<compile_context>
chip_gen: v7x
topology: tpu7x:2x2x1
jax: 0.10.0
libtpu: 0.0.40
codegen_flags: <defaults>
</compile_context>

<pallas_src>
import jax
import jax.numpy as jnp
from jax import lax
from jax.experimental import pallas as pl
from jax.experimental.pallas import tpu as pltpu

EPS = 1e-5
LANE = 128


def _ceil_to(n, m):
    return ((n + m - 1) // m) * m


def _instance_norm_relu(acc, inv_n):
    # One-pass InstanceNorm2d (affine=False, biased variance) + ReLU, f32 stats.
    s = jnp.sum(acc, axis=0, keepdims=True)
    ss = jnp.sum(acc * acc, axis=0, keepdims=True)
    mean = s * inv_n
    # Clamp: E[x^2] - E[x]^2 can cancel to a tiny negative in f32 -> NaN rsqrt.
    var = jnp.maximum(ss * inv_n - mean * mean, 0.0)
    return jnp.maximum((acc - mean) * lax.rsqrt(var + EPS), 0.0)


def _make_conv_block_kernel(H, W, Cin, CP):
    HW = H * W
    inv_hw = 1.0 / HW

    def fill_halo(xpad, interior, c):
        # Zero only the 1-pixel halo border. Column strips are 2 wide starting
        # at even offsets (0 and W) so they stay aligned to packed-bf16
        # sublane pairs; the extra interior column they touch is overwritten
        # by the interior store below.
        xpad[0:1, :, :] = jnp.zeros((1, W + 2, c), jnp.bfloat16)
        xpad[H + 1:H + 2, :, :] = jnp.zeros((1, W + 2, c), jnp.bfloat16)
        xpad[1:H + 1, 0:2, :] = jnp.zeros((H, 2, c), jnp.bfloat16)
        xpad[1:H + 1, W:W + 2, :] = jnp.zeros((H, 2, c), jnp.bfloat16)
        xpad[1:H + 1, 1:W + 1, :] = interior

    def conv3x3(xpad, w_ref, c):
        # 9 accumulating bf16 MXU matmuls into one f32 accumulator
        # (no materialized (HW, 9*C) im2col tensor).
        acc = jnp.zeros((HW, CP), jnp.float32)
        k = 0
        for dy in range(3):
            for dx in range(3):
                tap = xpad[dy:dy + H, dx:dx + W, :].reshape(HW, c)
                acc = acc + jnp.dot(tap, w_ref[k],
                                    preferred_element_type=jnp.float32)
                k += 1
        return acc

    def kernel(x_ref, w1_ref, w2_ref, wc1_ref, bc1_ref, wc2_ref, bc2_ref,
               ws_ref, bs_ref, out_ref, xpad1, xpad2):
        # ---- stage 1: conv3x3 -> InstanceNorm -> ReLU ----------------------
        # Conv bias omitted (cancelled by InstanceNorm mean); Dropout2d is
        # identity at inference.
        fill_halo(xpad1, x_ref[0], Cin)
        act1 = _instance_norm_relu(conv3x3(xpad1, w1_ref, Cin), inv_hw)

        # ---- stage 2: conv3x3 -> InstanceNorm -> ReLU ----------------------
        fill_halo(xpad2, act1.reshape(H, W, CP).astype(jnp.bfloat16), CP)
        act2 = _instance_norm_relu(conv3x3(xpad2, w2_ref, CP), inv_hw)

        # ---- scSE attention -------------------------------------------------
        # cSE: global average pool -> 1x1 -> ReLU -> 1x1 -> sigmoid (f32).
        pooled = jnp.sum(act2, axis=0, keepdims=True) * inv_hw          # (1, CP)
        hid = jnp.maximum(
            jnp.dot(pooled, wc1_ref[...],
                    preferred_element_type=jnp.float32) + bc1_ref[...], 0.0)
        yc = jax.nn.sigmoid(
            jnp.dot(hid, wc2_ref[...],
                    preferred_element_type=jnp.float32) + bc2_ref[...])  # (1, CP)
        # sSE: 1x1 conv to one channel = VPU multiply + lane reduction.
        s = jax.nn.sigmoid(
            jnp.sum(act2 * ws_ref[...], axis=-1, keepdims=True) + bs_ref[0])
        # act2 >= 0 post-ReLU, so max(act2*yc, act2*s) == act2 * max(yc, s):
        out_ref[0] = (act2 * jnp.maximum(yc, s)).astype(out_ref.dtype)

    return kernel


def conv_block_forward(x_nchw, p):
    N, Cin, H, W = x_nchw.shape
    C = p["w_conv1"].shape[-1]
    Cr = p["w_c1"].shape[-1]
    CP = max(LANE, _ceil_to(C, LANE))      # lane-dense internal channel count
    HW = H * W

    # NCHW -> NHWC; activations cross the pallas_call boundary in bf16.
    x = jnp.transpose(x_nchw, (0, 2, 3, 1)).astype(jnp.bfloat16)

    # Conv weights as per-tap (9, Cin, Cout) matrices, bf16, Cout (and conv2's
    # Cin) zero-padded to CP so every in-kernel tensor is 128-lane dense.
    w1 = jnp.pad(p["w_conv1"].reshape(9, Cin, C),
                 ((0, 0), (0, 0), (0, CP - C))).astype(jnp.bfloat16)
    w2 = jnp.pad(p["w_conv2"].reshape(9, C, C),
                 ((0, 0), (0, CP - C), (0, CP - C))).astype(jnp.bfloat16)

    wc1 = jnp.pad(p["w_c1"], ((0, CP - C), (0, 0)))                   # (CP, Cr)
    bc1 = p["b_c1"].reshape(1, Cr)
    wc2 = jnp.pad(p["w_c2"], ((0, 0), (0, CP - C)))                   # (Cr, CP)
    bc2 = jnp.pad(p["b_c2"], (0, CP - C)).reshape(1, CP)
    ws = jnp.pad(p["w_s"][:, 0], (0, CP - C)).reshape(1, CP)
    bs = p["b_s"].reshape(1)

    kernel = _make_conv_block_kernel(H, W, Cin, CP)

    out = pl.pallas_call(
        kernel,
        out_shape=jax.ShapeDtypeStruct((N, HW, CP), jnp.bfloat16),
        grid=(N,),
        in_specs=[
            pl.BlockSpec((1, H, W, Cin), lambda n: (n, 0, 0, 0)),
            pl.BlockSpec((9, Cin, CP), lambda n: (0, 0, 0)),
            pl.BlockSpec((9, CP, CP), lambda n: (0, 0, 0)),
            pl.BlockSpec((CP, Cr), lambda n: (0, 0)),
            pl.BlockSpec((1, Cr), lambda n: (0, 0)),
            pl.BlockSpec((Cr, CP), lambda n: (0, 0)),
            pl.BlockSpec((1, CP), lambda n: (0, 0)),
            pl.BlockSpec((1, CP), lambda n: (0, 0)),
            pl.BlockSpec(memory_space=pltpu.MemorySpace.SMEM),   # scalar bias
        ],
        out_specs=pl.BlockSpec((1, HW, CP), lambda n: (n, 0, 0)),
        scratch_shapes=[
            pltpu.VMEM((H + 2, W + 2, Cin), jnp.bfloat16),   # padded input
            pltpu.VMEM((H + 2, W + 2, CP), jnp.bfloat16),    # padded act1
        ],
        compiler_params=pltpu.CompilerParams(
            dimension_semantics=("parallel",),
            vmem_limit_bytes=32 * 1024 * 1024),
    )(x, w1, w2, wc1, bc1, wc2, bc2, ws, bs)

    out = out[:, :, :C].astype(jnp.float32).reshape(N, H, W, C)  # drop padding
    return jnp.transpose(out, (0, 3, 1, 2))                      # NHWC -> NCHW


# -----------------------------------------------------------------------------
# Pure-JAX reference (mirrors the kernel's bf16 conv-operand precision so the
# comparison only measures accumulation-order / one-pass-variance / bf16
# output quantization differences).
# -----------------------------------------------------------------------------
def conv_block_reference(x_nchw, p):
    x = jnp.transpose(x_nchw, (0, 2, 3, 1)).astype(jnp.float32)

    def stage(h, w, b):
        y = lax.conv_general_dilated(
            h.astype(jnp.bfloat16), w.astype(jnp.bfloat16),
            window_strides=(1, 1), padding="SAME",
            dimension_numbers=("NHWC", "HWIO", "NHWC"),
            preferred_element_type=jnp.float32) + b
        mean = y.mean(axis=(1, 2), keepdims=True)
        var = ((y - mean) ** 2).mean(axis=(1, 2), keepdims=True)
        return jnp.maximum((y - mean) * lax.rsqrt(var + EPS), 0.0)

    h = stage(x, p["w_conv1"], p["b_conv1"])
    h = stage(h, p["w_conv2"], p["b_conv2"])

    hp = lax.Precision.HIGHEST
    pooled = h.mean(axis=(1, 2), keepdims=True)
    hc = jnp.maximum(jnp.einsum("nhwc,cr->nhwr", pooled, p["w_c1"],
                                precision=hp) + p["b_c1"], 0.0)
    yc = jax.nn.sigmoid(jnp.einsum("nhwr,rc->nhwc", hc, p["w_c2"],
                                   precision=hp) + p["b_c2"])
    y1 = h * yc
    s = jax.nn.sigmoid(jnp.einsum("nhwc,co->nhwo", h, p["w_s"],
                                  precision=hp) + p["b_s"])
    y2 = h * s
    return jnp.transpose(jnp.maximum(y1, y2), (0, 3, 1, 2))


def init_params(key, in_chans, out_chans, reduction):
    ks = jax.random.split(key, 10)
    cr = out_chans // reduction
    scale = 0.1
    return {
        "w_conv1": scale * jax.random.normal(ks[0], (3, 3, in_chans, out_chans), jnp.float32),
        "b_conv1": scale * jax.random.normal(ks[1], (out_chans,), jnp.float32),
        "w_conv2": scale * jax.random.normal(ks[2], (3, 3, out_chans, out_chans), jnp.float32),
        "b_conv2": scale * jax.random.normal(ks[3], (out_chans,), jnp.float32),
        # cSE 1x1 convs stored as (Cin, Cout) matrices
        "w_c1": scale * jax.random.normal(ks[4], (out_chans, cr), jnp.float32),
        "b_c1": scale * jax.random.normal(ks[5], (cr,), jnp.float32),
        "w_c2": scale * jax.random.normal(ks[6], (cr, out_chans), jnp.float32),
        "b_c2": scale * jax.random.normal(ks[7], (out_chans,), jnp.float32),
        # sSE 1x1 conv: C -> 1
        "w_s": scale * jax.random.normal(ks[8], (out_chans, 1), jnp.float32),
        "b_s": scale * jax.random.normal(ks[9], (1,), jnp.float32),
    }


if __name__ == "__main__":
    key = jax.random.PRNGKey(0)
    k_x, k_p = jax.random.split(key)

    batch, in_chans, out_chans, H, W = 2, 4, 8, 16, 16
    reduction = 4  # out_chans // reduction must be >= 1

    x = jax.random.normal(k_x, (batch, in_chans, H, W), jnp.float32)  # NCHW
    params = init_params(k_p, in_chans, out_chans, reduction)

    out = jax.block_until_ready(jax.jit(conv_block_forward)(x, params))
    ref = jax.block_until_ready(conv_block_reference(x, params))

    assert out.shape == (batch, out_chans, H, W)
    # Tolerance set by bf16 conv operands (mirrored in the reference) plus the
    # bf16 output quantization; remainder is f32 accumulation-order /
    # one-pass-variance noise.
    assert jnp.allclose(out, ref, rtol=2e-2, atol=2e-2), "mismatch vs reference"

    print("KERNEL_OK")
</pallas_src>

<mosaic_0001>
module attributes {stable_mosaic.version = 11 : i64} {
  func.func @kernel(%arg0: i32, %arg1: memref<1x16x16x4xbf16, #tpu.memory_space<vmem>>, %arg2: memref<9x4x128xbf16, #tpu.memory_space<vmem>>, %arg3: memref<9x128x128xbf16, #tpu.memory_space<vmem>>, %arg4: memref<128x2xf32, #tpu.memory_space<vmem>>, %arg5: memref<1x2xf32, #tpu.memory_space<vmem>>, %arg6: memref<2x128xf32, #tpu.memory_space<vmem>>, %arg7: memref<1x128xf32, #tpu.memory_space<vmem>>, %arg8: memref<1x128xf32, #tpu.memory_space<vmem>>, %arg9: memref<1xf32, #tpu.memory_space<smem>>, %arg10: memref<1x256x128xbf16, #tpu.memory_space<vmem>>, %arg11: memref<18x18x4xbf16, #tpu.memory_space<vmem>>, %arg12: memref<18x18x128xbf16, #tpu.memory_space<vmem>>) attributes {dimension_semantics = [#tpu.dimension_semantics<parallel>], iteration_bounds = array<i64: 2>, scalar_prefetch = 0 : i64, scratch_operands = 2 : i64, tpu.core_type = #tpu.core_type<tc>, window_params = [{transform_indices = @transform_0, window_bounds = array<i64: 1, 16, 16, 4>}, {pipeline_mode = #tpu.pipeline_mode<synchronous>, transform_indices = @transform_1, window_bounds = array<i64: 9, 4, 128>}, {pipeline_mode = #tpu.pipeline_mode<synchronous>, transform_indices = @transform_2, window_bounds = array<i64: 9, 128, 128>}, {pipeline_mode = #tpu.pipeline_mode<synchronous>, transform_indices = @transform_3, window_bounds = array<i64: 128, 2>}, {pipeline_mode = #tpu.pipeline_mode<synchronous>, transform_indices = @transform_4, window_bounds = array<i64: 1, 2>}, {pipeline_mode = #tpu.pipeline_mode<synchronous>, transform_indices = @transform_5, window_bounds = array<i64: 2, 128>}, {pipeline_mode = #tpu.pipeline_mode<synchronous>, transform_indices = @transform_6, window_bounds = array<i64: 1, 128>}, {pipeline_mode = #tpu.pipeline_mode<synchronous>, transform_indices = @transform_7, window_bounds = array<i64: 1, 128>}, {transform_indices = @transform_8, window_bounds = array<i64: 1>}, {transform_indices = @transform_9, window_bounds = array<i64: 1, 256, 128>}]} {
    %c0 = arith.constant 0 : index
    %c0_0 = arith.constant 0 : index
    %c0_1 = arith.constant 0 : index
    %c0_2 = arith.constant 0 : index
    %0 = vector.load %arg1[%c0, %c0_0, %c0_1, %c0_2] : memref<1x16x16x4xbf16, #tpu.memory_space<vmem>>, vector<1x16x16x4xbf16>
    %1 = vector.shape_cast %0 : vector<1x16x16x4xbf16> to vector<16x16x4xbf16>
    %cst = arith.constant 0.000000e+00 : bf16
    %2 = vector.broadcast %cst : bf16 to vector<1x18x4xbf16>
    %c0_3 = arith.constant 0 : index
    %c0_4 = arith.constant 0 : index
    %c0_5 = arith.constant 0 : index
    %3 = vector.load %arg11[%c0_3, %c0_4, %c0_5] : memref<18x18x4xbf16, #tpu.memory_space<vmem>>, vector<1x18x4xbf16>
    tpu.vector_store %arg11[%c0_3, %c0_4, %c0_5], %2 {strides = array<i32>} : memref<18x18x4xbf16, #tpu.memory_space<vmem>>, vector<1x18x4xbf16>,
    %cst_6 = arith.constant 0.000000e+00 : bf16
    %4 = vector.broadcast %cst_6 : bf16 to vector<1x18x4xbf16>
    %c17 = arith.constant 17 : index
    %c0_7 = arith.constant 0 : index
    %c0_8 = arith.constant 0 : index
    %5 = vector.load %arg11[%c17, %c0_7, %c0_8] : memref<18x18x4xbf16, #tpu.memory_space<vmem>>, vector<1x18x4xbf16>
    tpu.vector_store %arg11[%c17, %c0_7, %c0_8], %4 {strides = array<i32>} : memref<18x18x4xbf16, #tpu.memory_space<vmem>>, vector<1x18x4xbf16>,
    %cst_9 = arith.constant 0.000000e+00 : bf16
    %6 = vector.broadcast %cst_9 : bf16 to vector<16x2x4xbf16>
    %c1 = arith.constant 1 : index
    %c0_10 = arith.constant 0 : index
    %c0_11 = arith.constant 0 : index
    %7 = vector.load %arg11[%c1, %c0_10, %c0_11] : memref<18x18x4xbf16, #tpu.memory_space<vmem>>, vector<16x2x4xbf16>
    tpu.vector_store %arg11[%c1, %c0_10, %c0_11], %6 {strides = array<i32>} : memref<18x18x4xbf16, #tpu.memory_space<vmem>>, vector<16x2x4xbf16>,
    %cst_12 = arith.constant 0.000000e+00 : bf16
    %8 = vector.broadcast %cst_12 : bf16 to vector<16x2x4xbf16>
    %c1_13 = arith.constant 1 : index
    %c16 = arith.constant 16 : index
    %c0_14 = arith.constant 0 : index
    %9 = vector.load %arg11[%c1_13, %c16, %c0_14] : memref<18x18x4xbf16, #tpu.memory_space<vmem>>, vector<16x2x4xbf16>
    tpu.vector_store %arg11[%c1_13, %c16, %c0_14], %8 {strides = array<i32>} : memref<18x18x4xbf16, #tpu.memory_space<vmem>>, vector<16x2x4xbf16>,
    %c1_15 = arith.constant 1 : index
    %c1_16 = arith.constant 1 : index
    %c0_17 = arith.constant 0 : index
    %10 = vector.load %arg11[%c1_15, %c1_16, %c0_17] : memref<18x18x4xbf16, #tpu.memory_space<vmem>>, vector<16x16x4xbf16>
    tpu.vector_store %arg11[%c1_15, %c1_16, %c0_17], %1 {strides = array<i32>} : memref<18x18x4xbf16, #tpu.memory_space<vmem>>, vector<16x16x4xbf16>,
    %cst_18 = arith.constant 0.000000e+00 : f32
    %11 = vector.broadcast %cst_18 : f32 to vector<256x128xf32>
    %c0_19 = arith.constant 0 : index
    %c0_20 = arith.constant 0 : index
    %c0_21 = arith.constant 0 : index
    %12 = vector.load %arg11[%c0_19, %c0_20, %c0_21] : memref<18x18x4xbf16, #tpu.memory_space<vmem>>, vector<16x16x4xbf16>
    %13 = vector.shape_cast %12 : vector<16x16x4xbf16> to vector<256x4xbf16>
    %c0_22 = arith.constant 0 : index
    %c0_23 = arith.constant 0 : index
    %c0_24 = arith.constant 0 : index
    %14 = vector.load %arg2[%c0_22, %c0_23, %c0_24] : memref<9x4x128xbf16, #tpu.memory_space<vmem>>, vector<1x4x128xbf16>
    %15 = vector.shape_cast %14 : vector<1x4x128xbf16> to vector<4x128xbf16>
    %cst_25 = arith.constant dense<0.000000e+00> : vector<256x128xf32>
    %16 = tpu.matmul %13, %15, %cst_25 {dimension_numbers = #tpu.dot_dimension_numbers<[1], [0], [0], [1], [0, 0, 1, 1], [], []>} : vector<256x4xbf16>, vector<4x128xbf16>, vector<256x128xf32> -> vector<256x128xf32>
    %17 = arith.addf %11, %16 : vector<256x128xf32>
    %c0_26 = arith.constant 0 : index
    %c1_27 = arith.constant 1 : index
    %c0_28 = arith.constant 0 : index
    %18 = vector.load %arg11[%c0_26, %c1_27, %c0_28] : memref<18x18x4xbf16, #tpu.memory_space<vmem>>, vector<16x16x4xbf16>
    %19 = vector.shape_cast %18 : vector<16x16x4xbf16> to vector<256x4xbf16>
    %c1_29 = arith.constant 1 : index
    %c0_30 = arith.constant 0 : index
    %c0_31 = arith.constant 0 : index
    %20 = vector.load %arg2[%c1_29, %c0_30, %c0_31] : memref<9x4x128xbf16, #tpu.memory_space<vmem>>, vector<1x4x128xbf16>
    %21 = vector.shape_cast %20 : vector<1x4x128xbf16> to vector<4x128xbf16>
    %cst_32 = arith.constant dense<0.000000e+00> : vector<256x128xf32>
    %22 = tpu.matmul %19, %21, %cst_32 {dimension_numbers = #tpu.dot_dimension_numbers<[1], [0], [0], [1], [0, 0, 1, 1], [], []>} : vector<256x4xbf16>, vector<4x128xbf16>, vector<256x128xf32> -> vector<256x128xf32>
    %23 = arith.addf %17, %22 : vector<256x128xf32>
    %c0_33 = arith.constant 0 : index
    %c2 = arith.constant 2 : index
    %c0_34 = arith.constant 0 : index
    %24 = vector.load %arg11[%c0_33, %c2, %c0_34] : memref<18x18x4xbf16, #tpu.memory_space<vmem>>, vector<16x16x4xbf16>
    %25 = vector.shape_cast %24 : vector<16x16x4xbf16> to vector<256x4xbf16>
    %c2_35 = arith.constant 2 : index
    %c0_36 = arith.constant 0 : index
    %c0_37 = arith.constant 0 : index
    %26 = vector.load %arg2[%c2_35, %c0_36, %c0_37] : memref<9x4x128xbf16, #tpu.memory_space<vmem>>, vector<1x4x128xbf16>
    %27 = vector.shape_cast %26 : vector<1x4x128xbf16> to vector<4x128xbf16>
    %cst_38 = arith.constant dense<0.000000e+00> : vector<256x128xf32>
    %28 = tpu.matmul %25, %27, %cst_38 {dimension_numbers = #tpu.dot_dimension_numbers<[1], [0], [0], [1], [0, 0, 1, 1], [], []>} : vector<256x4xbf16>, vector<4x128xbf16>, vector<256x128xf32> -> vector<256x128xf32>
    %29 = arith.addf %23, %28 : vector<256x128xf32>
    %c1_39 = arith.constant 1 : index
    %c0_40 = arith.constant 0 : index
    %c0_41 = arith.constant 0 : index
    %30 = vector.load %arg11[%c1_39, %c0_40, %c0_41] : memref<18x18x4xbf16, #tpu.memory_space<vmem>>, vector<16x16x4xbf16>
    %31 = vector.shape_cast %30 : vector<16x16x4xbf16> to vector<256x4xbf16>
    %c3 = arith.constant 3 : index
    %c0_42 = arith.constant 0 : index
    %c0_43 = arith.constant 0 : index
    %32 = vector.load %arg2[%c3, %c0_42, %c0_43] : memref<9x4x128xbf16, #tpu.memory_space<vmem>>, vector<1x4x128xbf16>
    %33 = vector.shape_cast %32 : vector<1x4x128xbf16> to vector<4x128xbf16>
    %cst_44 = arith.constant dense<0.000000e+00> : vector<256x128xf32>
    %34 = tpu.matmul %31, %33, %cst_44 {dimension_numbers = #tpu.dot_dimension_numbers<[1], [0], [0], [1], [0, 0, 1, 1], [], []>} : vector<256x4xbf16>, vector<4x128xbf16>, vector<256x128xf32> -> vector<256x128xf32>
    %35 = arith.addf %29, %34 : vector<256x128xf32>
    %c1_45 = arith.constant 1 : index
    %c1_46 = arith.constant 1 : index
    %c0_47 = arith.constant 0 : index
    %36 = vector.load %arg11[%c1_45, %c1_46, %c0_47] : memref<18x18x4xbf16, #tpu.memory_space<vmem>>, vector<16x16x4xbf16>
    %37 = vector.shape_cast %36 : vector<16x16x4xbf16> to vector<256x4xbf16>
    %c4 = arith.constant 4 : index
    %c0_48 = arith.constant 0 : index
    %c0_49 = arith.constant 0 : index
    %38 = vector.load %arg2[%c4, %c0_48, %c0_49] : memref<9x4x128xbf16, #tpu.memory_space<vmem>>, vector<1x4x128xbf16>
    %39 = vector.shape_cast %38 : vector<1x4x128xbf16> to vector<4x128xbf16>
    %cst_50 = arith.constant dense<0.000000e+00> : vector<256x128xf32>
    %40 = tpu.matmul %37, %39, %cst_50 {dimension_numbers = #tpu.dot_dimension_numbers<[1], [0], [0], [1], [0, 0, 1, 1], [], []>} : vector<256x4xbf16>, vector<4x128xbf16>, vector<256x128xf32> -> vector<256x128xf32>
    %41 = arith.addf %35, %40 : vector<256x128xf32>
    %c1_51 = arith.constant 1 : index
    %c2_52 = arith.constant 2 : index
    %c0_53 = arith.constant 0 : index
    %42 = vector.load %arg11[%c1_51, %c2_52, %c0_53] : memref<18x18x4xbf16, #tpu.memory_space<vmem>>, vector<16x16x4xbf16>
    %43 = vector.shape_cast %42 : vector<16x16x4xbf16> to vector<256x4xbf16>
    %c5 = arith.constant 5 : index
    %c0_54 = arith.constant 0 : index
    %c0_55 = arith.constant 0 : index
    %44 = vector.load %arg2[%c5, %c0_54, %c0_55] : memref<9x4x128xbf16, #tpu.memory_space<vmem>>, vector<1x4x128xbf16>
    %45 = vector.shape_cast %44 : vector<1x4x128xbf16> to vector<4x128xbf16>
    %cst_56 = arith.constant dense<0.000000e+00> : vector<256x128xf32>
    %46 = tpu.matmul %43, %45, %cst_56 {dimension_numbers = #tpu.dot_dimension_numbers<[1], [0], [0], [1], [0, 0, 1, 1], [], []>} : vector<256x4xbf16>, vector<4x128xbf16>, vector<256x128xf32> -> vector<256x128xf32>
    %47 = arith.addf %41, %46 : vector<256x128xf32>
    %c2_57 = arith.constant 2 : index
    %c0_58 = arith.constant 0 : index
    %c0_59 = arith.constant 0 : index
    %48 = vector.load %arg11[%c2_57, %c0_58, %c0_59] : memref<18x18x4xbf16, #tpu.memory_space<vmem>>, vector<16x16x4xbf16>
    %49 = vector.shape_cast %48 : vector<16x16x4xbf16> to vector<256x4xbf16>
    %c6 = arith.constant 6 : index
    %c0_60 = arith.constant 0 : index
    %c0_61 = arith.constant 0 : index
    %50 = vector.load %arg2[%c6, %c0_60, %c0_61] : memref<9x4x128xbf16, #tpu.memory_space<vmem>>, vector<1x4x128xbf16>
    %51 = vector.shape_cast %50 : vector<1x4x128xbf16> to vector<4x128xbf16>
    %cst_62 = arith.constant dense<0.000000e+00> : vector<256x128xf32>
    %52 = tpu.matmul %49, %51, %cst_62 {dimension_numbers = #tpu.dot_dimension_numbers<[1], [0], [0], [1], [0, 0, 1, 1], [], []>} : vector<256x4xbf16>, vector<4x128xbf16>, vector<256x128xf32> -> vector<256x128xf32>
    %53 = arith.addf %47, %52 : vector<256x128xf32>
    %c2_63 = arith.constant 2 : index
    %c1_64 = arith.constant 1 : index
    %c0_65 = arith.constant 0 : index
    %54 = vector.load %arg11[%c2_63, %c1_64, %c0_65] : memref<18x18x4xbf16, #tpu.memory_space<vmem>>, vector<16x16x4xbf16>
    %55 = vector.shape_cast %54 : vector<16x16x4xbf16> to vector<256x4xbf16>
    %c7 = arith.constant 7 : index
    %c0_66 = arith.constant 0 : index
    %c0_67 = arith.constant 0 : index
    %56 = vector.load %arg2[%c7, %c0_66, %c0_67] : memref<9x4x128xbf16, #tpu.memory_space<vmem>>, vector<1x4x128xbf16>
    %57 = vector.shape_cast %56 : vector<1x4x128xbf16> to vector<4x128xbf16>
    %cst_68 = arith.constant dense<0.000000e+00> : vector<256x128xf32>
    %58 = tpu.matmul %55, %57, %cst_68 {dimension_numbers = #tpu.dot_dimension_numbers<[1], [0], [0], [1], [0, 0, 1, 1], [], []>} : vector<256x4xbf16>, vector<4x128xbf16>, vector<256x128xf32> -> vector<256x128xf32>
    %59 = arith.addf %53, %58 : vector<256x128xf32>
    %c2_69 = arith.constant 2 : index
    %c2_70 = arith.constant 2 : index
    %c0_71 = arith.constant 0 : index
    %60 = vector.load %arg11[%c2_69, %c2_70, %c0_71] : memref<18x18x4xbf16, #tpu.memory_space<vmem>>, vector<16x16x4xbf16>
    %61 = vector.shape_cast %60 : vector<16x16x4xbf16> to vector<256x4xbf16>
    %c8 = arith.constant 8 : index
    %c0_72 = arith.constant 0 : index
    %c0_73 = arith.constant 0 : index
    %62 = vector.load %arg2[%c8, %c0_72, %c0_73] : memref<9x4x128xbf16, #tpu.memory_space<vmem>>, vector<1x4x128xbf16>
    %63 = vector.shape_cast %62 : vector<1x4x128xbf16> to vector<4x128xbf16>
    %cst_74 = arith.constant dense<0.000000e+00> : vector<256x128xf32>
    %64 = tpu.matmul %61, %63, %cst_74 {dimension_numbers = #tpu.dot_dimension_numbers<[1], [0], [0], [1], [0, 0, 1, 1], [], []>} : vector<256x4xbf16>, vector<4x128xbf16>, vector<256x128xf32> -> vector<256x128xf32>
    %65 = arith.addf %59, %64 : vector<256x128xf32>
    %cst_75 = arith.constant dense<0.000000e+00> : vector<128xf32>
    %66 = vector.multi_reduction <add>, %65, %cst_75 [0] : vector<256x128xf32> to vector<128xf32>
    %67 = vector.shape_cast %66 : vector<128xf32> to vector<1x128xf32>
    %68 = arith.mulf %65, %65 : vector<256x128xf32>
    %cst_76 = arith.constant dense<0.000000e+00> : vector<128xf32>
    %69 = vector.multi_reduction <add>, %68, %cst_76 [0] : vector<256x128xf32> to vector<128xf32>
    %70 = vector.shape_cast %69 : vector<128xf32> to vector<1x128xf32>
    %cst_77 = arith.constant 3.906250e-03 : f32
    %71 = vector.broadcast %cst_77 : f32 to vector<1x128xf32>
    %72 = arith.mulf %67, %71 : vector<1x128xf32>
    %cst_78 = arith.constant 3.906250e-03 : f32
    %73 = vector.broadcast %cst_78 : f32 to vector<1x128xf32>
    %74 = arith.mulf %70, %73 : vector<1x128xf32>
    %75 = arith.mulf %72, %72 : vector<1x128xf32>
    %76 = arith.subf %74, %75 : vector<1x128xf32>
    %cst_79 = arith.constant 0.000000e+00 : f32
    %77 = vector.broadcast %cst_79 : f32 to vector<1x128xf32>
    %78 = arith.maximumf %76, %77 : vector<1x128xf32>
    %79 = vector.broadcast %72 : vector<1x128xf32> to vector<256x128xf32>
    %80 = arith.subf %65, %79 : vector<256x128xf32>
    %cst_80 = arith.constant 9.99999974E-6 : f32
    %81 = vector.broadcast %cst_80 : f32 to vector<1x128xf32>
    %82 = arith.addf %78, %81 : vector<1x128xf32>
    %83 = math.rsqrt %82 : vector<1x128xf32>
    %84 = vector.broadcast %83 : vector<1x128xf32> to vector<256x128xf32>
    %85 = arith.mulf %80, %84 : vector<256x128xf32>
    %cst_81 = arith.constant 0.000000e+00 : f32
    %86 = vector.broadcast %cst_81 : f32 to vector<256x128xf32>
    %87 = arith.maximumf %85, %86 : vector<256x128xf32>
    %88 = vector.shape_cast %87 : vector<256x128xf32> to vector<16x16x128xf32>
    %89 = arith.truncf %88 : vector<16x16x128xf32> to vector<16x16x128xbf16>
    %cst_82 = arith.constant 0.000000e+00 : bf16
    %90 = vector.broadcast %cst_82 : bf16 to vector<1x18x128xbf16>
    %c0_83 = arith.constant 0 : index
    %c0_84 = arith.constant 0 : index
    %c0_85 = arith.constant 0 : index
    %91 = vector.load %arg12[%c0_83, %c0_84, %c0_85] : memref<18x18x128xbf16, #tpu.memory_space<vmem>>, vector<1x18x128xbf16>
    tpu.vector_store %arg12[%c0_83, %c0_84, %c0_85], %90 {strides = array<i32>} : memref<18x18x128xbf16, #tpu.memory_space<vmem>>, vector<1x18x128xbf16>,
    %cst_86 = arith.constant 0.000000e+00 : bf16
    %92 = vector.broadcast %cst_86 : bf16 to vector<1x18x128xbf16>
    %c17_87 = arith.constant 17 : index
    %c0_88 = arith.constant 0 : index
    %c0_89 = arith.constant 0 : index
    %93 = vector.load %arg12[%c17_87, %c0_88, %c0_89] : memref<18x18x128xbf16, #tpu.memory_space<vmem>>, vector<1x18x128xbf16>
    tpu.vector_store %arg12[%c17_87, %c0_88, %c0_89], %92 {strides = array<i32>} : memref<18x18x128xbf16, #tpu.memory_space<vmem>>, vector<1x18x128xbf16>,
    %cst_90 = arith.constant 0.000000e+00 : bf16
    %94 = vector.broadcast %cst_90 : bf16 to vector<16x2x128xbf16>
    %c1_91 = arith.constant 1 : index
    %c0_92 = arith.constant 0 : index
    %c0_93 = arith.constant 0 : index
    %95 = vector.load %arg12[%c1_91, %c0_92, %c0_93] : memref<18x18x128xbf16, #tpu.memory_space<vmem>>, vector<16x2x128xbf16>
    tpu.vector_store %arg12[%c1_91, %c0_92, %c0_93], %94 {strides = array<i32>} : memref<18x18x128xbf16, #tpu.memory_space<vmem>>, vector<16x2x128xbf16>,
    %cst_94 = arith.constant 0.000000e+00 : bf16
    %96 = vector.broadcast %cst_94 : bf16 to vector<16x2x128xbf16>
    %c1_95 = arith.constant 1 : index
    %c16_96 = arith.constant 16 : index
    %c0_97 = arith.constant 0 : index
    %97 = vector.load %arg12[%c1_95, %c16_96, %c0_97] : memref<18x18x128xbf16, #tpu.memory_space<vmem>>, vector<16x2x128xbf16>
    tpu.vector_store %arg12[%c1_95, %c16_96, %c0_97], %96 {strides = array<i32>} : memref<18x18x128xbf16, #tpu.memory_space<vmem>>, vector<16x2x128xbf16>,
    %c1_98 = arith.constant 1 : index
    %c1_99 = arith.constant 1 : index
    %c0_100 = arith.constant 0 : index
    %98 = vector.load %arg12[%c1_98, %c1_99, %c0_100] : memref<18x18x128xbf16, #tpu.memory_space<vmem>>, vector<16x16x128xbf16>
    tpu.vector_store %arg12[%c1_98, %c1_99, %c0_100], %89 {strides = array<i32>} : memref<18x18x128xbf16, #tpu.memory_space<vmem>>, vector<16x16x128xbf16>,
    %cst_101 = arith.constant 0.000000e+00 : f32
    %99 = vector.broadcast %cst_101 : f32 to vector<256x128xf32>
    %c0_102 = arith.constant 0 : index
    %c0_103 = arith.constant 0 : index
    %c0_104 = arith.constant 0 : index
    %100 = vector.load %arg12[%c0_102, %c0_103, %c0_104] : memref<18x18x128xbf16, #tpu.memory_space<vmem>>, vector<16x16x128xbf16>
    %101 = vector.shape_cast %100 : vector<16x16x128xbf16> to vector<256x128xbf16>
    %c0_105 = arith.constant 0 : index
    %c0_106 = arith.constant 0 : index
    %c0_107 = arith.constant 0 : index
    %102 = vector.load %arg3[%c0_105, %c0_106, %c0_107] : memref<9x128x128xbf16, #tpu.memory_space<vmem>>, vector<1x128x128xbf16>
    %103 = vector.shape_cast %102 : vector<1x128x128xbf16> to vector<128x128xbf16>
    %cst_108 = arith.constant dense<0.000000e+00> : vector<256x128xf32>
    %104 = tpu.matmul %101, %103, %cst_108 {dimension_numbers = #tpu.dot_dimension_numbers<[1], [0], [0], [1], [0, 0, 1, 1], [], []>} : vector<256x128xbf16>, vector<128x128xbf16>, vector<256x128xf32> -> vector<256x128xf32>
    %105 = arith.addf %99, %104 : vector<256x128xf32>
    %c0_109 = arith.constant 0 : index
    %c1_110 = arith.constant 1 : index
    %c0_111 = arith.constant 0 : index
    %106 = vector.load %arg12[%c0_109, %c1_110, %c0_111] : memref<18x18x128xbf16, #tpu.memory_space<vmem>>, vector<16x16x128xbf16>
    %107 = vector.shape_cast %106 : vector<16x16x128xbf16> to vector<256x128xbf16>
    %c1_112 = arith.constant 1 : index
    %c0_113 = arith.constant 0 : index
    %c0_114 = arith.constant 0 : index
    %108 = vector.load %arg3[%c1_112, %c0_113, %c0_114] : memref<9x128x128xbf16, #tpu.memory_space<vmem>>, vector<1x128x128xbf16>
    %109 = vector.shape_cast %108 : vector<1x128x128xbf16> to vector<128x128xbf16>
    %cst_115 = arith.constant dense<0.000000e+00> : vector<256x128xf32>
    %110 = tpu.matmul %107, %109, %cst_115 {dimension_numbers = #tpu.dot_dimension_numbers<[1], [0], [0], [1], [0, 0, 1, 1], [], []>} : vector<256x128xbf16>, vector<128x128xbf16>, vector<256x128xf32> -> vector<256x128xf32>
    %111 = arith.addf %105, %110 : vector<256x128xf32>
    %c0_116 = arith.constant 0 : index
    %c2_117 = arith.constant 2 : index
    %c0_118 = arith.constant 0 : index
    %112 = vector.load %arg12[%c0_116, %c2_117, %c0_118] : memref<18x18x128xbf16, #tpu.memory_space<vmem>>, vector<16x16x128xbf16>
    %113 = vector.shape_cast %112 : vector<16x16x128xbf16> to vector<256x128xbf16>
    %c2_119 = arith.constant 2 : index
    %c0_120 = arith.constant 0 : index
    %c0_121 = arith.constant 0 : index
    %114 = vector.load %arg3[%c2_119, %c0_120, %c0_121] : memref<9x128x128xbf16, #tpu.memory_space<vmem>>, vector<1x128x128xbf16>
    %115 = vector.shape_cast %114 : vector<1x128x128xbf16> to vector<128x128xbf16>
    %cst_122 = arith.constant dense<0.000000e+00> : vector<256x128xf32>
    %116 = tpu.matmul %113, %115, %cst_122 {dimension_numbers = #tpu.dot_dimension_numbers<[1], [0], [0], [1], [0, 0, 1, 1], [], []>} : vector<256x128xbf16>, vector<128x128xbf16>, vector<256x128xf32> -> vector<256x128xf32>
    %117 = arith.addf %111, %116 : vector<256x128xf32>
    %c1_123 = arith.constant 1 : index
    %c0_124 = arith.constant 0 : index
    %c0_125 = arith.constant 0 : index
    %118 = vector.load %arg12[%c1_123, %c0_124, %c0_125] : memref<18x18x128xbf16, #tpu.memory_space<vmem>>, vector<16x16x128xbf16>
    %119 = vector.shape_cast %118 : vector<16x16x128xbf16> to vector<256x128xbf16>
    %c3_126 = arith.constant 3 : index
    %c0_127 = arith.constant 0 : index
    %c0_128 = arith.constant 0 : index
    %120 = vector.load %arg3[%c3_126, %c0_127, %c0_128] : memref<9x128x128xbf16, #tpu.memory_space<vmem>>, vector<1x128x128xbf16>
    %121 = vector.shape_cast %120 : vector<1x128x128xbf16> to vector<128x128xbf16>
    %cst_129 = arith.constant dense<0.000000e+00> : vector<256x128xf32>
    %122 = tpu.matmul %119, %121, %cst_129 {dimension_numbers = #tpu.dot_dimension_numbers<[1], [0], [0], [1], [0, 0, 1, 1], [], []>} : vector<256x128xbf16>, vector<128x128xbf16>, vector<256x128xf32> -> vector<256x128xf32>
    %123 = arith.addf %117, %122 : vector<256x128xf32>
    %c1_130 = arith.constant 1 : index
    %c1_131 = arith.constant 1 : index
    %c0_132 = arith.constant 0 : index
    %124 = vector.load %arg12[%c1_130, %c1_131, %c0_132] : memref<18x18x128xbf16, #tpu.memory_space<vmem>>, vector<16x16x128xbf16>
    %125 = vector.shape_cast %124 : vector<16x16x128xbf16> to vector<256x128xbf16>
    %c4_133 = arith.constant 4 : index
    %c0_134 = arith.constant 0 : index
    %c0_135 = arith.constant 0 : index
    %126 = vector.load %arg3[%c4_133, %c0_134, %c0_135] : memref<9x128x128xbf16, #tpu.memory_space<vmem>>, vector<1x128x128xbf16>
    %127 = vector.shape_cast %126 : vector<1x128x128xbf16> to vector<128x128xbf16>
    %cst_136 = arith.constant dense<0.000000e+00> : vector<256x128xf32>
    %128 = tpu.matmul %125, %127, %cst_136 {dimension_numbers = #tpu.dot_dimension_numbers<[1], [0], [0], [1], [0, 0, 1, 1], [], []>} : vector<256x128xbf16>, vector<128x128xbf16>, vector<256x128xf32> -> vector<256x128xf32>
    %129 = arith.addf %123, %128 : vector<256x128xf32>
    %c1_137 = arith.constant 1 : index
    %c2_138 = arith.constant 2 : index
    %c0_139 = arith.constant 0 : index
    %130 = vector.load %arg12[%c1_137, %c2_138, %c0_139] : memref<18x18x128xbf16, #tpu.memory_space<vmem>>, vector<16x16x128xbf16>
    %131 = vector.shape_cast %130 : vector<16x16x128xbf16> to vector<256x128xbf16>
    %c5_140 = arith.constant 5 : index
    %c0_141 = arith.constant 0 : index
    %c0_142 = arith.constant 0 : index
    %132 = vector.load %arg3[%c5_140, %c0_141, %c0_142] : memref<9x128x128xbf16, #tpu.memory_space<vmem>>, vector<1x128x128xbf16>
    %133 = vector.shape_cast %132 : vector<1x128x128xbf16> to vector<128x128xbf16>
    %cst_143 = arith.constant dense<0.000000e+00> : vector<256x128xf32>
    %134 = tpu.matmul %131, %133, %cst_143 {dimension_numbers = #tpu.dot_dimension_numbers<[1], [0], [0], [1], [0, 0, 1, 1], [], []>} : vector<256x128xbf16>, vector<128x128xbf16>, vector<256x128xf32> -> vector<256x128xf32>
    %135 = arith.addf %129, %134 : vector<256x128xf32>
    %c2_144 = arith.constant 2 : index
    %c0_145 = arith.constant 0 : index
    %c0_146 = arith.constant 0 : index
    %136 = vector.load %arg12[%c2_144, %c0_145, %c0_146] : memref<18x18x128xbf16, #tpu.memory_space<vmem>>, vector<16x16x128xbf16>
    %137 = vector.shape_cast %136 : vector<16x16x128xbf16> to vector<256x128xbf16>
    %c6_147 = arith.constant 6 : index
    %c0_148 = arith.constant 0 : index
    %c0_149 = arith.constant 0 : index
    %138 = vector.load %arg3[%c6_147, %c0_148, %c0_149] : memref<9x128x128xbf16, #tpu.memory_space<vmem>>, vector<1x128x128xbf16>
    %139 = vector.shape_cast %138 : vector<1x128x128xbf16> to vector<128x128xbf16>
    %cst_150 = arith.constant dense<0.000000e+00> : vector<256x128xf32>
    %140 = tpu.matmul %137, %139, %cst_150 {dimension_numbers = #tpu.dot_dimension_numbers<[1], [0], [0], [1], [0, 0, 1, 1], [], []>} : vector<256x128xbf16>, vector<128x128xbf16>, vector<256x128xf32> -> vector<256x128xf32>
    %141 = arith.addf %135, %140 : vector<256x128xf32>
    %c2_151 = arith.constant 2 : index
    %c1_152 = arith.constant 1 : index
    %c0_153 = arith.constant 0 : index
    %142 = vector.load %arg12[%c2_151, %c1_152, %c0_153] : memref<18x18x128xbf16, #tpu.memory_space<vmem>>, vector<16x16x128xbf16>
    %143 = vector.shape_cast %142 : vector<16x16x128xbf16> to vector<256x128xbf16>
    %c7_154 = arith.constant 7 : index
    %c0_155 = arith.constant 0 : index
    %c0_156 = arith.constant 0 : index
    %144 = vector.load %arg3[%c7_154, %c0_155, %c0_156] : memref<9x128x128xbf16, #tpu.memory_space<vmem>>, vector<1x128x128xbf16>
    %145 = vector.shape_cast %144 : vector<1x128x128xbf16> to vector<128x128xbf16>
    %cst_157 = arith.constant dense<0.000000e+00> : vector<256x128xf32>
    %146 = tpu.matmul %143, %145, %cst_157 {dimension_numbers = #tpu.dot_dimension_numbers<[1], [0], [0], [1], [0, 0, 1, 1], [], []>} : vector<256x128xbf16>, vector<128x128xbf16>, vector<256x128xf32> -> vector<256x128xf32>
    %147 = arith.addf %141, %146 : vector<256x128xf32>
    %c2_158 = arith.constant 2 : index
    %c2_159 = arith.constant 2 : index
    %c0_160 = arith.constant 0 : index
    %148 = vector.load %arg12[%c2_158, %c2_159, %c0_160] : memref<18x18x128xbf16, #tpu.memory_space<vmem>>, vector<16x16x128xbf16>
    %149 = vector.shape_cast %148 : vector<16x16x128xbf16> to vector<256x128xbf16>
    %c8_161 = arith.constant 8 : index
    %c0_162 = arith.constant 0 : index
    %c0_163 = arith.constant 0 : index
    %150 = vector.load %arg3[%c8_161, %c0_162, %c0_163] : memref<9x128x128xbf16, #tpu.memory_space<vmem>>, vector<1x128x128xbf16>
    %151 = vector.shape_cast %150 : vector<1x128x128xbf16> to vector<128x128xbf16>
    %cst_164 = arith.constant dense<0.000000e+00> : vector<256x128xf32>
    %152 = tpu.matmul %149, %151, %cst_164 {dimension_numbers = #tpu.dot_dimension_numbers<[1], [0], [0], [1], [0, 0, 1, 1], [], []>} : vector<256x128xbf16>, vector<128x128xbf16>, vector<256x128xf32> -> vector<256x128xf32>
    %153 = arith.addf %147, %152 : vector<256x128xf32>
    %cst_165 = arith.constant dense<0.000000e+00> : vector<128xf32>
    %154 = vector.multi_reduction <add>, %153, %cst_165 [0] : vector<256x128xf32> to vector<128xf32>
    %155 = vector.shape_cast %154 : vector<128xf32> to vector<1x128xf32>
    %156 = arith.mulf %153, %153 : vector<256x128xf32>
    %cst_166 = arith.constant dense<0.000000e+00> : vector<128xf32>
    %157 = vector.multi_reduction <add>, %156, %cst_166 [0] : vector<256x128xf32> to vector<128xf32>
    %158 = vector.shape_cast %157 : vector<128xf32> to vector<1x128xf32>
    %cst_167 = arith.constant 3.906250e-03 : f32
    %159 = vector.broadcast %cst_167 : f32 to vector<1x128xf32>
    %160 = arith.mulf %155, %159 : vector<1x128xf32>
    %cst_168 = arith.constant 3.906250e-03 : f32
    %161 = vector.broadcast %cst_168 : f32 to vector<1x128xf32>
    %162 = arith.mulf %158, %161 : vector<1x128xf32>
    %163 = arith.mulf %160, %160 : vector<1x128xf32>
    %164 = arith.subf %162, %163 : vector<1x128xf32>
    %cst_169 = arith.constant 0.000000e+00 : f32
    %165 = vector.broadcast %cst_169 : f32 to vector<1x128xf32>
    %166 = arith.maximumf %164, %165 : vector<1x128xf32>
    %167 = vector.broadcast %160 : vector<1x128xf32> to vector<256x128xf32>
    %168 = arith.subf %153, %167 : vector<256x128xf32>
    %cst_170 = arith.constant 9.99999974E-6 : f32
    %169 = vector.broadcast %cst_170 : f32 to vector<1x128xf32>
    %170 = arith.addf %166, %169 : vector<1x128xf32>
    %171 = math.rsqrt %170 : vector<1x128xf32>
    %172 = vector.broadcast %171 : vector<1x128xf32> to vector<256x128xf32>
    %173 = arith.mulf %168, %172 : vector<256x128xf32>
    %cst_171 = arith.constant 0.000000e+00 : f32
    %174 = vector.broadcast %cst_171 : f32 to vector<256x128xf32>
    %175 = arith.maximumf %173, %174 : vector<256x128xf32>
    %cst_172 = arith.constant dense<0.000000e+00> : vector<128xf32>
    %176 = vector.multi_reduction <add>, %175, %cst_172 [0] : vector<256x128xf32> to vector<128xf32>
    %177 = vector.shape_cast %176 : vector<128xf32> to vector<1x128xf32>
    %cst_173 = arith.constant 3.906250e-03 : f32
    %178 = vector.broadcast %cst_173 : f32 to vector<1x128xf32>
    %179 = arith.mulf %177, %178 : vector<1x128xf32>
    %c0_174 = arith.constant 0 : index
    %c0_175 = arith.constant 0 : index
    %180 = vector.load %arg4[%c0_174, %c0_175] : memref<128x2xf32, #tpu.memory_space<vmem>>, vector<128x2xf32>
    %cst_176 = arith.constant dense<0.000000e+00> : vector<1x2xf32>
    %181 = tpu.matmul %179, %180, %cst_176 {dimension_numbers = #tpu.dot_dimension_numbers<[1], [0], [0], [1], [0, 0, 1, 1], [], []>} : vector<1x128xf32>, vector<128x2xf32>, vector<1x2xf32> -> vector<1x2xf32>
    %c0_177 = arith.constant 0 : index
    %c0_178 = arith.constant 0 : index
    %182 = vector.load %arg5[%c0_177, %c0_178] : memref<1x2xf32, #tpu.memory_space<vmem>>, vector<1x2xf32>
    %183 = arith.addf %181, %182 : vector<1x2xf32>
    %cst_179 = arith.constant 0.000000e+00 : f32
    %184 = vector.broadcast %cst_179 : f32 to vector<1x2xf32>
    %185 = arith.maximumf %183, %184 : vector<1x2xf32>
    %c0_180 = arith.constant 0 : index
    %c0_181 = arith.constant 0 : index
    %186 = vector.load %arg6[%c0_180, %c0_181] : memref<2x128xf32, #tpu.memory_space<vmem>>, vector<2x128xf32>
    %cst_182 = arith.constant dense<0.000000e+00> : vector<1x128xf32>
    %187 = tpu.matmul %185, %186, %cst_182 {dimension_numbers = #tpu.dot_dimension_numbers<[1], [0], [0], [1], [0, 0, 1, 1], [], []>} : vector<1x2xf32>, vector<2x128xf32>, vector<1x128xf32> -> vector<1x128xf32>
    %c0_183 = arith.constant 0 : index
    %c0_184 = arith.constant 0 : index
    %188 = vector.load %arg7[%c0_183, %c0_184] : memref<1x128xf32, #tpu.memory_space<vmem>>, vector<1x128xf32>
    %189 = arith.addf %187, %188 : vector<1x128xf32>
    %190 = arith.negf %189 : vector<1x128xf32>
    %191 = math.exp %190 : vector<1x128xf32>
    %cst_185 = arith.constant 1.000000e+00 : f32
    %192 = vector.broadcast %cst_185 : f32 to vector<1x128xf32>
    %193 = arith.addf %192, %191 : vector<1x128xf32>
    %194 = arith.divf %192, %193 : vector<1x128xf32>
    %c0_186 = arith.constant 0 : index
    %c0_187 = arith.constant 0 : index
    %195 = vector.load %arg8[%c0_186, %c0_187] : memref<1x128xf32, #tpu.memory_space<vmem>>, vector<1x128xf32>
    %196 = vector.broadcast %195 : vector<1x128xf32> to vector<256x128xf32>
    %197 = arith.mulf %175, %196 : vector<256x128xf32>
    %cst_188 = arith.constant dense<0.000000e+00> : vector<256xf32>
    %198 = vector.multi_reduction <add>, %197, %cst_188 [1] : vector<256x128xf32> to vector<256xf32>
    %199 = vector.shape_cast %198 : vector<256xf32> to vector<256x1xf32>
    %c0_189 = arith.constant 0 : index
    %200 = memref.load %arg9[%c0_189] : memref<1xf32, #tpu.memory_space<smem>>
    %201 = vector.broadcast %200 : f32 to vector<256x1xf32>
    %202 = arith.addf %199, %201 : vector<256x1xf32>
    %203 = arith.negf %202 : vector<256x1xf32>
    %204 = math.exp %203 : vector<256x1xf32>
    %cst_190 = arith.constant 1.000000e+00 : f32
    %205 = vector.broadcast %cst_190 : f32 to vector<256x1xf32>
    %206 = arith.addf %205, %204 : vector<256x1xf32>
    %207 = arith.divf %205, %206 : vector<256x1xf32>
    %208 = vector.broadcast %194 : vector<1x128xf32> to vector<256x128xf32>
    %209 = vector.broadcast %207 : vector<256x1xf32> to vector<256x128xf32>
    %210 = arith.maximumf %208, %209 : vector<256x128xf32>
    %211 = arith.mulf %175, %210 : vector<256x128xf32>
    %212 = arith.truncf %211 : vector<256x128xf32> to vector<256x128xbf16>
    %c0_191 = arith.constant 0 : index
    %c0_192 = arith.constant 0 : index
    %c0_193 = arith.constant 0 : index
    %213 = vector.load %arg10[%c0_191, %c0_192, %c0_193] : memref<1x256x128xbf16, #tpu.memory_space<vmem>>, vector<1x256x128xbf16>
    %214 = vector.shape_cast %213 : vector<1x256x128xbf16> to vector<256x128xbf16>
    %215 = vector.shape_cast %212 : vector<256x128xbf16> to vector<1x256x128xbf16>
    tpu.vector_store %arg10[%c0_191, %c0_192, %c0_193], %215 {strides = array<i32>} : memref<1x256x128xbf16, #tpu.memory_space<vmem>>, vector<1x256x128xbf16>,
    return
  }
  func.func @transform_0(%arg0: i32) -> (i32, i32, i32, i32) {
    %c0_i32 = arith.constant 0 : i32
    %c0_i32_0 = arith.constant 0 : i32
    %c0_i32_1 = arith.constant 0 : i32
    %c0_i32_2 = arith.constant 0 : i32
    return %arg0, %c0_i32, %c0_i32_0, %c0_i32_1 : i32, i32, i32, i32
  }
  func.func @transform_1(%arg0: i32) -> (i32, i32, i32) {
    %c0_i32 = arith.constant 0 : i32
    %c0_i32_0 = arith.constant 0 : i32
    %c0_i32_1 = arith.constant 0 : i32
    %c0_i32_2 = arith.constant 0 : i32
    return %c0_i32, %c0_i32_0, %c0_i32_1 : i32, i32, i32
  }
  func.func @transform_2(%arg0: i32) -> (i32, i32, i32) {
    %c0_i32 = arith.constant 0 : i32
    %c0_i32_0 = arith.constant 0 : i32
    %c0_i32_1 = arith.constant 0 : i32
    %c0_i32_2 = arith.constant 0 : i32
    return %c0_i32, %c0_i32_0, %c0_i32_1 : i32, i32, i32
  }
  func.func @transform_3(%arg0: i32) -> (i32, i32) {
    %c0_i32 = arith.constant 0 : i32
    %c0_i32_0 = arith.constant 0 : i32
    %c0_i32_1 = arith.constant 0 : i32
    return %c0_i32, %c0_i32_0 : i32, i32
  }
  func.func @transform_4(%arg0: i32) -> (i32, i32) {
    %c0_i32 = arith.constant 0 : i32
    %c0_i32_0 = arith.constant 0 : i32
    %c0_i32_1 = arith.constant 0 : i32
    return %c0_i32, %c0_i32_0 : i32, i32
  }
  func.func @transform_5(%arg0: i32) -> (i32, i32) {
    %c0_i32 = arith.constant 0 : i32
    %c0_i32_0 = arith.constant 0 : i32
    %c0_i32_1 = arith.constant 0 : i32
    return %c0_i32, %c0_i32_0 : i32, i32
  }
  func.func @transform_6(%arg0: i32) -> (i32, i32) {
    %c0_i32 = arith.constant 0 : i32
    %c0_i32_0 = arith.constant 0 : i32
    %c0_i32_1 = arith.constant 0 : i32
    return %c0_i32, %c0_i32_0 : i32, i32
  }
  func.func @transform_7(%arg0: i32) -> (i32, i32) {
    %c0_i32 = arith.constant 0 : i32
    %c0_i32_0 = arith.constant 0 : i32
    %c0_i32_1 = arith.constant 0 : i32
    return %c0_i32, %c0_i32_0 : i32, i32
  }
  func.func @transform_8(%arg0: i32) -> i32 {
    %c0_i32 = arith.constant 0 : i32
    %c0_i32_0 = arith.constant 0 : i32
    return %c0_i32 : i32
  }
  func.func @transform_9(%arg0: i32) -> (i32, i32, i32) {
    %c0_i32 = arith.constant 0 : i32
    %c0_i32_0 = arith.constant 0 : i32
    %c0_i32_1 = arith.constant 0 : i32
    return %arg0, %c0_i32, %c0_i32_0 : i32, i32, i32
  }
}

</mosaic_0001>

<llo_original>
// kernel: conv_block_forward.1
$region0: #{conv_block_forward.1}
  #allocation0 [shape = 'u32[]', space=smem, size = 0x4, offset = 0x4, fixed_abs, tag = 'smem constant byte address 0x4 - core index']
  #allocation1 [shape = 'u32[144,128]{1,0:T(1,128)}', space=vmem, size = 0x12000, scoped, tag = 'internal scratch']
  #allocation2 [shape = 'bf16[18,18,4]{2,1,0:T(8,128)(2,1)}', space=vmem, size = 0x1b000, scoped, tag = 'scratch operand']
  #allocation3 [shape = 'bf16[18,18,128]{2,1,0:T(8,128)(2,1)}', space=vmem, size = 0x1b000, scoped, tag = 'scratch operand']
  #allocation4 [shape = 'f32[1]{0:T(128)S(6)}', space=smem, size = 0x200, scoped, tag = 'scoped memory for conv_block_forward.1']
  %s0 = inlined_call_operand.vmem [shape: bf16[2,16,16,4], index: 0, kind: input, shape index: {}]
  %s1 = inlined_call_operand.vmem [shape: bf16[9,4,128], index: 1, kind: input, shape index: {}]
  %s2 = inlined_call_operand.vmem [shape: bf16[9,128,128], index: 2, kind: input, shape index: {}]
  %s3 = inlined_call_operand.vmem [shape: f32[128,2], index: 3, kind: input, shape index: {}]
  %s4 = inlined_call_operand.vmem [shape: f32[1,2], index: 4, kind: input, shape index: {}]
  %s5 = inlined_call_operand.vmem [shape: f32[2,128], index: 5, kind: input, shape index: {}]
  %s6 = inlined_call_operand.vmem [shape: f32[1,128], index: 6, kind: input, shape index: {}]
  %s7 = inlined_call_operand.vmem [shape: f32[1,128], index: 7, kind: input, shape index: {}]
  %s8 = inlined_call_operand.<no memory space> [shape: f32[1], index: 8, kind: input, shape index: {}]
  %s9 = inlined_call_operand.vmem [shape: bf16[2,256,128], index: 9, kind: output, shape index: {}]
  %s10 = sld [smem:[#allocation0]]
  $region69: #{conv_block_forward.1} parent=0
    _
  %s12 = ssub.s32 1, %s10
  %s13 = scalar_select 0, %s12, %s10
  %14 = sst [smem:[#allocation4]] %s8
  loop: start=0, step=1, limit=4
  $region2: #{conv_block_forward.1} parent=0 // loop_pre_header
    _
  $region3: #{conv_block_forward.1} parent=0 // loop_header
    %s16 = sphi 0, %s20
    %p17 = scmp.ge.s32.totalorder %s16, 4
    %s26 = sphi 0, %s28
    %s29 = sphi 0, %s26
    %s30 = sphi 0, %s29
    %s46 = sphi 0, %s30
    %s50 = sphi 0, %s50
    %s52 = sphi 0, %s50
    %s53 = sphi 0, %s52
    %s67 = sphi 0, %s53
    %s71 = sphi 0, %s71
    %s73 = sphi 0, %s71
    %s74 = sphi 0, %s73
    %s88 = sphi 0, %s74
    %s92 = sphi 0, %s92
    %s94 = sphi 0, %s92
    %s95 = sphi 0, %s94
    %s109 = sphi 0, %s95
    %s113 = sphi 0, %s113
    %s115 = sphi 0, %s113
    %s116 = sphi 0, %s115
    %s130 = sphi 0, %s116
    %s134 = sphi 0, %s134
    %s136 = sphi 0, %s134
    %s137 = sphi 0, %s136
    %s151 = sphi 0, %s137
    %s155 = sphi 0, %s155
    %s157 = sphi 0, %s155
    %s158 = sphi 0, %s157
    %s172 = sphi 0, %s158
    %s176 = sphi 0, %s176
    %s178 = sphi 0, %s176
    %s179 = sphi 0, %s178
    %s193 = sphi 0, %s179
    %s197 = sphi 0, %s197
    %s199 = sphi 0, %s197
    %s200 = sphi 0, %s199
    %s214 = sphi 0, %s200
    %s220 = sphi 0, %s222
    %s223 = sphi 0, %s220
    %s224 = sphi 0, %s223
    %s240 = sphi 0, %s224
  $region4: #{conv_block_forward.1} parent=0 // loop_header_branch
    %19 = sbr.rel (%p17) target = $region8
  $region5: #{conv_block_forward.1} parent=0 // loop_body
    %s21 = ssub.s32 %s16, 1
    %s22 = ssub.s32 %s16, 2
    %s23 = sadd.s32 %s16, 1
    %s24 = ssub.s32 %s16, %s23
    %p25 = scmp.eq.s32.totalorder %s24, 0
    %s27 = sadd.s32 %s26, 1
    %s28 = scalar_select %p25, %s26, %s27
    %p31 = pneg %p25
    %p32 = scmp.eq.s32.totalorder %s16, 1
    %p33 = por %p31, %p32
    %p34 = scmp.ne.s32.totalorder %s26, %s29
    %p35 = scmp.eq.s32.totalorder %s16, 0
    %p36 = por %p34, %p35
    %p37 = scmp.ne.s32.totalorder %s26, %s29
    %p38 = scmp.eq.s32.totalorder %s21, 1
    %p39 = por %p37, %p38
    %p40 = scmp.ne.s32.totalorder %s29, %s30
    %p41 = scmp.eq.s32.totalorder %s21, 0
    %p42 = por %p40, %p41
    %p43 = scmp.ne.s32.totalorder %s29, %s30
    %p44 = scmp.eq.s32.totalorder %s22, 1
    %p45 = por %p43, %p44
    %p47 = scmp.ne.s32.totalorder %s30, %s46
    %p48 = scmp.eq.s32.totalorder %s22, 0
    %p49 = por %p47, %p48
    %s51 = sadd.s32 %s50, 1
    %p54 = scmp.eq.s32.totalorder %s16, 1
    %p55 = scmp.ne.s32.totalorder %s50, %s52
    %p56 = scmp.eq.s32.totalorder %s16, 0
    %p57 = por %p55, %p56
    %p58 = scmp.ne.s32.totalorder %s50, %s52
    %p59 = scmp.eq.s32.totalorder %s21, 1
    %p60 = por %p58, %p59
    %p61 = scmp.ne.s32.totalorder %s52, %s53
    %p62 = scmp.eq.s32.totalorder %s21, 0
    %p63 = por %p61, %p62
    %p64 = scmp.ne.s32.totalorder %s52, %s53
    %p65 = scmp.eq.s32.totalorder %s22, 1
    %p66 = por %p64, %p65
    %p68 = scmp.ne.s32.totalorder %s53, %s67
    %p69 = scmp.eq.s32.totalorder %s22, 0
    %p70 = por %p68, %p69
    %s72 = sadd.s32 %s71, 1
    %p75 = scmp.eq.s32.totalorder %s16, 1
    %p76 = scmp.ne.s32.totalorder %s71, %s73
    %p77 = scmp.eq.s32.totalorder %s16, 0
    %p78 = por %p76, %p77
    %p79 = scmp.ne.s32.totalorder %s71, %s73
    %p80 = scmp.eq.s32.totalorder %s21, 1
    %p81 = por %p79, %p80
    %p82 = scmp.ne.s32.totalorder %s73, %s74
    %p83 = scmp.eq.s32.totalorder %s21, 0
    %p84 = por %p82, %p83
    %p85 = scmp.ne.s32.totalorder %s73, %s74
    %p86 = scmp.eq.s32.totalorder %s22, 1
    %p87 = por %p85, %p86
    %p89 = scmp.ne.s32.totalorder %s74, %s88
    %p90 = scmp.eq.s32.totalorder %s22, 0
    %p91 = por %p89, %p90
    %s93 = sadd.s32 %s92, 1
    %p96 = scmp.eq.s32.totalorder %s16, 1
    %p97 = scmp.ne.s32.totalorder %s92, %s94
    %p98 = scmp.eq.s32.totalorder %s16, 0
    %p99 = por %p97, %p98
    %p100 = scmp.ne.s32.totalorder %s92, %s94
    %p101 = scmp.eq.s32.totalorder %s21, 1
    %p102 = por %p100, %p101
    %p103 = scmp.ne.s32.totalorder %s94, %s95
    %p104 = scmp.eq.s32.totalorder %s21, 0
    %p105 = por %p103, %p104
    %p106 = scmp.ne.s32.totalorder %s94, %s95
    %p107 = scmp.eq.s32.totalorder %s22, 1
    %p108 = por %p106, %p107
    %p110 = scmp.ne.s32.totalorder %s95, %s109
    %p111 = scmp.eq.s32.totalorder %s22, 0
    %p112 = por %p110, %p111
    %s114 = sadd.s32 %s113, 1
    %p117 = scmp.eq.s32.totalorder %s16, 1
    %p118 = scmp.ne.s32.totalorder %s113, %s115
    %p119 = scmp.eq.s32.totalorder %s16, 0
    %p120 = por %p118, %p119
    %p121 = scmp.ne.s32.totalorder %s113, %s115
    %p122 = scmp.eq.s32.totalorder %s21, 1
    %p123 = por %p121, %p122
    %p124 = scmp.ne.s32.totalorder %s115, %s116
    %p125 = scmp.eq.s32.totalorder %s21, 0
    %p126 = por %p124, %p125
    %p127 = scmp.ne.s32.totalorder %s115, %s116
    %p128 = scmp.eq.s32.totalorder %s22, 1
    %p129 = por %p127, %p128
    %p131 = scmp.ne.s32.totalorder %s116, %s130
    %p132 = scmp.eq.s32.totalorder %s22, 0
    %p133 = por %p131, %p132
    %s135 = sadd.s32 %s134, 1
    %p138 = scmp.eq.s32.totalorder %s16, 1
    %p139 = scmp.ne.s32.totalorder %s134, %s136
    %p140 = scmp.eq.s32.totalorder %s16, 0
    %p141 = por %p139, %p140
    %p142 = scmp.ne.s32.totalorder %s134, %s136
    %p143 = scmp.eq.s32.totalorder %s21, 1
    %p144 = por %p142, %p143
    %p145 = scmp.ne.s32.totalorder %s136, %s137
    %p146 = scmp.eq.s32.totalorder %s21, 0
    %p147 = por %p145, %p146
    %p148 = scmp.ne.s32.totalorder %s136, %s137
    %p149 = scmp.eq.s32.totalorder %s22, 1
    %p150 = por %p148, %p149
    %p152 = scmp.ne.s32.totalorder %s137, %s151
    %p153 = scmp.eq.s32.totalorder %s22, 0
    %p154 = por %p152, %p153
    %s156 = sadd.s32 %s155, 1
    %p159 = scmp.eq.s32.totalorder %s16, 1
    %p160 = scmp.ne.s32.totalorder %s155, %s157
    %p161 = scmp.eq.s32.totalorder %s16, 0
    %p162 = por %p160, %p161
    %p163 = scmp.ne.s32.totalorder %s155, %s157
    %p164 = scmp.eq.s32.totalorder %s21, 1
    %p165 = por %p163, %p164
    %p166 = scmp.ne.s32.totalorder %s157, %s158
    %p167 = scmp.eq.s32.totalorder %s21, 0
    %p168 = por %p166, %p167
    %p169 = scmp.ne.s32.totalorder %s157, %s158
    %p170 = scmp.eq.s32.totalorder %s22, 1
    %p171 = por %p169, %p170
    %p173 = scmp.ne.s32.totalorder %s158, %s172
    %p174 = scmp.eq.s32.totalorder %s22, 0
    %p175 = por %p173, %p174
    %s177 = sadd.s32 %s176, 1
    %p180 = scmp.eq.s32.totalorder %s16, 1
    %p181 = scmp.ne.s32.totalorder %s176, %s178
    %p182 = scmp.eq.s32.totalorder %s16, 0
    %p183 = por %p181, %p182
    %p184 = scmp.ne.s32.totalorder %s176, %s178
    %p185 = scmp.eq.s32.totalorder %s21, 1
    %p186 = por %p184, %p185
    %p187 = scmp.ne.s32.totalorder %s178, %s179
    %p188 = scmp.eq.s32.totalorder %s21, 0
    %p189 = por %p187, %p188
    %p190 = scmp.ne.s32.totalorder %s178, %s179
    %p191 = scmp.eq.s32.totalorder %s22, 1
    %p192 = por %p190, %p191
    %p194 = scmp.ne.s32.totalorder %s179, %s193
    %p195 = scmp.eq.s32.totalorder %s22, 0
    %p196 = por %p194, %p195
    %s198 = sadd.s32 %s197, 1
    %p201 = scmp.eq.s32.totalorder %s16, 1
    %p202 = scmp.ne.s32.totalorder %s197, %s199
    %p203 = scmp.eq.s32.totalorder %s16, 0
    %p204 = por %p202, %p203
    %p205 = scmp.ne.s32.totalorder %s197, %s199
    %p206 = scmp.eq.s32.totalorder %s21, 1
    %p207 = por %p205, %p206
    %p208 = scmp.ne.s32.totalorder %s199, %s200
    %p209 = scmp.eq.s32.totalorder %s21, 0
    %p210 = por %p208, %p209
    %p211 = scmp.ne.s32.totalorder %s199, %s200
    %p212 = scmp.eq.s32.totalorder %s22, 1
    %p213 = por %p211, %p212
    %p215 = scmp.ne.s32.totalorder %s200, %s214
    %p216 = scmp.eq.s32.totalorder %s22, 0
    %p217 = por %p215, %p216
    %s218 = ssub.s32 %s16, %s23
    %p219 = scmp.eq.s32.totalorder %s218, 0
    %s221 = sadd.s32 %s220, 1
    %s222 = scalar_select %p219, %s220, %s221
    %p225 = pneg %p219
    %p226 = scmp.eq.s32.totalorder %s16, 1
    %p227 = por %p225, %p226
    %p228 = scmp.ne.s32.totalorder %s220, %s223
    %p229 = scmp.eq.s32.totalorder %s16, 0
    %p230 = por %p228, %p229
    %p231 = scmp.ne.s32.totalorder %s220, %s223
    %p232 = scmp.eq.s32.totalorder %s21, 1
    %p233 = por %p231, %p232
    %p234 = scmp.ne.s32.totalorder %s223, %s224
    %p235 = scmp.eq.s32.totalorder %s21, 0
    %p236 = por %p234, %p235
    %p237 = scmp.ne.s32.totalorder %s223, %s224
    %p238 = scmp.eq.s32.totalorder %s22, 1
    %p239 = por %p237, %p238
    %p241 = scmp.ne.s32.totalorder %s224, %s240
    %p242 = scmp.eq.s32.totalorder %s22, 0
    %p243 = por %p241, %p242
    %p244 = scmp.le.s32.totalorder 1, %s16
    %p245 = scmp.lt.s32.totalorder %s16, 3
    %p246 = pnand %p244, %p245
    %p247 = pneg %p246
    // Predicated region
    $region9: #{conv_block_forward.1} parent=5 // pred_check
      _
    $region10: #{conv_block_forward.1} parent=5 // pred_check_branch
      %249 = sbr.rel (%p246) target = $region12
    $region11: #{conv_block_forward.1} parent=5 // pred_region
      %s250 = ssub.s32 %s16, 1
      // Predicated region
      $region13: #{conv_block_forward.1} parent=11 // pred_check
        %p251 = pneg %p63
      $region14: #{conv_block_forward.1} parent=11 // pred_check_branch
        %253 = sbr.rel (%p251) target = $region16
      $region15: #{conv_block_forward.1} parent=11 // pred_region
        _
      $region16: #{conv_block_forward.1} parent=11 // pred_fallthru
        _
      // Predicated region
      $region17: #{conv_block_forward.1} parent=11 // pred_check
        %p254 = pneg %p84
      $region18: #{conv_block_forward.1} parent=11 // pred_check_branch
        %256 = sbr.rel (%p254) target = $region20
      $region19: #{conv_block_forward.1} parent=11 // pred_region
        _
      $region20: #{conv_block_forward.1} parent=11 // pred_fallthru
        _
      // Predicated region
      $region21: #{conv_block_forward.1} parent=11 // pred_check
        %p257 = pneg %p105
      $region22: #{conv_block_forward.1} parent=11 // pred_check_branch
        %259 = sbr.rel (%p257) target = $region24
      $region23: #{conv_block_forward.1} parent=11 // pred_region
        _
      $region24: #{conv_block_forward.1} parent=11 // pred_fallthru
        _
      // Predicated region
      $region25: #{conv_block_forward.1} parent=11 // pred_check
        %p260 = pneg %p126
      $region26: #{conv_block_forward.1} parent=11 // pred_check_branch
        %262 = sbr.rel (%p260) target = $region28
      $region27: #{conv_block_forward.1} parent=11 // pred_region
        _
      $region28: #{conv_block_forward.1} parent=11 // pred_fallthru
        _
      // Predicated region
      $region29: #{conv_block_forward.1} parent=11 // pred_check
        %p263 = pneg %p147
      $region30: #{conv_block_forward.1} parent=11 // pred_check_branch
        %265 = sbr.rel (%p263) target = $region32
      $region31: #{conv_block_forward.1} parent=11 // pred_region
        _
      $region32: #{conv_block_forward.1} parent=11 // pred_fallthru
        _
      // Predicated region
      $region33: #{conv_block_forward.1} parent=11 // pred_check
        %p266 = pneg %p168
      $region34: #{conv_block_forward.1} parent=11 // pred_check_branch
        %268 = sbr.rel (%p266) target = $region36
      $region35: #{conv_block_forward.1} parent=11 // pred_region
        _
      $region36: #{conv_block_forward.1} parent=11 // pred_fallthru
        _
      // Predicated region
      $region37: #{conv_block_forward.1} parent=11 // pred_check
        %p269 = pneg %p189
      $region38: #{conv_block_forward.1} parent=11 // pred_check_branch
        %271 = sbr.rel (%p269) target = $region40
      $region39: #{conv_block_forward.1} parent=11 // pred_region
        _
      $region40: #{conv_block_forward.1} parent=11 // pred_fallthru
        _
      // Predicated region
      $region41: #{conv_block_forward.1} parent=11 // pred_check
        %p272 = pneg %p210
      $region42: #{conv_block_forward.1} parent=11 // pred_check_branch
        %274 = sbr.rel (%p272) target = $region44
      $region43: #{conv_block_forward.1} parent=11 // pred_region
        _
      $region44: #{conv_block_forward.1} parent=11 // pred_fallthru
        _
    $region12: #{conv_block_forward.1} parent=5 // pred_fallthru
      _
    %p275 = scmp.lt.s32.totalorder %s16, 2
    // Predicated region
    $region45: #{conv_block_forward.1} parent=5 // pred_check
      %p276 = pneg %p275
    $region46: #{conv_block_forward.1} parent=5 // pred_check_branch
      %278 = sbr.rel (%p276) target = $region48
    $region47: #{conv_block_forward.1} parent=5 // pred_region
      // Predicated region
      $region49: #{conv_block_forward.1} parent=47 // pred_check
        %p279 = pneg %p36
      $region50: #{conv_block_forward.1} parent=47 // pred_check_branch
        %281 = sbr.rel (%p279) target = $region52
      $region51: #{conv_block_forward.1} parent=47 // pred_region
        %p282 = scmp.lt.s32.totalorder %s16, 1
        %s283 = scalar_select %p282, %s16, 1
        %s284 = smul.addr %s283, 32
        %s285 = smul.addr %s284, 4
        %s286 = scalar_lea.vmem %s0, %s285
      $region52: #{conv_block_forward.1} parent=47 // pred_fallthru
        _
    $region48: #{conv_block_forward.1} parent=5 // pred_fallthru
      _
    %p287 = scmp.le.s32.totalorder 1, %s16
    %p288 = scmp.lt.s32.totalorder %s16, 3
    %p289 = pnand %p287, %p288
    %p290 = pneg %p289
    // Predicated region
    $region53: #{conv_block_forward.1} parent=5 // pred_check
      _
    $region54: #{conv_block_forward.1} parent=5 // pred_check_branch
      %292 = sbr.rel (%p289) target = $region56
    $region55: #{conv_block_forward.1} parent=5 // pred_region
      %s293 = ssub.s32 %s16, 1
      %p294 = scmp.lt.s32.totalorder %s21, 1
      %s295 = scalar_select %p294, %s21, 1
      %s296 = smul.addr %s295, 32
      %s297 = smul.addr %s296, 4
      %s298 = scalar_lea.vmem %s0, %s297
      %p299 = pneg %p42
      %p300 = pneg %p39
      %p301 = pneg %p63
      %p302 = pneg %p60
      %p303 = pneg %p84
      %p304 = pneg %p81
      %p305 = pneg %p105
      %p306 = pneg %p102
      %p307 = pneg %p126
      %p308 = pneg %p123
      %p309 = pneg %p147
      %p310 = pneg %p144
      %p311 = pneg %p168
      %p312 = pneg %p165
      %p313 = pneg %p189
      %p314 = pneg %p186
      %p315 = pneg %p210
      %p316 = pneg %p207
      %p317 = pneg %p236
      %p318 = pneg %p233
      %p319 = scmp.lt.s32.totalorder %s21, 1
      %s320 = scalar_select %p319, %s21, 1
      %s321 = smul.addr %s320, 32
      %s322 = smul.addr %s321, 4
      %s323 = scalar_lea.vmem %s9, %s322
      %p324 = scmp.lt.s32.totalorder %s21, 1
      %s325 = scalar_select %p324, %s21, 1
      %s326 = smul.addr %s325, 32
      %s327 = smul.addr %s326, 4
      %s328 = scalar_lea.vmem %s0, %s327
      %p329 = scmp.lt.s32.totalorder %s21, 1
      %s330 = scalar_select %p329, %s21, 1
      %s331 = smul.addr %s330, 32
      %s332 = smul.addr %s331, 4
      %s333 = scalar_lea.vmem %s9, %s332
      %v335 = vld [vmem:[%s328] sm:$0xf]
      %v336 = vld [vmem:[%s328 + $0x4] sm:$0xf]
      %v337 = vld [vmem:[%s328 + $0x8] sm:$0xf]
      %v338 = vld [vmem:[%s328 + $0xc] sm:$0xf]
      %v339 = vld [vmem:[%s328 + $0x10] sm:$0xf]
      %v340 = vld [vmem:[%s328 + $0x14] sm:$0xf]
      %v341 = vld [vmem:[%s328 + $0x18] sm:$0xf]
      %v342 = vld [vmem:[%s328 + $0x1c] sm:$0xf]
      %v343 = vld [vmem:[%s328 + $0x20] sm:$0xf]
      %v344 = vld [vmem:[%s328 + $0x24] sm:$0xf]
      %v345 = vld [vmem:[%s328 + $0x28] sm:$0xf]
      %v346 = vld [vmem:[%s328 + $0x2c] sm:$0xf]
      %v347 = vld [vmem:[%s328 + $0x30] sm:$0xf]
      %v348 = vld [vmem:[%s328 + $0x34] sm:$0xf]
      %v349 = vld [vmem:[%s328 + $0x38] sm:$0xf]
      %v350 = vld [vmem:[%s328 + $0x3c] sm:$0xf]
      %v351 = vld [vmem:[%s328 + $0x40] sm:$0xf]
      %v352 = vld [vmem:[%s328 + $0x44] sm:$0xf]
      %v353 = vld [vmem:[%s328 + $0x48] sm:$0xf]
      %v354 = vld [vmem:[%s328 + $0x4c] sm:$0xf]
      %v355 = vld [vmem:[%s328 + $0x50] sm:$0xf]
      %v356 = vld [vmem:[%s328 + $0x54] sm:$0xf]
      %v357 = vld [vmem:[%s328 + $0x58] sm:$0xf]
      %v358 = vld [vmem:[%s328 + $0x5c] sm:$0xf]
      %v359 = vld [vmem:[%s328 + $0x60] sm:$0xf]
      %v360 = vld [vmem:[%s328 + $0x64] sm:$0xf]
      %v361 = vld [vmem:[%s328 + $0x68] sm:$0xf]
      %v362 = vld [vmem:[%s328 + $0x6c] sm:$0xf]
      %v363 = vld [vmem:[%s328 + $0x70] sm:$0xf]
      %v364 = vld [vmem:[%s328 + $0x74] sm:$0xf]
      %v365 = vld [vmem:[%s328 + $0x78] sm:$0xf]
      %v366 = vld [vmem:[%s328 + $0x7c] sm:$0xf]
      %vm367 = vcmask 27648
      %368 = vst.msk [vmem:[#allocation2] sm:$0xf] %vm367, 0
      %369 = vst.msk [vmem:[#allocation2 + $0x4] sm:$0xf] %vm367, 0
      %vm370 = vcmask 24576
      %371 = vst.msk [vmem:[#allocation2 + $0x8] sm:$0x1] %vm370, 0
      %s372 = scalar_lea.vmem [#allocation2], 204
      %373 = vst.msk [vmem:[%s372] sm:$0xf] %vm367, 0
      %374 = vst.msk [vmem:[%s372 + $0x4] sm:$0xf] %vm367, 0
      %375 = vst.msk [vmem:[%s372 + $0x8] sm:$0x1] %vm370, 0
      %s376 = scalar_lea.vmem [#allocation2], 12
      %377 = vst.msk [vmem:[%s376] sm:$0x1] %vm370, 0
      %378 = vst.msk [vmem:[%s376 + $0xc] sm:$0x1] %vm370, 0
      %379 = vst.msk [vmem:[%s376 + $0x18] sm:$0x1] %vm370, 0
      %380 = vst.msk [vmem:[%s376 + $0x24] sm:$0x1] %vm370, 0
      %381 = vst.msk [vmem:[%s376 + $0x30] sm:$0x1] %vm370, 0
      %382 = vst.msk [vmem:[%s376 + $0x3c] sm:$0x1] %vm370, 0
      %383 = vst.msk [vmem:[%s376 + $0x48] sm:$0x1] %vm370, 0
      %384 = vst.msk [vmem:[%s376 + $0x54] sm:$0x1] %vm370, 0
      %385 = vst.msk [vmem:[%s376 + $0x60] sm:$0x1] %vm370, 0
      %386 = vst.msk [vmem:[%s376 + $0x6c] sm:$0x1] %vm370, 0
      %387 = vst.msk [vmem:[%s376 + $0x78] sm:$0x1] %vm370, 0
      %388 = vst.msk [vmem:[%s376 + $0x84] sm:$0x1] %vm370, 0
      %389 = vst.msk [vmem:[%s376 + $0x90] sm:$0x1] %vm370, 0
      %390 = vst.msk [vmem:[%s376 + $0x9c] sm:$0x1] %vm370, 0
      %391 = vst.msk [vmem:[%s376 + $0xa8] sm:$0x1] %vm370, 0
      %392 = vst.msk [vmem:[%s376 + $0xb4] sm:$0x1] %vm370, 0
      %393 = vst.msk [vmem:[%s376 + $0x8] sm:$0x1] %vm370, 0
      %394 = vst.msk [vmem:[%s376 + $0x14] sm:$0x1] %vm370, 0
      %395 = vst.msk [vmem:[%s376 + $0x20] sm:$0x1] %vm370, 0
      %396 = vst.msk [vmem:[%s376 + $0x2c] sm:$0x1] %vm370, 0
      %397 = vst.msk [vmem:[%s376 + $0x38] sm:$0x1] %vm370, 0
      %398 = vst.msk [vmem:[%s376 + $0x44] sm:$0x1] %vm370, 0
      %399 = vst.msk [vmem:[%s376 + $0x50] sm:$0x1] %vm370, 0
      %400 = vst.msk [vmem:[%s376 + $0x5c] sm:$0x1] %vm370, 0
      %401 = vst.msk [vmem:[%s376 + $0x68] sm:$0x1] %vm370, 0
      %402 = vst.msk [vmem:[%s376 + $0x74] sm:$0x1] %vm370, 0
      %403 = vst.msk [vmem:[%s376 + $0x80] sm:$0x1] %vm370, 0
      %404 = vst.msk [vmem:[%s376 + $0x8c] sm:$0x1] %vm370, 0
      %405 = vst.msk [vmem:[%s376 + $0x98] sm:$0x1] %vm370, 0
      %406 = vst.msk [vmem:[%s376 + $0xa4] sm:$0x1] %vm370, 0
      %407 = vst.msk [vmem:[%s376 + $0xb0] sm:$0x1] %vm370, 0
      %408 = vst.msk [vmem:[%s376 + $0xbc] sm:$0x1] %vm370, 0
      %vm409 = vsmask.f32 256
      %vm410 = vsmask.f32 4368
      %vm411 = vmor %vm409, %vm410
      %v413 = vshrl.u32 %v335, 16
      %v415 = vrot.slane %v413, 7
      %v416 = vshll.u32 %v335, 16
      %v418 = vor.u32 %v415, %v416
      %v419 = vrot.slane %v415, 4
      %v421 = vshrl.u32 %v336, 16
      %v423 = vrot.slane %v421, 7
      %v424 = vshll.u32 %v336, 16
      %v426 = vor.u32 %v423, %v424
      %v427 = vsel %vm411, %v419, %v426
      %v428 = vrot.slane %v423, 4
      %v430 = vshrl.u32 %v337, 16
      %v432 = vrot.slane %v430, 7
      %v433 = vshll.u32 %v337, 16
      %v435 = vor.u32 %v432, %v433
      %v436 = vrot.slane %v432, 4
      %v438 = vshrl.u32 %v338, 16
      %v440 = vrot.slane %v438, 7
      %v441 = vshll.u32 %v338, 16
      %v443 = vor.u32 %v440, %v441
      %v444 = vsel %vm411, %v436, %v443
      %v445 = vrot.slane %v440, 4
      %v447 = vshrl.u32 %v339, 16
      %v449 = vrot.slane %v447, 7
      %v450 = vshll.u32 %v339, 16
      %v452 = vor.u32 %v449, %v450
      %v453 = vrot.slane %v449, 4
      %v455 = vshrl.u32 %v340, 16
      %v457 = vrot.slane %v455, 7
      %v458 = vshll.u32 %v340, 16
      %v460 = vor.u32 %v457, %v458
      %v461 = vsel %vm411, %v453, %v460
      %v462 = vrot.slane %v457, 4
      %v464 = vshrl.u32 %v341, 16
      %v466 = vrot.slane %v464, 7
      %v467 = vshll.u32 %v341, 16
      %v469 = vor.u32 %v466, %v467
      %v470 = vrot.slane %v466, 4
      %v472 = vshrl.u32 %v342, 16
      %v474 = vrot.slane %v472, 7
      %v475 = vshll.u32 %v342, 16
      %v477 = vor.u32 %v474, %v475
      %v478 = vsel %vm411, %v470, %v477
      %v479 = vrot.slane %v474, 4
      %v481 = vshrl.u32 %v343, 16
      %v483 = vrot.slane %v481, 7
      %v484 = vshll.u32 %v343, 16
      %v486 = vor.u32 %v483, %v484
      %v487 = vrot.slane %v483, 4
      %v489 = vshrl.u32 %v344, 16
      %v491 = vrot.slane %v489, 7
      %v492 = vshll.u32 %v344, 16
      %v494 = vor.u32 %v491, %v492
      %v495 = vsel %vm411, %v487, %v494
      %v496 = vrot.slane %v491, 4
      %v498 = vshrl.u32 %v345, 16
      %v500 = vrot.slane %v498, 7
      %v501 = vshll.u32 %v345, 16
      %v503 = vor.u32 %v500, %v501
      %v504 = vrot.slane %v500, 4
      %v506 = vshrl.u32 %v346, 16
      %v508 = vrot.slane %v506, 7
      %v509 = vshll.u32 %v346, 16
      %v511 = vor.u32 %v508, %v509
      %v512 = vsel %vm411, %v504, %v511
      %v513 = vrot.slane %v508, 4
      %v515 = vshrl.u32 %v347, 16
      %v517 = vrot.slane %v515, 7
      %v518 = vshll.u32 %v347, 16
      %v520 = vor.u32 %v517, %v518
      %v521 = vrot.slane %v517, 4
      %v523 = vshrl.u32 %v348, 16
      %v525 = vrot.slane %v523, 7
      %v526 = vshll.u32 %v348, 16
      %v528 = vor.u32 %v525, %v526
      %v529 = vsel %vm411, %v521, %v528
      %v530 = vrot.slane %v525, 4
      %v532 = vshrl.u32 %v349, 16
      %v534 = vrot.slane %v532, 7
      %v535 = vshll.u32 %v349, 16
      %v537 = vor.u32 %v534, %v535
      %v538 = vrot.slane %v534, 4
      %v540 = vshrl.u32 %v350, 16
      %v542 = vrot.slane %v540, 7
      %v543 = vshll.u32 %v350, 16
      %v545 = vor.u32 %v542, %v543
      %v546 = vsel %vm411, %v538, %v545
      %v547 = vrot.slane %v542, 4
      %v549 = vshrl.u32 %v351, 16
      %v551 = vrot.slane %v549, 7
      %v552 = vshll.u32 %v351, 16
      %v554 = vor.u32 %v551, %v552
      %v555 = vrot.slane %v551, 4
      %v557 = vshrl.u32 %v352, 16
      %v559 = vrot.slane %v557, 7
      %v560 = vshll.u32 %v352, 16
      %v562 = vor.u32 %v559, %v560
      %v563 = vsel %vm411, %v555, %v562
      %v564 = vrot.slane %v559, 4
      %v566 = vshrl.u32 %v353, 16
      %v568 = vrot.slane %v566, 7
      %v569 = vshll.u32 %v353, 16
      %v571 = vor.u32 %v568, %v569
      %v572 = vrot.slane %v568, 4
      %v574 = vshrl.u32 %v354, 16
      %v576 = vrot.slane %v574, 7
      %v577 = vshll.u32 %v354, 16
      %v579 = vor.u32 %v576, %v577
      %v580 = vsel %vm411, %v572, %v579
      %v581 = vrot.slane %v576, 4
      %v583 = vshrl.u32 %v355, 16
      %v585 = vrot.slane %v583, 7
      %v586 = vshll.u32 %v355, 16
      %v588 = vor.u32 %v585, %v586
      %v589 = vrot.slane %v585, 4
      %v591 = vshrl.u32 %v356, 16
      %v593 = vrot.slane %v591, 7
      %v594 = vshll.u32 %v356, 16
      %v596 = vor.u32 %v593, %v594
      %v597 = vsel %vm411, %v589, %v596
      %v598 = vrot.slane %v593, 4
      %v600 = vshrl.u32 %v357, 16
      %v602 = vrot.slane %v600, 7
      %v603 = vshll.u32 %v357, 16
      %v605 = vor.u32 %v602, %v603
      %v606 = vrot.slane %v602, 4
      %v608 = vshrl.u32 %v358, 16
      %v610 = vrot.slane %v608, 7
      %v611 = vshll.u32 %v358, 16
      %v613 = vor.u32 %v610, %v611
      %v614 = vsel %vm411, %v606, %v613
      %v615 = vrot.slane %v610, 4
      %v617 = vshrl.u32 %v359, 16
      %v619 = vrot.slane %v617, 7
      %v620 = vshll.u32 %v359, 16
      %v622 = vor.u32 %v619, %v620
      %v623 = vrot.slane %v619, 4
      %v625 = vshrl.u32 %v360, 16
      %v627 = vrot.slane %v625, 7
      %v628 = vshll.u32 %v360, 16
      %v630 = vor.u32 %v627, %v628
      %v631 = vsel %vm411, %v623, %v630
      %v632 = vrot.slane %v627, 4
      %v634 = vshrl.u32 %v361, 16
      %v636 = vrot.slane %v634, 7
      %v637 = vshll.u32 %v361, 16
      %v639 = vor.u32 %v636, %v637
      %v640 = vrot.slane %v636, 4
      %v642 = vshrl.u32 %v362, 16
      %v644 = vrot.slane %v642, 7
      %v645 = vshll.u32 %v362, 16
      %v647 = vor.u32 %v644, %v645
      %v648 = vsel %vm411, %v640, %v647
      %v649 = vrot.slane %v644, 4
      %v651 = vshrl.u32 %v363, 16
      %v653 = vrot.slane %v651, 7
      %v654 = vshll.u32 %v363, 16
      %v656 = vor.u32 %v653, %v654
      %v657 = vrot.slane %v653, 4
      %v659 = vshrl.u32 %v364, 16
      %v661 = vrot.slane %v659, 7
      %v662 = vshll.u32 %v364, 16
      %v664 = vor.u32 %v661, %v662
      %v665 = vsel %vm411, %v657, %v664
      %v666 = vrot.slane %v661, 4
      %v668 = vshrl.u32 %v365, 16
      %v670 = vrot.slane %v668, 7
      %v671 = vshll.u32 %v365, 16
      %v673 = vor.u32 %v670, %v671
      %v674 = vrot.slane %v670, 4
      %v676 = vshrl.u32 %v366, 16
      %v678 = vrot.slane %v676, 7
      %v679 = vshll.u32 %v366, 16
      %v681 = vor.u32 %v678, %v679
      %v682 = vsel %vm411, %v674, %v681
      %v683 = vrot.slane %v678, 4
      %vm732 = vcmask 27648
      %vm733 = vsmask.f32 7938
      %vm734 = vmand %vm732, %vm733
      %v735 = vld [vmem:[%s376] sm:$0xf]
      %v736 = vsel %vm734, %v418, %v735
      %737 = vst [vmem:[%s376] sm:$0xf] %v736
      %738 = vst.msk [vmem:[%s376 + $0x4] sm:$0xf] %vm367, %v427
      %vm739 = vcmask 24576
      %vm740 = vmand %vm739, %vm409
      %v741 = vld [vmem:[%s376 + $0x8] sm:$0x1]
      %v742 = vsel %vm740, %v428, %v741
      %743 = vst [vmem:[%s376 + $0x8] sm:$0x1] %v742
      %v744 = vld [vmem:[%s376 + $0xc] sm:$0xf]
      %v745 = vsel %vm734, %v435, %v744
      %746 = vst [vmem:[%s376 + $0xc] sm:$0xf] %v745
      %747 = vst.msk [vmem:[%s376 + $0x10] sm:$0xf] %vm367, %v444
      %v748 = vld [vmem:[%s376 + $0x14] sm:$0x1]
      %v749 = vsel %vm740, %v445, %v748
      %750 = vst [vmem:[%s376 + $0x14] sm:$0x1] %v749
      %v751 = vld [vmem:[%s376 + $0x18] sm:$0xf]
      %v752 = vsel %vm734, %v452, %v751
      %753 = vst [vmem:[%s376 + $0x18] sm:$0xf] %v752
      %754 = vst.msk [vmem:[%s376 + $0x1c] sm:$0xf] %vm367, %v461
      %v755 = vld [vmem:[%s376 + $0x20] sm:$0x1]
      %v756 = vsel %vm740, %v462, %v755
      %757 = vst [vmem:[%s376 + $0x20] sm:$0x1] %v756
      %v758 = vld [vmem:[%s376 + $0x24] sm:$0xf]
      %v759 = vsel %vm734, %v469, %v758
      %760 = vst [vmem:[%s376 + $0x24] sm:$0xf] %v759
      %761 = vst.msk [vmem:[%s376 + $0x28] sm:$0xf] %vm367, %v478
      %v762 = vld [vmem:[%s376 + $0x2c] sm:$0x1]
      %v763 = vsel %vm740, %v479, %v762
      %764 = vst [vmem:[%s376 + $0x2c] sm:$0x1] %v763
      %v765 = vld [vmem:[%s376 + $0x30] sm:$0xf]
      %v766 = vsel %vm734, %v486, %v765
      %767 = vst [vmem:[%s376 + $0x30] sm:$0xf] %v766
      %768 = vst.msk [vmem:[%s376 + $0x34] sm:$0xf] %vm367, %v495
      %v769 = vld [vmem:[%s376 + $0x38] sm:$0x1]
      %v770 = vsel %vm740, %v496, %v769
      %771 = vst [vmem:[%s376 + $0x38] sm:$0x1] %v770
      %v772 = vld [vmem:[%s376 + $0x3c] sm:$0xf]
      %v773 = vsel %vm734, %v503, %v772
      %774 = vst [vmem:[%s376 + $0x3c] sm:$0xf] %v773
      %775 = vst.msk [vmem:[%s376 + $0x40] sm:$0xf] %vm367, %v512
      %v776 = vld [vmem:[%s376 + $0x44] sm:$0x1]
      %v777 = vsel %vm740, %v513, %v776
      %778 = vst [vmem:[%s376 + $0x44] sm:$0x1] %v777
      %v779 = vld [vmem:[%s376 + $0x48] sm:$0xf]
      %v780 = vsel %vm734, %v520, %v779
      %781 = vst [vmem:[%s376 + $0x48] sm:$0xf] %v780
      %782 = vst.msk [vmem:[%s376 + $0x4c] sm:$0xf] %vm367, %v529
      %v783 = vld [vmem:[%s376 + $0x50] sm:$0x1]
      %v784 = vsel %vm740, %v530, %v783
      %785 = vst [vmem:[%s376 + $0x50] sm:$0x1] %v784
      %v786 = vld [vmem:[%s376 + $0x54] sm:$0xf]
      %v787 = vsel %vm734, %v537, %v786
      %788 = vst [vmem:[%s376 + $0x54] sm:$0xf] %v787
      %789 = vst.msk [vmem:[%s376 + $0x58] sm:$0xf] %vm367, %v546
      %v790 = vld [vmem:[%s376 + $0x5c] sm:$0x1]
      %v791 = vsel %vm740, %v547, %v790
      %792 = vst [vmem:[%s376 + $0x5c] sm:$0x1] %v791
      %v793 = vld [vmem:[%s376 + $0x60] sm:$0xf]
      %v794 = vsel %vm734, %v554, %v793
      %795 = vst [vmem:[%s376 + $0x60] sm:$0xf] %v794
      %796 = vst.msk [vmem:[%s376 + $0x64] sm:$0xf] %vm367, %v563
      %v797 = vld [vmem:[%s376 + $0x68] sm:$0x1]
      %v798 = vsel %vm740, %v564, %v797
      %799 = vst [vmem:[%s376 + $0x68] sm:$0x1] %v798
      %v800 = vld [vmem:[%s376 + $0x6c] sm:$0xf]
      %v801 = vsel %vm734, %v571, %v800
      %802 = vst [vmem:[%s376 + $0x6c] sm:$0xf] %v801
      %803 = vst.msk [vmem:[%s376 + $0x70] sm:$0xf] %vm367, %v580
      %v804 = vld [vmem:[%s376 + $0x74] sm:$0x1]
      %v805 = vsel %vm740, %v581, %v804
      %806 = vst [vmem:[%s376 + $0x74] sm:$0x1] %v805
      %v807 = vld [vmem:[%s376 + $0x78] sm:$0xf]
      %v808 = vsel %vm734, %v588, %v807
      %809 = vst [vmem:[%s376 + $0x78] sm:$0xf] %v808
      %810 = vst.msk [vmem:[%s376 + $0x7c] sm:$0xf] %vm367, %v597
      %v811 = vld [vmem:[%s376 + $0x80] sm:$0x1]
      %v812 = vsel %vm740, %v598, %v811
      %813 = vst [vmem:[%s376 + $0x80] sm:$0x1] %v812
      %v814 = vld [vmem:[%s376 + $0x84] sm:$0xf]
      %v815 = vsel %vm734, %v605, %v814
      %816 = vst [vmem:[%s376 + $0x84] sm:$0xf] %v815
      %817 = vst.msk [vmem:[%s376 + $0x88] sm:$0xf] %vm367, %v614
      %v818 = vld [vmem:[%s376 + $0x8c] sm:$0x1]
      %v819 = vsel %vm740, %v615, %v818
      %820 = vst [vmem:[%s376 + $0x8c] sm:$0x1] %v819
      %v821 = vld [vmem:[%s376 + $0x90] sm:$0xf]
      %v822 = vsel %vm734, %v622, %v821
      %823 = vst [vmem:[%s376 + $0x90] sm:$0xf] %v822
      %824 = vst.msk [vmem:[%s376 + $0x94] sm:$0xf] %vm367, %v631
      %v825 = vld [vmem:[%s376 + $0x98] sm:$0x1]
      %v826 = vsel %vm740, %v632, %v825
      %827 = vst [vmem:[%s376 + $0x98] sm:$0x1] %v826
      %v828 = vld [vmem:[%s376 + $0x9c] sm:$0xf]
      %v829 = vsel %vm734, %v639, %v828
      %830 = vst [vmem:[%s376 + $0x9c] sm:$0xf] %v829
      %831 = vst.msk [vmem:[%s376 + $0xa0] sm:$0xf] %vm367, %v648
      %v832 = vld [vmem:[%s376 + $0xa4] sm:$0x1]
      %v833 = vsel %vm740, %v649, %v832
      %834 = vst [vmem:[%s376 + $0xa4] sm:$0x1] %v833
      %v835 = vld [vmem:[%s376 + $0xa8] sm:$0xf]
      %v836 = vsel %vm734, %v656, %v835
      %837 = vst [vmem:[%s376 + $0xa8] sm:$0xf] %v836
      %838 = vst.msk [vmem:[%s376 + $0xac] sm:$0xf] %vm367, %v665
      %v839 = vld [vmem:[%s376 + $0xb0] sm:$0x1]
      %v840 = vsel %vm740, %v666, %v839
      %841 = vst [vmem:[%s376 + $0xb0] sm:$0x1] %v840
      %v842 = vld [vmem:[%s376 + $0xb4] sm:$0xf]
      %v843 = vsel %vm734, %v673, %v842
      %844 = vst [vmem:[%s376 + $0xb4] sm:$0xf] %v843
      %845 = vst.msk [vmem:[%s376 + $0xb8] sm:$0xf] %vm367, %v682
      %v846 = vld [vmem:[%s376 + $0xbc] sm:$0x1]
      %v847 = vsel %vm740, %v683, %v846
      %848 = vst [vmem:[%s376 + $0xbc] sm:$0x1] %v847
      %v849 = vld [vmem:[#allocation2] sm:$0xf]
      %v850 = vld [vmem:[#allocation2 + $0x4] sm:$0xf]
      %v851 = vld [vmem:[#allocation2 + $0xc] sm:$0xf]
      %v852 = vld [vmem:[#allocation2 + $0x10] sm:$0xf]
      %v853 = vld [vmem:[#allocation2 + $0x18] sm:$0xf]
      %v854 = vld [vmem:[#allocation2 + $0x1c] sm:$0xf]
      %v855 = vld [vmem:[#allocation2 + $0x24] sm:$0xf]
      %v856 = vld [vmem:[#allocation2 + $0x28] sm:$0xf]
      %v857 = vld [vmem:[#allocation2 + $0x30] sm:$0xf]
      %v858 = vld [vmem:[#allocation2 + $0x34] sm:$0xf]
      %v859 = vld [vmem:[#allocation2 + $0x3c] sm:$0xf]
      %v860 = vld [vmem:[#allocation2 + $0x40] sm:$0xf]
      %v861 = vld [vmem:[#allocation2 + $0x48] sm:$0xf]
      %v862 = vld [vmem:[#allocation2 + $0x4c] sm:$0xf]
      %v863 = vld [vmem:[#allocation2 + $0x54] sm:$0xf]
      %v864 = vld [vmem:[#allocation2 + $0x58] sm:$0xf]
      %v865 = vld [vmem:[#allocation2 + $0x60] sm:$0xf]
      %v866 = vld [vmem:[#allocation2 + $0x64] sm:$0xf]
      %v867 = vld [vmem:[#allocation2 + $0x6c] sm:$0xf]
      %v868 = vld [vmem:[#allocation2 + $0x70] sm:$0xf]
      %v869 = vld [vmem:[#allocation2 + $0x78] sm:$0xf]
      %v870 = vld [vmem:[#allocation2 + $0x7c] sm:$0xf]
      %v871 = vld [vmem:[#allocation2 + $0x84] sm:$0xf]
      %v872 = vld [vmem:[#allocation2 + $0x88] sm:$0xf]
      %v873 = vld [vmem:[#allocation2 + $0x90] sm:$0xf]
      %v874 = vld [vmem:[#allocation2 + $0x94] sm:$0xf]
      %v875 = vld [vmem:[#allocation2 + $0x9c] sm:$0xf]
      %v876 = vld [vmem:[#allocation2 + $0xa0] sm:$0xf]
      %v877 = vld [vmem:[#allocation2 + $0xa8] sm:$0xf]
      %v878 = vld [vmem:[#allocation2 + $0xac] sm:$0xf]
      %v879 = vld [vmem:[#allocation2 + $0xb4] sm:$0xf]
      %v880 = vld [vmem:[#allocation2 + $0xb8] sm:$0xf]
      %v881 = vld [vmem:[%s1] sm:$0x3]
      %v882 = vld [vmem:[#allocation2 + $0x8] sm:$0x1]
      %v883 = vld [vmem:[#allocation2 + $0x14] sm:$0x1]
      %v884 = vld [vmem:[#allocation2 + $0x20] sm:$0x1]
      %v885 = vld [vmem:[#allocation2 + $0x2c] sm:$0x1]
      %v886 = vld [vmem:[#allocation2 + $0x38] sm:$0x1]
      %v887 = vld [vmem:[#allocation2 + $0x44] sm:$0x1]
      %v888 = vld [vmem:[#allocation2 + $0x50] sm:$0x1]
      %v889 = vld [vmem:[#allocation2 + $0x5c] sm:$0x1]
      %v890 = vld [vmem:[#allocation2 + $0x68] sm:$0x1]
      %v891 = vld [vmem:[#allocation2 + $0x74] sm:$0x1]
      %v892 = vld [vmem:[#allocation2 + $0x80] sm:$0x1]
      %v893 = vld [vmem:[#allocation2 + $0x8c] sm:$0x1]
      %v894 = vld [vmem:[#allocation2 + $0x98] sm:$0x1]
      %v895 = vld [vmem:[#allocation2 + $0xa4] sm:$0x1]
      %v896 = vld [vmem:[#allocation2 + $0xb0] sm:$0x1]
      %v897 = vld [vmem:[#allocation2 + $0xbc] sm:$0x1]
      %vm898 = vsmask.f32 3328
      %vm899 = vsmask.f32 7440
      %vm900 = vmor %vm898, %vm899
      %v902 = vshrl.u32 %v849, 16
      %v904 = vrot.slane %v902, 4
      %v905 = vshll.u32 %v849, 16
      %v907 = vrot.slane %v905, 5
      %v908 = vor.u32 %v904, %v907
      %v909 = vrot.slane %v908, 4
      %v911 = vshll.u32 %v850, 16
      %v913 = vrot.slane %v911, 5
      %v914 = vsel %vm900, %v909, %v913
      %v915 = vshrl.u32 %v850, 16
      %v917 = vrot.slane %v915, 4
      %v918 = vor.u32 %v917, %v913
      %v919 = vrot.slane %v918, 4
      %v921 = vshll.u32 %v882, 16
      %v923 = vrot.slane %v921, 5
      %v924 = vsel %vm900, %v919, %v923
      %v926 = vshrl.u32 %v851, 16
      %v928 = vrot.slane %v926, 4
      %v929 = vshll.u32 %v851, 16
      %v931 = vrot.slane %v929, 5
      %v932 = vor.u32 %v928, %v931
      %v933 = vrot.slane %v932, 4
      %v935 = vshll.u32 %v852, 16
      %v937 = vrot.slane %v935, 5
      %v938 = vsel %vm900, %v933, %v937
      %v939 = vshrl.u32 %v852, 16
      %v941 = vrot.slane %v939, 4
      %v942 = vor.u32 %v941, %v937
      %v943 = vrot.slane %v942, 4
      %v945 = vshll.u32 %v883, 16
      %v947 = vrot.slane %v945, 5
      %v948 = vsel %vm900, %v943, %v947
      %v950 = vshrl.u32 %v853, 16
      %v952 = vrot.slane %v950, 4
      %v953 = vshll.u32 %v853, 16
      %v955 = vrot.slane %v953, 5
      %v956 = vor.u32 %v952, %v955
      %v957 = vrot.slane %v956, 4
      %v959 = vshll.u32 %v854, 16
      %v961 = vrot.slane %v959, 5
      %v962 = vsel %vm900, %v957, %v961
      %v963 = vshrl.u32 %v854, 16
      %v965 = vrot.slane %v963, 4
      %v966 = vor.u32 %v965, %v961
      %v967 = vrot.slane %v966, 4
      %v969 = vshll.u32 %v884, 16
      %v971 = vrot.slane %v969, 5
      %v972 = vsel %vm900, %v967, %v971
      %v974 = vshrl.u32 %v855, 16
      %v976 = vrot.slane %v974, 4
      %v977 = vshll.u32 %v855, 16
      %v979 = vrot.slane %v977, 5
      %v980 = vor.u32 %v976, %v979
      %v981 = vrot.slane %v980, 4
      %v983 = vshll.u32 %v856, 16
      %v985 = vrot.slane %v983, 5
      %v986 = vsel %vm900, %v981, %v985
      %v987 = vshrl.u32 %v856, 16
      %v989 = vrot.slane %v987, 4
      %v990 = vor.u32 %v989, %v985
      %v991 = vrot.slane %v990, 4
      %v993 = vshll.u32 %v885, 16
      %v995 = vrot.slane %v993, 5
      %v996 = vsel %vm900, %v991, %v995
      %v998 = vshrl.u32 %v857, 16
      %v1000 = vrot.slane %v998, 4
      %v1001 = vshll.u32 %v857, 16
      %v1003 = vrot.slane %v1001, 5
      %v1004 = vor.u32 %v1000, %v1003
      %v1005 = vrot.slane %v1004, 4
      %v1007 = vshll.u32 %v858, 16
      %v1009 = vrot.slane %v1007, 5
      %v1010 = vsel %vm900, %v1005, %v1009
      %v1011 = vshrl.u32 %v858, 16
      %v1013 = vrot.slane %v1011, 4
      %v1014 = vor.u32 %v1013, %v1009
      %v1015 = vrot.slane %v1014, 4
      %v1017 = vshll.u32 %v886, 16
      %v1019 = vrot.slane %v1017, 5
      %v1020 = vsel %vm900, %v1015, %v1019
      %v1022 = vshrl.u32 %v859, 16
      %v1024 = vrot.slane %v1022, 4
      %v1025 = vshll.u32 %v859, 16
      %v1027 = vrot.slane %v1025, 5
      %v1028 = vor.u32 %v1024, %v1027
      %v1029 = vrot.slane %v1028, 4
      %v1031 = vshll.u32 %v860, 16
      %v1033 = vrot.slane %v1031, 5
      %v1034 = vsel %vm900, %v1029, %v1033
      %v1035 = vshrl.u32 %v860, 16
      %v1037 = vrot.slane %v1035, 4
      %v1038 = vor.u32 %v1037, %v1033
      %v1039 = vrot.slane %v1038, 4
      %v1041 = vshll.u32 %v887, 16
      %v1043 = vrot.slane %v1041, 5
      %v1044 = vsel %vm900, %v1039, %v1043
      %v1046 = vshrl.u32 %v861, 16
      %v1048 = vrot.slane %v1046, 4
      %v1049 = vshll.u32 %v861, 16
      %v1051 = vrot.slane %v1049, 5
      %v1052 = vor.u32 %v1048, %v1051
      %v1053 = vrot.slane %v1052, 4
      %v1055 = vshll.u32 %v862, 16
      %v1057 = vrot.slane %v1055, 5
      %v1058 = vsel %vm900, %v1053, %v1057
      %v1059 = vshrl.u32 %v862, 16
      %v1061 = vrot.slane %v1059, 4
      %v1062 = vor.u32 %v1061, %v1057
      %v1063 = vrot.slane %v1062, 4
      %v1065 = vshll.u32 %v888, 16
      %v1067 = vrot.slane %v1065, 5
      %v1068 = vsel %vm900, %v1063, %v1067
      %v1070 = vshrl.u32 %v863, 16
      %v1072 = vrot.slane %v1070, 4
      %v1073 = vshll.u32 %v863, 16
      %v1075 = vrot.slane %v1073, 5
      %v1076 = vor.u32 %v1072, %v1075
      %v1077 = vrot.slane %v1076, 4
      %v1079 = vshll.u32 %v864, 16
      %v1081 = vrot.slane %v1079, 5
      %v1082 = vsel %vm900, %v1077, %v1081
      %v1083 = vshrl.u32 %v864, 16
      %v1085 = vrot.slane %v1083, 4
      %v1086 = vor.u32 %v1085, %v1081
      %v1087 = vrot.slane %v1086, 4
      %v1089 = vshll.u32 %v889, 16
      %v1091 = vrot.slane %v1089, 5
      %v1092 = vsel %vm900, %v1087, %v1091
      %v1094 = vshrl.u32 %v865, 16
      %v1096 = vrot.slane %v1094, 4
      %v1097 = vshll.u32 %v865, 16
      %v1099 = vrot.slane %v1097, 5
      %v1100 = vor.u32 %v1096, %v1099
      %v1101 = vrot.slane %v1100, 4
      %v1103 = vshll.u32 %v866, 16
      %v1105 = vrot.slane %v1103, 5
      %v1106 = vsel %vm900, %v1101, %v1105
      %v1107 = vshrl.u32 %v866, 16
      %v1109 = vrot.slane %v1107, 4
      %v1110 = vor.u32 %v1109, %v1105
      %v1111 = vrot.slane %v1110, 4
      %v1113 = vshll.u32 %v890, 16
      %v1115 = vrot.slane %v1113, 5
      %v1116 = vsel %vm900, %v1111, %v1115
      %v1118 = vshrl.u32 %v867, 16
      %v1120 = vrot.slane %v1118, 4
      %v1121 = vshll.u32 %v867, 16
      %v1123 = vrot.slane %v1121, 5
      %v1124 = vor.u32 %v1120, %v1123
      %v1125 = vrot.slane %v1124, 4
      %v1127 = vshll.u32 %v868, 16
      %v1129 = vrot.slane %v1127, 5
      %v1130 = vsel %vm900, %v1125, %v1129
      %v1131 = vshrl.u32 %v868, 16
      %v1133 = vrot.slane %v1131, 4
      %v1134 = vor.u32 %v1133, %v1129
      %v1135 = vrot.slane %v1134, 4
      %v1137 = vshll.u32 %v891, 16
      %v1139 = vrot.slane %v1137, 5
      %v1140 = vsel %vm900, %v1135, %v1139
      %v1142 = vshrl.u32 %v869, 16
      %v1144 = vrot.slane %v1142, 4
      %v1145 = vshll.u32 %v869, 16
      %v1147 = vrot.slane %v1145, 5
      %v1148 = vor.u32 %v1144, %v1147
      %v1149 = vrot.slane %v1148, 4
      %v1151 = vshll.u32 %v870, 16
      %v1153 = vrot.slane %v1151, 5
      %v1154 = vsel %vm900, %v1149, %v1153
      %v1155 = vshrl.u32 %v870, 16
      %v1157 = vrot.slane %v1155, 4
      %v1158 = vor.u32 %v1157, %v1153
      %v1159 = vrot.slane %v1158, 4
      %v1161 = vshll.u32 %v892, 16
      %v1163 = vrot.slane %v1161, 5
      %v1164 = vsel %vm900, %v1159, %v1163
      %v1166 = vshrl.u32 %v871, 16
      %v1168 = vrot.slane %v1166, 4
      %v1169 = vshll.u32 %v871, 16
      %v1171 = vrot.slane %v1169, 5
      %v1172 = vor.u32 %v1168, %v1171
      %v1173 = vrot.slane %v1172, 4
      %v1175 = vshll.u32 %v872, 16
      %v1177 = vrot.slane %v1175, 5
      %v1178 = vsel %vm900, %v1173, %v1177
      %v1179 = vshrl.u32 %v872, 16
      %v1181 = vrot.slane %v1179, 4
      %v1182 = vor.u32 %v1181, %v1177
      %v1183 = vrot.slane %v1182, 4
      %v1185 = vshll.u32 %v893, 16
      %v1187 = vrot.slane %v1185, 5
      %v1188 = vsel %vm900, %v1183, %v1187
      %v1190 = vshrl.u32 %v873, 16
      %v1192 = vrot.slane %v1190, 4
      %v1193 = vshll.u32 %v873, 16
      %v1195 = vrot.slane %v1193, 5
      %v1196 = vor.u32 %v1192, %v1195
      %v1197 = vrot.slane %v1196, 4
      %v1199 = vshll.u32 %v874, 16
      %v1201 = vrot.slane %v1199, 5
      %v1202 = vsel %vm900, %v1197, %v1201
      %v1203 = vshrl.u32 %v874, 16
      %v1205 = vrot.slane %v1203, 4
      %v1206 = vor.u32 %v1205, %v1201
      %v1207 = vrot.slane %v1206, 4
      %v1209 = vshll.u32 %v894, 16
      %v1211 = vrot.slane %v1209, 5
      %v1212 = vsel %vm900, %v1207, %v1211
      %v1214 = vshrl.u32 %v875, 16
      %v1216 = vrot.slane %v1214, 4
      %v1217 = vshll.u32 %v875, 16
      %v1219 = vrot.slane %v1217, 5
      %v1220 = vor.u32 %v1216, %v1219
      %v1221 = vrot.slane %v1220, 4
      %v1223 = vshll.u32 %v876, 16
      %v1225 = vrot.slane %v1223, 5
      %v1226 = vsel %vm900, %v1221, %v1225
      %v1227 = vshrl.u32 %v876, 16
      %v1229 = vrot.slane %v1227, 4
      %v1230 = vor.u32 %v1229, %v1225
      %v1231 = vrot.slane %v1230, 4
      %v1233 = vshll.u32 %v895, 16
      %v1235 = vrot.slane %v1233, 5
      %v1236 = vsel %vm900, %v1231, %v1235
      %v1238 = vshrl.u32 %v877, 16
      %v1240 = vrot.slane %v1238, 4
      %v1241 = vshll.u32 %v877, 16
      %v1243 = vrot.slane %v1241, 5
      %v1244 = vor.u32 %v1240, %v1243
      %v1245 = vrot.slane %v1244, 4
      %v1247 = vshll.u32 %v878, 16
      %v1249 = vrot.slane %v1247, 5
      %v1250 = vsel %vm900, %v1245, %v1249
      %v1251 = vshrl.u32 %v878, 16
      %v1253 = vrot.slane %v1251, 4
      %v1254 = vor.u32 %v1253, %v1249
      %v1255 = vrot.slane %v1254, 4
      %v1257 = vshll.u32 %v896, 16
      %v1259 = vrot.slane %v1257, 5
      %v1260 = vsel %vm900, %v1255, %v1259
      %v1262 = vshrl.u32 %v879, 16
      %v1264 = vrot.slane %v1262, 4
      %v1265 = vshll.u32 %v879, 16
      %v1267 = vrot.slane %v1265, 5
      %v1268 = vor.u32 %v1264, %v1267
      %v1269 = vrot.slane %v1268, 4
      %v1271 = vshll.u32 %v880, 16
      %v1273 = vrot.slane %v1271, 5
      %v1274 = vsel %vm900, %v1269, %v1273
      %v1275 = vshrl.u32 %v880, 16
      %v1277 = vrot.slane %v1275, 4
      %v1278 = vor.u32 %v1277, %v1273
      %v1279 = vrot.slane %v1278, 4
      %v1281 = vshll.u32 %v897, 16
      %v1283 = vrot.slane %v1281, 5
      %v1284 = vsel %vm900, %v1279, %v1283
      %s1285 = scalar_lea.vmem %s1, 2
      %v1286 = vld [vmem:[%s1285] sm:$0x3]
      %v1287 = vunpack.c.l.b16 %v914
      %v1288 = vunpack.c.l.b16 %v924
      %v1289 = vunpack.c.l.b16 %v938
      %v1290 = vunpack.c.l.b16 %v948
      %v1291 = vunpack.c.l.b16 %v962
      %v1292 = vunpack.c.l.b16 %v972
      %v1293 = vunpack.c.l.b16 %v986
      %v1294 = vunpack.c.l.b16 %v996
      %v1295 = vunpack.c.l.b16 %v1010
      %v1296 = vunpack.c.l.b16 %v1020
      %v1297 = vunpack.c.l.b16 %v1034
      %v1298 = vunpack.c.l.b16 %v1044
      %v1299 = vunpack.c.l.b16 %v1058
      %v1300 = vunpack.c.l.b16 %v1068
      %v1301 = vunpack.c.l.b16 %v1082
      %v1302 = vunpack.c.l.b16 %v1092
      %v1303 = vunpack.c.l.b16 %v1106
      %v1304 = vunpack.c.l.b16 %v1116
      %v1305 = vunpack.c.l.b16 %v1130
      %v1306 = vunpack.c.l.b16 %v1140
      %v1307 = vunpack.c.l.b16 %v1154
      %v1308 = vunpack.c.l.b16 %v1164
      %v1309 = vunpack.c.l.b16 %v1178
      %v1310 = vunpack.c.l.b16 %v1188
      %v1311 = vunpack.c.l.b16 %v1202
      %v1312 = vunpack.c.l.b16 %v1212
      %v1313 = vunpack.c.l.b16 %v1226
      %v1314 = vunpack.c.l.b16 %v1236
      %v1315 = vunpack.c.l.b16 %v1250
      %v1316 = vunpack.c.l.b16 %v1260
      %v1317 = vunpack.c.l.b16 %v1274
      %v1318 = vunpack.c.l.b16 %v1284
      %v1319 = vpack.c.b16 %v1288, %v1287
      %v1320 = vpack.c.b16 %v1290, %v1289
      %v1321 = vpack.c.b16 %v1292, %v1291
      %v1322 = vpack.c.b16 %v1294, %v1293
      %v1323 = vpack.c.b16 %v1296, %v1295
      %v1324 = vpack.c.b16 %v1298, %v1297
      %v1325 = vpack.c.b16 %v1300, %v1299
      %v1326 = vpack.c.b16 %v1302, %v1301
      %v1327 = vpack.c.b16 %v1304, %v1303
      %v1328 = vpack.c.b16 %v1306, %v1305
      %v1329 = vpack.c.b16 %v1308, %v1307
      %v1330 = vpack.c.b16 %v1310, %v1309
      %v1331 = vpack.c.b16 %v1312, %v1311
      %v1332 = vpack.c.b16 %v1314, %v1313
      %v1333 = vpack.c.b16 %v1316, %v1315
      %v1334 = vpack.c.b16 %v1318, %v1317
      %vm1335 = vcmask 31744
      %v1337 = vsel %vm1335, %v1319, 0
      %v1340 = vsel %vm1335, %v1320, 0
      %v1343 = vsel %vm1335, %v1321, 0
      %v1346 = vsel %vm1335, %v1322, 0
      %v1349 = vsel %vm1335, %v1323, 0
      %v1352 = vsel %vm1335, %v1324, 0
      %v1355 = vsel %vm1335, %v1325, 0
      %v1358 = vsel %vm1335, %v1326, 0
      %v1361 = vsel %vm1335, %v1327, 0
      %v1364 = vsel %vm1335, %v1328, 0
      %v1367 = vsel %vm1335, %v1329, 0
      %v1370 = vsel %vm1335, %v1330, 0
      %v1373 = vsel %vm1335, %v1331, 0
      %v1376 = vsel %vm1335, %v1332, 0
      %v1379 = vsel %vm1335, %v1333, 0
      %v1382 = vsel %vm1335, %v1334, 0
      %vm1384 = vcmask 1041408
      %v1386 = vsel %vm1384, %v1286, 0
      %1388 = vmatprep.subr.bf16.mxu0 0
      %1389 = vmatpush1.bf16.msra.mxu0 %v1386
      %1390 = vmatprep.subr.bf16.mxu0 0
      %1391 = vmatpush1.bf16.msra.mxu0 0
      %1392 = vmatprep.subr.bf16.mxu0 0
      %1393 = vmatpush1.bf16.msra.mxu0 0
      %1394 = vmatprep.subr.bf16.mxu0 0
      %1395 = vmatpush1.bf16.msra.mxu0 0
      %1396 = vmatprep.subr.bf16.mxu0 0
      %1397 = vmatpush1.bf16.msra.mxu0 0
      %1398 = vmatprep.subr.bf16.mxu0 0
      %1399 = vmatpush1.bf16.msra.mxu0 0
      %1400 = vmatprep.subr.bf16.mxu0 0
      %1401 = vmatpush1.bf16.msra.mxu0 0
      %1402 = vmatprep.subr.bf16.mxu0 0
      %1403 = vmatpush1.bf16.msra.mxu0 0
      %1404 = vmatprep.subr.bf16.mxu0 0
      %1405 = vmatpush1.bf16.msra.mxu0 0
      %1406 = vmatprep.subr.bf16.mxu0 0
      %1407 = vmatpush1.bf16.msra.mxu0 0
      %1408 = vmatprep.subr.bf16.mxu0 0
      %1409 = vmatpush1.bf16.msra.mxu0 0
      %1410 = vmatprep.subr.bf16.mxu0 0
      %1411 = vmatpush1.bf16.msra.mxu0 0
      %1412 = vmatprep.subr.bf16.mxu0 0
      %1413 = vmatpush1.bf16.msra.mxu0 0
      %1414 = vmatprep.subr.bf16.mxu0 0
      %1415 = vmatpush1.bf16.msra.mxu0 0
      %1416 = vmatprep.subr.bf16.mxu0 0
      %1417 = vmatpush1.bf16.msra.mxu0 0
      %1418 = vmatprep.subr.bf16.mxu0 0
      %1419 = vmatpush1.bf16.msra.mxu0 0
      %1420 = vmatprep.mubr.bf16.mxu0 0
      %1421 = vmatmul.mubr.bf16.gmra.mrb[0].mxu0 %v1337
      %v1422 = vpop.f32.mrb[0].mxu0
      %v1423 = vadd.f32 0.0, %v1422
      %v1424 = vpop.f32.mrb[0].mxu0
      %v1425 = vpop.f32.mrb[0].mxu0
      %v1426 = vadd.f32 0.0, %v1425
      %v1427 = vpop.f32.mrb[0].mxu0
      %1428 = vmatprep.mubr.bf16.mxu0 0
      %1429 = vmatmul.mubr.bf16.gmra.mrb[0].mxu0 %v1340
      %v1430 = vpop.f32.mrb[0].mxu0
      %v1431 = vadd.f32 0.0, %v1430
      %v1432 = vpop.f32.mrb[0].mxu0
      %v1433 = vpop.f32.mrb[0].mxu0
      %v1434 = vadd.f32 0.0, %v1433
      %v1435 = vpop.f32.mrb[0].mxu0
      %1436 = vmatprep.mubr.bf16.mxu0 0
      %1437 = vmatmul.mubr.bf16.gmra.mrb[0].mxu0 %v1343
      %v1438 = vpop.f32.mrb[0].mxu0
      %v1439 = vadd.f32 0.0, %v1438
      %v1440 = vpop.f32.mrb[0].mxu0
      %v1441 = vpop.f32.mrb[0].mxu0
      %v1442 = vadd.f32 0.0, %v1441
      %v1443 = vpop.f32.mrb[0].mxu0
      %1444 = vmatprep.mubr.bf16.mxu0 0
      %1445 = vmatmul.mubr.bf16.gmra.mrb[0].mxu0 %v1346
      %v1446 = vpop.f32.mrb[0].mxu0
      %v1447 = vadd.f32 0.0, %v1446
      %v1448 = vpop.f32.mrb[0].mxu0
      %v1449 = vpop.f32.mrb[0].mxu0
      %v1450 = vadd.f32 0.0, %v1449
      %v1451 = vpop.f32.mrb[0].mxu0
      %1452 = vmatprep.mubr.bf16.mxu0 0
      %1453 = vmatmul.mubr.bf16.gmra.mrb[0].mxu0 %v1349
      %v1454 = vpop.f32.mrb[0].mxu0
      %v1455 = vadd.f32 0.0, %v1454
      %v1456 = vpop.f32.mrb[0].mxu0
      %v1457 = vpop.f32.mrb[0].mxu0
      %v1458 = vadd.f32 0.0, %v1457
      %v1459 = vpop.f32.mrb[0].mxu0
      %1460 = vmatprep.mubr.bf16.mxu0 0
      %1461 = vmatmul.mubr.bf16.gmra.mrb[0].mxu0 %v1352
      %v1462 = vpop.f32.mrb[0].mxu0
      %v1463 = vadd.f32 0.0, %v1462
      %v1464 = vpop.f32.mrb[0].mxu0
      %v1465 = vpop.f32.mrb[0].mxu0
      %v1466 = vadd.f32 0.0, %v1465
      %v1467 = vpop.f32.mrb[0].mxu0
      %1468 = vmatprep.mubr.bf16.mxu0 0
      %1469 = vmatmul.mubr.bf16.gmra.mrb[0].mxu0 %v1355
      %v1470 = vpop.f32.mrb[0].mxu0
      %v1471 = vadd.f32 0.0, %v1470
      %v1472 = vpop.f32.mrb[0].mxu0
      %v1473 = vpop.f32.mrb[0].mxu0
      %v1474 = vadd.f32 0.0, %v1473
      %v1475 = vpop.f32.mrb[0].mxu0
      %1476 = vmatprep.mubr.bf16.mxu0 0
      %1477 = vmatmul.mubr.bf16.gmra.mrb[0].mxu0 %v1358
      %v1478 = vpop.f32.mrb[0].mxu0
      %v1479 = vadd.f32 0.0, %v1478
      %v1480 = vpop.f32.mrb[0].mxu0
      %v1481 = vpop.f32.mrb[0].mxu0
      %v1482 = vadd.f32 0.0, %v1481
      %v1483 = vpop.f32.mrb[0].mxu0
      %1484 = vmatprep.mubr.bf16.mxu0 0
      %1485 = vmatmul.mubr.bf16.gmra.mrb[0].mxu0 %v1361
      %v1486 = vpop.f32.mrb[0].mxu0
      %v1487 = vadd.f32 0.0, %v1486
      %v1488 = vpop.f32.mrb[0].mxu0
      %v1489 = vpop.f32.mrb[0].mxu0
      %v1490 = vadd.f32 0.0, %v1489
      %v1491 = vpop.f32.mrb[0].mxu0
      %1492 = vmatprep.mubr.bf16.mxu0 0
      %1493 = vmatmul.mubr.bf16.gmra.mrb[0].mxu0 %v1364
      %v1494 = vpop.f32.mrb[0].mxu0
      %v1495 = vadd.f32 0.0, %v1494
      %v1496 = vpop.f32.mrb[0].mxu0
      %v1497 = vpop.f32.mrb[0].mxu0
      %v1498 = vadd.f32 0.0, %v1497
      %v1499 = vpop.f32.mrb[0].mxu0
      %1500 = vmatprep.mubr.bf16.mxu0 0
      %1501 = vmatmul.mubr.bf16.gmra.mrb[0].mxu0 %v1367
      %v1502 = vpop.f32.mrb[0].mxu0
      %v1503 = vadd.f32 0.0, %v1502
      %v1504 = vpop.f32.mrb[0].mxu0
      %v1505 = vpop.f32.mrb[0].mxu0
      %v1506 = vadd.f32 0.0, %v1505
      %v1507 = vpop.f32.mrb[0].mxu0
      %1508 = vmatprep.mubr.bf16.mxu0 0
      %1509 = vmatmul.mubr.bf16.gmra.mrb[0].mxu0 %v1370
      %v1510 = vpop.f32.mrb[0].mxu0
      %v1511 = vadd.f32 0.0, %v1510
      %v1512 = vpop.f32.mrb[0].mxu0
      %v1513 = vpop.f32.mrb[0].mxu0
      %v1514 = vadd.f32 0.0, %v1513
      %v1515 = vpop.f32.mrb[0].mxu0
      %1516 = vmatprep.mubr.bf16.mxu0 0
      %1517 = vmatmul.mubr.bf16.gmra.mrb[0].mxu0 %v1373
      %v1518 = vpop.f32.mrb[0].mxu0
      %v1519 = vadd.f32 0.0, %v1518
      %v1520 = vpop.f32.mrb[0].mxu0
      %v1521 = vpop.f32.mrb[0].mxu0
      %v1522 = vadd.f32 0.0, %v1521
      %v1523 = vpop.f32.mrb[0].mxu0
      %1524 = vmatprep.mubr.bf16.mxu0 0
      %1525 = vmatmul.mubr.bf16.gmra.mrb[0].mxu0 %v1376
      %v1526 = vpop.f32.mrb[0].mxu0
      %v1527 = vadd.f32 0.0, %v1526
      %v1528 = vpop.f32.mrb[0].mxu0
      %v1529 = vpop.f32.mrb[0].mxu0
      %v1530 = vadd.f32 0.0, %v1529
      %v1531 = vpop.f32.mrb[0].mxu0
      %1532 = vmatprep.mubr.bf16.mxu0 0
      %1533 = vmatmul.mubr.bf16.gmra.mrb[0].mxu0 %v1379
      %v1534 = vpop.f32.mrb[0].mxu0
      %v1535 = vadd.f32 0.0, %v1534
      %v1536 = vpop.f32.mrb[0].mxu0
      %v1537 = vpop.f32.mrb[0].mxu0
      %v1538 = vadd.f32 0.0, %v1537
      %v1539 = vpop.f32.mrb[0].mxu0
      %1540 = vmatprep.mubr.bf16.mxu0 0
      %1541 = vmatmul.mubr.bf16.gmra.mrb[0].mxu0 %v1382
      %v1542 = vpop.f32.mrb[0].mxu0
      %v1543 = vadd.f32 0.0, %v1542
      %v1544 = vpop.f32.mrb[0].mxu0
      %v1545 = vpop.f32.mrb[0].mxu0
      %v1546 = vadd.f32 0.0, %v1545
      %v1547 = vpop.f32.mrb[0].mxu0
      %1548 = vdwg.mxu0
      %v1581 = vunpack.c.l.b16 %v849
      %v1582 = vunpack.c.l.b16 %v850
      %v1583 = vunpack.c.l.b16 %v851
      %v1584 = vunpack.c.l.b16 %v852
      %v1585 = vunpack.c.l.b16 %v853
      %v1586 = vunpack.c.l.b16 %v854
      %v1587 = vunpack.c.l.b16 %v855
      %v1588 = vunpack.c.l.b16 %v856
      %v1589 = vunpack.c.l.b16 %v857
      %v1590 = vunpack.c.l.b16 %v858
      %v1591 = vunpack.c.l.b16 %v859
      %v1592 = vunpack.c.l.b16 %v860
      %v1593 = vunpack.c.l.b16 %v861
      %v1594 = vunpack.c.l.b16 %v862
      %v1595 = vunpack.c.l.b16 %v863
      %v1596 = vunpack.c.l.b16 %v864
      %v1597 = vunpack.c.l.b16 %v865
      %v1598 = vunpack.c.l.b16 %v866
      %v1599 = vunpack.c.l.b16 %v867
      %v1600 = vunpack.c.l.b16 %v868
      %v1601 = vunpack.c.l.b16 %v869
      %v1602 = vunpack.c.l.b16 %v870
      %v1603 = vunpack.c.l.b16 %v871
      %v1604 = vunpack.c.l.b16 %v872
      %v1605 = vunpack.c.l.b16 %v873
      %v1606 = vunpack.c.l.b16 %v874
      %v1607 = vunpack.c.l.b16 %v875
      %v1608 = vunpack.c.l.b16 %v876
      %v1609 = vunpack.c.l.b16 %v877
      %v1610 = vunpack.c.l.b16 %v878
      %v1611 = vunpack.c.l.b16 %v879
      %v1612 = vunpack.c.l.b16 %v880
      %v1613 = vpack.c.b16 %v1582, %v1581
      %v1614 = vpack.c.b16 %v1584, %v1583
      %v1615 = vpack.c.b16 %v1586, %v1585
      %v1616 = vpack.c.b16 %v1588, %v1587
      %v1617 = vpack.c.b16 %v1590, %v1589
      %v1618 = vpack.c.b16 %v1592, %v1591
      %v1619 = vpack.c.b16 %v1594, %v1593
      %v1620 = vpack.c.b16 %v1596, %v1595
      %v1621 = vpack.c.b16 %v1598, %v1597
      %v1622 = vpack.c.b16 %v1600, %v1599
      %v1623 = vpack.c.b16 %v1602, %v1601
      %v1624 = vpack.c.b16 %v1604, %v1603
      %v1625 = vpack.c.b16 %v1606, %v1605
      %v1626 = vpack.c.b16 %v1608, %v1607
      %v1627 = vpack.c.b16 %v1610, %v1609
      %v1628 = vpack.c.b16 %v1612, %v1611
      %v1630 = vsel %vm1335, %v1613, 0
      %v1633 = vsel %vm1335, %v1614, 0
      %v1636 = vsel %vm1335, %v1615, 0
      %v1639 = vsel %vm1335, %v1616, 0
      %v1642 = vsel %vm1335, %v1617, 0
      %v1645 = vsel %vm1335, %v1618, 0
      %v1648 = vsel %vm1335, %v1619, 0
      %v1651 = vsel %vm1335, %v1620, 0
      %v1654 = vsel %vm1335, %v1621, 0
      %v1657 = vsel %vm1335, %v1622, 0
      %v1660 = vsel %vm1335, %v1623, 0
      %v1663 = vsel %vm1335, %v1624, 0
      %v1666 = vsel %vm1335, %v1625, 0
      %v1669 = vsel %vm1335, %v1626, 0
      %v1672 = vsel %vm1335, %v1627, 0
      %v1675 = vsel %vm1335, %v1628, 0
      %v1678 = vsel %vm1384, %v881, 0
      %1680 = vmatprep.subr.bf16.mxu0 0
      %1681 = vmatpush1.bf16.msra.mxu0 %v1678
      %1682 = vmatprep.subr.bf16.mxu0 0
      %1683 = vmatpush1.bf16.msra.mxu0 0
      %1684 = vmatprep.subr.bf16.mxu0 0
      %1685 = vmatpush1.bf16.msra.mxu0 0
      %1686 = vmatprep.subr.bf16.mxu0 0
      %1687 = vmatpush1.bf16.msra.mxu0 0
      %1688 = vmatprep.subr.bf16.mxu0 0
      %1689 = vmatpush1.bf16.msra.mxu0 0
      %1690 = vmatprep.subr.bf16.mxu0 0
      %1691 = vmatpush1.bf16.msra.mxu0 0
      %1692 = vmatprep.subr.bf16.mxu0 0
      %1693 = vmatpush1.bf16.msra.mxu0 0
      %1694 = vmatprep.subr.bf16.mxu0 0
      %1695 = vmatpush1.bf16.msra.mxu0 0
      %1696 = vmatprep.subr.bf16.mxu0 0
      %1697 = vmatpush1.bf16.msra.mxu0 0
      %1698 = vmatprep.subr.bf16.mxu0 0
      %1699 = vmatpush1.bf16.msra.mxu0 0
      %1700 = vmatprep.subr.bf16.mxu0 0
      %1701 = vmatpush1.bf16.msra.mxu0 0
      %1702 = vmatprep.subr.bf16.mxu0 0
      %1703 = vmatpush1.bf16.msra.mxu0 0
      %1704 = vmatprep.subr.bf16.mxu0 0
      %1705 = vmatpush1.bf16.msra.mxu0 0
      %1706 = vmatprep.subr.bf16.mxu0 0
      %1707 = vmatpush1.bf16.msra.mxu0 0
      %1708 = vmatprep.subr.bf16.mxu0 0
      %1709 = vmatpush1.bf16.msra.mxu0 0
      %1710 = vmatprep.subr.bf16.mxu0 0
      %1711 = vmatpush1.bf16.msra.mxu0 0
      %1712 = vmatprep.mubr.bf16.mxu0 0
      %1713 = vmatmul.mubr.bf16.gmra.mrb[0].mxu0 %v1630
      %v1714 = vpop.f32.mrb[0].mxu0
      %v1715 = vadd.f32 %v1423, %v1714
      %v1716 = vpop.f32.mrb[0].mxu0
      %v1717 = vpop.f32.mrb[0].mxu0
      %v1718 = vadd.f32 %v1426, %v1717
      %v1719 = vpop.f32.mrb[0].mxu0
      %1720 = vmatprep.mubr.bf16.mxu0 0
      %1721 = vmatmul.mubr.bf16.gmra.mrb[0].mxu0 %v1633
      %v1722 = vpop.f32.mrb[0].mxu0
      %v1723 = vadd.f32 %v1431, %v1722
      %v1724 = vpop.f32.mrb[0].mxu0
      %v1725 = vpop.f32.mrb[0].mxu0
      %v1726 = vadd.f32 %v1434, %v1725
      %v1727 = vpop.f32.mrb[0].mxu0
      %1728 = vmatprep.mubr.bf16.mxu0 0
      %1729 = vmatmul.mubr.bf16.gmra.mrb[0].mxu0 %v1636
      %v1730 = vpop.f32.mrb[0].mxu0
      %v1731 = vadd.f32 %v1439, %v1730
      %v1732 = vpop.f32.mrb[0].mxu0
      %v1733 = vpop.f32.mrb[0].mxu0
      %v1734 = vadd.f32 %v1442, %v1733
      %v1735 = vpop.f32.mrb[0].mxu0
      %1736 = vmatprep.mubr.bf16.mxu0 0
      %1737 = vmatmul.mubr.bf16.gmra.mrb[0].mxu0 %v1639
      %v1738 = vpop.f32.mrb[0].mxu0
      %v1739 = vadd.f32 %v1447, %v1738
      %v1740 = vpop.f32.mrb[0].mxu0
      %v1741 = vpop.f32.mrb[0].mxu0
      %v1742 = vadd.f32 %v1450, %v1741
      %v1743 = vpop.f32.mrb[0].mxu0
      %1744 = vmatprep.mubr.bf16.mxu0 0
      %1745 = vmatmul.mubr.bf16.gmra.mrb[0].mxu0 %v1642
      %v1746 = vpop.f32.mrb[0].mxu0
      %v1747 = vadd.f32 %v1455, %v1746
      %v1748 = vpop.f32.mrb[0].mxu0
      %v1749 = vpop.f32.mrb[0].mxu0
      %v1750 = vadd.f32 %v1458, %v1749
      %v1751 = vpop.f32.mrb[0].mxu0
      %1752 = vmatprep.mubr.bf16.mxu0 0
      %1753 = vmatmul.mubr.bf16.gmra.mrb[0].mxu0 %v1645
      %v1754 = vpop.f32.mrb[0].mxu0
      %v1755 = vadd.f32 %v1463, %v1754
      %v1756 = vpop.f32.mrb[0].mxu0
      %v1757 = vpop.f32.mrb[0].mxu0
      %v1758 = vadd.f32 %v1466, %v1757
      %v1759 = vpop.f32.mrb[0].mxu0
      %1760 = vmatprep.mubr.bf16.mxu0 0
      %1761 = vmatmul.mubr.bf16.gmra.mrb[0].mxu0 %v1648
      %v1762 = vpop.f32.mrb[0].mxu0
      %v1763 = vadd.f32 %v1471, %v1762
      %v1764 = vpop.f32.mrb[0].mxu0
      %v1765 = vpop.f32.mrb[0].mxu0
      %v1766 = vadd.f32 %v1474, %v1765
      %v1767 = vpop.f32.mrb[0].mxu0
      %1768 = vmatprep.mubr.bf16.mxu0 0
      %1769 = vmatmul.mubr.bf16.gmra.mrb[0].mxu0 %v1651
      %v1770 = vpop.f32.mrb[0].mxu0
      %v1771 = vadd.f32 %v1479, %v1770
      %v1772 = vpop.f32.mrb[0].mxu0
      %v1773 = vpop.f32.mrb[0].mxu0
      %v1774 = vadd.f32 %v1482, %v1773
      %v1775 = vpop.f32.mrb[0].mxu0
      %1776 = vmatprep.mubr.bf16.mxu0 0
      %1777 = vmatmul.mubr.bf16.gmra.mrb[0].mxu0 %v1654
      %v1778 = vpop.f32.mrb[0].mxu0
      %v1779 = vadd.f32 %v1487, %v1778
      %v1780 = vpop.f32.mrb[0].mxu0
      %v1781 = vpop.f32.mrb[0].mxu0
      %v1782 = vadd.f32 %v1490, %v1781
      %v1783 = vpop.f32.mrb[0].mxu0
      %1784 = vmatprep.mubr.bf16.mxu0 0
      %1785 = vmatmul.mubr.bf16.gmra.mrb[0].mxu0 %v1657
      %v1786 = vpop.f32.mrb[0].mxu0
      %v1787 = vadd.f32 %v1495, %v1786
      %v1788 = vpop.f32.mrb[0].mxu0
      %v1789 = vpop.f32.mrb[0].mxu0
      %v1790 = vadd.f32 %v1498, %v1789
      %v1791 = vpop.f32.mrb[0].mxu0
      %1792 = vmatprep.mubr.bf16.mxu0 0
      %1793 = vmatmul.mubr.bf16.gmra.mrb[0].mxu0 %v1660
      %v1794 = vpop.f32.mrb[0].mxu0
      %v1795 = vadd.f32 %v1503, %v1794
      %v1796 = vpop.f32.mrb[0].mxu0
      %v1797 = vpop.f32.mrb[0].mxu0
      %v1798 = vadd.f32 %v1506, %v1797
      %v1799 = vpop.f32.mrb[0].mxu0
      %1800 = vmatprep.mubr.bf16.mxu0 0
      %1801 = vmatmul.mubr.bf16.gmra.mrb[0].mxu0 %v1663
      %v1802 = vpop.f32.mrb[0].mxu0
      %v1803 = vadd.f32 %v1511, %v1802
      %v1804 = vpop.f32.mrb[0].mxu0
      %v1805 = vpop.f32.mrb[0].mxu0
      %v1806 = vadd.f32 %v1514, %v1805
      %v1807 = vpop.f32.mrb[0].mxu0
      %1808 = vmatprep.mubr.bf16.mxu0 0
      %1809 = vmatmul.mubr.bf16.gmra.mrb[0].mxu0 %v1666
      %v1810 = vpop.f32.mrb[0].mxu0
      %v1811 = vadd.f32 %v1519, %v1810
      %v1812 = vpop.f32.mrb[0].mxu0
      %v1813 = vpop.f32.mrb[0].mxu0
      %v1814 = vadd.f32 %v1522, %v1813
      %v1815 = vpop.f32.mrb[0].mxu0
      %1816 = vmatprep.mubr.bf16.mxu0 0
      %1817 = vmatmul.mubr.bf16.gmra.mrb[0].mxu0 %v1669
      %v1818 = vpop.f32.mrb[0].mxu0
      %v1819 = vadd.f32 %v1527, %v1818
      %v1820 = vpop.f32.mrb[0].mxu0
      %v1821 = vpop.f32.mrb[0].mxu0
      %v1822 = vadd.f32 %v1530, %v1821
      %v1823 = vpop.f32.mrb[0].mxu0
      %1824 = vmatprep.mubr.bf16.mxu0 0
      %1825 = vmatmul.mubr.bf16.gmra.mrb[0].mxu0 %v1672
      %v1826 = vpop.f32.mrb[0].mxu0
      %v1827 = vadd.f32 %v1535, %v1826
      %v1828 = vpop.f32.mrb[0].mxu0
      %v1829 = vpop.f32.mrb[0].mxu0
      %v1830 = vadd.f32 %v1538, %v1829
      %v1831 = vpop.f32.mrb[0].mxu0
      %1832 = vmatprep.mubr.bf16.mxu0 0
      %1833 = vmatmul.mubr.bf16.gmra.mrb[0].mxu0 %v1675
      %v1834 = vpop.f32.mrb[0].mxu0
      %v1835 = vadd.f32 %v1543, %v1834
      %v1836 = vpop.f32.mrb[0].mxu0
      %v1837 = vpop.f32.mrb[0].mxu0
      %v1838 = vadd.f32 %v1546, %v1837
      %v1839 = vpop.f32.mrb[0].mxu0
      %1840 = vdwg.mxu0
      %v1841 = vld [vmem:[#allocation2] sm:$0xe]
      %v1842 = vld [vmem:[#allocation2 + $0xc] sm:$0xe]
      %v1843 = vld [vmem:[#allocation2 + $0x18] sm:$0xe]
      %v1844 = vld [vmem:[#allocation2 + $0x24] sm:$0xe]
      %v1845 = vld [vmem:[#allocation2 + $0x30] sm:$0xe]
      %v1846 = vld [vmem:[#allocation2 + $0x3c] sm:$0xe]
      %v1847 = vld [vmem:[#allocation2 + $0x48] sm:$0xe]
      %v1848 = vld [vmem:[#allocation2 + $0x54] sm:$0xe]
      %v1849 = vld [vmem:[#allocation2 + $0x60] sm:$0xe]
      %v1850 = vld [vmem:[#allocation2 + $0x6c] sm:$0xe]
      %v1851 = vld [vmem:[#allocation2 + $0x78] sm:$0xe]
      %v1852 = vld [vmem:[#allocation2 + $0x84] sm:$0xe]
      %v1853 = vld [vmem:[#allocation2 + $0x90] sm:$0xe]
      %v1854 = vld [vmem:[#allocation2 + $0x9c] sm:$0xe]
      %v1855 = vld [vmem:[#allocation2 + $0xa8] sm:$0xe]
      %v1856 = vld [vmem:[#allocation2 + $0xb4] sm:$0xe]
      %vm1889 = vcmask 1042432
      %vm1890 = vcmask 1046532
      %vm1891 = vmor %vm1889, %vm1890
      %v1892 = vrot.slane %v1841, 5
      %v1893 = vrot.slane %v1892, 4
      %v1894 = vrot.slane %v850, 5
      %v1895 = vsel %vm1891, %v1893, %v1894
      %v1896 = vrot.slane %v1894, 4
      %v1897 = vrot.slane %v882, 5
      %v1898 = vsel %vm1891, %v1896, %v1897
      %v1899 = vrot.slane %v1842, 5
      %v1900 = vrot.slane %v1899, 4
      %v1901 = vrot.slane %v852, 5
      %v1902 = vsel %vm1891, %v1900, %v1901
      %v1903 = vrot.slane %v1901, 4
      %v1904 = vrot.slane %v883, 5
      %v1905 = vsel %vm1891, %v1903, %v1904
      %v1906 = vrot.slane %v1843, 5
      %v1907 = vrot.slane %v1906, 4
      %v1908 = vrot.slane %v854, 5
      %v1909 = vsel %vm1891, %v1907, %v1908
      %v1910 = vrot.slane %v1908, 4
      %v1911 = vrot.slane %v884, 5
      %v1912 = vsel %vm1891, %v1910, %v1911
      %v1913 = vrot.slane %v1844, 5
      %v1914 = vrot.slane %v1913, 4
      %v1915 = vrot.slane %v856, 5
      %v1916 = vsel %vm1891, %v1914, %v1915
      %v1917 = vrot.slane %v1915, 4
      %v1918 = vrot.slane %v885, 5
      %v1919 = vsel %vm1891, %v1917, %v1918
      %v1920 = vrot.slane %v1845, 5
      %v1921 = vrot.slane %v1920, 4
      %v1922 = vrot.slane %v858, 5
      %v1923 = vsel %vm1891, %v1921, %v1922
      %v1924 = vrot.slane %v1922, 4
      %v1925 = vrot.slane %v886, 5
      %v1926 = vsel %vm1891, %v1924, %v1925
      %v1927 = vrot.slane %v1846, 5
      %v1928 = vrot.slane %v1927, 4
      %v1929 = vrot.slane %v860, 5
      %v1930 = vsel %vm1891, %v1928, %v1929
      %v1931 = vrot.slane %v1929, 4
      %v1932 = vrot.slane %v887, 5
      %v1933 = vsel %vm1891, %v1931, %v1932
      %v1934 = vrot.slane %v1847, 5
      %v1935 = vrot.slane %v1934, 4
      %v1936 = vrot.slane %v862, 5
      %v1937 = vsel %vm1891, %v1935, %v1936
      %v1938 = vrot.slane %v1936, 4
      %v1939 = vrot.slane %v888, 5
      %v1940 = vsel %vm1891, %v1938, %v1939
      %v1941 = vrot.slane %v1848, 5
      %v1942 = vrot.slane %v1941, 4
      %v1943 = vrot.slane %v864, 5
      %v1944 = vsel %vm1891, %v1942, %v1943
      %v1945 = vrot.slane %v1943, 4
      %v1946 = vrot.slane %v889, 5
      %v1947 = vsel %vm1891, %v1945, %v1946
      %v1948 = vrot.slane %v1849, 5
      %v1949 = vrot.slane %v1948, 4
      %v1950 = vrot.slane %v866, 5
      %v1951 = vsel %vm1891, %v1949, %v1950
      %v1952 = vrot.slane %v1950, 4
      %v1953 = vrot.slane %v890, 5
      %v1954 = vsel %vm1891, %v1952, %v1953
      %v1955 = vrot.slane %v1850, 5
      %v1956 = vrot.slane %v1955, 4
      %v1957 = vrot.slane %v868, 5
      %v1958 = vsel %vm1891, %v1956, %v1957
      %v1959 = vrot.slane %v1957, 4
      %v1960 = vrot.slane %v891, 5
      %v1961 = vsel %vm1891, %v1959, %v1960
      %v1962 = vrot.slane %v1851, 5
      %v1963 = vrot.slane %v1962, 4
      %v1964 = vrot.slane %v870, 5
      %v1965 = vsel %vm1891, %v1963, %v1964
      %v1966 = vrot.slane %v1964, 4
      %v1967 = vrot.slane %v892, 5
      %v1968 = vsel %vm1891, %v1966, %v1967
      %v1969 = vrot.slane %v1852, 5
      %v1970 = vrot.slane %v1969, 4
      %v1971 = vrot.slane %v872, 5
      %v1972 = vsel %vm1891, %v1970, %v1971
      %v1973 = vrot.slane %v1971, 4
      %v1974 = vrot.slane %v893, 5
      %v1975 = vsel %vm1891, %v1973, %v1974
      %v1976 = vrot.slane %v1853, 5
      %v1977 = vrot.slane %v1976, 4
      %v1978 = vrot.slane %v874, 5
      %v1979 = vsel %vm1891, %v1977, %v1978
      %v1980 = vrot.slane %v1978, 4
      %v1981 = vrot.slane %v894, 5
      %v1982 = vsel %vm1891, %v1980, %v1981
      %v1983 = vrot.slane %v1854, 5
      %v1984 = vrot.slane %v1983, 4
      %v1985 = vrot.slane %v876, 5
      %v1986 = vsel %vm1891, %v1984, %v1985
      %v1987 = vrot.slane %v1985, 4
      %v1988 = vrot.slane %v895, 5
      %v1989 = vsel %vm1891, %v1987, %v1988
      %v1990 = vrot.slane %v1855, 5
      %v1991 = vrot.slane %v1990, 4
      %v1992 = vrot.slane %v878, 5
      %v1993 = vsel %vm1891, %v1991, %v1992
      %v1994 = vrot.slane %v1992, 4
      %v1995 = vrot.slane %v896, 5
      %v1996 = vsel %vm1891, %v1994, %v1995
      %v1997 = vrot.slane %v1856, 5
      %v1998 = vrot.slane %v1997, 4
      %v1999 = vrot.slane %v880, 5
      %v2000 = vsel %vm1891, %v1998, %v1999
      %v2001 = vrot.slane %v1999, 4
      %v2002 = vrot.slane %v897, 5
      %v2003 = vsel %vm1891, %v2001, %v2002
      %s2004 = scalar_lea.vmem %s1, 4
      %v2005 = vld [vmem:[%s2004] sm:$0x3]
      %v2006 = vunpack.c.l.b16 %v1895
      %v2007 = vunpack.c.l.b16 %v1898
      %v2008 = vunpack.c.l.b16 %v1902
      %v2009 = vunpack.c.l.b16 %v1905
      %v2010 = vunpack.c.l.b16 %v1909
      %v2011 = vunpack.c.l.b16 %v1912
      %v2012 = vunpack.c.l.b16 %v1916
      %v2013 = vunpack.c.l.b16 %v1919
      %v2014 = vunpack.c.l.b16 %v1923
      %v2015 = vunpack.c.l.b16 %v1926
      %v2016 = vunpack.c.l.b16 %v1930
      %v2017 = vunpack.c.l.b16 %v1933
      %v2018 = vunpack.c.l.b16 %v1937
      %v2019 = vunpack.c.l.b16 %v1940
      %v2020 = vunpack.c.l.b16 %v1944
      %v2021 = vunpack.c.l.b16 %v1947
      %v2022 = vunpack.c.l.b16 %v1951
      %v2023 = vunpack.c.l.b16 %v1954
      %v2024 = vunpack.c.l.b16 %v1958
      %v2025 = vunpack.c.l.b16 %v1961
      %v2026 = vunpack.c.l.b16 %v1965
      %v2027 = vunpack.c.l.b16 %v1968
      %v2028 = vunpack.c.l.b16 %v1972
      %v2029 = vunpack.c.l.b16 %v1975
      %v2030 = vunpack.c.l.b16 %v1979
      %v2031 = vunpack.c.l.b16 %v1982
      %v2032 = vunpack.c.l.b16 %v1986
      %v2033 = vunpack.c.l.b16 %v1989
      %v2034 = vunpack.c.l.b16 %v1993
      %v2035 = vunpack.c.l.b16 %v1996
      %v2036 = vunpack.c.l.b16 %v2000
      %v2037 = vunpack.c.l.b16 %v2003
      %v2038 = vpack.c.b16 %v2007, %v2006
      %v2039 = vpack.c.b16 %v2009, %v2008
      %v2040 = vpack.c.b16 %v2011, %v2010
      %v2041 = vpack.c.b16 %v2013, %v2012
      %v2042 = vpack.c.b16 %v2015, %v2014
      %v2043 = vpack.c.b16 %v2017, %v2016
      %v2044 = vpack.c.b16 %v2019, %v2018
      %v2045 = vpack.c.b16 %v2021, %v2020
      %v2046 = vpack.c.b16 %v2023, %v2022
      %v2047 = vpack.c.b16 %v2025, %v2024
      %v2048 = vpack.c.b16 %v2027, %v2026
      %v2049 = vpack.c.b16 %v2029, %v2028
      %v2050 = vpack.c.b16 %v2031, %v2030
      %v2051 = vpack.c.b16 %v2033, %v2032
      %v2052 = vpack.c.b16 %v2035, %v2034
      %v2053 = vpack.c.b16 %v2037, %v2036
      %v2055 = vsel %vm1335, %v2038, 0
      %v2058 = vsel %vm1335, %v2039, 0
      %v2061 = vsel %vm1335, %v2040, 0
      %v2064 = vsel %vm1335, %v2041, 0
      %v2067 = vsel %vm1335, %v2042, 0
      %v2070 = vsel %vm1335, %v2043, 0
      %v2073 = vsel %vm1335, %v2044, 0
      %v2076 = vsel %vm1335, %v2045, 0
      %v2079 = vsel %vm1335, %v2046, 0
      %v2082 = vsel %vm1335, %v2047, 0
      %v2085 = vsel %vm1335, %v2048, 0
      %v2088 = vsel %vm1335, %v2049, 0
      %v2091 = vsel %vm1335, %v2050, 0
      %v2094 = vsel %vm1335, %v2051, 0
      %v2097 = vsel %vm1335, %v2052, 0
      %v2100 = vsel %vm1335, %v2053, 0
      %v2103 = vsel %vm1384, %v2005, 0
      %2105 = vmatprep.subr.bf16.mxu0 0
      %2106 = vmatpush1.bf16.msra.mxu0 %v2103
      %2107 = vmatprep.subr.bf16.mxu0 0
      %2108 = vmatpush1.bf16.msra.mxu0 0
      %2109 = vmatprep.subr.bf16.mxu0 0
      %2110 = vmatpush1.bf16.msra.mxu0 0
      %2111 = vmatprep.subr.bf16.mxu0 0
      %2112 = vmatpush1.bf16.msra.mxu0 0
      %2113 = vmatprep.subr.bf16.mxu0 0
      %2114 = vmatpush1.bf16.msra.mxu0 0
      %2115 = vmatprep.subr.bf16.mxu0 0
      %2116 = vmatpush1.bf16.msra.mxu0 0
      %2117 = vmatprep.subr.bf16.mxu0 0
      %2118 = vmatpush1.bf16.msra.mxu0 0
      %2119 = vmatprep.subr.bf16.mxu0 0
      %2120 = vmatpush1.bf16.msra.mxu0 0
      %2121 = vmatprep.subr.bf16.mxu0 0
      %2122 = vmatpush1.bf16.msra.mxu0 0
      %2123 = vmatprep.subr.bf16.mxu0 0
      %2124 = vmatpush1.bf16.msra.mxu0 0
      %2125 = vmatprep.subr.bf16.mxu0 0
      %2126 = vmatpush1.bf16.msra.mxu0 0
      %2127 = vmatprep.subr.bf16.mxu0 0
      %2128 = vmatpush1.bf16.msra.mxu0 0
      %2129 = vmatprep.subr.bf16.mxu0 0
      %2130 = vmatpush1.bf16.msra.mxu0 0
      %2131 = vmatprep.subr.bf16.mxu0 0
      %2132 = vmatpush1.bf16.msra.mxu0 0
      %2133 = vmatprep.subr.bf16.mxu0 0
      %2134 = vmatpush1.bf16.msra.mxu0 0
      %2135 = vmatprep.subr.bf16.mxu0 0
      %2136 = vmatpush1.bf16.msra.mxu0 0
      %2137 = vmatprep.mubr.bf16.mxu0 0
      %2138 = vmatmul.mubr.bf16.gmra.mrb[0].mxu0 %v2055
      %v2139 = vpop.f32.mrb[0].mxu0
      %v2140 = vadd.f32 0.0, %v2139
      %v2141 = vpop.f32.mrb[0].mxu0
      %v2142 = vpop.f32.mrb[0].mxu0
      %v2143 = vadd.f32 0.0, %v2142
      %v2144 = vpop.f32.mrb[0].mxu0
      %2145 = vmatprep.mubr.bf16.mxu0 0
      %2146 = vmatmul.mubr.bf16.gmra.mrb[0].mxu0 %v2058
      %v2147 = vpop.f32.mrb[0].mxu0
      %v2148 = vadd.f32 0.0, %v2147
      %v2149 = vpop.f32.mrb[0].mxu0
      %v2150 = vpop.f32.mrb[0].mxu0
      %v2151 = vadd.f32 0.0, %v2150
      %v2152 = vpop.f32.mrb[0].mxu0
      %2153 = vmatprep.mubr.bf16.mxu0 0
      %2154 = vmatmul.mubr.bf16.gmra.mrb[0].mxu0 %v2061
      %v2155 = vpop.f32.mrb[0].mxu0
      %v2156 = vadd.f32 0.0, %v2155
      %v2157 = vpop.f32.mrb[0].mxu0
      %v2158 = vpop.f32.mrb[0].mxu0
      %v2159 = vadd.f32 0.0, %v2158
      %v2160 = vpop.f32.mrb[0].mxu0
      %2161 = vmatprep.mubr.bf16.mxu0 0
      %2162 = vmatmul.mubr.bf16.gmra.mrb[0].mxu0 %v2064
      %v2163 = vpop.f32.mrb[0].mxu0
      %v2164 = vadd.f32 0.0, %v2163
      %v2165 = vpop.f32.mrb[0].mxu0
      %v2166 = vpop.f32.mrb[0].mxu0
      %v2167 = vadd.f32 0.0, %v2166
      %v2168 = vpop.f32.mrb[0].mxu0
      %2169 = vmatprep.mubr.bf16.mxu0 0
      %2170 = vmatmul.mubr.bf16.gmra.mrb[0].mxu0 %v2067
      %v2171 = vpop.f32.mrb[0].mxu0
      %v2172 = vadd.f32 0.0, %v2171
      %v2173 = vpop.f32.mrb[0].mxu0
      %v2174 = vpop.f32.mrb[0].mxu0
      %v2175 = vadd.f32 0.0, %v2174
      %v2176 = vpop.f32.mrb[0].mxu0
      %2177 = vmatprep.mubr.bf16.mxu0 0
      %2178 = vmatmul.mubr.bf16.gmra.mrb[0].mxu0 %v2070
      %v2179 = vpop.f32.mrb[0].mxu0
      %v2180 = vadd.f32 0.0, %v2179
      %v2181 = vpop.f32.mrb[0].mxu0
      %v2182 = vpop.f32.mrb[0].mxu0
      %v2183 = vadd.f32 0.0, %v2182
      %v2184 = vpop.f32.mrb[0].mxu0
      %2185 = vmatprep.mubr.bf16.mxu0 0
      %2186 = vmatmul.mubr.bf16.gmra.mrb[0].mxu0 %v2073
      %v2187 = vpop.f32.mrb[0].mxu0
      %v2188 = vadd.f32 0.0, %v2187
      %v2189 = vpop.f32.mrb[0].mxu0
      %v2190 = vpop.f32.mrb[0].mxu0
      %v2191 = vadd.f32 0.0, %v2190
      %v2192 = vpop.f32.mrb[0].mxu0
      %2193 = vmatprep.mubr.bf16.mxu0 0
      %2194 = vmatmul.mubr.bf16.gmra.mrb[0].mxu0 %v2076
      %v2195 = vpop.f32.mrb[0].mxu0
      %v2196 = vadd.f32 0.0, %v2195
      %v2197 = vpop.f32.mrb[0].mxu0
      %v2198 = vpop.f32.mrb[0].mxu0
      %v2199 = vadd.f32 0.0, %v2198
      %v2200 = vpop.f32.mrb[0].mxu0
      %2201 = vmatprep.mubr.bf16.mxu0 0
      %2202 = vmatmul.mubr.bf16.gmra.mrb[0].mxu0 %v2079
      %v2203 = vpop.f32.mrb[0].mxu0
      %v2204 = vadd.f32 0.0, %v2203
      %v2205 = vpop.f32.mrb[0].mxu0
      %v2206 = vpop.f32.mrb[0].mxu0
      %v2207 = vadd.f32 0.0, %v2206
      %v2208 = vpop.f32.mrb[0].mxu0
      %2209 = vmatprep.mubr.bf16.mxu0 0
      %2210 = vmatmul.mubr.bf16.gmra.mrb[0].mxu0 %v2082
      %v2211 = vpop.f32.mrb[0].mxu0
      %v2212 = vadd.f32 0.0, %v2211
      %v2213 = vpop.f32.mrb[0].mxu0
      %v2214 = vpop.f32.mrb[0].mxu0
      %v2215 = vadd.f32 0.0, %v2214
      %v2216 = vpop.f32.mrb[0].mxu0
      %2217 = vmatprep.mubr.bf16.mxu0 0
      %2218 = vmatmul.mubr.bf16.gmra.mrb[0].mxu0 %v2085
      %v2219 = vpop.f32.mrb[0].mxu0
      %v2220 = vadd.f32 0.0, %v2219
      %v2221 = vpop.f32.mrb[0].mxu0
      %v2222 = vpop.f32.mrb[0].mxu0
      %v2223 = vadd.f32 0.0, %v2222
      %v2224 = vpop.f32.mrb[0].mxu0
      %2225 = vmatprep.mubr.bf16.mxu0 0
      %2226 = vmatmul.mubr.bf16.gmra.mrb[0].mxu0 %v2088
      %v2227 = vpop.f32.mrb[0].mxu0
      %v2228 = vadd.f32 0.0, %v2227
      %v2229 = vpop.f32.mrb[0].mxu0
      %v2230 = vpop.f32.mrb[0].mxu0
      %v2231 = vadd.f32 0.0, %v2230
      %v2232 = vpop.f32.mrb[0].mxu0
      %2233 = vmatprep.mubr.bf16.mxu0 0
      %2234 = vmatmul.mubr.bf16.gmra.mrb[0].mxu0 %v2091
      %v2235 = vpop.f32.mrb[0].mxu0
      %v2236 = vadd.f32 0.0, %v2235
      %v2237 = vpop.f32.mrb[0].mxu0
      %v2238 = vpop.f32.mrb[0].mxu0
      %v2239 = vadd.f32 0.0, %v2238
      %v2240 = vpop.f32.mrb[0].mxu0
      %2241 = vmatprep.mubr.bf16.mxu0 0
      %2242 = vmatmul.mubr.bf16.gmra.mrb[0].mxu0 %v2094
      %v2243 = vpop.f32.mrb[0].mxu0
      %v2244 = vadd.f32 0.0, %v2243
      %v2245 = vpop.f32.mrb[0].mxu0
      %v2246 = vpop.f32.mrb[0].mxu0
      %v2247 = vadd.f32 0.0, %v2246
      %v2248 = vpop.f32.mrb[0].mxu0
      %2249 = vmatprep.mubr.bf16.mxu0 0
      %2250 = vmatmul.mubr.bf16.gmra.mrb[0].mxu0 %v2097
      %v2251 = vpop.f32.mrb[0].mxu0
      %v2252 = vadd.f32 0.0, %v2251
      %v2253 = vpop.f32.mrb[0].mxu0
      %v2254 = vpop.f32.mrb[0].mxu0
      %v2255 = vadd.f32 0.0, %v2254
      %v2256 = vpop.f32.mrb[0].mxu0
      %2257 = vmatprep.mubr.bf16.mxu0 0
      %2258 = vmatmul.mubr.bf16.gmra.mrb[0].mxu0 %v2100
      %v2259 = vpop.f32.mrb[0].mxu0
      %v2260 = vadd.f32 0.0, %v2259
      %v2261 = vpop.f32.mrb[0].mxu0
      %v2262 = vpop.f32.mrb[0].mxu0
      %v2263 = vadd.f32 0.0, %v2262
      %v2264 = vpop.f32.mrb[0].mxu0
      %2265 = vdwg.mxu0
      %v2266 = vadd.f32 %v1715, %v2140
      %v2267 = vadd.f32 %v1718, %v2143
      %v2268 = vadd.f32 %v1723, %v2148
      %v2269 = vadd.f32 %v1726, %v2151
      %v2270 = vadd.f32 %v1731, %v2156
      %v2271 = vadd.f32 %v1734, %v2159
      %v2272 = vadd.f32 %v1739, %v2164
      %v2273 = vadd.f32 %v1742, %v2167
      %v2274 = vadd.f32 %v1747, %v2172
      %v2275 = vadd.f32 %v1750, %v2175
      %v2276 = vadd.f32 %v1755, %v2180
      %v2277 = vadd.f32 %v1758, %v2183
      %v2278 = vadd.f32 %v1763, %v2188
      %v2279 = vadd.f32 %v1766, %v2191
      %v2280 = vadd.f32 %v1771, %v2196
      %v2281 = vadd.f32 %v1774, %v2199
      %v2282 = vadd.f32 %v1779, %v2204
      %v2283 = vadd.f32 %v1782, %v2207
      %v2284 = vadd.f32 %v1787, %v2212
      %v2285 = vadd.f32 %v1790, %v2215
      %v2286 = vadd.f32 %v1795, %v2220
      %v2287 = vadd.f32 %v1798, %v2223
      %v2288 = vadd.f32 %v1803, %v2228
      %v2289 = vadd.f32 %v1806, %v2231
      %v2290 = vadd.f32 %v1811, %v2236
      %v2291 = vadd.f32 %v1814, %v2239
      %v2292 = vadd.f32 %v1819, %v2244
      %v2293 = vadd.f32 %v1822, %v2247
      %v2294 = vadd.f32 %v1827, %v2252
      %v2295 = vadd.f32 %v1830, %v2255
      %v2296 = vadd.f32 %v1835, %v2260
      %v2297 = vadd.f32 %v1838, %v2263
      %v2298 = vld [vmem:[%s376] sm:$0xf]
      %v2299 = vld [vmem:[%s376 + $0x4] sm:$0xf]
      %v2300 = vld [vmem:[%s376 + $0xc] sm:$0xf]
      %v2301 = vld [vmem:[%s376 + $0x10] sm:$0xf]
      %v2302 = vld [vmem:[%s376 + $0x18] sm:$0xf]
      %v2303 = vld [vmem:[%s376 + $0x1c] sm:$0xf]
      %v2304 = vld [vmem:[%s376 + $0x24] sm:$0xf]
      %v2305 = vld [vmem:[%s376 + $0x28] sm:$0xf]
      %v2306 = vld [vmem:[%s376 + $0x30] sm:$0xf]
      %v2307 = vld [vmem:[%s376 + $0x34] sm:$0xf]
      %v2308 = vld [vmem:[%s376 + $0x3c] sm:$0xf]
      %v2309 = vld [vmem:[%s376 + $0x40] sm:$0xf]
      %v2310 = vld [vmem:[%s376 + $0x48] sm:$0xf]
      %v2311 = vld [vmem:[%s376 + $0x4c] sm:$0xf]
      %v2312 = vld [vmem:[%s376 + $0x54] sm:$0xf]
      %v2313 = vld [vmem:[%s376 + $0x58] sm:$0xf]
      %v2314 = vld [vmem:[%s376 + $0x60] sm:$0xf]
      %v2315 = vld [vmem:[%s376 + $0x64] sm:$0xf]
      %v2316 = vld [vmem:[%s376 + $0x6c] sm:$0xf]
      %v2317 = vld [vmem:[%s376 + $0x70] sm:$0xf]
      %v2318 = vld [vmem:[%s376 + $0x78] sm:$0xf]
      %v2319 = vld [vmem:[%s376 + $0x7c] sm:$0xf]
      %v2320 = vld [vmem:[%s376 + $0x84] sm:$0xf]
      %v2321 = vld [vmem:[%s376 + $0x88] sm:$0xf]
      %v2322 = vld [vmem:[%s376 + $0x90] sm:$0xf]
      %v2323 = vld [vmem:[%s376 + $0x94] sm:$0xf]
      %v2324 = vld [vmem:[%s376 + $0x9c] sm:$0xf]
      %v2325 = vld [vmem:[%s376 + $0xa0] sm:$0xf]
      %v2326 = vld [vmem:[%s376 + $0xa8] sm:$0xf]
      %v2327 = vld [vmem:[%s376 + $0xac] sm:$0xf]
      %v2328 = vld [vmem:[%s376 + $0xb4] sm:$0xf]
      %v2329 = vld [vmem:[%s376 + $0xb8] sm:$0xf]
      %s2330 = scalar_lea.vmem %s1, 6
      %v2331 = vld [vmem:[%s2330] sm:$0x3]
      %v2364 = vunpack.c.l.b16 %v2298
      %v2365 = vunpack.c.l.b16 %v2299
      %v2366 = vunpack.c.l.b16 %v2300
      %v2367 = vunpack.c.l.b16 %v2301
      %v2368 = vunpack.c.l.b16 %v2302
      %v2369 = vunpack.c.l.b16 %v2303
      %v2370 = vunpack.c.l.b16 %v2304
      %v2371 = vunpack.c.l.b16 %v2305
      %v2372 = vunpack.c.l.b16 %v2306
      %v2373 = vunpack.c.l.b16 %v2307
      %v2374 = vunpack.c.l.b16 %v2308
      %v2375 = vunpack.c.l.b16 %v2309
      %v2376 = vunpack.c.l.b16 %v2310
      %v2377 = vunpack.c.l.b16 %v2311
      %v2378 = vunpack.c.l.b16 %v2312
      %v2379 = vunpack.c.l.b16 %v2313
      %v2380 = vunpack.c.l.b16 %v2314
      %v2381 = vunpack.c.l.b16 %v2315
      %v2382 = vunpack.c.l.b16 %v2316
      %v2383 = vunpack.c.l.b16 %v2317
      %v2384 = vunpack.c.l.b16 %v2318
      %v2385 = vunpack.c.l.b16 %v2319
      %v2386 = vunpack.c.l.b16 %v2320
      %v2387 = vunpack.c.l.b16 %v2321
      %v2388 = vunpack.c.l.b16 %v2322
      %v2389 = vunpack.c.l.b16 %v2323
      %v2390 = vunpack.c.l.b16 %v2324
      %v2391 = vunpack.c.l.b16 %v2325
      %v2392 = vunpack.c.l.b16 %v2326
      %v2393 = vunpack.c.l.b16 %v2327
      %v2394 = vunpack.c.l.b16 %v2328
      %v2395 = vunpack.c.l.b16 %v2329
      %v2396 = vpack.c.b16 %v2365, %v2364
      %v2397 = vpack.c.b16 %v2367, %v2366
      %v2398 = vpack.c.b16 %v2369, %v2368
      %v2399 = vpack.c.b16 %v2371, %v2370
      %v2400 = vpack.c.b16 %v2373, %v2372
      %v2401 = vpack.c.b16 %v2375, %v2374
      %v2402 = vpack.c.b16 %v2377, %v2376
      %v2403 = vpack.c.b16 %v2379, %v2378
      %v2404 = vpack.c.b16 %v2381, %v2380
      %v2405 = vpack.c.b16 %v2383, %v2382
      %v2406 = vpack.c.b16 %v2385, %v2384
      %v2407 = vpack.c.b16 %v2387, %v2386
      %v2408 = vpack.c.b16 %v2389, %v2388
      %v2409 = vpack.c.b16 %v2391, %v2390
      %v2410 = vpack.c.b16 %v2393, %v2392
      %v2411 = vpack.c.b16 %v2395, %v2394
      %v2413 = vsel %vm1335, %v2396, 0
      %v2416 = vsel %vm1335, %v2397, 0
      %v2419 = vsel %vm1335, %v2398, 0
      %v2422 = vsel %vm1335, %v2399, 0
      %v2425 = vsel %vm1335, %v2400, 0
      %v2428 = vsel %vm1335, %v2401, 0
      %v2431 = vsel %vm1335, %v2402, 0
      %v2434 = vsel %vm1335, %v2403, 0
      %v2437 = vsel %vm1335, %v2404, 0
      %v2440 = vsel %vm1335, %v2405, 0
      %v2443 = vsel %vm1335, %v2406, 0
      %v2446 = vsel %vm1335, %v2407, 0
      %v2449 = vsel %vm1335, %v2408, 0
      %v2452 = vsel %vm1335, %v2409, 0
      %v2455 = vsel %vm1335, %v2410, 0
      %v2458 = vsel %vm1335, %v2411, 0
      %v2461 = vsel %vm1384, %v2331, 0
      %2463 = vmatprep.subr.bf16.mxu0 0
      %2464 = vmatpush1.bf16.msra.mxu0 %v2461
      %2465 = vmatprep.subr.bf16.mxu0 0
      %2466 = vmatpush1.bf16.msra.mxu0 0
      %2467 = vmatprep.subr.bf16.mxu0 0
      %2468 = vmatpush1.bf16.msra.mxu0 0
      %2469 = vmatprep.subr.bf16.mxu0 0
      %2470 = vmatpush1.bf16.msra.mxu0 0
      %2471 = vmatprep.subr.bf16.mxu0 0
      %2472 = vmatpush1.bf16.msra.mxu0 0
      %2473 = vmatprep.subr.bf16.mxu0 0
      %2474 = vmatpush1.bf16.msra.mxu0 0
      %2475 = vmatprep.subr.bf16.mxu0 0
      %2476 = vmatpush1.bf16.msra.mxu0 0
      %2477 = vmatprep.subr.bf16.mxu0 0
      %2478 = vmatpush1.bf16.msra.mxu0 0
      %2479 = vmatprep.subr.bf16.mxu0 0
      %2480 = vmatpush1.bf16.msra.mxu0 0
      %2481 = vmatprep.subr.bf16.mxu0 0
      %2482 = vmatpush1.bf16.msra.mxu0 0
      %2483 = vmatprep.subr.bf16.mxu0 0
      %2484 = vmatpush1.bf16.msra.mxu0 0
      %2485 = vmatprep.subr.bf16.mxu0 0
      %2486 = vmatpush1.bf16.msra.mxu0 0
      %2487 = vmatprep.subr.bf16.mxu0 0
      %2488 = vmatpush1.bf16.msra.mxu0 0
      %2489 = vmatprep.subr.bf16.mxu0 0
      %2490 = vmatpush1.bf16.msra.mxu0 0
      %2491 = vmatprep.subr.bf16.mxu0 0
      %2492 = vmatpush1.bf16.msra.mxu0 0
      %2493 = vmatprep.subr.bf16.mxu0 0
      %2494 = vmatpush1.bf16.msra.mxu0 0
      %2495 = vmatprep.mubr.bf16.mxu0 0
      %2496 = vmatmul.mubr.bf16.gmra.mrb[0].mxu0 %v2413
      %v2497 = vpop.f32.mrb[0].mxu0
      %v2498 = vadd.f32 0.0, %v2497
      %v2499 = vpop.f32.mrb[0].mxu0
      %v2500 = vpop.f32.mrb[0].mxu0
      %v2501 = vadd.f32 0.0, %v2500
      %v2502 = vpop.f32.mrb[0].mxu0
      %2503 = vmatprep.mubr.bf16.mxu0 0
      %2504 = vmatmul.mubr.bf16.gmra.mrb[0].mxu0 %v2416
      %v2505 = vpop.f32.mrb[0].mxu0
      %v2506 = vadd.f32 0.0, %v2505
      %v2507 = vpop.f32.mrb[0].mxu0
      %v2508 = vpop.f32.mrb[0].mxu0
      %v2509 = vadd.f32 0.0, %v2508
      %v2510 = vpop.f32.mrb[0].mxu0
      %2511 = vmatprep.mubr.bf16.mxu0 0
      %2512 = vmatmul.mubr.bf16.gmra.mrb[0].mxu0 %v2419
      %v2513 = vpop.f32.mrb[0].mxu0
      %v2514 = vadd.f32 0.0, %v2513
      %v2515 = vpop.f32.mrb[0].mxu0
      %v2516 = vpop.f32.mrb[0].mxu0
      %v2517 = vadd.f32 0.0, %v2516
      %v2518 = vpop.f32.mrb[0].mxu0
      %2519 = vmatprep.mubr.bf16.mxu0 0
      %2520 = vmatmul.mubr.bf16.gmra.mrb[0].mxu0 %v2422
      %v2521 = vpop.f32.mrb[0].mxu0
      %v2522 = vadd.f32 0.0, %v2521
      %v2523 = vpop.f32.mrb[0].mxu0
      %v2524 = vpop.f32.mrb[0].mxu0
      %v2525 = vadd.f32 0.0, %v2524
      %v2526 = vpop.f32.mrb[0].mxu0
      %2527 = vmatprep.mubr.bf16.mxu0 0
      %2528 = vmatmul.mubr.bf16.gmra.mrb[0].mxu0 %v2425
      %v2529 = vpop.f32.mrb[0].mxu0
      %v2530 = vadd.f32 0.0, %v2529
      %v2531 = vpop.f32.mrb[0].mxu0
      %v2532 = vpop.f32.mrb[0].mxu0
      %v2533 = vadd.f32 0.0, %v2532
      %v2534 = vpop.f32.mrb[0].mxu0
      %2535 = vmatprep.mubr.bf16.mxu0 0
      %2536 = vmatmul.mubr.bf16.gmra.mrb[0].mxu0 %v2428
      %v2537 = vpop.f32.mrb[0].mxu0
      %v2538 = vadd.f32 0.0, %v2537
      %v2539 = vpop.f32.mrb[0].mxu0
      %v2540 = vpop.f32.mrb[0].mxu0
      %v2541 = vadd.f32 0.0, %v2540
      %v2542 = vpop.f32.mrb[0].mxu0
      %2543 = vmatprep.mubr.bf16.mxu0 0
      %2544 = vmatmul.mubr.bf16.gmra.mrb[0].mxu0 %v2431
      %v2545 = vpop.f32.mrb[0].mxu0
      %v2546 = vadd.f32 0.0, %v2545
      %v2547 = vpop.f32.mrb[0].mxu0
      %v2548 = vpop.f32.mrb[0].mxu0
      %v2549 = vadd.f32 0.0, %v2548
      %v2550 = vpop.f32.mrb[0].mxu0
      %2551 = vmatprep.mubr.bf16.mxu0 0
      %2552 = vmatmul.mubr.bf16.gmra.mrb[0].mxu0 %v2434
      %v2553 = vpop.f32.mrb[0].mxu0
      %v2554 = vadd.f32 0.0, %v2553
      %v2555 = vpop.f32.mrb[0].mxu0
      %v2556 = vpop.f32.mrb[0].mxu0
      %v2557 = vadd.f32 0.0, %v2556
      %v2558 = vpop.f32.mrb[0].mxu0
      %2559 = vmatprep.mubr.bf16.mxu0 0
      %2560 = vmatmul.mubr.bf16.gmra.mrb[0].mxu0 %v2437
      %v2561 = vpop.f32.mrb[0].mxu0
      %v2562 = vadd.f32 0.0, %v2561
      %v2563 = vpop.f32.mrb[0].mxu0
      %v2564 = vpop.f32.mrb[0].mxu0
      %v2565 = vadd.f32 0.0, %v2564
      %v2566 = vpop.f32.mrb[0].mxu0
      %2567 = vmatprep.mubr.bf16.mxu0 0
      %2568 = vmatmul.mubr.bf16.gmra.mrb[0].mxu0 %v2440
      %v2569 = vpop.f32.mrb[0].mxu0
      %v2570 = vadd.f32 0.0, %v2569
      %v2571 = vpop.f32.mrb[0].mxu0
      %v2572 = vpop.f32.mrb[0].mxu0
      %v2573 = vadd.f32 0.0, %v2572
      %v2574 = vpop.f32.mrb[0].mxu0
      %2575 = vmatprep.mubr.bf16.mxu0 0
      %2576 = vmatmul.mubr.bf16.gmra.mrb[0].mxu0 %v2443
      %v2577 = vpop.f32.mrb[0].mxu0
      %v2578 = vadd.f32 0.0, %v2577
      %v2579 = vpop.f32.mrb[0].mxu0
      %v2580 = vpop.f32.mrb[0].mxu0
      %v2581 = vadd.f32 0.0, %v2580
      %v2582 = vpop.f32.mrb[0].mxu0
      %2583 = vmatprep.mubr.bf16.mxu0 0
      %2584 = vmatmul.mubr.bf16.gmra.mrb[0].mxu0 %v2446
      %v2585 = vpop.f32.mrb[0].mxu0
      %v2586 = vadd.f32 0.0, %v2585
      %v2587 = vpop.f32.mrb[0].mxu0
      %v2588 = vpop.f32.mrb[0].mxu0
      %v2589 = vadd.f32 0.0, %v2588
      %v2590 = vpop.f32.mrb[0].mxu0
      %2591 = vmatprep.mubr.bf16.mxu0 0
      %2592 = vmatmul.mubr.bf16.gmra.mrb[0].mxu0 %v2449
      %v2593 = vpop.f32.mrb[0].mxu0
      %v2594 = vadd.f32 0.0, %v2593
      %v2595 = vpop.f32.mrb[0].mxu0
      %v2596 = vpop.f32.mrb[0].mxu0
      %v2597 = vadd.f32 0.0, %v2596
      %v2598 = vpop.f32.mrb[0].mxu0
      %2599 = vmatprep.mubr.bf16.mxu0 0
      %2600 = vmatmul.mubr.bf16.gmra.mrb[0].mxu0 %v2452
      %v2601 = vpop.f32.mrb[0].mxu0
      %v2602 = vadd.f32 0.0, %v2601
      %v2603 = vpop.f32.mrb[0].mxu0
      %v2604 = vpop.f32.mrb[0].mxu0
      %v2605 = vadd.f32 0.0, %v2604
      %v2606 = vpop.f32.mrb[0].mxu0
      %2607 = vmatprep.mubr.bf16.mxu0 0
      %2608 = vmatmul.mubr.bf16.gmra.mrb[0].mxu0 %v2455
      %v2609 = vpop.f32.mrb[0].mxu0
      %v2610 = vadd.f32 0.0, %v2609
      %v2611 = vpop.f32.mrb[0].mxu0
      %v2612 = vpop.f32.mrb[0].mxu0
      %v2613 = vadd.f32 0.0, %v2612
      %v2614 = vpop.f32.mrb[0].mxu0
      %2615 = vmatprep.mubr.bf16.mxu0 0
      %2616 = vmatmul.mubr.bf16.gmra.mrb[0].mxu0 %v2458
      %v2617 = vpop.f32.mrb[0].mxu0
      %v2618 = vadd.f32 0.0, %v2617
      %v2619 = vpop.f32.mrb[0].mxu0
      %v2620 = vpop.f32.mrb[0].mxu0
      %v2621 = vadd.f32 0.0, %v2620
      %v2622 = vpop.f32.mrb[0].mxu0
      %2623 = vdwg.mxu0
      %v2624 = vadd.f32 %v2266, %v2498
      %v2625 = vadd.f32 %v2267, %v2501
      %v2626 = vadd.f32 %v2268, %v2506
      %v2627 = vadd.f32 %v2269, %v2509
      %v2628 = vadd.f32 %v2270, %v2514
      %v2629 = vadd.f32 %v2271, %v2517
      %v2630 = vadd.f32 %v2272, %v2522
      %v2631 = vadd.f32 %v2273, %v2525
      %v2632 = vadd.f32 %v2274, %v2530
      %v2633 = vadd.f32 %v2275, %v2533
      %v2634 = vadd.f32 %v2276, %v2538
      %v2635 = vadd.f32 %v2277, %v2541
      %v2636 = vadd.f32 %v2278, %v2546
      %v2637 = vadd.f32 %v2279, %v2549
      %v2638 = vadd.f32 %v2280, %v2554
      %v2639 = vadd.f32 %v2281, %v2557
      %v2640 = vadd.f32 %v2282, %v2562
      %v2641 = vadd.f32 %v2283, %v2565
      %v2642 = vadd.f32 %v2284, %v2570
      %v2643 = vadd.f32 %v2285, %v2573
      %v2644 = vadd.f32 %v2286, %v2578
      %v2645 = vadd.f32 %v2287, %v2581
      %v2646 = vadd.f32 %v2288, %v2586
      %v2647 = vadd.f32 %v2289, %v2589
      %v2648 = vadd.f32 %v2290, %v2594
      %v2649 = vadd.f32 %v2291, %v2597
      %v2650 = vadd.f32 %v2292, %v2602
      %v2651 = vadd.f32 %v2293, %v2605
      %v2652 = vadd.f32 %v2294, %v2610
      %v2653 = vadd.f32 %v2295, %v2613
      %v2654 = vadd.f32 %v2296, %v2618
      %v2655 = vadd.f32 %v2297, %v2621
      %v2656 = vld [vmem:[%s376] sm:$0xf]
      %v2657 = vld [vmem:[%s376 + $0x4] sm:$0xf]
      %v2658 = vld [vmem:[%s376 + $0x8] sm:$0x1]
      %v2659 = vld [vmem:[%s376 + $0xc] sm:$0xf]
      %v2660 = vld [vmem:[%s376 + $0x10] sm:$0xf]
      %v2661 = vld [vmem:[%s376 + $0x14] sm:$0x1]
      %v2662 = vld [vmem:[%s376 + $0x18] sm:$0xf]
      %v2663 = vld [vmem:[%s376 + $0x1c] sm:$0xf]
      %v2664 = vld [vmem:[%s376 + $0x20] sm:$0x1]
      %v2665 = vld [vmem:[%s376 + $0x24] sm:$0xf]
      %v2666 = vld [vmem:[%s376 + $0x28] sm:$0xf]
      %v2667 = vld [vmem:[%s376 + $0x2c] sm:$0x1]
      %v2668 = vld [vmem:[%s376 + $0x30] sm:$0xf]
      %v2669 = vld [vmem:[%s376 + $0x34] sm:$0xf]
      %v2670 = vld [vmem:[%s376 + $0x38] sm:$0x1]
      %v2671 = vld [vmem:[%s376 + $0x3c] sm:$0xf]
      %v2672 = vld [vmem:[%s376 + $0x40] sm:$0xf]
      %v2673 = vld [vmem:[%s376 + $0x44] sm:$0x1]
      %v2674 = vld [vmem:[%s376 + $0x48] sm:$0xf]
      %v2675 = vld [vmem:[%s376 + $0x4c] sm:$0xf]
      %v2676 = vld [vmem:[%s376 + $0x50] sm:$0x1]
      %v2677 = vld [vmem:[%s376 + $0x54] sm:$0xf]
      %v2678 = vld [vmem:[%s376 + $0x58] sm:$0xf]
      %v2679 = vld [vmem:[%s376 + $0x5c] sm:$0x1]
      %v2680 = vld [vmem:[%s376 + $0x60] sm:$0xf]
      %v2681 = vld [vmem:[%s376 + $0x64] sm:$0xf]
      %v2682 = vld [vmem:[%s376 + $0x68] sm:$0x1]
      %v2683 = vld [vmem:[%s376 + $0x6c] sm:$0xf]
      %v2684 = vld [vmem:[%s376 + $0x70] sm:$0xf]
      %v2685 = vld [vmem:[%s376 + $0x74] sm:$0x1]
      %v2686 = vld [vmem:[%s376 + $0x78] sm:$0xf]
      %v2687 = vld [vmem:[%s376 + $0x7c] sm:$0xf]
      %v2688 = vld [vmem:[%s376 + $0x80] sm:$0x1]
      %v2689 = vld [vmem:[%s376 + $0x84] sm:$0xf]
      %v2690 = vld [vmem:[%s376 + $0x88] sm:$0xf]
      %v2691 = vld [vmem:[%s376 + $0x8c] sm:$0x1]
      %v2692 = vld [vmem:[%s376 + $0x90] sm:$0xf]
      %v2693 = vld [vmem:[%s376 + $0x94] sm:$0xf]
      %v2694 = vld [vmem:[%s376 + $0x98] sm:$0x1]
      %v2695 = vld [vmem:[%s376 + $0x9c] sm:$0xf]
      %v2696 = vld [vmem:[%s376 + $0xa0] sm:$0xf]
      %v2697 = vld [vmem:[%s376 + $0xa4] sm:$0x1]
      %v2698 = vld [vmem:[%s376 + $0xa8] sm:$0xf]
      %v2699 = vld [vmem:[%s376 + $0xac] sm:$0xf]
      %v2700 = vld [vmem:[%s376 + $0xb0] sm:$0x1]
      %v2701 = vld [vmem:[%s376 + $0xb4] sm:$0xf]
      %v2702 = vld [vmem:[%s376 + $0xb8] sm:$0xf]
      %v2703 = vld [vmem:[%s376 + $0xbc] sm:$0x1]
      %v2705 = vshrl.u32 %v2656, 16
      %v2707 = vrot.slane %v2705, 4
      %v2708 = vshll.u32 %v2656, 16
      %v2710 = vrot.slane %v2708, 5
      %v2711 = vor.u32 %v2707, %v2710
      %v2712 = vrot.slane %v2711, 4
      %v2714 = vshll.u32 %v2657, 16
      %v2716 = vrot.slane %v2714, 5
      %v2717 = vsel %vm900, %v2712, %v2716
      %v2718 = vshrl.u32 %v2657, 16
      %v2720 = vrot.slane %v2718, 4
      %v2721 = vor.u32 %v2720, %v2716
      %v2722 = vrot.slane %v2721, 4
      %v2724 = vshll.u32 %v2658, 16
      %v2726 = vrot.slane %v2724, 5
      %v2727 = vsel %vm900, %v2722, %v2726
      %v2729 = vshrl.u32 %v2659, 16
      %v2731 = vrot.slane %v2729, 4
      %v2732 = vshll.u32 %v2659, 16
      %v2734 = vrot.slane %v2732, 5
      %v2735 = vor.u32 %v2731, %v2734
      %v2736 = vrot.slane %v2735, 4
      %v2738 = vshll.u32 %v2660, 16
      %v2740 = vrot.slane %v2738, 5
      %v2741 = vsel %vm900, %v2736, %v2740
      %v2742 = vshrl.u32 %v2660, 16
      %v2744 = vrot.slane %v2742, 4
      %v2745 = vor.u32 %v2744, %v2740
      %v2746 = vrot.slane %v2745, 4
      %v2748 = vshll.u32 %v2661, 16
      %v2750 = vrot.slane %v2748, 5
      %v2751 = vsel %vm900, %v2746, %v2750
      %v2753 = vshrl.u32 %v2662, 16
      %v2755 = vrot.slane %v2753, 4
      %v2756 = vshll.u32 %v2662, 16
      %v2758 = vrot.slane %v2756, 5
      %v2759 = vor.u32 %v2755, %v2758
      %v2760 = vrot.slane %v2759, 4
      %v2762 = vshll.u32 %v2663, 16
      %v2764 = vrot.slane %v2762, 5
      %v2765 = vsel %vm900, %v2760, %v2764
      %v2766 = vshrl.u32 %v2663, 16
      %v2768 = vrot.slane %v2766, 4
      %v2769 = vor.u32 %v2768, %v2764
      %v2770 = vrot.slane %v2769, 4
      %v2772 = vshll.u32 %v2664, 16
      %v2774 = vrot.slane %v2772, 5
      %v2775 = vsel %vm900, %v2770, %v2774
      %v2777 = vshrl.u32 %v2665, 16
      %v2779 = vrot.slane %v2777, 4
      %v2780 = vshll.u32 %v2665, 16
      %v2782 = vrot.slane %v2780, 5
      %v2783 = vor.u32 %v2779, %v2782
      %v2784 = vrot.slane %v2783, 4
      %v2786 = vshll.u32 %v2666, 16
      %v2788 = vrot.slane %v2786, 5
      %v2789 = vsel %vm900, %v2784, %v2788
      %v2790 = vshrl.u32 %v2666, 16
      %v2792 = vrot.slane %v2790, 4
      %v2793 = vor.u32 %v2792, %v2788
      %v2794 = vrot.slane %v2793, 4
      %v2796 = vshll.u32 %v2667, 16
      %v2798 = vrot.slane %v2796, 5
      %v2799 = vsel %vm900, %v2794, %v2798
      %v2801 = vshrl.u32 %v2668, 16
      %v2803 = vrot.slane %v2801, 4
      %v2804 = vshll.u32 %v2668, 16
      %v2806 = vrot.slane %v2804, 5
      %v2807 = vor.u32 %v2803, %v2806
      %v2808 = vrot.slane %v2807, 4
      %v2810 = vshll.u32 %v2669, 16
      %v2812 = vrot.slane %v2810, 5
      %v2813 = vsel %vm900, %v2808, %v2812
      %v2814 = vshrl.u32 %v2669, 16
      %v2816 = vrot.slane %v2814, 4
      %v2817 = vor.u32 %v2816, %v2812
      %v2818 = vrot.slane %v2817, 4
      %v2820 = vshll.u32 %v2670, 16
      %v2822 = vrot.slane %v2820, 5
      %v2823 = vsel %vm900, %v2818, %v2822
      %v2825 = vshrl.u32 %v2671, 16
      %v2827 = vrot.slane %v2825, 4
      %v2828 = vshll.u32 %v2671, 16
      %v2830 = vrot.slane %v2828, 5
      %v2831 = vor.u32 %v2827, %v2830
      %v2832 = vrot.slane %v2831, 4
      %v2834 = vshll.u32 %v2672, 16
      %v2836 = vrot.slane %v2834, 5
      %v2837 = vsel %vm900, %v2832, %v2836
      %v2838 = vshrl.u32 %v2672, 16
      %v2840 = vrot.slane %v2838, 4
      %v2841 = vor.u32 %v2840, %v2836
      %v2842 = vrot.slane %v2841, 4
      %v2844 = vshll.u32 %v2673, 16
      %v2846 = vrot.slane %v2844, 5
      %v2847 = vsel %vm900, %v2842, %v2846
      %v2849 = vshrl.u32 %v2674, 16
      %v2851 = vrot.slane %v2849, 4
      %v2852 = vshll.u32 %v2674, 16
      %v2854 = vrot.slane %v2852, 5
      %v2855 = vor.u32 %v2851, %v2854
      %v2856 = vrot.slane %v2855, 4
      %v2858 = vshll.u32 %v2675, 16
      %v2860 = vrot.slane %v2858, 5
      %v2861 = vsel %vm900, %v2856, %v2860
      %v2862 = vshrl.u32 %v2675, 16
      %v2864 = vrot.slane %v2862, 4
      %v2865 = vor.u32 %v2864, %v2860
      %v2866 = vrot.slane %v2865, 4
      %v2868 = vshll.u32 %v2676, 16
      %v2870 = vrot.slane %v2868, 5
      %v2871 = vsel %vm900, %v2866, %v2870
      %v2873 = vshrl.u32 %v2677, 16
      %v2875 = vrot.slane %v2873, 4
      %v2876 = vshll.u32 %v2677, 16
      %v2878 = vrot.slane %v2876, 5
      %v2879 = vor.u32 %v2875, %v2878
      %v2880 = vrot.slane %v2879, 4
      %v2882 = vshll.u32 %v2678, 16
      %v2884 = vrot.slane %v2882, 5
      %v2885 = vsel %vm900, %v2880, %v2884
      %v2886 = vshrl.u32 %v2678, 16
      %v2888 = vrot.slane %v2886, 4
      %v2889 = vor.u32 %v2888, %v2884
      %v2890 = vrot.slane %v2889, 4
      %v2892 = vshll.u32 %v2679, 16
      %v2894 = vrot.slane %v2892, 5
      %v2895 = vsel %vm900, %v2890, %v2894
      %v2897 = vshrl.u32 %v2680, 16
      %v2899 = vrot.slane %v2897, 4
      %v2900 = vshll.u32 %v2680, 16
      %v2902 = vrot.slane %v2900, 5
      %v2903 = vor.u32 %v2899, %v2902
      %v2904 = vrot.slane %v2903, 4
      %v2906 = vshll.u32 %v2681, 16
      %v2908 = vrot.slane %v2906, 5
      %v2909 = vsel %vm900, %v2904, %v2908
      %v2910 = vshrl.u32 %v2681, 16
      %v2912 = vrot.slane %v2910, 4
      %v2913 = vor.u32 %v2912, %v2908
      %v2914 = vrot.slane %v2913, 4
      %v2916 = vshll.u32 %v2682, 16
      %v2918 = vrot.slane %v2916, 5
      %v2919 = vsel %vm900, %v2914, %v2918
      %v2921 = vshrl.u32 %v2683, 16
      %v2923 = vrot.slane %v2921, 4
      %v2924 = vshll.u32 %v2683, 16
      %v2926 = vrot.slane %v2924, 5
      %v2927 = vor.u32 %v2923, %v2926
      %v2928 = vrot.slane %v2927, 4
      %v2930 = vshll.u32 %v2684, 16
      %v2932 = vrot.slane %v2930, 5
      %v2933 = vsel %vm900, %v2928, %v2932
      %v2934 = vshrl.u32 %v2684, 16
      %v2936 = vrot.slane %v2934, 4
      %v2937 = vor.u32 %v2936, %v2932
      %v2938 = vrot.slane %v2937, 4
      %v2940 = vshll.u32 %v2685, 16
      %v2942 = vrot.slane %v2940, 5
      %v2943 = vsel %vm900, %v2938, %v2942
      %v2945 = vshrl.u32 %v2686, 16
      %v2947 = vrot.slane %v2945, 4
      %v2948 = vshll.u32 %v2686, 16
      %v2950 = vrot.slane %v2948, 5
      %v2951 = vor.u32 %v2947, %v2950
      %v2952 = vrot.slane %v2951, 4
      %v2954 = vshll.u32 %v2687, 16
      %v2956 = vrot.slane %v2954, 5
      %v2957 = vsel %vm900, %v2952, %v2956
      %v2958 = vshrl.u32 %v2687, 16
      %v2960 = vrot.slane %v2958, 4
      %v2961 = vor.u32 %v2960, %v2956
      %v2962 = vrot.slane %v2961, 4
      %v2964 = vshll.u32 %v2688, 16
      %v2966 = vrot.slane %v2964, 5
      %v2967 = vsel %vm900, %v2962, %v2966
      %v2969 = vshrl.u32 %v2689, 16
      %v2971 = vrot.slane %v2969, 4
      %v2972 = vshll.u32 %v2689, 16
      %v2974 = vrot.slane %v2972, 5
      %v2975 = vor.u32 %v2971, %v2974
      %v2976 = vrot.slane %v2975, 4
      %v2978 = vshll.u32 %v2690, 16
      %v2980 = vrot.slane %v2978, 5
      %v2981 = vsel %vm900, %v2976, %v2980
      %v2982 = vshrl.u32 %v2690, 16
      %v2984 = vrot.slane %v2982, 4
      %v2985 = vor.u32 %v2984, %v2980
      %v2986 = vrot.slane %v2985, 4
      %v2988 = vshll.u32 %v2691, 16
      %v2990 = vrot.slane %v2988, 5
      %v2991 = vsel %vm900, %v2986, %v2990
      %v2993 = vshrl.u32 %v2692, 16
      %v2995 = vrot.slane %v2993, 4
      %v2996 = vshll.u32 %v2692, 16
      %v2998 = vrot.slane %v2996, 5
      %v2999 = vor.u32 %v2995, %v2998
      %v3000 = vrot.slane %v2999, 4
      %v3002 = vshll.u32 %v2693, 16
      %v3004 = vrot.slane %v3002, 5
      %v3005 = vsel %vm900, %v3000, %v3004
      %v3006 = vshrl.u32 %v2693, 16
      %v3008 = vrot.slane %v3006, 4
      %v3009 = vor.u32 %v3008, %v3004
      %v3010 = vrot.slane %v3009, 4
      %v3012 = vshll.u32 %v2694, 16
      %v3014 = vrot.slane %v3012, 5
      %v3015 = vsel %vm900, %v3010, %v3014
      %v3017 = vshrl.u32 %v2695, 16
      %v3019 = vrot.slane %v3017, 4
      %v3020 = vshll.u32 %v2695, 16
      %v3022 = vrot.slane %v3020, 5
      %v3023 = vor.u32 %v3019, %v3022
      %v3024 = vrot.slane %v3023, 4
      %v3026 = vshll.u32 %v2696, 16
      %v3028 = vrot.slane %v3026, 5
      %v3029 = vsel %vm900, %v3024, %v3028
      %v3030 = vshrl.u32 %v2696, 16
      %v3032 = vrot.slane %v3030, 4
      %v3033 = vor.u32 %v3032, %v3028
      %v3034 = vrot.slane %v3033, 4
      %v3036 = vshll.u32 %v2697, 16
      %v3038 = vrot.slane %v3036, 5
      %v3039 = vsel %vm900, %v3034, %v3038
      %v3041 = vshrl.u32 %v2698, 16
      %v3043 = vrot.slane %v3041, 4
      %v3044 = vshll.u32 %v2698, 16
      %v3046 = vrot.slane %v3044, 5
      %v3047 = vor.u32 %v3043, %v3046
      %v3048 = vrot.slane %v3047, 4
      %v3050 = vshll.u32 %v2699, 16
      %v3052 = vrot.slane %v3050, 5
      %v3053 = vsel %vm900, %v3048, %v3052
      %v3054 = vshrl.u32 %v2699, 16
      %v3056 = vrot.slane %v3054, 4
      %v3057 = vor.u32 %v3056, %v3052
      %v3058 = vrot.slane %v3057, 4
      %v3060 = vshll.u32 %v2700, 16
      %v3062 = vrot.slane %v3060, 5
      %v3063 = vsel %vm900, %v3058, %v3062
      %v3065 = vshrl.u32 %v2701, 16
      %v3067 = vrot.slane %v3065, 4
      %v3068 = vshll.u32 %v2701, 16
      %v3070 = vrot.slane %v3068, 5
      %v3071 = vor.u32 %v3067, %v3070
      %v3072 = vrot.slane %v3071, 4
      %v3074 = vshll.u32 %v2702, 16
      %v3076 = vrot.slane %v3074, 5
      %v3077 = vsel %vm900, %v3072, %v3076
      %v3078 = vshrl.u32 %v2702, 16
      %v3080 = vrot.slane %v3078, 4
      %v3081 = vor.u32 %v3080, %v3076
      %v3082 = vrot.slane %v3081, 4
      %v3084 = vshll.u32 %v2703, 16
      %v3086 = vrot.slane %v3084, 5
      %v3087 = vsel %vm900, %v3082, %v3086
      %s3088 = scalar_lea.vmem %s1, 8
      %v3089 = vld [vmem:[%s3088] sm:$0x3]
      %v3090 = vunpack.c.l.b16 %v2717
      %v3091 = vunpack.c.l.b16 %v2727
      %v3092 = vunpack.c.l.b16 %v2741
      %v3093 = vunpack.c.l.b16 %v2751
      %v3094 = vunpack.c.l.b16 %v2765
      %v3095 = vunpack.c.l.b16 %v2775
      %v3096 = vunpack.c.l.b16 %v2789
      %v3097 = vunpack.c.l.b16 %v2799
      %v3098 = vunpack.c.l.b16 %v2813
      %v3099 = vunpack.c.l.b16 %v2823
      %v3100 = vunpack.c.l.b16 %v2837
      %v3101 = vunpack.c.l.b16 %v2847
      %v3102 = vunpack.c.l.b16 %v2861
      %v3103 = vunpack.c.l.b16 %v2871
      %v3104 = vunpack.c.l.b16 %v2885
      %v3105 = vunpack.c.l.b16 %v2895
      %v3106 = vunpack.c.l.b16 %v2909
      %v3107 = vunpack.c.l.b16 %v2919
      %v3108 = vunpack.c.l.b16 %v2933
      %v3109 = vunpack.c.l.b16 %v2943
      %v3110 = vunpack.c.l.b16 %v2957
      %v3111 = vunpack.c.l.b16 %v2967
      %v3112 = vunpack.c.l.b16 %v2981
      %v3113 = vunpack.c.l.b16 %v2991
      %v3114 = vunpack.c.l.b16 %v3005
      %v3115 = vunpack.c.l.b16 %v3015
      %v3116 = vunpack.c.l.b16 %v3029
      %v3117 = vunpack.c.l.b16 %v3039
      %v3118 = vunpack.c.l.b16 %v3053
      %v3119 = vunpack.c.l.b16 %v3063
      %v3120 = vunpack.c.l.b16 %v3077
      %v3121 = vunpack.c.l.b16 %v3087
      %v3122 = vpack.c.b16 %v3091, %v3090
      %v3123 = vpack.c.b16 %v3093, %v3092
      %v3124 = vpack.c.b16 %v3095, %v3094
      %v3125 = vpack.c.b16 %v3097, %v3096
      %v3126 = vpack.c.b16 %v3099, %v3098
      %v3127 = vpack.c.b16 %v3101, %v3100
      %v3128 = vpack.c.b16 %v3103, %v3102
      %v3129 = vpack.c.b16 %v3105, %v3104
      %v3130 = vpack.c.b16 %v3107, %v3106
      %v3131 = vpack.c.b16 %v3109, %v3108
      %v3132 = vpack.c.b16 %v3111, %v3110
      %v3133 = vpack.c.b16 %v3113, %v3112
      %v3134 = vpack.c.b16 %v3115, %v3114
      %v3135 = vpack.c.b16 %v3117, %v3116
      %v3136 = vpack.c.b16 %v3119, %v3118
      %v3137 = vpack.c.b16 %v3121, %v3120
      %v3139 = vsel %vm1335, %v3122, 0
      %v3142 = vsel %vm1335, %v3123, 0
      %v3145 = vsel %vm1335, %v3124, 0
      %v3148 = vsel %vm1335, %v3125, 0
      %v3151 = vsel %vm1335, %v3126, 0
      %v3154 = vsel %vm1335, %v3127, 0
      %v3157 = vsel %vm1335, %v3128, 0
      %v3160 = vsel %vm1335, %v3129, 0
      %v3163 = vsel %vm1335, %v3130, 0
      %v3166 = vsel %vm1335, %v3131, 0
      %v3169 = vsel %vm1335, %v3132, 0
      %v3172 = vsel %vm1335, %v3133, 0
      %v3175 = vsel %vm1335, %v3134, 0
      %v3178 = vsel %vm1335, %v3135, 0
      %v3181 = vsel %vm1335, %v3136, 0
      %v3184 = vsel %vm1335, %v3137, 0
      %v3187 = vsel %vm1384, %v3089, 0
      %3189 = vmatprep.subr.bf16.mxu0 0
      %3190 = vmatpush1.bf16.msra.mxu0 %v3187
      %3191 = vmatprep.subr.bf16.mxu0 0
      %3192 = vmatpush1.bf16.msra.mxu0 0
      %3193 = vmatprep.subr.bf16.mxu0 0
      %3194 = vmatpush1.bf16.msra.mxu0 0
      %3195 = vmatprep.subr.bf16.mxu0 0
      %3196 = vmatpush1.bf16.msra.mxu0 0
      %3197 = vmatprep.subr.bf16.mxu0 0
      %3198 = vmatpush1.bf16.msra.mxu0 0
      %3199 = vmatprep.subr.bf16.mxu0 0
      %3200 = vmatpush1.bf16.msra.mxu0 0
      %3201 = vmatprep.subr.bf16.mxu0 0
      %3202 = vmatpush1.bf16.msra.mxu0 0
      %3203 = vmatprep.subr.bf16.mxu0 0
      %3204 = vmatpush1.bf16.msra.mxu0 0
      %3205 = vmatprep.subr.bf16.mxu0 0
      %3206 = vmatpush1.bf16.msra.mxu0 0
      %3207 = vmatprep.subr.bf16.mxu0 0
      %3208 = vmatpush1.bf16.msra.mxu0 0
      %3209 = vmatprep.subr.bf16.mxu0 0
      %3210 = vmatpush1.bf16.msra.mxu0 0
      %3211 = vmatprep.subr.bf16.mxu0 0
      %3212 = vmatpush1.bf16.msra.mxu0 0
      %3213 = vmatprep.subr.bf16.mxu0 0
      %3214 = vmatpush1.bf16.msra.mxu0 0
      %3215 = vmatprep.subr.bf16.mxu0 0
      %3216 = vmatpush1.bf16.msra.mxu0 0
      %3217 = vmatprep.subr.bf16.mxu0 0
      %3218 = vmatpush1.bf16.msra.mxu0 0
      %3219 = vmatprep.subr.bf16.mxu0 0
      %3220 = vmatpush1.bf16.msra.mxu0 0
      %3221 = vmatprep.mubr.bf16.mxu0 0
      %3222 = vmatmul.mubr.bf16.gmra.mrb[0].mxu0 %v3139
      %v3223 = vpop.f32.mrb[0].mxu0
      %v3224 = vadd.f32 0.0, %v3223
      %v3225 = vpop.f32.mrb[0].mxu0
      %v3226 = vpop.f32.mrb[0].mxu0
      %v3227 = vadd.f32 0.0, %v3226
      %v3228 = vpop.f32.mrb[0].mxu0
      %3229 = vmatprep.mubr.bf16.mxu0 0
      %3230 = vmatmul.mubr.bf16.gmra.mrb[0].mxu0 %v3142
      %v3231 = vpop.f32.mrb[0].mxu0
      %v3232 = vadd.f32 0.0, %v3231
      %v3233 = vpop.f32.mrb[0].mxu0
      %v3234 = vpop.f32.mrb[0].mxu0
      %v3235 = vadd.f32 0.0, %v3234
      %v3236 = vpop.f32.mrb[0].mxu0
      %3237 = vmatprep.mubr.bf16.mxu0 0
      %3238 = vmatmul.mubr.bf16.gmra.mrb[0].mxu0 %v3145
      %v3239 = vpop.f32.mrb[0].mxu0
      %v3240 = vadd.f32 0.0, %v3239
      %v3241 = vpop.f32.mrb[0].mxu0
      %v3242 = vpop.f32.mrb[0].mxu0
      %v3243 = vadd.f32 0.0, %v3242
      %v3244 = vpop.f32.mrb[0].mxu0
      %3245 = vmatprep.mubr.bf16.mxu0 0
      %3246 = vmatmul.mubr.bf16.gmra.mrb[0].mxu0 %v3148
      %v3247 = vpop.f32.mrb[0].mxu0
      %v3248 = vadd.f32 0.0, %v3247
      %v3249 = vpop.f32.mrb[0].mxu0
      %v3250 = vpop.f32.mrb[0].mxu0
      %v3251 = vadd.f32 0.0, %v3250
      %v3252 = vpop.f32.mrb[0].mxu0
      %3253 = vmatprep.mubr.bf16.mxu0 0
      %3254 = vmatmul.mubr.bf16.gmra.mrb[0].mxu0 %v3151
      %v3255 = vpop.f32.mrb[0].mxu0
      %v3256 = vadd.f32 0.0, %v3255
      %v3257 = vpop.f32.mrb[0].mxu0
      %v3258 = vpop.f32.mrb[0].mxu0
      %v3259 = vadd.f32 0.0, %v3258
      %v3260 = vpop.f32.mrb[0].mxu0
      %3261 = vmatprep.mubr.bf16.mxu0 0
      %3262 = vmatmul.mubr.bf16.gmra.mrb[0].mxu0 %v3154
      %v3263 = vpop.f32.mrb[0].mxu0
      %v3264 = vadd.f32 0.0, %v3263
      %v3265 = vpop.f32.mrb[0].mxu0
      %v3266 = vpop.f32.mrb[0].mxu0
      %v3267 = vadd.f32 0.0, %v3266
      %v3268 = vpop.f32.mrb[0].mxu0
      %3269 = vmatprep.mubr.bf16.mxu0 0
      %3270 = vmatmul.mubr.bf16.gmra.mrb[0].mxu0 %v3157
      %v3271 = vpop.f32.mrb[0].mxu0
      %v3272 = vadd.f32 0.0, %v3271
      %v3273 = vpop.f32.mrb[0].mxu0
      %v3274 = vpop.f32.mrb[0].mxu0
      %v3275 = vadd.f32 0.0, %v3274
      %v3276 = vpop.f32.mrb[0].mxu0
      %3277 = vmatprep.mubr.bf16.mxu0 0
      %3278 = vmatmul.mubr.bf16.gmra.mrb[0].mxu0 %v3160
      %v3279 = vpop.f32.mrb[0].mxu0
      %v3280 = vadd.f32 0.0, %v3279
      %v3281 = vpop.f32.mrb[0].mxu0
      %v3282 = vpop.f32.mrb[0].mxu0
      %v3283 = vadd.f32 0.0, %v3282
      %v3284 = vpop.f32.mrb[0].mxu0
      %3285 = vmatprep.mubr.bf16.mxu0 0
      %3286 = vmatmul.mubr.bf16.gmra.mrb[0].mxu0 %v3163
      %v3287 = vpop.f32.mrb[0].mxu0
      %v3288 = vadd.f32 0.0, %v3287
      %v3289 = vpop.f32.mrb[0].mxu0
      %v3290 = vpop.f32.mrb[0].mxu0
      %v3291 = vadd.f32 0.0, %v3290
      %v3292 = vpop.f32.mrb[0].mxu0
      %3293 = vmatprep.mubr.bf16.mxu0 0
      %3294 = vmatmul.mubr.bf16.gmra.mrb[0].mxu0 %v3166
      %v3295 = vpop.f32.mrb[0].mxu0
      %v3296 = vadd.f32 0.0, %v3295
      %v3297 = vpop.f32.mrb[0].mxu0
      %v3298 = vpop.f32.mrb[0].mxu0
      %v3299 = vadd.f32 0.0, %v3298
      %v3300 = vpop.f32.mrb[0].mxu0
      %3301 = vmatprep.mubr.bf16.mxu0 0
      %3302 = vmatmul.mubr.bf16.gmra.mrb[0].mxu0 %v3169
      %v3303 = vpop.f32.mrb[0].mxu0
      %v3304 = vadd.f32 0.0, %v3303
      %v3305 = vpop.f32.mrb[0].mxu0
      %v3306 = vpop.f32.mrb[0].mxu0
      %v3307 = vadd.f32 0.0, %v3306
      %v3308 = vpop.f32.mrb[0].mxu0
      %3309 = vmatprep.mubr.bf16.mxu0 0
      %3310 = vmatmul.mubr.bf16.gmra.mrb[0].mxu0 %v3172
      %v3311 = vpop.f32.mrb[0].mxu0
      %v3312 = vadd.f32 0.0, %v3311
      %v3313 = vpop.f32.mrb[0].mxu0
      %v3314 = vpop.f32.mrb[0].mxu0
      %v3315 = vadd.f32 0.0, %v3314
      %v3316 = vpop.f32.mrb[0].mxu0
      %3317 = vmatprep.mubr.bf16.mxu0 0
      %3318 = vmatmul.mubr.bf16.gmra.mrb[0].mxu0 %v3175
      %v3319 = vpop.f32.mrb[0].mxu0
      %v3320 = vadd.f32 0.0, %v3319
      %v3321 = vpop.f32.mrb[0].mxu0
      %v3322 = vpop.f32.mrb[0].mxu0
      %v3323 = vadd.f32 0.0, %v3322
      %v3324 = vpop.f32.mrb[0].mxu0
      %3325 = vmatprep.mubr.bf16.mxu0 0
      %3326 = vmatmul.mubr.bf16.gmra.mrb[0].mxu0 %v3178
      %v3327 = vpop.f32.mrb[0].mxu0
      %v3328 = vadd.f32 0.0, %v3327
      %v3329 = vpop.f32.mrb[0].mxu0
      %v3330 = vpop.f32.mrb[0].mxu0
      %v3331 = vadd.f32 0.0, %v3330
      %v3332 = vpop.f32.mrb[0].mxu0
      %3333 = vmatprep.mubr.bf16.mxu0 0
      %3334 = vmatmul.mubr.bf16.gmra.mrb[0].mxu0 %v3181
      %v3335 = vpop.f32.mrb[0].mxu0
      %v3336 = vadd.f32 0.0, %v3335
      %v3337 = vpop.f32.mrb[0].mxu0
      %v3338 = vpop.f32.mrb[0].mxu0
      %v3339 = vadd.f32 0.0, %v3338
      %v3340 = vpop.f32.mrb[0].mxu0
      %3341 = vmatprep.mubr.bf16.mxu0 0
      %3342 = vmatmul.mubr.bf16.gmra.mrb[0].mxu0 %v3184
      %v3343 = vpop.f32.mrb[0].mxu0
      %v3344 = vadd.f32 0.0, %v3343
      %v3345 = vpop.f32.mrb[0].mxu0
      %v3346 = vpop.f32.mrb[0].mxu0
      %v3347 = vadd.f32 0.0, %v3346
      %v3348 = vpop.f32.mrb[0].mxu0
      %3349 = vdwg.mxu0
      %v3350 = vadd.f32 %v2624, %v3224
      %v3351 = vadd.f32 %v2625, %v3227
      %v3352 = vadd.f32 %v2626, %v3232
      %v3353 = vadd.f32 %v2627, %v3235
      %v3354 = vadd.f32 %v2628, %v3240
      %v3355 = vadd.f32 %v2629, %v3243
      %v3356 = vadd.f32 %v2630, %v3248
      %v3357 = vadd.f32 %v2631, %v3251
      %v3358 = vadd.f32 %v2632, %v3256
      %v3359 = vadd.f32 %v2633, %v3259
      %v3360 = vadd.f32 %v2634, %v3264
      %v3361 = vadd.f32 %v2635, %v3267
      %v3362 = vadd.f32 %v2636, %v3272
      %v3363 = vadd.f32 %v2637, %v3275
      %v3364 = vadd.f32 %v2638, %v3280
      %v3365 = vadd.f32 %v2639, %v3283
      %v3366 = vadd.f32 %v2640, %v3288
      %v3367 = vadd.f32 %v2641, %v3291
      %v3368 = vadd.f32 %v2642, %v3296
      %v3369 = vadd.f32 %v2643, %v3299
      %v3370 = vadd.f32 %v2644, %v3304
      %v3371 = vadd.f32 %v2645, %v3307
      %v3372 = vadd.f32 %v2646, %v3312
      %v3373 = vadd.f32 %v2647, %v3315
      %v3374 = vadd.f32 %v2648, %v3320
      %v3375 = vadd.f32 %v2649, %v3323
      %v3376 = vadd.f32 %v2650, %v3328
      %v3377 = vadd.f32 %v2651, %v3331
      %v3378 = vadd.f32 %v2652, %v3336
      %v3379 = vadd.f32 %v2653, %v3339
      %v3380 = vadd.f32 %v2654, %v3344
      %v3381 = vadd.f32 %v2655, %v3347
      %v3382 = vld [vmem:[%s376] sm:$0xe]
      %v3383 = vld [vmem:[%s376 + $0xc] sm:$0xe]
      %v3384 = vld [vmem:[%s376 + $0x18] sm:$0xe]
      %v3385 = vld [vmem:[%s376 + $0x24] sm:$0xe]
      %v3386 = vld [vmem:[%s376 + $0x30] sm:$0xe]
      %v3387 = vld [vmem:[%s376 + $0x3c] sm:$0xe]
      %v3388 = vld [vmem:[%s376 + $0x48] sm:$0xe]
      %v3389 = vld [vmem:[%s376 + $0x54] sm:$0xe]
      %v3390 = vld [vmem:[%s376 + $0x60] sm:$0xe]
      %v3391 = vld [vmem:[%s376 + $0x6c] sm:$0xe]
      %v3392 = vld [vmem:[%s376 + $0x78] sm:$0xe]
      %v3393 = vld [vmem:[%s376 + $0x84] sm:$0xe]
      %v3394 = vld [vmem:[%s376 + $0x90] sm:$0xe]
      %v3395 = vld [vmem:[%s376 + $0x9c] sm:$0xe]
      %v3396 = vld [vmem:[%s376 + $0xa8] sm:$0xe]
      %v3397 = vld [vmem:[%s376 + $0xb4] sm:$0xe]
      %v3446 = vrot.slane %v3382, 5
      %v3447 = vrot.slane %v3446, 4
      %v3448 = vrot.slane %v2657, 5
      %v3449 = vsel %vm1891, %v3447, %v3448
      %v3450 = vrot.slane %v3448, 4
      %v3451 = vrot.slane %v2658, 5
      %v3452 = vsel %vm1891, %v3450, %v3451
      %v3453 = vrot.slane %v3383, 5
      %v3454 = vrot.slane %v3453, 4
      %v3455 = vrot.slane %v2660, 5
      %v3456 = vsel %vm1891, %v3454, %v3455
      %v3457 = vrot.slane %v3455, 4
      %v3458 = vrot.slane %v2661, 5
      %v3459 = vsel %vm1891, %v3457, %v3458
      %v3460 = vrot.slane %v3384, 5
      %v3461 = vrot.slane %v3460, 4
      %v3462 = vrot.slane %v2663, 5
      %v3463 = vsel %vm1891, %v3461, %v3462
      %v3464 = vrot.slane %v3462, 4
      %v3465 = vrot.slane %v2664, 5
      %v3466 = vsel %vm1891, %v3464, %v3465
      %v3467 = vrot.slane %v3385, 5
      %v3468 = vrot.slane %v3467, 4
      %v3469 = vrot.slane %v2666, 5
      %v3470 = vsel %vm1891, %v3468, %v3469
      %v3471 = vrot.slane %v3469, 4
      %v3472 = vrot.slane %v2667, 5
      %v3473 = vsel %vm1891, %v3471, %v3472
      %v3474 = vrot.slane %v3386, 5
      %v3475 = vrot.slane %v3474, 4
      %v3476 = vrot.slane %v2669, 5
      %v3477 = vsel %vm1891, %v3475, %v3476
      %v3478 = vrot.slane %v3476, 4
      %v3479 = vrot.slane %v2670, 5
      %v3480 = vsel %vm1891, %v3478, %v3479
      %v3481 = vrot.slane %v3387, 5
      %v3482 = vrot.slane %v3481, 4
      %v3483 = vrot.slane %v2672, 5
      %v3484 = vsel %vm1891, %v3482, %v3483
      %v3485 = vrot.slane %v3483, 4
      %v3486 = vrot.slane %v2673, 5
      %v3487 = vsel %vm1891, %v3485, %v3486
      %v3488 = vrot.slane %v3388, 5
      %v3489 = vrot.slane %v3488, 4
      %v3490 = vrot.slane %v2675, 5
      %v3491 = vsel %vm1891, %v3489, %v3490
      %v3492 = vrot.slane %v3490, 4
      %v3493 = vrot.slane %v2676, 5
      %v3494 = vsel %vm1891, %v3492, %v3493
      %v3495 = vrot.slane %v3389, 5
      %v3496 = vrot.slane %v3495, 4
      %v3497 = vrot.slane %v2678, 5
      %v3498 = vsel %vm1891, %v3496, %v3497
      %v3499 = vrot.slane %v3497, 4
      %v3500 = vrot.slane %v2679, 5
      %v3501 = vsel %vm1891, %v3499, %v3500
      %v3502 = vrot.slane %v3390, 5
      %v3503 = vrot.slane %v3502, 4
      %v3504 = vrot.slane %v2681, 5
      %v3505 = vsel %vm1891, %v3503, %v3504
      %v3506 = vrot.slane %v3504, 4
      %v3507 = vrot.slane %v2682, 5
      %v3508 = vsel %vm1891, %v3506, %v3507
      %v3509 = vrot.slane %v3391, 5
      %v3510 = vrot.slane %v3509, 4
      %v3511 = vrot.slane %v2684, 5
      %v3512 = vsel %vm1891, %v3510, %v3511
      %v3513 = vrot.slane %v3511, 4
      %v3514 = vrot.slane %v2685, 5
      %v3515 = vsel %vm1891, %v3513, %v3514
      %v3516 = vrot.slane %v3392, 5
      %v3517 = vrot.slane %v3516, 4
      %v3518 = vrot.slane %v2687, 5
      %v3519 = vsel %vm1891, %v3517, %v3518
      %v3520 = vrot.slane %v3518, 4
      %v3521 = vrot.slane %v2688, 5
      %v3522 = vsel %vm1891, %v3520, %v3521
      %v3523 = vrot.slane %v3393, 5
      %v3524 = vrot.slane %v3523, 4
      %v3525 = vrot.slane %v2690, 5
      %v3526 = vsel %vm1891, %v3524, %v3525
      %v3527 = vrot.slane %v3525, 4
      %v3528 = vrot.slane %v2691, 5
      %v3529 = vsel %vm1891, %v3527, %v3528
      %v3530 = vrot.slane %v3394, 5
      %v3531 = vrot.slane %v3530, 4
      %v3532 = vrot.slane %v2693, 5
      %v3533 = vsel %vm1891, %v3531, %v3532
      %v3534 = vrot.slane %v3532, 4
      %v3535 = vrot.slane %v2694, 5
      %v3536 = vsel %vm1891, %v3534, %v3535
      %v3537 = vrot.slane %v3395, 5
      %v3538 = vrot.slane %v3537, 4
      %v3539 = vrot.slane %v2696, 5
      %v3540 = vsel %vm1891, %v3538, %v3539
      %v3541 = vrot.slane %v3539, 4
      %v3542 = vrot.slane %v2697, 5
      %v3543 = vsel %vm1891, %v3541, %v3542
      %v3544 = vrot.slane %v3396, 5
      %v3545 = vrot.slane %v3544, 4
      %v3546 = vrot.slane %v2699, 5
      %v3547 = vsel %vm1891, %v3545, %v3546
      %v3548 = vrot.slane %v3546, 4
      %v3549 = vrot.slane %v2700, 5
      %v3550 = vsel %vm1891, %v3548, %v3549
      %v3551 = vrot.slane %v3397, 5
      %v3552 = vrot.slane %v3551, 4
      %v3553 = vrot.slane %v2702, 5
      %v3554 = vsel %vm1891, %v3552, %v3553
      %v3555 = vrot.slane %v3553, 4
      %v3556 = vrot.slane %v2703, 5
      %v3557 = vsel %vm1891, %v3555, %v3556
      %s3558 = scalar_lea.vmem %s1, 10
      %v3559 = vld [vmem:[%s3558] sm:$0x3]
      %v3560 = vunpack.c.l.b16 %v3449
      %v3561 = vunpack.c.l.b16 %v3452
      %v3562 = vunpack.c.l.b16 %v3456
      %v3563 = vunpack.c.l.b16 %v3459
      %v3564 = vunpack.c.l.b16 %v3463
      %v3565 = vunpack.c.l.b16 %v3466
      %v3566 = vunpack.c.l.b16 %v3470
      %v3567 = vunpack.c.l.b16 %v3473
      %v3568 = vunpack.c.l.b16 %v3477
      %v3569 = vunpack.c.l.b16 %v3480
      %v3570 = vunpack.c.l.b16 %v3484
      %v3571 = vunpack.c.l.b16 %v3487
      %v3572 = vunpack.c.l.b16 %v3491
      %v3573 = vunpack.c.l.b16 %v3494
      %v3574 = vunpack.c.l.b16 %v3498
      %v3575 = vunpack.c.l.b16 %v3501
      %v3576 = vunpack.c.l.b16 %v3505
      %v3577 = vunpack.c.l.b16 %v3508
      %v3578 = vunpack.c.l.b16 %v3512
      %v3579 = vunpack.c.l.b16 %v3515
      %v3580 = vunpack.c.l.b16 %v3519
      %v3581 = vunpack.c.l.b16 %v3522
      %v3582 = vunpack.c.l.b16 %v3526
      %v3583 = vunpack.c.l.b16 %v3529
      %v3584 = vunpack.c.l.b16 %v3533
      %v3585 = vunpack.c.l.b16 %v3536
      %v3586 = vunpack.c.l.b16 %v3540
      %v3587 = vunpack.c.l.b16 %v3543
      %v3588 = vunpack.c.l.b16 %v3547
      %v3589 = vunpack.c.l.b16 %v3550
      %v3590 = vunpack.c.l.b16 %v3554
      %v3591 = vunpack.c.l.b16 %v3557
      %v3592 = vpack.c.b16 %v3561, %v3560
      %v3593 = vpack.c.b16 %v3563, %v3562
      %v3594 = vpack.c.b16 %v3565, %v3564
      %v3595 = vpack.c.b16 %v3567, %v3566
      %v3596 = vpack.c.b16 %v3569, %v3568
      %v3597 = vpack.c.b16 %v3571, %v3570
      %v3598 = vpack.c.b16 %v3573, %v3572
      %v3599 = vpack.c.b16 %v3575, %v3574
      %v3600 = vpack.c.b16 %v3577, %v3576
      %v3601 = vpack.c.b16 %v3579, %v3578
      %v3602 = vpack.c.b16 %v3581, %v3580
      %v3603 = vpack.c.b16 %v3583, %v3582
      %v3604 = vpack.c.b16 %v3585, %v3584
      %v3605 = vpack.c.b16 %v3587, %v3586
      %v3606 = vpack.c.b16 %v3589, %v3588
      %v3607 = vpack.c.b16 %v3591, %v3590
      %v3609 = vsel %vm1335, %v3592, 0
      %v3612 = vsel %vm1335, %v3593, 0
      %v3615 = vsel %vm1335, %v3594, 0
      %v3618 = vsel %vm1335, %v3595, 0
      %v3621 = vsel %vm1335, %v3596, 0
      %v3624 = vsel %vm1335, %v3597, 0
      %v3627 = vsel %vm1335, %v3598, 0
      %v3630 = vsel %vm1335, %v3599, 0
      %v3633 = vsel %vm1335, %v3600, 0
      %v3636 = vsel %vm1335, %v3601, 0
      %v3639 = vsel %vm1335, %v3602, 0
      %v3642 = vsel %vm1335, %v3603, 0
      %v3645 = vsel %vm1335, %v3604, 0
      %v3648 = vsel %vm1335, %v3605, 0
      %v3651 = vsel %vm1335, %v3606, 0
      %v3654 = vsel %vm1335, %v3607, 0
      %v3657 = vsel %vm1384, %v3559, 0
      %3659 = vmatprep.subr.bf16.mxu0 0
      %3660 = vmatpush1.bf16.msra.mxu0 %v3657
      %3661 = vmatprep.subr.bf16.mxu0 0
      %3662 = vmatpush1.bf16.msra.mxu0 0
      %3663 = vmatprep.subr.bf16.mxu0 0
      %3664 = vmatpush1.bf16.msra.mxu0 0
      %3665 = vmatprep.subr.bf16.mxu0 0
      %3666 = vmatpush1.bf16.msra.mxu0 0
      %3667 = vmatprep.subr.bf16.mxu0 0
      %3668 = vmatpush1.bf16.msra.mxu0 0
      %3669 = vmatprep.subr.bf16.mxu0 0
      %3670 = vmatpush1.bf16.msra.mxu0 0
      %3671 = vmatprep.subr.bf16.mxu0 0
      %3672 = vmatpush1.bf16.msra.mxu0 0
      %3673 = vmatprep.subr.bf16.mxu0 0
      %3674 = vmatpush1.bf16.msra.mxu0 0
      %3675 = vmatprep.subr.bf16.mxu0 0
      %3676 = vmatpush1.bf16.msra.mxu0 0
      %3677 = vmatprep.subr.bf16.mxu0 0
      %3678 = vmatpush1.bf16.msra.mxu0 0
      %3679 = vmatprep.subr.bf16.mxu0 0
      %3680 = vmatpush1.bf16.msra.mxu0 0
      %3681 = vmatprep.subr.bf16.mxu0 0
      %3682 = vmatpush1.bf16.msra.mxu0 0
      %3683 = vmatprep.subr.bf16.mxu0 0
      %3684 = vmatpush1.bf16.msra.mxu0 0
      %3685 = vmatprep.subr.bf16.mxu0 0
      %3686 = vmatpush1.bf16.msra.mxu0 0
      %3687 = vmatprep.subr.bf16.mxu0 0
      %3688 = vmatpush1.bf16.msra.mxu0 0
      %3689 = vmatprep.subr.bf16.mxu0 0
      %3690 = vmatpush1.bf16.msra.mxu0 0
      %3691 = vmatprep.mubr.bf16.mxu0 0
      %3692 = vmatmul.mubr.bf16.gmra.mrb[0].mxu0 %v3609
      %v3693 = vpop.f32.mrb[0].mxu0
      %v3694 = vadd.f32 0.0, %v3693
      %v3695 = vpop.f32.mrb[0].mxu0
      %v3696 = vpop.f32.mrb[0].mxu0
      %v3697 = vadd.f32 0.0, %v3696
      %v3698 = vpop.f32.mrb[0].mxu0
      %3699 = vmatprep.mubr.bf16.mxu0 0
      %3700 = vmatmul.mubr.bf16.gmra.mrb[0].mxu0 %v3612
      %v3701 = vpop.f32.mrb[0].mxu0
      %v3702 = vadd.f32 0.0, %v3701
      %v3703 = vpop.f32.mrb[0].mxu0
      %v3704 = vpop.f32.mrb[0].mxu0
      %v3705 = vadd.f32 0.0, %v3704
      %v3706 = vpop.f32.mrb[0].mxu0
      %3707 = vmatprep.mubr.bf16.mxu0 0
      %3708 = vmatmul.mubr.bf16.gmra.mrb[0].mxu0 %v3615
      %v3709 = vpop.f32.mrb[0].mxu0
      %v3710 = vadd.f32 0.0, %v3709
      %v3711 = vpop.f32.mrb[0].mxu0
      %v3712 = vpop.f32.mrb[0].mxu0
      %v3713 = vadd.f32 0.0, %v3712
      %v3714 = vpop.f32.mrb[0].mxu0
      %3715 = vmatprep.mubr.bf16.mxu0 0
      %3716 = vmatmul.mubr.bf16.gmra.mrb[0].mxu0 %v3618
      %v3717 = vpop.f32.mrb[0].mxu0
      %v3718 = vadd.f32 0.0, %v3717
      %v3719 = vpop.f32.mrb[0].mxu0
      %v3720 = vpop.f32.mrb[0].mxu0
      %v3721 = vadd.f32 0.0, %v3720
      %v3722 = vpop.f32.mrb[0].mxu0
      %3723 = vmatprep.mubr.bf16.mxu0 0
      %3724 = vmatmul.mubr.bf16.gmra.mrb[0].mxu0 %v3621
      %v3725 = vpop.f32.mrb[0].mxu0
      %v3726 = vadd.f32 0.0, %v3725
      %v3727 = vpop.f32.mrb[0].mxu0
      %v3728 = vpop.f32.mrb[0].mxu0
      %v3729 = vadd.f32 0.0, %v3728
      %v3730 = vpop.f32.mrb[0].mxu0
      %3731 = vmatprep.mubr.bf16.mxu0 0
      %3732 = vmatmul.mubr.bf16.gmra.mrb[0].mxu0 %v3624
      %v3733 = vpop.f32.mrb[0].mxu0
      %v3734 = vadd.f32 0.0, %v3733
      %v3735 = vpop.f32.mrb[0].mxu0
      %v3736 = vpop.f32.mrb[0].mxu0
      %v3737 = vadd.f32 0.0, %v3736
      %v3738 = vpop.f32.mrb[0].mxu0
      %3739 = vmatprep.mubr.bf16.mxu0 0
      %3740 = vmatmul.mubr.bf16.gmra.mrb[0].mxu0 %v3627
      %v3741 = vpop.f32.mrb[0].mxu0
      %v3742 = vadd.f32 0.0, %v3741
      %v3743 = vpop.f32.mrb[0].mxu0
      %v3744 = vpop.f32.mrb[0].mxu0
      %v3745 = vadd.f32 0.0, %v3744
      %v3746 = vpop.f32.mrb[0].mxu0
      %3747 = vmatprep.mubr.bf16.mxu0 0
      %3748 = vmatmul.mubr.bf16.gmra.mrb[0].mxu0 %v3630
      %v3749 = vpop.f32.mrb[0].mxu0
      %v3750 = vadd.f32 0.0, %v3749
      %v3751 = vpop.f32.mrb[0].mxu0
      %v3752 = vpop.f32.mrb[0].mxu0
      %v3753 = vadd.f32 0.0, %v3752
      %v3754 = vpop.f32.mrb[0].mxu0
      %3755 = vmatprep.mubr.bf16.mxu0 0
      %3756 = vmatmul.mubr.bf16.gmra.mrb[0].mxu0 %v3633
      %v3757 = vpop.f32.mrb[0].mxu0
      %v3758 = vadd.f32 0.0, %v3757
      %v3759 = vpop.f32.mrb[0].mxu0
      %v3760 = vpop.f32.mrb[0].mxu0
      %v3761 = vadd.f32 0.0, %v3760
      %v3762 = vpop.f32.mrb[0].mxu0
      %3763 = vmatprep.mubr.bf16.mxu0 0
      %3764 = vmatmul.mubr.bf16.gmra.mrb[0].mxu0 %v3636
      %v3765 = vpop.f32.mrb[0].mxu0
      %v3766 = vadd.f32 0.0, %v3765
      %v3767 = vpop.f32.mrb[0].mxu0
      %v3768 = vpop.f32.mrb[0].mxu0
      %v3769 = vadd.f32 0.0, %v3768
      %v3770 = vpop.f32.mrb[0].mxu0
      %3771 = vmatprep.mubr.bf16.mxu0 0
      %3772 = vmatmul.mubr.bf16.gmra.mrb[0].mxu0 %v3639
      %v3773 = vpop.f32.mrb[0].mxu0
      %v3774 = vadd.f32 0.0, %v3773
      %v3775 = vpop.f32.mrb[0].mxu0
      %v3776 = vpop.f32.mrb[0].mxu0
      %v3777 = vadd.f32 0.0, %v3776
      %v3778 = vpop.f32.mrb[0].mxu0
      %3779 = vmatprep.mubr.bf16.mxu0 0
      %3780 = vmatmul.mubr.bf16.gmra.mrb[0].mxu0 %v3642
      %v3781 = vpop.f32.mrb[0].mxu0
      %v3782 = vadd.f32 0.0, %v3781
      %v3783 = vpop.f32.mrb[0].mxu0
      %v3784 = vpop.f32.mrb[0].mxu0
      %v3785 = vadd.f32 0.0, %v3784
      %v3786 = vpop.f32.mrb[0].mxu0
      %3787 = vmatprep.mubr.bf16.mxu0 0
      %3788 = vmatmul.mubr.bf16.gmra.mrb[0].mxu0 %v3645
      %v3789 = vpop.f32.mrb[0].mxu0
      %v3790 = vadd.f32 0.0, %v3789
      %v3791 = vpop.f32.mrb[0].mxu0
      %v3792 = vpop.f32.mrb[0].mxu0
      %v3793 = vadd.f32 0.0, %v3792
      %v3794 = vpop.f32.mrb[0].mxu0
      %3795 = vmatprep.mubr.bf16.mxu0 0
      %3796 = vmatmul.mubr.bf16.gmra.mrb[0].mxu0 %v3648
      %v3797 = vpop.f32.mrb[0].mxu0
      %v3798 = vadd.f32 0.0, %v3797
      %v3799 = vpop.f32.mrb[0].mxu0
      %v3800 = vpop.f32.mrb[0].mxu0
      %v3801 = vadd.f32 0.0, %v3800
      %v3802 = vpop.f32.mrb[0].mxu0
      %3803 = vmatprep.mubr.bf16.mxu0 0
      %3804 = vmatmul.mubr.bf16.gmra.mrb[0].mxu0 %v3651
      %v3805 = vpop.f32.mrb[0].mxu0
      %v3806 = vadd.f32 0.0, %v3805
      %v3807 = vpop.f32.mrb[0].mxu0
      %v3808 = vpop.f32.mrb[0].mxu0
      %v3809 = vadd.f32 0.0, %v3808
      %v3810 = vpop.f32.mrb[0].mxu0
      %3811 = vmatprep.mubr.bf16.mxu0 0
      %3812 = vmatmul.mubr.bf16.gmra.mrb[0].mxu0 %v3654
      %v3813 = vpop.f32.mrb[0].mxu0
      %v3814 = vadd.f32 0.0, %v3813
      %v3815 = vpop.f32.mrb[0].mxu0
      %v3816 = vpop.f32.mrb[0].mxu0
      %v3817 = vadd.f32 0.0, %v3816
      %v3818 = vpop.f32.mrb[0].mxu0
      %3819 = vdwg.mxu0
      %v3820 = vadd.f32 %v3350, %v3694
      %v3821 = vadd.f32 %v3351, %v3697
      %v3822 = vadd.f32 %v3352, %v3702
      %v3823 = vadd.f32 %v3353, %v3705
      %v3824 = vadd.f32 %v3354, %v3710
      %v3825 = vadd.f32 %v3355, %v3713
      %v3826 = vadd.f32 %v3356, %v3718
      %v3827 = vadd.f32 %v3357, %v3721
      %v3828 = vadd.f32 %v3358, %v3726
      %v3829 = vadd.f32 %v3359, %v3729
      %v3830 = vadd.f32 %v3360, %v3734
      %v3831 = vadd.f32 %v3361, %v3737
      %v3832 = vadd.f32 %v3362, %v3742
      %v3833 = vadd.f32 %v3363, %v3745
      %v3834 = vadd.f32 %v3364, %v3750
      %v3835 = vadd.f32 %v3365, %v3753
      %v3836 = vadd.f32 %v3366, %v3758
      %v3837 = vadd.f32 %v3367, %v3761
      %v3838 = vadd.f32 %v3368, %v3766
      %v3839 = vadd.f32 %v3369, %v3769
      %v3840 = vadd.f32 %v3370, %v3774
      %v3841 = vadd.f32 %v3371, %v3777
      %v3842 = vadd.f32 %v3372, %v3782
      %v3843 = vadd.f32 %v3373, %v3785
      %v3844 = vadd.f32 %v3374, %v3790
      %v3845 = vadd.f32 %v3375, %v3793
      %v3846 = vadd.f32 %v3376, %v3798
      %v3847 = vadd.f32 %v3377, %v3801
      %v3848 = vadd.f32 %v3378, %v3806
      %v3849 = vadd.f32 %v3379, %v3809
      %v3850 = vadd.f32 %v3380, %v3814
      %v3851 = vadd.f32 %v3381, %v3817
      %s3852 = scalar_lea.vmem [#allocation2], 24
      %v3853 = vld [vmem:[%s3852] sm:$0xf]
      %v3854 = vld [vmem:[%s3852 + $0x4] sm:$0xf]
      %v3855 = vld [vmem:[%s3852 + $0xc] sm:$0xf]
      %v3856 = vld [vmem:[%s3852 + $0x10] sm:$0xf]
      %v3857 = vld [vmem:[%s3852 + $0x18] sm:$0xf]
      %v3858 = vld [vmem:[%s3852 + $0x1c] sm:$0xf]
      %v3859 = vld [vmem:[%s3852 + $0x24] sm:$0xf]
      %v3860 = vld [vmem:[%s3852 + $0x28] sm:$0xf]
      %v3861 = vld [vmem:[%s3852 + $0x30] sm:$0xf]
      %v3862 = vld [vmem:[%s3852 + $0x34] sm:$0xf]
      %v3863 = vld [vmem:[%s3852 + $0x3c] sm:$0xf]
      %v3864 = vld [vmem:[%s3852 + $0x40] sm:$0xf]
      %v3865 = vld [vmem:[%s3852 + $0x48] sm:$0xf]
      %v3866 = vld [vmem:[%s3852 + $0x4c] sm:$0xf]
      %v3867 = vld [vmem:[%s3852 + $0x54] sm:$0xf]
      %v3868 = vld [vmem:[%s3852 + $0x58] sm:$0xf]
      %v3869 = vld [vmem:[%s3852 + $0x60] sm:$0xf]
      %v3870 = vld [vmem:[%s3852 + $0x64] sm:$0xf]
      %v3871 = vld [vmem:[%s3852 + $0x6c] sm:$0xf]
      %v3872 = vld [vmem:[%s3852 + $0x70] sm:$0xf]
      %v3873 = vld [vmem:[%s3852 + $0x78] sm:$0xf]
      %v3874 = vld [vmem:[%s3852 + $0x7c] sm:$0xf]
      %v3875 = vld [vmem:[%s3852 + $0x84] sm:$0xf]
      %v3876 = vld [vmem:[%s3852 + $0x88] sm:$0xf]
      %v3877 = vld [vmem:[%s3852 + $0x90] sm:$0xf]
      %v3878 = vld [vmem:[%s3852 + $0x94] sm:$0xf]
      %v3879 = vld [vmem:[%s3852 + $0x9c] sm:$0xf]
      %v3880 = vld [vmem:[%s3852 + $0xa0] sm:$0xf]
      %v3881 = vld [vmem:[%s3852 + $0xa8] sm:$0xf]
      %v3882 = vld [vmem:[%s3852 + $0xac] sm:$0xf]
      %v3883 = vld [vmem:[%s3852 + $0xb4] sm:$0xf]
      %v3884 = vld [vmem:[%s3852 + $0xb8] sm:$0xf]
      %s3885 = scalar_lea.vmem %s1, 12
      %v3886 = vld [vmem:[%s3885] sm:$0x3]
      %v3919 = vunpack.c.l.b16 %v3853
      %v3920 = vunpack.c.l.b16 %v3854
      %v3921 = vunpack.c.l.b16 %v3855
      %v3922 = vunpack.c.l.b16 %v3856
      %v3923 = vunpack.c.l.b16 %v3857
      %v3924 = vunpack.c.l.b16 %v3858
      %v3925 = vunpack.c.l.b16 %v3859
      %v3926 = vunpack.c.l.b16 %v3860
      %v3927 = vunpack.c.l.b16 %v3861
      %v3928 = vunpack.c.l.b16 %v3862
      %v3929 = vunpack.c.l.b16 %v3863
      %v3930 = vunpack.c.l.b16 %v3864
      %v3931 = vunpack.c.l.b16 %v3865
      %v3932 = vunpack.c.l.b16 %v3866
      %v3933 = vunpack.c.l.b16 %v3867
      %v3934 = vunpack.c.l.b16 %v3868
      %v3935 = vunpack.c.l.b16 %v3869
      %v3936 = vunpack.c.l.b16 %v3870
      %v3937 = vunpack.c.l.b16 %v3871
      %v3938 = vunpack.c.l.b16 %v3872
      %v3939 = vunpack.c.l.b16 %v3873
      %v3940 = vunpack.c.l.b16 %v3874
      %v3941 = vunpack.c.l.b16 %v3875
      %v3942 = vunpack.c.l.b16 %v3876
      %v3943 = vunpack.c.l.b16 %v3877
      %v3944 = vunpack.c.l.b16 %v3878
      %v3945 = vunpack.c.l.b16 %v3879
      %v3946 = vunpack.c.l.b16 %v3880
      %v3947 = vunpack.c.l.b16 %v3881
      %v3948 = vunpack.c.l.b16 %v3882
      %v3949 = vunpack.c.l.b16 %v3883
      %v3950 = vunpack.c.l.b16 %v3884
      %v3951 = vpack.c.b16 %v3920, %v3919
      %v3952 = vpack.c.b16 %v3922, %v3921
      %v3953 = vpack.c.b16 %v3924, %v3923
      %v3954 = vpack.c.b16 %v3926, %v3925
      %v3955 = vpack.c.b16 %v3928, %v3927
      %v3956 = vpack.c.b16 %v3930, %v3929
      %v3957 = vpack.c.b16 %v3932, %v3931
      %v3958 = vpack.c.b16 %v3934, %v3933
      %v3959 = vpack.c.b16 %v3936, %v3935
      %v3960 = vpack.c.b16 %v3938, %v3937
      %v3961 = vpack.c.b16 %v3940, %v3939
      %v3962 = vpack.c.b16 %v3942, %v3941
      %v3963 = vpack.c.b16 %v3944, %v3943
      %v3964 = vpack.c.b16 %v3946, %v3945
      %v3965 = vpack.c.b16 %v3948, %v3947
      %v3966 = vpack.c.b16 %v3950, %v3949
      %v3968 = vsel %vm1335, %v3951, 0
      %v3971 = vsel %vm1335, %v3952, 0
      %v3974 = vsel %vm1335, %v3953, 0
      %v3977 = vsel %vm1335, %v3954, 0
      %v3980 = vsel %vm1335, %v3955, 0
      %v3983 = vsel %vm1335, %v3956, 0
      %v3986 = vsel %vm1335, %v3957, 0
      %v3989 = vsel %vm1335, %v3958, 0
      %v3992 = vsel %vm1335, %v3959, 0
      %v3995 = vsel %vm1335, %v3960, 0
      %v3998 = vsel %vm1335, %v3961, 0
      %v4001 = vsel %vm1335, %v3962, 0
      %v4004 = vsel %vm1335, %v3963, 0
      %v4007 = vsel %vm1335, %v3964, 0
      %v4010 = vsel %vm1335, %v3965, 0
      %v4013 = vsel %vm1335, %v3966, 0
      %v4016 = vsel %vm1384, %v3886, 0
      %4018 = vmatprep.subr.bf16.mxu0 0
      %4019 = vmatpush1.bf16.msra.mxu0 %v4016
      %4020 = vmatprep.subr.bf16.mxu0 0
      %4021 = vmatpush1.bf16.msra.mxu0 0
      %4022 = vmatprep.subr.bf16.mxu0 0
      %4023 = vmatpush1.bf16.msra.mxu0 0
      %4024 = vmatprep.subr.bf16.mxu0 0
      %4025 = vmatpush1.bf16.msra.mxu0 0
      %4026 = vmatprep.subr.bf16.mxu0 0
      %4027 = vmatpush1.bf16.msra.mxu0 0
      %4028 = vmatprep.subr.bf16.mxu0 0
      %4029 = vmatpush1.bf16.msra.mxu0 0
      %4030 = vmatprep.subr.bf16.mxu0 0
      %4031 = vmatpush1.bf16.msra.mxu0 0
      %4032 = vmatprep.subr.bf16.mxu0 0
      %4033 = vmatpush1.bf16.msra.mxu0 0
      %4034 = vmatprep.subr.bf16.mxu0 0
      %4035 = vmatpush1.bf16.msra.mxu0 0
      %4036 = vmatprep.subr.bf16.mxu0 0
      %4037 = vmatpush1.bf16.msra.mxu0 0
      %4038 = vmatprep.subr.bf16.mxu0 0
      %4039 = vmatpush1.bf16.msra.mxu0 0
      %4040 = vmatprep.subr.bf16.mxu0 0
      %4041 = vmatpush1.bf16.msra.mxu0 0
      %4042 = vmatprep.subr.bf16.mxu0 0
      %4043 = vmatpush1.bf16.msra.mxu0 0
      %4044 = vmatprep.subr.bf16.mxu0 0
      %4045 = vmatpush1.bf16.msra.mxu0 0
      %4046 = vmatprep.subr.bf16.mxu0 0
      %4047 = vmatpush1.bf16.msra.mxu0 0
      %4048 = vmatprep.subr.bf16.mxu0 0
      %4049 = vmatpush1.bf16.msra.mxu0 0
      %4050 = vmatprep.mubr.bf16.mxu0 0
      %4051 = vmatmul.mubr.bf16.gmra.mrb[0].mxu0 %v3968
      %v4052 = vpop.f32.mrb[0].mxu0
      %v4053 = vadd.f32 0.0, %v4052
      %v4054 = vpop.f32.mrb[0].mxu0
      %v4055 = vpop.f32.mrb[0].mxu0
      %v4056 = vadd.f32 0.0, %v4055
      %v4057 = vpop.f32.mrb[0].mxu0
      %4058 = vmatprep.mubr.bf16.mxu0 0
      %4059 = vmatmul.mubr.bf16.gmra.mrb[0].mxu0 %v3971
      %v4060 = vpop.f32.mrb[0].mxu0
      %v4061 = vadd.f32 0.0, %v4060
      %v4062 = vpop.f32.mrb[0].mxu0
      %v4063 = vpop.f32.mrb[0].mxu0
      %v4064 = vadd.f32 0.0, %v4063
      %v4065 = vpop.f32.mrb[0].mxu0
      %4066 = vmatprep.mubr.bf16.mxu0 0
      %4067 = vmatmul.mubr.bf16.gmra.mrb[0].mxu0 %v3974
      %v4068 = vpop.f32.mrb[0].mxu0
      %v4069 = vadd.f32 0.0, %v4068
      %v4070 = vpop.f32.mrb[0].mxu0
      %v4071 = vpop.f32.mrb[0].mxu0
      %v4072 = vadd.f32 0.0, %v4071
      %v4073 = vpop.f32.mrb[0].mxu0
      %4074 = vmatprep.mubr.bf16.mxu0 0
      %4075 = vmatmul.mubr.bf16.gmra.mrb[0].mxu0 %v3977
      %v4076 = vpop.f32.mrb[0].mxu0
      %v4077 = vadd.f32 0.0, %v4076
      %v4078 = vpop.f32.mrb[0].mxu0
      %v4079 = vpop.f32.mrb[0].mxu0
      %v4080 = vadd.f32 0.0, %v4079
      %v4081 = vpop.f32.mrb[0].mxu0
      %4082 = vmatprep.mubr.bf16.mxu0 0
      %4083 = vmatmul.mubr.bf16.gmra.mrb[0].mxu0 %v3980
      %v4084 = vpop.f32.mrb[0].mxu0
      %v4085 = vadd.f32 0.0, %v4084
      %v4086 = vpop.f32.mrb[0].mxu0
      %v4087 = vpop.f32.mrb[0].mxu0
      %v4088 = vadd.f32 0.0, %v4087
      %v4089 = vpop.f32.mrb[0].mxu0
      %4090 = vmatprep.mubr.bf16.mxu0 0
      %4091 = vmatmul.mubr.bf16.gmra.mrb[0].mxu0 %v3983
      %v4092 = vpop.f32.mrb[0].mxu0
      %v4093 = vadd.f32 0.0, %v4092
      %v4094 = vpop.f32.mrb[0].mxu0
      %v4095 = vpop.f32.mrb[0].mxu0
      %v4096 = vadd.f32 0.0, %v4095
      %v4097 = vpop.f32.mrb[0].mxu0
      %4098 = vmatprep.mubr.bf16.mxu0 0
      %4099 = vmatmul.mubr.bf16.gmra.mrb[0].mxu0 %v3986
      %v4100 = vpop.f32.mrb[0].mxu0
      %v4101 = vadd.f32 0.0, %v4100
      %v4102 = vpop.f32.mrb[0].mxu0
      %v4103 = vpop.f32.mrb[0].mxu0
      %v4104 = vadd.f32 0.0, %v4103
      %v4105 = vpop.f32.mrb[0].mxu0
      %4106 = vmatprep.mubr.bf16.mxu0 0
      %4107 = vmatmul.mubr.bf16.gmra.mrb[0].mxu0 %v3989
      %v4108 = vpop.f32.mrb[0].mxu0
      %v4109 = vadd.f32 0.0, %v4108
      %v4110 = vpop.f32.mrb[0].mxu0
      %v4111 = vpop.f32.mrb[0].mxu0
      %v4112 = vadd.f32 0.0, %v4111
      %v4113 = vpop.f32.mrb[0].mxu0
      %4114 = vmatprep.mubr.bf16.mxu0 0
      %4115 = vmatmul.mubr.bf16.gmra.mrb[0].mxu0 %v3992
      %v4116 = vpop.f32.mrb[0].mxu0
      %v4117 = vadd.f32 0.0, %v4116
      %v4118 = vpop.f32.mrb[0].mxu0
      %v4119 = vpop.f32.mrb[0].mxu0
      %v4120 = vadd.f32 0.0, %v4119
      %v4121 = vpop.f32.mrb[0].mxu0
      %4122 = vmatprep.mubr.bf16.mxu0 0
      %4123 = vmatmul.mubr.bf16.gmra.mrb[0].mxu0 %v3995
      %v4124 = vpop.f32.mrb[0].mxu0
      %v4125 = vadd.f32 0.0, %v4124
      %v4126 = vpop.f32.mrb[0].mxu0
      %v4127 = vpop.f32.mrb[0].mxu0
      %v4128 = vadd.f32 0.0, %v4127
      %v4129 = vpop.f32.mrb[0].mxu0
      %4130 = vmatprep.mubr.bf16.mxu0 0
      %4131 = vmatmul.mubr.bf16.gmra.mrb[0].mxu0 %v3998
      %v4132 = vpop.f32.mrb[0].mxu0
      %v4133 = vadd.f32 0.0, %v4132
      %v4134 = vpop.f32.mrb[0].mxu0
      %v4135 = vpop.f32.mrb[0].mxu0
      %v4136 = vadd.f32 0.0, %v4135
      %v4137 = vpop.f32.mrb[0].mxu0
      %4138 = vmatprep.mubr.bf16.mxu0 0
      %4139 = vmatmul.mubr.bf16.gmra.mrb[0].mxu0 %v4001
      %v4140 = vpop.f32.mrb[0].mxu0
      %v4141 = vadd.f32 0.0, %v4140
      %v4142 = vpop.f32.mrb[0].mxu0
      %v4143 = vpop.f32.mrb[0].mxu0
      %v4144 = vadd.f32 0.0, %v4143
      %v4145 = vpop.f32.mrb[0].mxu0
      %4146 = vmatprep.mubr.bf16.mxu0 0
      %4147 = vmatmul.mubr.bf16.gmra.mrb[0].mxu0 %v4004
      %v4148 = vpop.f32.mrb[0].mxu0
      %v4149 = vadd.f32 0.0, %v4148
      %v4150 = vpop.f32.mrb[0].mxu0
      %v4151 = vpop.f32.mrb[0].mxu0
      %v4152 = vadd.f32 0.0, %v4151
      %v4153 = vpop.f32.mrb[0].mxu0
      %4154 = vmatprep.mubr.bf16.mxu0 0
      %4155 = vmatmul.mubr.bf16.gmra.mrb[0].mxu0 %v4007
      %v4156 = vpop.f32.mrb[0].mxu0
      %v4157 = vadd.f32 0.0, %v4156
      %v4158 = vpop.f32.mrb[0].mxu0
      %v4159 = vpop.f32.mrb[0].mxu0
      %v4160 = vadd.f32 0.0, %v4159
      %v4161 = vpop.f32.mrb[0].mxu0
      %4162 = vmatprep.mubr.bf16.mxu0 0
      %4163 = vmatmul.mubr.bf16.gmra.mrb[0].mxu0 %v4010
      %v4164 = vpop.f32.mrb[0].mxu0
      %v4165 = vadd.f32 0.0, %v4164
      %v4166 = vpop.f32.mrb[0].mxu0
      %v4167 = vpop.f32.mrb[0].mxu0
      %v4168 = vadd.f32 0.0, %v4167
      %v4169 = vpop.f32.mrb[0].mxu0
      %4170 = vmatprep.mubr.bf16.mxu0 0
      %4171 = vmatmul.mubr.bf16.gmra.mrb[0].mxu0 %v4013
      %v4172 = vpop.f32.mrb[0].mxu0
      %v4173 = vadd.f32 0.0, %v4172
      %v4174 = vpop.f32.mrb[0].mxu0
      %v4175 = vpop.f32.mrb[0].mxu0
      %v4176 = vadd.f32 0.0, %v4175
      %v4177 = vpop.f32.mrb[0].mxu0
      %4178 = vdwg.mxu0
      %v4179 = vadd.f32 %v3820, %v4053
      %v4180 = vadd.f32 %v3821, %v4056
      %v4181 = vadd.f32 %v3822, %v4061
      %v4182 = vadd.f32 %v3823, %v4064
      %v4183 = vadd.f32 %v3824, %v4069
      %v4184 = vadd.f32 %v3825, %v4072
      %v4185 = vadd.f32 %v3826, %v4077
      %v4186 = vadd.f32 %v3827, %v4080
      %v4187 = vadd.f32 %v3828, %v4085
      %v4188 = vadd.f32 %v3829, %v4088
      %v4189 = vadd.f32 %v3830, %v4093
      %v4190 = vadd.f32 %v3831, %v4096
      %v4191 = vadd.f32 %v3832, %v4101
      %v4192 = vadd.f32 %v3833, %v4104
      %v4193 = vadd.f32 %v3834, %v4109
      %v4194 = vadd.f32 %v3835, %v4112
      %v4195 = vadd.f32 %v3836, %v4117
      %v4196 = vadd.f32 %v3837, %v4120
      %v4197 = vadd.f32 %v3838, %v4125
      %v4198 = vadd.f32 %v3839, %v4128
      %v4199 = vadd.f32 %v3840, %v4133
      %v4200 = vadd.f32 %v3841, %v4136
      %v4201 = vadd.f32 %v3842, %v4141
      %v4202 = vadd.f32 %v3843, %v4144
      %v4203 = vadd.f32 %v3844, %v4149
      %v4204 = vadd.f32 %v3845, %v4152
      %v4205 = vadd.f32 %v3846, %v4157
      %v4206 = vadd.f32 %v3847, %v4160
      %v4207 = vadd.f32 %v3848, %v4165
      %v4208 = vadd.f32 %v3849, %v4168
      %v4209 = vadd.f32 %v3850, %v4173
      %v4210 = vadd.f32 %v3851, %v4176
      %v4211 = vld [vmem:[%s3852] sm:$0xf]
      %v4212 = vld [vmem:[%s3852 + $0x4] sm:$0xf]
      %v4213 = vld [vmem:[%s3852 + $0x8] sm:$0x1]
      %v4214 = vld [vmem:[%s3852 + $0xc] sm:$0xf]
      %v4215 = vld [vmem:[%s3852 + $0x10] sm:$0xf]
      %v4216 = vld [vmem:[%s3852 + $0x14] sm:$0x1]
      %v4217 = vld [vmem:[%s3852 + $0x18] sm:$0xf]
      %v4218 = vld [vmem:[%s3852 + $0x1c] sm:$0xf]
      %v4219 = vld [vmem:[%s3852 + $0x20] sm:$0x1]
      %v4220 = vld [vmem:[%s3852 + $0x24] sm:$0xf]
      %v4221 = vld [vmem:[%s3852 + $0x28] sm:$0xf]
      %v4222 = vld [vmem:[%s3852 + $0x2c] sm:$0x1]
      %v4223 = vld [vmem:[%s3852 + $0x30] sm:$0xf]
      %v4224 = vld [vmem:[%s3852 + $0x34] sm:$0xf]
      %v4225 = vld [vmem:[%s3852 + $0x38] sm:$0x1]
      %v4226 = vld [vmem:[%s3852 + $0x3c] sm:$0xf]
      %v4227 = vld [vmem:[%s3852 + $0x40] sm:$0xf]
      %v4228 = vld [vmem:[%s3852 + $0x44] sm:$0x1]
      %v4229 = vld [vmem:[%s3852 + $0x48] sm:$0xf]
      %v4230 = vld [vmem:[%s3852 + $0x4c] sm:$0xf]
      %v4231 = vld [vmem:[%s3852 + $0x50] sm:$0x1]
      %v4232 = vld [vmem:[%s3852 + $0x54] sm:$0xf]
      %v4233 = vld [vmem:[%s3852 + $0x58] sm:$0xf]
      %v4234 = vld [vmem:[%s3852 + $0x5c] sm:$0x1]
      %v4235 = vld [vmem:[%s3852 + $0x60] sm:$0xf]
      %v4236 = vld [vmem:[%s3852 + $0x64] sm:$0xf]
      %v4237 = vld [vmem:[%s3852 + $0x68] sm:$0x1]
      %v4238 = vld [vmem:[%s3852 + $0x6c] sm:$0xf]
      %v4239 = vld [vmem:[%s3852 + $0x70] sm:$0xf]
      %v4240 = vld [vmem:[%s3852 + $0x74] sm:$0x1]
      %v4241 = vld [vmem:[%s3852 + $0x78] sm:$0xf]
      %v4242 = vld [vmem:[%s3852 + $0x7c] sm:$0xf]
      %v4243 = vld [vmem:[%s3852 + $0x80] sm:$0x1]
      %v4244 = vld [vmem:[%s3852 + $0x84] sm:$0xf]
      %v4245 = vld [vmem:[%s3852 + $0x88] sm:$0xf]
      %v4246 = vld [vmem:[%s3852 + $0x8c] sm:$0x1]
      %v4247 = vld [vmem:[%s3852 + $0x90] sm:$0xf]
      %v4248 = vld [vmem:[%s3852 + $0x94] sm:$0xf]
      %v4249 = vld [vmem:[%s3852 + $0x98] sm:$0x1]
      %v4250 = vld [vmem:[%s3852 + $0x9c] sm:$0xf]
      %v4251 = vld [vmem:[%s3852 + $0xa0] sm:$0xf]
      %v4252 = vld [vmem:[%s3852 + $0xa4] sm:$0x1]
      %v4253 = vld [vmem:[%s3852 + $0xa8] sm:$0xf]
      %v4254 = vld [vmem:[%s3852 + $0xac] sm:$0xf]
      %v4255 = vld [vmem:[%s3852 + $0xb0] sm:$0x1]
      %v4256 = vld [vmem:[%s3852 + $0xb4] sm:$0xf]
      %v4257 = vld [vmem:[%s3852 + $0xb8] sm:$0xf]
      %v4258 = vld [vmem:[%s3852 + $0xbc] sm:$0x1]
      %v4260 = vshrl.u32 %v4211, 16
      %v4262 = vrot.slane %v4260, 4
      %v4263 = vshll.u32 %v4211, 16
      %v4265 = vrot.slane %v4263, 5
      %v4266 = vor.u32 %v4262, %v4265
      %v4267 = vrot.slane %v4266, 4
      %v4269 = vshll.u32 %v4212, 16
      %v4271 = vrot.slane %v4269, 5
      %v4272 = vsel %vm900, %v4267, %v4271
      %v4273 = vshrl.u32 %v4212, 16
      %v4275 = vrot.slane %v4273, 4
      %v4276 = vor.u32 %v4275, %v4271
      %v4277 = vrot.slane %v4276, 4
      %v4279 = vshll.u32 %v4213, 16
      %v4281 = vrot.slane %v4279, 5
      %v4282 = vsel %vm900, %v4277, %v4281
      %v4284 = vshrl.u32 %v4214, 16
      %v4286 = vrot.slane %v4284, 4
      %v4287 = vshll.u32 %v4214, 16
      %v4289 = vrot.slane %v4287, 5
      %v4290 = vor.u32 %v4286, %v4289
      %v4291 = vrot.slane %v4290, 4
      %v4293 = vshll.u32 %v4215, 16
      %v4295 = vrot.slane %v4293, 5
      %v4296 = vsel %vm900, %v4291, %v4295
      %v4297 = vshrl.u32 %v4215, 16
      %v4299 = vrot.slane %v4297, 4
      %v4300 = vor.u32 %v4299, %v4295
      %v4301 = vrot.slane %v4300, 4
      %v4303 = vshll.u32 %v4216, 16
      %v4305 = vrot.slane %v4303, 5
      %v4306 = vsel %vm900, %v4301, %v4305
      %v4308 = vshrl.u32 %v4217, 16
      %v4310 = vrot.slane %v4308, 4
      %v4311 = vshll.u32 %v4217, 16
      %v4313 = vrot.slane %v4311, 5
      %v4314 = vor.u32 %v4310, %v4313
      %v4315 = vrot.slane %v4314, 4
      %v4317 = vshll.u32 %v4218, 16
      %v4319 = vrot.slane %v4317, 5
      %v4320 = vsel %vm900, %v4315, %v4319
      %v4321 = vshrl.u32 %v4218, 16
      %v4323 = vrot.slane %v4321, 4
      %v4324 = vor.u32 %v4323, %v4319
      %v4325 = vrot.slane %v4324, 4
      %v4327 = vshll.u32 %v4219, 16
      %v4329 = vrot.slane %v4327, 5
      %v4330 = vsel %vm900, %v4325, %v4329
      %v4332 = vshrl.u32 %v4220, 16
      %v4334 = vrot.slane %v4332, 4
      %v4335 = vshll.u32 %v4220, 16
      %v4337 = vrot.slane %v4335, 5
      %v4338 = vor.u32 %v4334, %v4337
      %v4339 = vrot.slane %v4338, 4
      %v4341 = vshll.u32 %v4221, 16
      %v4343 = vrot.slane %v4341, 5
      %v4344 = vsel %vm900, %v4339, %v4343
      %v4345 = vshrl.u32 %v4221, 16
      %v4347 = vrot.slane %v4345, 4
      %v4348 = vor.u32 %v4347, %v4343
      %v4349 = vrot.slane %v4348, 4
      %v4351 = vshll.u32 %v4222, 16
      %v4353 = vrot.slane %v4351, 5
      %v4354 = vsel %vm900, %v4349, %v4353
      %v4356 = vshrl.u32 %v4223, 16
      %v4358 = vrot.slane %v4356, 4
      %v4359 = vshll.u32 %v4223, 16
      %v4361 = vrot.slane %v4359, 5
      %v4362 = vor.u32 %v4358, %v4361
      %v4363 = vrot.slane %v4362, 4
      %v4365 = vshll.u32 %v4224, 16
      %v4367 = vrot.slane %v4365, 5
      %v4368 = vsel %vm900, %v4363, %v4367
      %v4369 = vshrl.u32 %v4224, 16
      %v4371 = vrot.slane %v4369, 4
      %v4372 = vor.u32 %v4371, %v4367
      %v4373 = vrot.slane %v4372, 4
      %v4375 = vshll.u32 %v4225, 16
      %v4377 = vrot.slane %v4375, 5
      %v4378 = vsel %vm900, %v4373, %v4377
      %v4380 = vshrl.u32 %v4226, 16
      %v4382 = vrot.slane %v4380, 4
      %v4383 = vshll.u32 %v4226, 16
      %v4385 = vrot.slane %v4383, 5
      %v4386 = vor.u32 %v4382, %v4385
      %v4387 = vrot.slane %v4386, 4
      %v4389 = vshll.u32 %v4227, 16
      %v4391 = vrot.slane %v4389, 5
      %v4392 = vsel %vm900, %v4387, %v4391
      %v4393 = vshrl.u32 %v4227, 16
      %v4395 = vrot.slane %v4393, 4
      %v4396 = vor.u32 %v4395, %v4391
      %v4397 = vrot.slane %v4396, 4
      %v4399 = vshll.u32 %v4228, 16
      %v4401 = vrot.slane %v4399, 5
      %v4402 = vsel %vm900, %v4397, %v4401
      %v4404 = vshrl.u32 %v4229, 16
      %v4406 = vrot.slane %v4404, 4
      %v4407 = vshll.u32 %v4229, 16
      %v4409 = vrot.slane %v4407, 5
      %v4410 = vor.u32 %v4406, %v4409
      %v4411 = vrot.slane %v4410, 4
      %v4413 = vshll.u32 %v4230, 16
      %v4415 = vrot.slane %v4413, 5
      %v4416 = vsel %vm900, %v4411, %v4415
      %v4417 = vshrl.u32 %v4230, 16
      %v4419 = vrot.slane %v4417, 4
      %v4420 = vor.u32 %v4419, %v4415
      %v4421 = vrot.slane %v4420, 4
      %v4423 = vshll.u32 %v4231, 16
      %v4425 = vrot.slane %v4423, 5
      %v4426 = vsel %vm900, %v4421, %v4425
      %v4428 = vshrl.u32 %v4232, 16
      %v4430 = vrot.slane %v4428, 4
      %v4431 = vshll.u32 %v4232, 16
      %v4433 = vrot.slane %v4431, 5
      %v4434 = vor.u32 %v4430, %v4433
      %v4435 = vrot.slane %v4434, 4
      %v4437 = vshll.u32 %v4233, 16
      %v4439 = vrot.slane %v4437, 5
      %v4440 = vsel %vm900, %v4435, %v4439
      %v4441 = vshrl.u32 %v4233, 16
      %v4443 = vrot.slane %v4441, 4
      %v4444 = vor.u32 %v4443, %v4439
      %v4445 = vrot.slane %v4444, 4
      %v4447 = vshll.u32 %v4234, 16
      %v4449 = vrot.slane %v4447, 5
      %v4450 = vsel %vm900, %v4445, %v4449
      %v4452 = vshrl.u32 %v4235, 16
      %v4454 = vrot.slane %v4452, 4
      %v4455 = vshll.u32 %v4235, 16
      %v4457 = vrot.slane %v4455, 5
      %v4458 = vor.u32 %v4454, %v4457
      %v4459 = vrot.slane %v4458, 4
      %v4461 = vshll.u32 %v4236, 16
      %v4463 = vrot.slane %v4461, 5
      %v4464 = vsel %vm900, %v4459, %v4463
      %v4465 = vshrl.u32 %v4236, 16
      %v4467 = vrot.slane %v4465, 4
      %v4468 = vor.u32 %v4467, %v4463
      %v4469 = vrot.slane %v4468, 4
      %v4471 = vshll.u32 %v4237, 16
      %v4473 = vrot.slane %v4471, 5
      %v4474 = vsel %vm900, %v4469, %v4473
      %v4476 = vshrl.u32 %v4238, 16
      %v4478 = vrot.slane %v4476, 4
      %v4479 = vshll.u32 %v4238, 16
      %v4481 = vrot.slane %v4479, 5
      %v4482 = vor.u32 %v4478, %v4481
      %v4483 = vrot.slane %v4482, 4
      %v4485 = vshll.u32 %v4239, 16
      %v4487 = vrot.slane %v4485, 5
      %v4488 = vsel %vm900, %v4483, %v4487
      %v4489 = vshrl.u32 %v4239, 16
      %v4491 = vrot.slane %v4489, 4
      %v4492 = vor.u32 %v4491, %v4487
      %v4493 = vrot.slane %v4492, 4
      %v4495 = vshll.u32 %v4240, 16
      %v4497 = vrot.slane %v4495, 5
      %v4498 = vsel %vm900, %v4493, %v4497
      %v4500 = vshrl.u32 %v4241, 16
      %v4502 = vrot.slane %v4500, 4
      %v4503 = vshll.u32 %v4241, 16
      %v4505 = vrot.slane %v4503, 5
      %v4506 = vor.u32 %v4502, %v4505
      %v4507 = vrot.slane %v4506, 4
      %v4509 = vshll.u32 %v4242, 16
      %v4511 = vrot.slane %v4509, 5
      %v4512 = vsel %vm900, %v4507, %v4511
      %v4513 = vshrl.u32 %v4242, 16
      %v4515 = vrot.slane %v4513, 4
      %v4516 = vor.u32 %v4515, %v4511
      %v4517 = vrot.slane %v4516, 4
      %v4519 = vshll.u32 %v4243, 16
      %v4521 = vrot.slane %v4519, 5
      %v4522 = vsel %vm900, %v4517, %v4521
      %v4524 = vshrl.u32 %v4244, 16
      %v4526 = vrot.slane %v4524, 4
      %v4527 = vshll.u32 %v4244, 16
      %v4529 = vrot.slane %v4527, 5
      %v4530 = vor.u32 %v4526, %v4529
      %v4531 = vrot.slane %v4530, 4
      %v4533 = vshll.u32 %v4245, 16
      %v4535 = vrot.slane %v4533, 5
      %v4536 = vsel %vm900, %v4531, %v4535
      %v4537 = vshrl.u32 %v4245, 16
      %v4539 = vrot.slane %v4537, 4
      %v4540 = vor.u32 %v4539, %v4535
      %v4541 = vrot.slane %v4540, 4
      %v4543 = vshll.u32 %v4246, 16
      %v4545 = vrot.slane %v4543, 5
      %v4546 = vsel %vm900, %v4541, %v4545
      %v4548 = vshrl.u32 %v4247, 16
      %v4550 = vrot.slane %v4548, 4
      %v4551 = vshll.u32 %v4247, 16
      %v4553 = vrot.slane %v4551, 5
      %v4554 = vor.u32 %v4550, %v4553
      %v4555 = vrot.slane %v4554, 4
      %v4557 = vshll.u32 %v4248, 16
      %v4559 = vrot.slane %v4557, 5
      %v4560 = vsel %vm900, %v4555, %v4559
      %v4561 = vshrl.u32 %v4248, 16
      %v4563 = vrot.slane %v4561, 4
      %v4564 = vor.u32 %v4563, %v4559
      %v4565 = vrot.slane %v4564, 4
      %v4567 = vshll.u32 %v4249, 16
      %v4569 = vrot.slane %v4567, 5
      %v4570 = vsel %vm900, %v4565, %v4569
      %v4572 = vshrl.u32 %v4250, 16
      %v4574 = vrot.slane %v4572, 4
      %v4575 = vshll.u32 %v4250, 16
      %v4577 = vrot.slane %v4575, 5
      %v4578 = vor.u32 %v4574, %v4577
      %v4579 = vrot.slane %v4578, 4
      %v4581 = vshll.u32 %v4251, 16
      %v4583 = vrot.slane %v4581, 5
      %v4584 = vsel %vm900, %v4579, %v4583
      %v4585 = vshrl.u32 %v4251, 16
      %v4587 = vrot.slane %v4585, 4
      %v4588 = vor.u32 %v4587, %v4583
      %v4589 = vrot.slane %v4588, 4
      %v4591 = vshll.u32 %v4252, 16
      %v4593 = vrot.slane %v4591, 5
      %v4594 = vsel %vm900, %v4589, %v4593
      %v4596 = vshrl.u32 %v4253, 16
      %v4598 = vrot.slane %v4596, 4
      %v4599 = vshll.u32 %v4253, 16
      %v4601 = vrot.slane %v4599, 5
      %v4602 = vor.u32 %v4598, %v4601
      %v4603 = vrot.slane %v4602, 4
      %v4605 = vshll.u32 %v4254, 16
      %v4607 = vrot.slane %v4605, 5
      %v4608 = vsel %vm900, %v4603, %v4607
      %v4609 = vshrl.u32 %v4254, 16
      %v4611 = vrot.slane %v4609, 4
      %v4612 = vor.u32 %v4611, %v4607
      %v4613 = vrot.slane %v4612, 4
      %v4615 = vshll.u32 %v4255, 16
      %v4617 = vrot.slane %v4615, 5
      %v4618 = vsel %vm900, %v4613, %v4617
      %v4620 = vshrl.u32 %v4256, 16
      %v4622 = vrot.slane %v4620, 4
      %v4623 = vshll.u32 %v4256, 16
      %v4625 = vrot.slane %v4623, 5
      %v4626 = vor.u32 %v4622, %v4625
      %v4627 = vrot.slane %v4626, 4
      %v4629 = vshll.u32 %v4257, 16
      %v4631 = vrot.slane %v4629, 5
      %v4632 = vsel %vm900, %v4627, %v4631
      %v4633 = vshrl.u32 %v4257, 16
      %v4635 = vrot.slane %v4633, 4
      %v4636 = vor.u32 %v4635, %v4631
      %v4637 = vrot.slane %v4636, 4
      %v4639 = vshll.u32 %v4258, 16
      %v4641 = vrot.slane %v4639, 5
      %v4642 = vsel %vm900, %v4637, %v4641
      %s4643 = scalar_lea.vmem %s1, 14
      %v4644 = vld [vmem:[%s4643] sm:$0x3]
      %v4645 = vunpack.c.l.b16 %v4272
      %v4646 = vunpack.c.l.b16 %v4282
      %v4647 = vunpack.c.l.b16 %v4296
      %v4648 = vunpack.c.l.b16 %v4306
      %v4649 = vunpack.c.l.b16 %v4320
      %v4650 = vunpack.c.l.b16 %v4330
      %v4651 = vunpack.c.l.b16 %v4344
      %v4652 = vunpack.c.l.b16 %v4354
      %v4653 = vunpack.c.l.b16 %v4368
      %v4654 = vunpack.c.l.b16 %v4378
      %v4655 = vunpack.c.l.b16 %v4392
      %v4656 = vunpack.c.l.b16 %v4402
      %v4657 = vunpack.c.l.b16 %v4416
      %v4658 = vunpack.c.l.b16 %v4426
      %v4659 = vunpack.c.l.b16 %v4440
      %v4660 = vunpack.c.l.b16 %v4450
      %v4661 = vunpack.c.l.b16 %v4464
      %v4662 = vunpack.c.l.b16 %v4474
      %v4663 = vunpack.c.l.b16 %v4488
      %v4664 = vunpack.c.l.b16 %v4498
      %v4665 = vunpack.c.l.b16 %v4512
      %v4666 = vunpack.c.l.b16 %v4522
      %v4667 = vunpack.c.l.b16 %v4536
      %v4668 = vunpack.c.l.b16 %v4546
      %v4669 = vunpack.c.l.b16 %v4560
      %v4670 = vunpack.c.l.b16 %v4570
      %v4671 = vunpack.c.l.b16 %v4584
      %v4672 = vunpack.c.l.b16 %v4594
      %v4673 = vunpack.c.l.b16 %v4608
      %v4674 = vunpack.c.l.b16 %v4618
      %v4675 = vunpack.c.l.b16 %v4632
      %v4676 = vunpack.c.l.b16 %v4642
      %v4677 = vpack.c.b16 %v4646, %v4645
      %v4678 = vpack.c.b16 %v4648, %v4647
      %v4679 = vpack.c.b16 %v4650, %v4649
      %v4680 = vpack.c.b16 %v4652, %v4651
      %v4681 = vpack.c.b16 %v4654, %v4653
      %v4682 = vpack.c.b16 %v4656, %v4655
      %v4683 = vpack.c.b16 %v4658, %v4657
      %v4684 = vpack.c.b16 %v4660, %v4659
      %v4685 = vpack.c.b16 %v4662, %v4661
      %v4686 = vpack.c.b16 %v4664, %v4663
      %v4687 = vpack.c.b16 %v4666, %v4665
      %v4688 = vpack.c.b16 %v4668, %v4667
      %v4689 = vpack.c.b16 %v4670, %v4669
      %v4690 = vpack.c.b16 %v4672, %v4671
      %v4691 = vpack.c.b16 %v4674, %v4673
      %v4692 = vpack.c.b16 %v4676, %v4675
      %v4694 = vsel %vm1335, %v4677, 0
      %v4697 = vsel %vm1335, %v4678, 0
      %v4700 = vsel %vm1335, %v4679, 0
      %v4703 = vsel %vm1335, %v4680, 0
      %v4706 = vsel %vm1335, %v4681, 0
      %v4709 = vsel %vm1335, %v4682, 0
      %v4712 = vsel %vm1335, %v4683, 0
      %v4715 = vsel %vm1335, %v4684, 0
      %v4718 = vsel %vm1335, %v4685, 0
      %v4721 = vsel %vm1335, %v4686, 0
      %v4724 = vsel %vm1335, %v4687, 0
      %v4727 = vsel %vm1335, %v4688, 0
      %v4730 = vsel %vm1335, %v4689, 0
      %v4733 = vsel %vm1335, %v4690, 0
      %v4736 = vsel %vm1335, %v4691, 0
      %v4739 = vsel %vm1335, %v4692, 0
      %v4742 = vsel %vm1384, %v4644, 0
      %4744 = vmatprep.subr.bf16.mxu0 0
      %4745 = vmatpush1.bf16.msra.mxu0 %v4742
      %4746 = vmatprep.subr.bf16.mxu0 0
      %4747 = vmatpush1.bf16.msra.mxu0 0
      %4748 = vmatprep.subr.bf16.mxu0 0
      %4749 = vmatpush1.bf16.msra.mxu0 0
      %4750 = vmatprep.subr.bf16.mxu0 0
      %4751 = vmatpush1.bf16.msra.mxu0 0
      %4752 = vmatprep.subr.bf16.mxu0 0
      %4753 = vmatpush1.bf16.msra.mxu0 0
      %4754 = vmatprep.subr.bf16.mxu0 0
      %4755 = vmatpush1.bf16.msra.mxu0 0
      %4756 = vmatprep.subr.bf16.mxu0 0
      %4757 = vmatpush1.bf16.msra.mxu0 0
      %4758 = vmatprep.subr.bf16.mxu0 0
      %4759 = vmatpush1.bf16.msra.mxu0 0
      %4760 = vmatprep.subr.bf16.mxu0 0
      %4761 = vmatpush1.bf16.msra.mxu0 0
      %4762 = vmatprep.subr.bf16.mxu0 0
      %4763 = vmatpush1.bf16.msra.mxu0 0
      %4764 = vmatprep.subr.bf16.mxu0 0
      %4765 = vmatpush1.bf16.msra.mxu0 0
      %4766 = vmatprep.subr.bf16.mxu0 0
      %4767 = vmatpush1.bf16.msra.mxu0 0
      %4768 = vmatprep.subr.bf16.mxu0 0
      %4769 = vmatpush1.bf16.msra.mxu0 0
      %4770 = vmatprep.subr.bf16.mxu0 0
      %4771 = vmatpush1.bf16.msra.mxu0 0
      %4772 = vmatprep.subr.bf16.mxu0 0
      %4773 = vmatpush1.bf16.msra.mxu0 0
      %4774 = vmatprep.subr.bf16.mxu0 0
      %4775 = vmatpush1.bf16.msra.mxu0 0
      %4776 = vmatprep.mubr.bf16.mxu0 0
      %4777 = vmatmul.mubr.bf16.gmra.mrb[0].mxu0 %v4694
      %v4778 = vpop.f32.mrb[0].mxu0
      %v4779 = vadd.f32 0.0, %v4778
      %v4780 = vpop.f32.mrb[0].mxu0
      %v4781 = vpop.f32.mrb[0].mxu0
      %v4782 = vadd.f32 0.0, %v4781
      %v4783 = vpop.f32.mrb[0].mxu0
      %4784 = vmatprep.mubr.bf16.mxu0 0
      %4785 = vmatmul.mubr.bf16.gmra.mrb[0].mxu0 %v4697
      %v4786 = vpop.f32.mrb[0].mxu0
      %v4787 = vadd.f32 0.0, %v4786
      %v4788 = vpop.f32.mrb[0].mxu0
      %v4789 = vpop.f32.mrb[0].mxu0
      %v4790 = vadd.f32 0.0, %v4789
      %v4791 = vpop.f32.mrb[0].mxu0
      %4792 = vmatprep.mubr.bf16.mxu0 0
      %4793 = vmatmul.mubr.bf16.gmra.mrb[0].mxu0 %v4700
      %v4794 = vpop.f32.mrb[0].mxu0
      %v4795 = vadd.f32 0.0, %v4794
      %v4796 = vpop.f32.mrb[0].mxu0
      %v4797 = vpop.f32.mrb[0].mxu0
      %v4798 = vadd.f32 0.0, %v4797
      %v4799 = vpop.f32.mrb[0].mxu0
      %4800 = vmatprep.mubr.bf16.mxu0 0
      %4801 = vmatmul.mubr.bf16.gmra.mrb[0].mxu0 %v4703
      %v4802 = vpop.f32.mrb[0].mxu0
      %v4803 = vadd.f32 0.0, %v4802
      %v4804 = vpop.f32.mrb[0].mxu0
      %v4805 = vpop.f32.mrb[0].mxu0
      %v4806 = vadd.f32 0.0, %v4805
      %v4807 = vpop.f32.mrb[0].mxu0
      %4808 = vmatprep.mubr.bf16.mxu0 0
      %4809 = vmatmul.mubr.bf16.gmra.mrb[0].mxu0 %v4706
      %v4810 = vpop.f32.mrb[0].mxu0
      %v4811 = vadd.f32 0.0, %v4810
      %v4812 = vpop.f32.mrb[0].mxu0
      %v4813 = vpop.f32.mrb[0].mxu0
      %v4814 = vadd.f32 0.0, %v4813
      %v4815 = vpop.f32.mrb[0].mxu0
      %4816 = vmatprep.mubr.bf16.mxu0 0
      %4817 = vmatmul.mubr.bf16.gmra.mrb[0].mxu0 %v4709
      %v4818 = vpop.f32.mrb[0].mxu0
      %v4819 = vadd.f32 0.0, %v4818
      %v4820 = vpop.f32.mrb[0].mxu0
      %v4821 = vpop.f32.mrb[0].mxu0
      %v4822 = vadd.f32 0.0, %v4821
      %v4823 = vpop.f32.mrb[0].mxu0
      %4824 = vmatprep.mubr.bf16.mxu0 0
      %4825 = vmatmul.mubr.bf16.gmra.mrb[0].mxu0 %v4712
      %v4826 = vpop.f32.mrb[0].mxu0
      %v4827 = vadd.f32 0.0, %v4826
      %v4828 = vpop.f32.mrb[0].mxu0
      %v4829 = vpop.f32.mrb[0].mxu0
      %v4830 = vadd.f32 0.0, %v4829
      %v4831 = vpop.f32.mrb[0].mxu0
      %4832 = vmatprep.mubr.bf16.mxu0 0
      %4833 = vmatmul.mubr.bf16.gmra.mrb[0].mxu0 %v4715
      %v4834 = vpop.f32.mrb[0].mxu0
      %v4835 = vadd.f32 0.0, %v4834
      %v4836 = vpop.f32.mrb[0].mxu0
      %v4837 = vpop.f32.mrb[0].mxu0
      %v4838 = vadd.f32 0.0, %v4837
      %v4839 = vpop.f32.mrb[0].mxu0
      %4840 = vmatprep.mubr.bf16.mxu0 0
      %4841 = vmatmul.mubr.bf16.gmra.mrb[0].mxu0 %v4718
      %v4842 = vpop.f32.mrb[0].mxu0
      %v4843 = vadd.f32 0.0, %v4842
      %v4844 = vpop.f32.mrb[0].mxu0
      %v4845 = vpop.f32.mrb[0].mxu0
      %v4846 = vadd.f32 0.0, %v4845
      %v4847 = vpop.f32.mrb[0].mxu0
      %4848 = vmatprep.mubr.bf16.mxu0 0
      %4849 = vmatmul.mubr.bf16.gmra.mrb[0].mxu0 %v4721
      %v4850 = vpop.f32.mrb[0].mxu0
      %v4851 = vadd.f32 0.0, %v4850
      %v4852 = vpop.f32.mrb[0].mxu0
      %v4853 = vpop.f32.mrb[0].mxu0
      %v4854 = vadd.f32 0.0, %v4853
      %v4855 = vpop.f32.mrb[0].mxu0
      %4856 = vmatprep.mubr.bf16.mxu0 0
      %4857 = vmatmul.mubr.bf16.gmra.mrb[0].mxu0 %v4724
      %v4858 = vpop.f32.mrb[0].mxu0
      %v4859 = vadd.f32 0.0, %v4858
      %v4860 = vpop.f32.mrb[0].mxu0
      %v4861 = vpop.f32.mrb[0].mxu0
      %v4862 = vadd.f32 0.0, %v4861
      %v4863 = vpop.f32.mrb[0].mxu0
      %4864 = vmatprep.mubr.bf16.mxu0 0
      %4865 = vmatmul.mubr.bf16.gmra.mrb[0].mxu0 %v4727
      %v4866 = vpop.f32.mrb[0].mxu0
      %v4867 = vadd.f32 0.0, %v4866
      %v4868 = vpop.f32.mrb[0].mxu0
      %v4869 = vpop.f32.mrb[0].mxu0
      %v4870 = vadd.f32 0.0, %v4869
      %v4871 = vpop.f32.mrb[0].mxu0
      %4872 = vmatprep.mubr.bf16.mxu0 0
      %4873 = vmatmul.mubr.bf16.gmra.mrb[0].mxu0 %v4730
      %v4874 = vpop.f32.mrb[0].mxu0
      %v4875 = vadd.f32 0.0, %v4874
      %v4876 = vpop.f32.mrb[0].mxu0
      %v4877 = vpop.f32.mrb[0].mxu0
      %v4878 = vadd.f32 0.0, %v4877
      %v4879 = vpop.f32.mrb[0].mxu0
      %4880 = vmatprep.mubr.bf16.mxu0 0
      %4881 = vmatmul.mubr.bf16.gmra.mrb[0].mxu0 %v4733
      %v4882 = vpop.f32.mrb[0].mxu0
      %v4883 = vadd.f32 0.0, %v4882
      %v4884 = vpop.f32.mrb[0].mxu0
      %v4885 = vpop.f32.mrb[0].mxu0
      %v4886 = vadd.f32 0.0, %v4885
      %v4887 = vpop.f32.mrb[0].mxu0
      %4888 = vmatprep.mubr.bf16.mxu0 0
      %4889 = vmatmul.mubr.bf16.gmra.mrb[0].mxu0 %v4736
      %v4890 = vpop.f32.mrb[0].mxu0
      %v4891 = vadd.f32 0.0, %v4890
      %v4892 = vpop.f32.mrb[0].mxu0
      %v4893 = vpop.f32.mrb[0].mxu0
      %v4894 = vadd.f32 0.0, %v4893
      %v4895 = vpop.f32.mrb[0].mxu0
      %4896 = vmatprep.mubr.bf16.mxu0 0
      %4897 = vmatmul.mubr.bf16.gmra.mrb[0].mxu0 %v4739
      %v4898 = vpop.f32.mrb[0].mxu0
      %v4899 = vadd.f32 0.0, %v4898
      %v4900 = vpop.f32.mrb[0].mxu0
      %v4901 = vpop.f32.mrb[0].mxu0
      %v4902 = vadd.f32 0.0, %v4901
      %v4903 = vpop.f32.mrb[0].mxu0
      %4904 = vdwg.mxu0
      %v4905 = vadd.f32 %v4179, %v4779
      %v4906 = vadd.f32 %v4180, %v4782
      %v4907 = vadd.f32 %v4181, %v4787
      %v4908 = vadd.f32 %v4182, %v4790
      %v4909 = vadd.f32 %v4183, %v4795
      %v4910 = vadd.f32 %v4184, %v4798
      %v4911 = vadd.f32 %v4185, %v4803
      %v4912 = vadd.f32 %v4186, %v4806
      %v4913 = vadd.f32 %v4187, %v4811
      %v4914 = vadd.f32 %v4188, %v4814
      %v4915 = vadd.f32 %v4189, %v4819
      %v4916 = vadd.f32 %v4190, %v4822
      %v4917 = vadd.f32 %v4191, %v4827
      %v4918 = vadd.f32 %v4192, %v4830
      %v4919 = vadd.f32 %v4193, %v4835
      %v4920 = vadd.f32 %v4194, %v4838
      %v4921 = vadd.f32 %v4195, %v4843
      %v4922 = vadd.f32 %v4196, %v4846
      %v4923 = vadd.f32 %v4197, %v4851
      %v4924 = vadd.f32 %v4198, %v4854
      %v4925 = vadd.f32 %v4199, %v4859
      %v4926 = vadd.f32 %v4200, %v4862
      %v4927 = vadd.f32 %v4201, %v4867
      %v4928 = vadd.f32 %v4202, %v4870
      %v4929 = vadd.f32 %v4203, %v4875
      %v4930 = vadd.f32 %v4204, %v4878
      %v4931 = vadd.f32 %v4205, %v4883
      %v4932 = vadd.f32 %v4206, %v4886
      %v4933 = vadd.f32 %v4207, %v4891
      %v4934 = vadd.f32 %v4208, %v4894
      %v4935 = vadd.f32 %v4209, %v4899
      %v4936 = vadd.f32 %v4210, %v4902
      %v4937 = vld [vmem:[%s3852] sm:$0xe]
      %v4938 = vld [vmem:[%s3852 + $0xc] sm:$0xe]
      %v4939 = vld [vmem:[%s3852 + $0x18] sm:$0xe]
      %v4940 = vld [vmem:[%s3852 + $0x24] sm:$0xe]
      %v4941 = vld [vmem:[%s3852 + $0x30] sm:$0xe]
      %v4942 = vld [vmem:[%s3852 + $0x3c] sm:$0xe]
      %v4943 = vld [vmem:[%s3852 + $0x48] sm:$0xe]
      %v4944 = vld [vmem:[%s3852 + $0x54] sm:$0xe]
      %v4945 = vld [vmem:[%s3852 + $0x60] sm:$0xe]
      %v4946 = vld [vmem:[%s3852 + $0x6c] sm:$0xe]
      %v4947 = vld [vmem:[%s3852 + $0x78] sm:$0xe]
      %v4948 = vld [vmem:[%s3852 + $0x84] sm:$0xe]
      %v4949 = vld [vmem:[%s3852 + $0x90] sm:$0xe]
      %v4950 = vld [vmem:[%s3852 + $0x9c] sm:$0xe]
      %v4951 = vld [vmem:[%s3852 + $0xa8] sm:$0xe]
      %v4952 = vld [vmem:[%s3852 + $0xb4] sm:$0xe]
      %v5001 = vrot.slane %v4937, 5
      %v5002 = vrot.slane %v5001, 4
      %v5003 = vrot.slane %v4212, 5
      %v5004 = vsel %vm1891, %v5002, %v5003
      %v5005 = vrot.slane %v5003, 4
      %v5006 = vrot.slane %v4213, 5
      %v5007 = vsel %vm1891, %v5005, %v5006
      %v5008 = vrot.slane %v4938, 5
      %v5009 = vrot.slane %v5008, 4
      %v5010 = vrot.slane %v4215, 5
      %v5011 = vsel %vm1891, %v5009, %v5010
      %v5012 = vrot.slane %v5010, 4
      %v5013 = vrot.slane %v4216, 5
      %v5014 = vsel %vm1891, %v5012, %v5013
      %v5015 = vrot.slane %v4939, 5
      %v5016 = vrot.slane %v5015, 4
      %v5017 = vrot.slane %v4218, 5
      %v5018 = vsel %vm1891, %v5016, %v5017
      %v5019 = vrot.slane %v5017, 4
      %v5020 = vrot.slane %v4219, 5
      %v5021 = vsel %vm1891, %v5019, %v5020
      %v5022 = vrot.slane %v4940, 5
      %v5023 = vrot.slane %v5022, 4
      %v5024 = vrot.slane %v4221, 5
      %v5025 = vsel %vm1891, %v5023, %v5024
      %v5026 = vrot.slane %v5024, 4
      %v5027 = vrot.slane %v4222, 5
      %v5028 = vsel %vm1891, %v5026, %v5027
      %v5029 = vrot.slane %v4941, 5
      %v5030 = vrot.slane %v5029, 4
      %v5031 = vrot.slane %v4224, 5
      %v5032 = vsel %vm1891, %v5030, %v5031
      %v5033 = vrot.slane %v5031, 4
      %v5034 = vrot.slane %v4225, 5
      %v5035 = vsel %vm1891, %v5033, %v5034
      %v5036 = vrot.slane %v4942, 5
      %v5037 = vrot.slane %v5036, 4
      %v5038 = vrot.slane %v4227, 5
      %v5039 = vsel %vm1891, %v5037, %v5038
      %v5040 = vrot.slane %v5038, 4
      %v5041 = vrot.slane %v4228, 5
      %v5042 = vsel %vm1891, %v5040, %v5041
      %v5043 = vrot.slane %v4943, 5
      %v5044 = vrot.slane %v5043, 4
      %v5045 = vrot.slane %v4230, 5
      %v5046 = vsel %vm1891, %v5044, %v5045
      %v5047 = vrot.slane %v5045, 4
      %v5048 = vrot.slane %v4231, 5
      %v5049 = vsel %vm1891, %v5047, %v5048
      %v5050 = vrot.slane %v4944, 5
      %v5051 = vrot.slane %v5050, 4
      %v5052 = vrot.slane %v4233, 5
      %v5053 = vsel %vm1891, %v5051, %v5052
      %v5054 = vrot.slane %v5052, 4
      %v5055 = vrot.slane %v4234, 5
      %v5056 = vsel %vm1891, %v5054, %v5055
      %v5057 = vrot.slane %v4945, 5
      %v5058 = vrot.slane %v5057, 4
      %v5059 = vrot.slane %v4236, 5
      %v5060 = vsel %vm1891, %v5058, %v5059
      %v5061 = vrot.slane %v5059, 4
      %v5062 = vrot.slane %v4237, 5
      %v5063 = vsel %vm1891, %v5061, %v5062
      %v5064 = vrot.slane %v4946, 5
      %v5065 = vrot.slane %v5064, 4
      %v5066 = vrot.slane %v4239, 5
      %v5067 = vsel %vm1891, %v5065, %v5066
      %v5068 = vrot.slane %v5066, 4
      %v5069 = vrot.slane %v4240, 5
      %v5070 = vsel %vm1891, %v5068, %v5069
      %v5071 = vrot.slane %v4947, 5
      %v5072 = vrot.slane %v5071, 4
      %v5073 = vrot.slane %v4242, 5
      %v5074 = vsel %vm1891, %v5072, %v5073
      %v5075 = vrot.slane %v5073, 4
      %v5076 = vrot.slane %v4243, 5
      %v5077 = vsel %vm1891, %v5075, %v5076
      %v5078 = vrot.slane %v4948, 5
      %v5079 = vrot.slane %v5078, 4
      %v5080 = vrot.slane %v4245, 5
      %v5081 = vsel %vm1891, %v5079, %v5080
      %v5082 = vrot.slane %v5080, 4
      %v5083 = vrot.slane %v4246, 5
      %v5084 = vsel %vm1891, %v5082, %v5083
      %v5085 = vrot.slane %v4949, 5
      %v5086 = vrot.slane %v5085, 4
      %v5087 = vrot.slane %v4248, 5
      %v5088 = vsel %vm1891, %v5086, %v5087
      %v5089 = vrot.slane %v5087, 4
      %v5090 = vrot.slane %v4249, 5
      %v5091 = vsel %vm1891, %v5089, %v5090
      %v5092 = vrot.slane %v4950, 5
      %v5093 = vrot.slane %v5092, 4
      %v5094 = vrot.slane %v4251, 5
      %v5095 = vsel %vm1891, %v5093, %v5094
      %v5096 = vrot.slane %v5094, 4
      %v5097 = vrot.slane %v4252, 5
      %v5098 = vsel %vm1891, %v5096, %v5097
      %v5099 = vrot.slane %v4951, 5
      %v5100 = vrot.slane %v5099, 4
      %v5101 = vrot.slane %v4254, 5
      %v5102 = vsel %vm1891, %v5100, %v5101
      %v5103 = vrot.slane %v5101, 4
      %v5104 = vrot.slane %v4255, 5
      %v5105 = vsel %vm1891, %v5103, %v5104
      %v5106 = vrot.slane %v4952, 5
      %v5107 = vrot.slane %v5106, 4
      %v5108 = vrot.slane %v4257, 5
      %v5109 = vsel %vm1891, %v5107, %v5108
      %v5110 = vrot.slane %v5108, 4
      %v5111 = vrot.slane %v4258, 5
      %v5112 = vsel %vm1891, %v5110, %v5111
      %s5113 = scalar_lea.vmem %s1, 16
      %v5114 = vld [vmem:[%s5113] sm:$0x3]
      %v5115 = vunpack.c.l.b16 %v5004
      %v5116 = vunpack.c.l.b16 %v5007
      %v5117 = vunpack.c.l.b16 %v5011
      %v5118 = vunpack.c.l.b16 %v5014
      %v5119 = vunpack.c.l.b16 %v5018
      %v5120 = vunpack.c.l.b16 %v5021
      %v5121 = vunpack.c.l.b16 %v5025
      %v5122 = vunpack.c.l.b16 %v5028
      %v5123 = vunpack.c.l.b16 %v5032
      %v5124 = vunpack.c.l.b16 %v5035
      %v5125 = vunpack.c.l.b16 %v5039
      %v5126 = vunpack.c.l.b16 %v5042
      %v5127 = vunpack.c.l.b16 %v5046
      %v5128 = vunpack.c.l.b16 %v5049
      %v5129 = vunpack.c.l.b16 %v5053
      %v5130 = vunpack.c.l.b16 %v5056
      %v5131 = vunpack.c.l.b16 %v5060
      %v5132 = vunpack.c.l.b16 %v5063
      %v5133 = vunpack.c.l.b16 %v5067
      %v5134 = vunpack.c.l.b16 %v5070
      %v5135 = vunpack.c.l.b16 %v5074
      %v5136 = vunpack.c.l.b16 %v5077
      %v5137 = vunpack.c.l.b16 %v5081
      %v5138 = vunpack.c.l.b16 %v5084
      %v5139 = vunpack.c.l.b16 %v5088
      %v5140 = vunpack.c.l.b16 %v5091
      %v5141 = vunpack.c.l.b16 %v5095
      %v5142 = vunpack.c.l.b16 %v5098
      %v5143 = vunpack.c.l.b16 %v5102
      %v5144 = vunpack.c.l.b16 %v5105
      %v5145 = vunpack.c.l.b16 %v5109
      %v5146 = vunpack.c.l.b16 %v5112
      %v5147 = vpack.c.b16 %v5116, %v5115
      %v5148 = vpack.c.b16 %v5118, %v5117
      %v5149 = vpack.c.b16 %v5120, %v5119
      %v5150 = vpack.c.b16 %v5122, %v5121
      %v5151 = vpack.c.b16 %v5124, %v5123
      %v5152 = vpack.c.b16 %v5126, %v5125
      %v5153 = vpack.c.b16 %v5128, %v5127
      %v5154 = vpack.c.b16 %v5130, %v5129
      %v5155 = vpack.c.b16 %v5132, %v5131
      %v5156 = vpack.c.b16 %v5134, %v5133
      %v5157 = vpack.c.b16 %v5136, %v5135
      %v5158 = vpack.c.b16 %v5138, %v5137
      %v5159 = vpack.c.b16 %v5140, %v5139
      %v5160 = vpack.c.b16 %v5142, %v5141
      %v5161 = vpack.c.b16 %v5144, %v5143
      %v5162 = vpack.c.b16 %v5146, %v5145
      %v5164 = vsel %vm1335, %v5147, 0
      %v5167 = vsel %vm1335, %v5148, 0
      %v5170 = vsel %vm1335, %v5149, 0
      %v5173 = vsel %vm1335, %v5150, 0
      %v5176 = vsel %vm1335, %v5151, 0
      %v5179 = vsel %vm1335, %v5152, 0
      %v5182 = vsel %vm1335, %v5153, 0
      %v5185 = vsel %vm1335, %v5154, 0
      %v5188 = vsel %vm1335, %v5155, 0
      %v5191 = vsel %vm1335, %v5156, 0
      %v5194 = vsel %vm1335, %v5157, 0
      %v5197 = vsel %vm1335, %v5158, 0
      %v5200 = vsel %vm1335, %v5159, 0
      %v5203 = vsel %vm1335, %v5160, 0
      %v5206 = vsel %vm1335, %v5161, 0
      %v5209 = vsel %vm1335, %v5162, 0
      %v5212 = vsel %vm1384, %v5114, 0
      %5214 = vmatprep.subr.bf16.mxu0 0
      %5215 = vmatpush1.bf16.msra.mxu0 %v5212
      %5216 = vmatprep.subr.bf16.mxu0 0
      %5217 = vmatpush1.bf16.msra.mxu0 0
      %5218 = vmatprep.subr.bf16.mxu0 0
      %5219 = vmatpush1.bf16.msra.mxu0 0
      %5220 = vmatprep.subr.bf16.mxu0 0
      %5221 = vmatpush1.bf16.msra.mxu0 0
      %5222 = vmatprep.subr.bf16.mxu0 0
      %5223 = vmatpush1.bf16.msra.mxu0 0
      %5224 = vmatprep.subr.bf16.mxu0 0
      %5225 = vmatpush1.bf16.msra.mxu0 0
      %5226 = vmatprep.subr.bf16.mxu0 0
      %5227 = vmatpush1.bf16.msra.mxu0 0
      %5228 = vmatprep.subr.bf16.mxu0 0
      %5229 = vmatpush1.bf16.msra.mxu0 0
      %5230 = vmatprep.subr.bf16.mxu0 0
      %5231 = vmatpush1.bf16.msra.mxu0 0
      %5232 = vmatprep.subr.bf16.mxu0 0
      %5233 = vmatpush1.bf16.msra.mxu0 0
      %5234 = vmatprep.subr.bf16.mxu0 0
      %5235 = vmatpush1.bf16.msra.mxu0 0
      %5236 = vmatprep.subr.bf16.mxu0 0
      %5237 = vmatpush1.bf16.msra.mxu0 0
      %5238 = vmatprep.subr.bf16.mxu0 0
      %5239 = vmatpush1.bf16.msra.mxu0 0
      %5240 = vmatprep.subr.bf16.mxu0 0
      %5241 = vmatpush1.bf16.msra.mxu0 0
      %5242 = vmatprep.subr.bf16.mxu0 0
      %5243 = vmatpush1.bf16.msra.mxu0 0
      %5244 = vmatprep.subr.bf16.mxu0 0
      %5245 = vmatpush1.bf16.msra.mxu0 0
      %5246 = vmatprep.mubr.bf16.mxu0 0
      %5247 = vmatmul.mubr.bf16.gmra.mrb[0].mxu0 %v5164
      %v5248 = vpop.f32.mrb[0].mxu0
      %v5249 = vadd.f32 0.0, %v5248
      %v5250 = vpop.f32.mrb[0].mxu0
      %v5251 = vpop.f32.mrb[0].mxu0
      %v5252 = vadd.f32 0.0, %v5251
      %v5253 = vpop.f32.mrb[0].mxu0
      %5254 = vmatprep.mubr.bf16.mxu0 0
      %5255 = vmatmul.mubr.bf16.gmra.mrb[0].mxu0 %v5167
      %v5256 = vpop.f32.mrb[0].mxu0
      %v5257 = vadd.f32 0.0, %v5256
      %v5258 = vpop.f32.mrb[0].mxu0
      %v5259 = vpop.f32.mrb[0].mxu0
      %v5260 = vadd.f32 0.0, %v5259
      %v5261 = vpop.f32.mrb[0].mxu0
      %5262 = vmatprep.mubr.bf16.mxu0 0
      %5263 = vmatmul.mubr.bf16.gmra.mrb[0].mxu0 %v5170
      %v5264 = vpop.f32.mrb[0].mxu0
      %v5265 = vadd.f32 0.0, %v5264
      %v5266 = vpop.f32.mrb[0].mxu0
      %v5267 = vpop.f32.mrb[0].mxu0
      %v5268 = vadd.f32 0.0, %v5267
      %v5269 = vpop.f32.mrb[0].mxu0
      %5270 = vmatprep.mubr.bf16.mxu0 0
      %5271 = vmatmul.mubr.bf16.gmra.mrb[0].mxu0 %v5173
      %v5272 = vpop.f32.mrb[0].mxu0
      %v5273 = vadd.f32 0.0, %v5272
      %v5274 = vpop.f32.mrb[0].mxu0
      %v5275 = vpop.f32.mrb[0].mxu0
      %v5276 = vadd.f32 0.0, %v5275
      %v5277 = vpop.f32.mrb[0].mxu0
      %5278 = vmatprep.mubr.bf16.mxu0 0
      %5279 = vmatmul.mubr.bf16.gmra.mrb[0].mxu0 %v5176
      %v5280 = vpop.f32.mrb[0].mxu0
      %v5281 = vadd.f32 0.0, %v5280
      %v5282 = vpop.f32.mrb[0].mxu0
      %v5283 = vpop.f32.mrb[0].mxu0
      %v5284 = vadd.f32 0.0, %v5283
      %v5285 = vpop.f32.mrb[0].mxu0
      %5286 = vmatprep.mubr.bf16.mxu0 0
      %5287 = vmatmul.mubr.bf16.gmra.mrb[0].mxu0 %v5179
      %v5288 = vpop.f32.mrb[0].mxu0
      %v5289 = vadd.f32 0.0, %v5288
      %v5290 = vpop.f32.mrb[0].mxu0
      %v5291 = vpop.f32.mrb[0].mxu0
      %v5292 = vadd.f32 0.0, %v5291
      %v5293 = vpop.f32.mrb[0].mxu0
      %5294 = vmatprep.mubr.bf16.mxu0 0
      %5295 = vmatmul.mubr.bf16.gmra.mrb[0].mxu0 %v5182
      %v5296 = vpop.f32.mrb[0].mxu0
      %v5297 = vadd.f32 0.0, %v5296
      %v5298 = vpop.f32.mrb[0].mxu0
      %v5299 = vpop.f32.mrb[0].mxu0
      %v5300 = vadd.f32 0.0, %v5299
      %v5301 = vpop.f32.mrb[0].mxu0
      %5302 = vmatprep.mubr.bf16.mxu0 0
      %5303 = vmatmul.mubr.bf16.gmra.mrb[0].mxu0 %v5185
      %v5304 = vpop.f32.mrb[0].mxu0
      %v5305 = vadd.f32 0.0, %v5304
      %v5306 = vpop.f32.mrb[0].mxu0
      %v5307 = vpop.f32.mrb[0].mxu0
      %v5308 = vadd.f32 0.0, %v5307
      %v5309 = vpop.f32.mrb[0].mxu0
      %5310 = vmatprep.mubr.bf16.mxu0 0
      %5311 = vmatmul.mubr.bf16.gmra.mrb[0].mxu0 %v5188
      %v5312 = vpop.f32.mrb[0].mxu0
      %v5313 = vadd.f32 0.0, %v5312
      %v5314 = vpop.f32.mrb[0].mxu0
      %v5315 = vpop.f32.mrb[0].mxu0
      %v5316 = vadd.f32 0.0, %v5315
      %v5317 = vpop.f32.mrb[0].mxu0
      %5318 = vmatprep.mubr.bf16.mxu0 0
      %5319 = vmatmul.mubr.bf16.gmra.mrb[0].mxu0 %v5191
      %v5320 = vpop.f32.mrb[0].mxu0
      %v5321 = vadd.f32 0.0, %v5320
      %v5322 = vpop.f32.mrb[0].mxu0
      %v5323 = vpop.f32.mrb[0].mxu0
      %v5324 = vadd.f32 0.0, %v5323
      %v5325 = vpop.f32.mrb[0].mxu0
      %5326 = vmatprep.mubr.bf16.mxu0 0
      %5327 = vmatmul.mubr.bf16.gmra.mrb[0].mxu0 %v5194
      %v5328 = vpop.f32.mrb[0].mxu0
      %v5329 = vadd.f32 0.0, %v5328
      %v5330 = vpop.f32.mrb[0].mxu0
      %v5331 = vpop.f32.mrb[0].mxu0
      %v5332 = vadd.f32 0.0, %v5331
      %v5333 = vpop.f32.mrb[0].mxu0
      %5334 = vmatprep.mubr.bf16.mxu0 0
      %5335 = vmatmul.mubr.bf16.gmra.mrb[0].mxu0 %v5197
      %v5336 = vpop.f32.mrb[0].mxu0
      %v5337 = vadd.f32 0.0, %v5336
      %v5338 = vpop.f32.mrb[0].mxu0
      %v5339 = vpop.f32.mrb[0].mxu0
      %v5340 = vadd.f32 0.0, %v5339
      %v5341 = vpop.f32.mrb[0].mxu0
      %5342 = vmatprep.mubr.bf16.mxu0 0
      %5343 = vmatmul.mubr.bf16.gmra.mrb[0].mxu0 %v5200
      %v5344 = vpop.f32.mrb[0].mxu0
      %v5345 = vadd.f32 0.0, %v5344
      %v5346 = vpop.f32.mrb[0].mxu0
      %v5347 = vpop.f32.mrb[0].mxu0
      %v5348 = vadd.f32 0.0, %v5347
      %v5349 = vpop.f32.mrb[0].mxu0
      %5350 = vmatprep.mubr.bf16.mxu0 0
      %5351 = vmatmul.mubr.bf16.gmra.mrb[0].mxu0 %v5203
      %v5352 = vpop.f32.mrb[0].mxu0
      %v5353 = vadd.f32 0.0, %v5352
      %v5354 = vpop.f32.mrb[0].mxu0
      %v5355 = vpop.f32.mrb[0].mxu0
      %v5356 = vadd.f32 0.0, %v5355
      %v5357 = vpop.f32.mrb[0].mxu0
      %5358 = vmatprep.mubr.bf16.mxu0 0
      %5359 = vmatmul.mubr.bf16.gmra.mrb[0].mxu0 %v5206
      %v5360 = vpop.f32.mrb[0].mxu0
      %v5361 = vadd.f32 0.0, %v5360
      %v5362 = vpop.f32.mrb[0].mxu0
      %v5363 = vpop.f32.mrb[0].mxu0
      %v5364 = vadd.f32 0.0, %v5363
      %v5365 = vpop.f32.mrb[0].mxu0
      %5366 = vmatprep.mubr.bf16.mxu0 0
      %5367 = vmatmul.mubr.bf16.gmra.mrb[0].mxu0 %v5209
      %v5368 = vpop.f32.mrb[0].mxu0
      %v5369 = vadd.f32 0.0, %v5368
      %v5370 = vpop.f32.mrb[0].mxu0
      %v5371 = vpop.f32.mrb[0].mxu0
      %v5372 = vadd.f32 0.0, %v5371
      %v5373 = vpop.f32.mrb[0].mxu0
      %5374 = vdwg.mxu0
      %v5375 = vadd.f32 %v4905, %v5249
      %v5376 = vadd.f32 %v4906, %v5252
      %v5377 = vadd.f32 %v4907, %v5257
      %v5378 = vadd.f32 %v4908, %v5260
      %v5379 = vadd.f32 %v4909, %v5265
      %v5380 = vadd.f32 %v4910, %v5268
      %v5381 = vadd.f32 %v4911, %v5273
      %v5382 = vadd.f32 %v4912, %v5276
      %v5383 = vadd.f32 %v4913, %v5281
      %v5384 = vadd.f32 %v4914, %v5284
      %v5385 = vadd.f32 %v4915, %v5289
      %v5386 = vadd.f32 %v4916, %v5292
      %v5387 = vadd.f32 %v4917, %v5297
      %v5388 = vadd.f32 %v4918, %v5300
      %v5389 = vadd.f32 %v4919, %v5305
      %v5390 = vadd.f32 %v4920, %v5308
      %v5391 = vadd.f32 %v4921, %v5313
      %v5392 = vadd.f32 %v4922, %v5316
      %v5393 = vadd.f32 %v4923, %v5321
      %v5394 = vadd.f32 %v4924, %v5324
      %v5395 = vadd.f32 %v4925, %v5329
      %v5396 = vadd.f32 %v4926, %v5332
      %v5397 = vadd.f32 %v4927, %v5337
      %v5398 = vadd.f32 %v4928, %v5340
      %v5399 = vadd.f32 %v4929, %v5345
      %v5400 = vadd.f32 %v4930, %v5348
      %v5401 = vadd.f32 %v4931, %v5353
      %v5402 = vadd.f32 %v4932, %v5356
      %v5403 = vadd.f32 %v4933, %v5361
      %v5404 = vadd.f32 %v4934, %v5364
      %v5405 = vadd.f32 %v4935, %v5369
      %v5406 = vadd.f32 %v4936, %v5372
      %v5407 = vadd.f32 %v5375, %v5376
      %v5408 = vadd.f32 %v5407, %v5377
      %v5409 = vadd.f32 %v5408, %v5378
      %v5410 = vadd.f32 %v5409, %v5379
      %v5411 = vadd.f32 %v5410, %v5380
      %v5412 = vadd.f32 %v5411, %v5381
      %v5413 = vadd.f32 %v5412, %v5382
      %v5414 = vadd.f32 %v5413, %v5383
      %v5415 = vadd.f32 %v5414, %v5384
      %v5416 = vadd.f32 %v5415, %v5385
      %v5417 = vadd.f32 %v5416, %v5386
      %v5418 = vadd.f32 %v5417, %v5387
      %v5419 = vadd.f32 %v5418, %v5388
      %v5420 = vadd.f32 %v5419, %v5389
      %v5421 = vadd.f32 %v5420, %v5390
      %v5422 = vadd.f32 %v5421, %v5391
      %v5423 = vadd.f32 %v5422, %v5392
      %v5424 = vadd.f32 %v5423, %v5393
      %v5425 = vadd.f32 %v5424, %v5394
      %v5426 = vadd.f32 %v5425, %v5395
      %v5427 = vadd.f32 %v5426, %v5396
      %v5428 = vadd.f32 %v5427, %v5397
      %v5429 = vadd.f32 %v5428, %v5398
      %v5430 = vadd.f32 %v5429, %v5399
      %v5431 = vadd.f32 %v5430, %v5400
      %v5432 = vadd.f32 %v5431, %v5401
      %v5433 = vadd.f32 %v5432, %v5402
      %v5434 = vadd.f32 %v5433, %v5403
      %v5435 = vadd.f32 %v5434, %v5404
      %v5436 = vadd.f32 %v5435, %v5405
      %v5437 = vadd.f32 %v5436, %v5406
      %v5438 = vrot.slane %v5437, 4
      %v5439 = vadd.f32 %v5437, %v5438
      %v5440 = vrot.slane %v5439, 2
      %v5441 = vadd.f32 %v5439, %v5440
      %v5442 = vrot.slane %v5441, 1
      %v5443 = vadd.f32 %v5441, %v5442
      %v5444 = vmul.f32 %v5375, %v5375
      %v5445 = vmul.f32 %v5376, %v5376
      %v5446 = vmul.f32 %v5377, %v5377
      %v5447 = vmul.f32 %v5378, %v5378
      %v5448 = vmul.f32 %v5379, %v5379
      %v5449 = vmul.f32 %v5380, %v5380
      %v5450 = vmul.f32 %v5381, %v5381
      %v5451 = vmul.f32 %v5382, %v5382
      %v5452 = vmul.f32 %v5383, %v5383
      %v5453 = vmul.f32 %v5384, %v5384
      %v5454 = vmul.f32 %v5385, %v5385
      %v5455 = vmul.f32 %v5386, %v5386
      %v5456 = vmul.f32 %v5387, %v5387
      %v5457 = vmul.f32 %v5388, %v5388
      %v5458 = vmul.f32 %v5389, %v5389
      %v5459 = vmul.f32 %v5390, %v5390
      %v5460 = vmul.f32 %v5391, %v5391
      %v5461 = vmul.f32 %v5392, %v5392
      %v5462 = vmul.f32 %v5393, %v5393
      %v5463 = vmul.f32 %v5394, %v5394
      %v5464 = vmul.f32 %v5395, %v5395
      %v5465 = vmul.f32 %v5396, %v5396
      %v5466 = vmul.f32 %v5397, %v5397
      %v5467 = vmul.f32 %v5398, %v5398
      %v5468 = vmul.f32 %v5399, %v5399
      %v5469 = vmul.f32 %v5400, %v5400
      %v5470 = vmul.f32 %v5401, %v5401
      %v5471 = vmul.f32 %v5402, %v5402
      %v5472 = vmul.f32 %v5403, %v5403
      %v5473 = vmul.f32 %v5404, %v5404
      %v5474 = vmul.f32 %v5405, %v5405
      %v5475 = vmul.f32 %v5406, %v5406
      %v5476 = vadd.f32 %v5444, %v5445
      %v5477 = vadd.f32 %v5476, %v5446
      %v5478 = vadd.f32 %v5477, %v5447
      %v5479 = vadd.f32 %v5478, %v5448
      %v5480 = vadd.f32 %v5479, %v5449
      %v5481 = vadd.f32 %v5480, %v5450
      %v5482 = vadd.f32 %v5481, %v5451
      %v5483 = vadd.f32 %v5482, %v5452
      %v5484 = vadd.f32 %v5483, %v5453
      %v5485 = vadd.f32 %v5484, %v5454
      %v5486 = vadd.f32 %v5485, %v5455
      %v5487 = vadd.f32 %v5486, %v5456
      %v5488 = vadd.f32 %v5487, %v5457
      %v5489 = vadd.f32 %v5488, %v5458
      %v5490 = vadd.f32 %v5489, %v5459
      %v5491 = vadd.f32 %v5490, %v5460
      %v5492 = vadd.f32 %v5491, %v5461
      %v5493 = vadd.f32 %v5492, %v5462
      %v5494 = vadd.f32 %v5493, %v5463
      %v5495 = vadd.f32 %v5494, %v5464
      %v5496 = vadd.f32 %v5495, %v5465
      %v5497 = vadd.f32 %v5496, %v5466
      %v5498 = vadd.f32 %v5497, %v5467
      %v5499 = vadd.f32 %v5498, %v5468
      %v5500 = vadd.f32 %v5499, %v5469
      %v5501 = vadd.f32 %v5500, %v5470
      %v5502 = vadd.f32 %v5501, %v5471
      %v5503 = vadd.f32 %v5502, %v5472
      %v5504 = vadd.f32 %v5503, %v5473
      %v5505 = vadd.f32 %v5504, %v5474
      %v5506 = vadd.f32 %v5505, %v5475
      %v5507 = vrot.slane %v5506, 4
      %v5508 = vadd.f32 %v5506, %v5507
      %v5509 = vrot.slane %v5508, 2
      %v5510 = vadd.f32 %v5508, %v5509
      %v5511 = vrot.slane %v5510, 1
      %v5512 = vadd.f32 %v5510, %v5511
      %v5513 = vmul.f32 %v5443, 0.00390625
      %v5514 = vmul.f32 %v5512, 0.00390625
      %v5515 = vmul.f32 %v5513, %v5513
      %v5516 = vsub.f32 %v5514, %v5515
      %v5517 = vmax.f32 %v5516, 0.0
      %v5518 = vsub.f32 %v5375, %v5513
      %v5519 = vsub.f32 %v5376, %v5513
      %v5520 = vsub.f32 %v5377, %v5513
      %v5521 = vsub.f32 %v5378, %v5513
      %v5522 = vsub.f32 %v5379, %v5513
      %v5523 = vsub.f32 %v5380, %v5513
      %v5524 = vsub.f32 %v5381, %v5513
      %v5525 = vsub.f32 %v5382, %v5513
      %v5526 = vsub.f32 %v5383, %v5513
      %v5527 = vsub.f32 %v5384, %v5513
      %v5528 = vsub.f32 %v5385, %v5513
      %v5529 = vsub.f32 %v5386, %v5513
      %v5530 = vsub.f32 %v5387, %v5513
      %v5531 = vsub.f32 %v5388, %v5513
      %v5532 = vsub.f32 %v5389, %v5513
      %v5533 = vsub.f32 %v5390, %v5513
      %v5534 = vsub.f32 %v5391, %v5513
      %v5535 = vsub.f32 %v5392, %v5513
      %v5536 = vsub.f32 %v5393, %v5513
      %v5537 = vsub.f32 %v5394, %v5513
      %v5538 = vsub.f32 %v5395, %v5513
      %v5539 = vsub.f32 %v5396, %v5513
      %v5540 = vsub.f32 %v5397, %v5513
      %v5541 = vsub.f32 %v5398, %v5513
      %v5542 = vsub.f32 %v5399, %v5513
      %v5543 = vsub.f32 %v5400, %v5513
      %v5544 = vsub.f32 %v5401, %v5513
      %v5545 = vsub.f32 %v5402, %v5513
      %v5546 = vsub.f32 %v5403, %v5513
      %v5547 = vsub.f32 %v5404, %v5513
      %v5548 = vsub.f32 %v5405, %v5513
      %v5549 = vsub.f32 %v5406, %v5513
      %v5550 = vadd.f32 %v5517, 1e-05
      %v5551 = vrsqrt.pop %v5550
      %v5552 = vmul.f32 %v5518, %v5551
      %v5553 = vmul.f32 %v5519, %v5551
      %v5554 = vmul.f32 %v5520, %v5551
      %v5555 = vmul.f32 %v5521, %v5551
      %v5556 = vmul.f32 %v5522, %v5551
      %v5557 = vmul.f32 %v5523, %v5551
      %v5558 = vmul.f32 %v5524, %v5551
      %v5559 = vmul.f32 %v5525, %v5551
      %v5560 = vmul.f32 %v5526, %v5551
      %v5561 = vmul.f32 %v5527, %v5551
      %v5562 = vmul.f32 %v5528, %v5551
      %v5563 = vmul.f32 %v5529, %v5551
      %v5564 = vmul.f32 %v5530, %v5551
      %v5565 = vmul.f32 %v5531, %v5551
      %v5566 = vmul.f32 %v5532, %v5551
      %v5567 = vmul.f32 %v5533, %v5551
      %v5568 = vmul.f32 %v5534, %v5551
      %v5569 = vmul.f32 %v5535, %v5551
      %v5570 = vmul.f32 %v5536, %v5551
      %v5571 = vmul.f32 %v5537, %v5551
      %v5572 = vmul.f32 %v5538, %v5551
      %v5573 = vmul.f32 %v5539, %v5551
      %v5574 = vmul.f32 %v5540, %v5551
      %v5575 = vmul.f32 %v5541, %v5551
      %v5576 = vmul.f32 %v5542, %v5551
      %v5577 = vmul.f32 %v5543, %v5551
      %v5578 = vmul.f32 %v5544, %v5551
      %v5579 = vmul.f32 %v5545, %v5551
      %v5580 = vmul.f32 %v5546, %v5551
      %v5581 = vmul.f32 %v5547, %v5551
      %v5582 = vmul.f32 %v5548, %v5551
      %v5583 = vmul.f32 %v5549, %v5551
      %v5584 = vmax.f32 %v5552, 0.0
      %v5585 = vmax.f32 %v5553, 0.0
      %v5586 = vmax.f32 %v5554, 0.0
      %v5587 = vmax.f32 %v5555, 0.0
      %v5588 = vmax.f32 %v5556, 0.0
      %v5589 = vmax.f32 %v5557, 0.0
      %v5590 = vmax.f32 %v5558, 0.0
      %v5591 = vmax.f32 %v5559, 0.0
      %v5592 = vmax.f32 %v5560, 0.0
      %v5593 = vmax.f32 %v5561, 0.0
      %v5594 = vmax.f32 %v5562, 0.0
      %v5595 = vmax.f32 %v5563, 0.0
      %v5596 = vmax.f32 %v5564, 0.0
      %v5597 = vmax.f32 %v5565, 0.0
      %v5598 = vmax.f32 %v5566, 0.0
      %v5599 = vmax.f32 %v5567, 0.0
      %v5600 = vmax.f32 %v5568, 0.0
      %v5601 = vmax.f32 %v5569, 0.0
      %v5602 = vmax.f32 %v5570, 0.0
      %v5603 = vmax.f32 %v5571, 0.0
      %v5604 = vmax.f32 %v5572, 0.0
      %v5605 = vmax.f32 %v5573, 0.0
      %v5606 = vmax.f32 %v5574, 0.0
      %v5607 = vmax.f32 %v5575, 0.0
      %v5608 = vmax.f32 %v5576, 0.0
      %v5609 = vmax.f32 %v5577, 0.0
      %v5610 = vmax.f32 %v5578, 0.0
      %v5611 = vmax.f32 %v5579, 0.0
      %v5612 = vmax.f32 %v5580, 0.0
      %v5613 = vmax.f32 %v5581, 0.0
      %v5614 = vmax.f32 %v5582, 0.0
      %v5615 = vmax.f32 %v5583, 0.0
      %v5616 = vpack.c.bf16 %v5585, %v5584
      %v5617 = vpack.c.bf16 %v5587, %v5586
      %v5618 = vpack.c.bf16 %v5589, %v5588
      %v5619 = vpack.c.bf16 %v5591, %v5590
      %v5620 = vpack.c.bf16 %v5593, %v5592
      %v5621 = vpack.c.bf16 %v5595, %v5594
      %v5622 = vpack.c.bf16 %v5597, %v5596
      %v5623 = vpack.c.bf16 %v5599, %v5598
      %v5624 = vpack.c.bf16 %v5601, %v5600
      %v5625 = vpack.c.bf16 %v5603, %v5602
      %v5626 = vpack.c.bf16 %v5605, %v5604
      %v5627 = vpack.c.bf16 %v5607, %v5606
      %v5628 = vpack.c.bf16 %v5609, %v5608
      %v5629 = vpack.c.bf16 %v5611, %v5610
      %v5630 = vpack.c.bf16 %v5613, %v5612
      %v5631 = vpack.c.bf16 %v5615, %v5614
      %5632 = vst [vmem:[#allocation3] sm:$0xf] 0
      %5633 = vst [vmem:[#allocation3 + $0x4] sm:$0xf] 0
      %5634 = vst [vmem:[#allocation3 + $0x8] sm:$0x1] 0
      %s5635 = scalar_lea.vmem [#allocation3], 204
      %5636 = vst [vmem:[%s5635] sm:$0xf] 0
      %5637 = vst [vmem:[%s5635 + $0x4] sm:$0xf] 0
      %5638 = vst [vmem:[%s5635 + $0x8] sm:$0x1] 0
      %s5639 = scalar_lea.vmem [#allocation3], 12
      %5640 = vst [vmem:[%s5639] sm:$0x1] 0
      %5641 = vst [vmem:[%s5639 + $0xc] sm:$0x1] 0
      %5642 = vst [vmem:[%s5639 + $0x18] sm:$0x1] 0
      %5643 = vst [vmem:[%s5639 + $0x24] sm:$0x1] 0
      %5644 = vst [vmem:[%s5639 + $0x30] sm:$0x1] 0
      %5645 = vst [vmem:[%s5639 + $0x3c] sm:$0x1] 0
      %5646 = vst [vmem:[%s5639 + $0x48] sm:$0x1] 0
      %5647 = vst [vmem:[%s5639 + $0x54] sm:$0x1] 0
      %5648 = vst [vmem:[%s5639 + $0x60] sm:$0x1] 0
      %5649 = vst [vmem:[%s5639 + $0x6c] sm:$0x1] 0
      %5650 = vst [vmem:[%s5639 + $0x78] sm:$0x1] 0
      %5651 = vst [vmem:[%s5639 + $0x84] sm:$0x1] 0
      %5652 = vst [vmem:[%s5639 + $0x90] sm:$0x1] 0
      %5653 = vst [vmem:[%s5639 + $0x9c] sm:$0x1] 0
      %5654 = vst [vmem:[%s5639 + $0xa8] sm:$0x1] 0
      %5655 = vst [vmem:[%s5639 + $0xb4] sm:$0x1] 0
      %5656 = vst [vmem:[%s5639 + $0x8] sm:$0x1] 0
      %5657 = vst [vmem:[%s5639 + $0x14] sm:$0x1] 0
      %5658 = vst [vmem:[%s5639 + $0x20] sm:$0x1] 0
      %5659 = vst [vmem:[%s5639 + $0x2c] sm:$0x1] 0
      %5660 = vst [vmem:[%s5639 + $0x38] sm:$0x1] 0
      %5661 = vst [vmem:[%s5639 + $0x44] sm:$0x1] 0
      %5662 = vst [vmem:[%s5639 + $0x50] sm:$0x1] 0
      %5663 = vst [vmem:[%s5639 + $0x5c] sm:$0x1] 0
      %5664 = vst [vmem:[%s5639 + $0x68] sm:$0x1] 0
      %5665 = vst [vmem:[%s5639 + $0x74] sm:$0x1] 0
      %5666 = vst [vmem:[%s5639 + $0x80] sm:$0x1] 0
      %5667 = vst [vmem:[%s5639 + $0x8c] sm:$0x1] 0
      %5668 = vst [vmem:[%s5639 + $0x98] sm:$0x1] 0
      %5669 = vst [vmem:[%s5639 + $0xa4] sm:$0x1] 0
      %5670 = vst [vmem:[%s5639 + $0xb0] sm:$0x1] 0
      %5671 = vst [vmem:[%s5639 + $0xbc] sm:$0x1] 0
      %v5688 = vunpack.c.l.b16 %v5616
      %v5689 = vunpack.c.h.b16 %v5616
      %v5690 = vunpack.c.l.b16 %v5617
      %v5691 = vunpack.c.h.b16 %v5617
      %v5692 = vunpack.c.l.b16 %v5618
      %v5693 = vunpack.c.h.b16 %v5618
      %v5694 = vunpack.c.l.b16 %v5619
      %v5695 = vunpack.c.h.b16 %v5619
      %v5696 = vunpack.c.l.b16 %v5620
      %v5697 = vunpack.c.h.b16 %v5620
      %v5698 = vunpack.c.l.b16 %v5621
      %v5699 = vunpack.c.h.b16 %v5621
      %v5700 = vunpack.c.l.b16 %v5622
      %v5701 = vunpack.c.h.b16 %v5622
      %v5702 = vunpack.c.l.b16 %v5623
      %v5703 = vunpack.c.h.b16 %v5623
      %v5704 = vunpack.c.l.b16 %v5624
      %v5705 = vunpack.c.h.b16 %v5624
      %v5706 = vunpack.c.l.b16 %v5625
      %v5707 = vunpack.c.h.b16 %v5625
      %v5708 = vunpack.c.l.b16 %v5626
      %v5709 = vunpack.c.h.b16 %v5626
      %v5710 = vunpack.c.l.b16 %v5627
      %v5711 = vunpack.c.h.b16 %v5627
      %v5712 = vunpack.c.l.b16 %v5628
      %v5713 = vunpack.c.h.b16 %v5628
      %v5714 = vunpack.c.l.b16 %v5629
      %v5715 = vunpack.c.h.b16 %v5629
      %v5716 = vunpack.c.l.b16 %v5630
      %v5717 = vunpack.c.h.b16 %v5630
      %v5718 = vunpack.c.l.b16 %v5631
      %v5719 = vunpack.c.h.b16 %v5631
      %v5720 = vpack.c.b16 %v5688, %v5688
      %v5721 = vpack.c.b16 %v5689, %v5689
      %v5722 = vpack.c.b16 %v5690, %v5690
      %v5723 = vpack.c.b16 %v5691, %v5691
      %v5724 = vpack.c.b16 %v5692, %v5692
      %v5725 = vpack.c.b16 %v5693, %v5693
      %v5726 = vpack.c.b16 %v5694, %v5694
      %v5727 = vpack.c.b16 %v5695, %v5695
      %v5728 = vpack.c.b16 %v5696, %v5696
      %v5729 = vpack.c.b16 %v5697, %v5697
      %v5730 = vpack.c.b16 %v5698, %v5698
      %v5731 = vpack.c.b16 %v5699, %v5699
      %v5732 = vpack.c.b16 %v5700, %v5700
      %v5733 = vpack.c.b16 %v5701, %v5701
      %v5734 = vpack.c.b16 %v5702, %v5702
      %v5735 = vpack.c.b16 %v5703, %v5703
      %v5736 = vpack.c.b16 %v5704, %v5704
      %v5737 = vpack.c.b16 %v5705, %v5705
      %v5738 = vpack.c.b16 %v5706, %v5706
      %v5739 = vpack.c.b16 %v5707, %v5707
      %v5740 = vpack.c.b16 %v5708, %v5708
      %v5741 = vpack.c.b16 %v5709, %v5709
      %v5742 = vpack.c.b16 %v5710, %v5710
      %v5743 = vpack.c.b16 %v5711, %v5711
      %v5744 = vpack.c.b16 %v5712, %v5712
      %v5745 = vpack.c.b16 %v5713, %v5713
      %v5746 = vpack.c.b16 %v5714, %v5714
      %v5747 = vpack.c.b16 %v5715, %v5715
      %v5748 = vpack.c.b16 %v5716, %v5716
      %v5749 = vpack.c.b16 %v5717, %v5717
      %v5750 = vpack.c.b16 %v5718, %v5718
      %v5751 = vpack.c.b16 %v5719, %v5719
      %v5753 = vshrl.u32 %v5720, 16
      %v5755 = vrot.slane %v5753, 7
      %v5756 = vshll.u32 %v5720, 16
      %v5758 = vor.u32 %v5755, %v5756
      %v5759 = vrot.slane %v5755, 4
      %v5761 = vshrl.u32 %v5721, 16
      %v5763 = vrot.slane %v5761, 7
      %v5764 = vshll.u32 %v5721, 16
      %v5766 = vor.u32 %v5763, %v5764
      %v5767 = vsel %vm411, %v5759, %v5766
      %v5768 = vrot.slane %v5763, 4
      %v5770 = vshrl.u32 %v5722, 16
      %v5772 = vrot.slane %v5770, 7
      %v5773 = vshll.u32 %v5722, 16
      %v5775 = vor.u32 %v5772, %v5773
      %v5776 = vrot.slane %v5772, 4
      %v5778 = vshrl.u32 %v5723, 16
      %v5780 = vrot.slane %v5778, 7
      %v5781 = vshll.u32 %v5723, 16
      %v5783 = vor.u32 %v5780, %v5781
      %v5784 = vsel %vm411, %v5776, %v5783
      %v5785 = vrot.slane %v5780, 4
      %v5787 = vshrl.u32 %v5724, 16
      %v5789 = vrot.slane %v5787, 7
      %v5790 = vshll.u32 %v5724, 16
      %v5792 = vor.u32 %v5789, %v5790
      %v5793 = vrot.slane %v5789, 4
      %v5795 = vshrl.u32 %v5725, 16
      %v5797 = vrot.slane %v5795, 7
      %v5798 = vshll.u32 %v5725, 16
      %v5800 = vor.u32 %v5797, %v5798
      %v5801 = vsel %vm411, %v5793, %v5800
      %v5802 = vrot.slane %v5797, 4
      %v5804 = vshrl.u32 %v5726, 16
      %v5806 = vrot.slane %v5804, 7
      %v5807 = vshll.u32 %v5726, 16
      %v5809 = vor.u32 %v5806, %v5807
      %v5810 = vrot.slane %v5806, 4
      %v5812 = vshrl.u32 %v5727, 16
      %v5814 = vrot.slane %v5812, 7
      %v5815 = vshll.u32 %v5727, 16
      %v5817 = vor.u32 %v5814, %v5815
      %v5818 = vsel %vm411, %v5810, %v5817
      %v5819 = vrot.slane %v5814, 4
      %v5821 = vshrl.u32 %v5728, 16
      %v5823 = vrot.slane %v5821, 7
      %v5824 = vshll.u32 %v5728, 16
      %v5826 = vor.u32 %v5823, %v5824
      %v5827 = vrot.slane %v5823, 4
      %v5829 = vshrl.u32 %v5729, 16
      %v5831 = vrot.slane %v5829, 7
      %v5832 = vshll.u32 %v5729, 16
      %v5834 = vor.u32 %v5831, %v5832
      %v5835 = vsel %vm411, %v5827, %v5834
      %v5836 = vrot.slane %v5831, 4
      %v5838 = vshrl.u32 %v5730, 16
      %v5840 = vrot.slane %v5838, 7
      %v5841 = vshll.u32 %v5730, 16
      %v5843 = vor.u32 %v5840, %v5841
      %v5844 = vrot.slane %v5840, 4
      %v5846 = vshrl.u32 %v5731, 16
      %v5848 = vrot.slane %v5846, 7
      %v5849 = vshll.u32 %v5731, 16
      %v5851 = vor.u32 %v5848, %v5849
      %v5852 = vsel %vm411, %v5844, %v5851
      %v5853 = vrot.slane %v5848, 4
      %v5855 = vshrl.u32 %v5732, 16
      %v5857 = vrot.slane %v5855, 7
      %v5858 = vshll.u32 %v5732, 16
      %v5860 = vor.u32 %v5857, %v5858
      %v5861 = vrot.slane %v5857, 4
      %v5863 = vshrl.u32 %v5733, 16
      %v5865 = vrot.slane %v5863, 7
      %v5866 = vshll.u32 %v5733, 16
      %v5868 = vor.u32 %v5865, %v5866
      %v5869 = vsel %vm411, %v5861, %v5868
      %v5870 = vrot.slane %v5865, 4
      %v5872 = vshrl.u32 %v5734, 16
      %v5874 = vrot.slane %v5872, 7
      %v5875 = vshll.u32 %v5734, 16
      %v5877 = vor.u32 %v5874, %v5875
      %v5878 = vrot.slane %v5874, 4
      %v5880 = vshrl.u32 %v5735, 16
      %v5882 = vrot.slane %v5880, 7
      %v5883 = vshll.u32 %v5735, 16
      %v5885 = vor.u32 %v5882, %v5883
      %v5886 = vsel %vm411, %v5878, %v5885
      %v5887 = vrot.slane %v5882, 4
      %v5889 = vshrl.u32 %v5736, 16
      %v5891 = vrot.slane %v5889, 7
      %v5892 = vshll.u32 %v5736, 16
      %v5894 = vor.u32 %v5891, %v5892
      %v5895 = vrot.slane %v5891, 4
      %v5897 = vshrl.u32 %v5737, 16
      %v5899 = vrot.slane %v5897, 7
      %v5900 = vshll.u32 %v5737, 16
      %v5902 = vor.u32 %v5899, %v5900
      %v5903 = vsel %vm411, %v5895, %v5902
      %v5904 = vrot.slane %v5899, 4
      %v5906 = vshrl.u32 %v5738, 16
      %v5908 = vrot.slane %v5906, 7
      %v5909 = vshll.u32 %v5738, 16
      %v5911 = vor.u32 %v5908, %v5909
      %v5912 = vrot.slane %v5908, 4
      %v5914 = vshrl.u32 %v5739, 16
      %v5916 = vrot.slane %v5914, 7
      %v5917 = vshll.u32 %v5739, 16
      %v5919 = vor.u32 %v5916, %v5917
      %v5920 = vsel %vm411, %v5912, %v5919
      %v5921 = vrot.slane %v5916, 4
      %v5923 = vshrl.u32 %v5740, 16
      %v5925 = vrot.slane %v5923, 7
      %v5926 = vshll.u32 %v5740, 16
      %v5928 = vor.u32 %v5925, %v5926
      %v5929 = vrot.slane %v5925, 4
      %v5931 = vshrl.u32 %v5741, 16
      %v5933 = vrot.slane %v5931, 7
      %v5934 = vshll.u32 %v5741, 16
      %v5936 = vor.u32 %v5933, %v5934
      %v5937 = vsel %vm411, %v5929, %v5936
      %v5938 = vrot.slane %v5933, 4
      %v5940 = vshrl.u32 %v5742, 16
      %v5942 = vrot.slane %v5940, 7
      %v5943 = vshll.u32 %v5742, 16
      %v5945 = vor.u32 %v5942, %v5943
      %v5946 = vrot.slane %v5942, 4
      %v5948 = vshrl.u32 %v5743, 16
      %v5950 = vrot.slane %v5948, 7
      %v5951 = vshll.u32 %v5743, 16
      %v5953 = vor.u32 %v5950, %v5951
      %v5954 = vsel %vm411, %v5946, %v5953
      %v5955 = vrot.slane %v5950, 4
      %v5957 = vshrl.u32 %v5744, 16
      %v5959 = vrot.slane %v5957, 7
      %v5960 = vshll.u32 %v5744, 16
      %v5962 = vor.u32 %v5959, %v5960
      %v5963 = vrot.slane %v5959, 4
      %v5965 = vshrl.u32 %v5745, 16
      %v5967 = vrot.slane %v5965, 7
      %v5968 = vshll.u32 %v5745, 16
      %v5970 = vor.u32 %v5967, %v5968
      %v5971 = vsel %vm411, %v5963, %v5970
      %v5972 = vrot.slane %v5967, 4
      %v5974 = vshrl.u32 %v5746, 16
      %v5976 = vrot.slane %v5974, 7
      %v5977 = vshll.u32 %v5746, 16
      %v5979 = vor.u32 %v5976, %v5977
      %v5980 = vrot.slane %v5976, 4
      %v5982 = vshrl.u32 %v5747, 16
      %v5984 = vrot.slane %v5982, 7
      %v5985 = vshll.u32 %v5747, 16
      %v5987 = vor.u32 %v5984, %v5985
      %v5988 = vsel %vm411, %v5980, %v5987
      %v5989 = vrot.slane %v5984, 4
      %v5991 = vshrl.u32 %v5748, 16
      %v5993 = vrot.slane %v5991, 7
      %v5994 = vshll.u32 %v5748, 16
      %v5996 = vor.u32 %v5993, %v5994
      %v5997 = vrot.slane %v5993, 4
      %v5999 = vshrl.u32 %v5749, 16
      %v6001 = vrot.slane %v5999, 7
      %v6002 = vshll.u32 %v5749, 16
      %v6004 = vor.u32 %v6001, %v6002
      %v6005 = vsel %vm411, %v5997, %v6004
      %v6006 = vrot.slane %v6001, 4
      %v6008 = vshrl.u32 %v5750, 16
      %v6010 = vrot.slane %v6008, 7
      %v6011 = vshll.u32 %v5750, 16
      %v6013 = vor.u32 %v6010, %v6011
      %v6014 = vrot.slane %v6010, 4
      %v6016 = vshrl.u32 %v5751, 16
      %v6018 = vrot.slane %v6016, 7
      %v6019 = vshll.u32 %v5751, 16
      %v6021 = vor.u32 %v6018, %v6019
      %v6022 = vsel %vm411, %v6014, %v6021
      %v6023 = vrot.slane %v6018, 4
      %vm6072 = vcmask 1043456
      %vm6073 = vmand %vm6072, %vm733
      %v6074 = vld [vmem:[%s5639] sm:$0xf]
      %v6075 = vsel %vm6073, %v5758, %v6074
      %6076 = vst [vmem:[%s5639] sm:$0xf] %v6075
      %6077 = vst [vmem:[%s5639 + $0x4] sm:$0xf] %v5767
      %vm6078 = vcmask 1040384
      %vm6079 = vmand %vm6078, %vm409
      %v6080 = vld [vmem:[%s5639 + $0x8] sm:$0x1]
      %v6081 = vsel %vm6079, %v5768, %v6080
      %6082 = vst [vmem:[%s5639 + $0x8] sm:$0x1] %v6081
      %v6083 = vld [vmem:[%s5639 + $0xc] sm:$0xf]
      %v6084 = vsel %vm6073, %v5775, %v6083
      %6085 = vst [vmem:[%s5639 + $0xc] sm:$0xf] %v6084
      %6086 = vst [vmem:[%s5639 + $0x10] sm:$0xf] %v5784
      %v6087 = vld [vmem:[%s5639 + $0x14] sm:$0x1]
      %v6088 = vsel %vm6079, %v5785, %v6087
      %6089 = vst [vmem:[%s5639 + $0x14] sm:$0x1] %v6088
      %v6090 = vld [vmem:[%s5639 + $0x18] sm:$0xf]
      %v6091 = vsel %vm6073, %v5792, %v6090
      %6092 = vst [vmem:[%s5639 + $0x18] sm:$0xf] %v6091
      %6093 = vst [vmem:[%s5639 + $0x1c] sm:$0xf] %v5801
      %v6094 = vld [vmem:[%s5639 + $0x20] sm:$0x1]
      %v6095 = vsel %vm6079, %v5802, %v6094
      %6096 = vst [vmem:[%s5639 + $0x20] sm:$0x1] %v6095
      %v6097 = vld [vmem:[%s5639 + $0x24] sm:$0xf]
      %v6098 = vsel %vm6073, %v5809, %v6097
      %6099 = vst [vmem:[%s5639 + $0x24] sm:$0xf] %v6098
      %6100 = vst [vmem:[%s5639 + $0x28] sm:$0xf] %v5818
      %v6101 = vld [vmem:[%s5639 + $0x2c] sm:$0x1]
      %v6102 = vsel %vm6079, %v5819, %v6101
      %6103 = vst [vmem:[%s5639 + $0x2c] sm:$0x1] %v6102
      %v6104 = vld [vmem:[%s5639 + $0x30] sm:$0xf]
      %v6105 = vsel %vm6073, %v5826, %v6104
      %6106 = vst [vmem:[%s5639 + $0x30] sm:$0xf] %v6105
      %6107 = vst [vmem:[%s5639 + $0x34] sm:$0xf] %v5835
      %v6108 = vld [vmem:[%s5639 + $0x38] sm:$0x1]
      %v6109 = vsel %vm6079, %v5836, %v6108
      %6110 = vst [vmem:[%s5639 + $0x38] sm:$0x1] %v6109
      %v6111 = vld [vmem:[%s5639 + $0x3c] sm:$0xf]
      %v6112 = vsel %vm6073, %v5843, %v6111
      %6113 = vst [vmem:[%s5639 + $0x3c] sm:$0xf] %v6112
      %6114 = vst [vmem:[%s5639 + $0x40] sm:$0xf] %v5852
      %v6115 = vld [vmem:[%s5639 + $0x44] sm:$0x1]
      %v6116 = vsel %vm6079, %v5853, %v6115
      %6117 = vst [vmem:[%s5639 + $0x44] sm:$0x1] %v6116
      %v6118 = vld [vmem:[%s5639 + $0x48] sm:$0xf]
      %v6119 = vsel %vm6073, %v5860, %v6118
      %6120 = vst [vmem:[%s5639 + $0x48] sm:$0xf] %v6119
      %6121 = vst [vmem:[%s5639 + $0x4c] sm:$0xf] %v5869
      %v6122 = vld [vmem:[%s5639 + $0x50] sm:$0x1]
      %v6123 = vsel %vm6079, %v5870, %v6122
      %6124 = vst [vmem:[%s5639 + $0x50] sm:$0x1] %v6123
      %v6125 = vld [vmem:[%s5639 + $0x54] sm:$0xf]
      %v6126 = vsel %vm6073, %v5877, %v6125
      %6127 = vst [vmem:[%s5639 + $0x54] sm:$0xf] %v6126
      %6128 = vst [vmem:[%s5639 + $0x58] sm:$0xf] %v5886
      %v6129 = vld [vmem:[%s5639 + $0x5c] sm:$0x1]
      %v6130 = vsel %vm6079, %v5887, %v6129
      %6131 = vst [vmem:[%s5639 + $0x5c] sm:$0x1] %v6130
      %v6132 = vld [vmem:[%s5639 + $0x60] sm:$0xf]
      %v6133 = vsel %vm6073, %v5894, %v6132
      %6134 = vst [vmem:[%s5639 + $0x60] sm:$0xf] %v6133
      %6135 = vst [vmem:[%s5639 + $0x64] sm:$0xf] %v5903
      %v6136 = vld [vmem:[%s5639 + $0x68] sm:$0x1]
      %v6137 = vsel %vm6079, %v5904, %v6136
      %6138 = vst [vmem:[%s5639 + $0x68] sm:$0x1] %v6137
      %v6139 = vld [vmem:[%s5639 + $0x6c] sm:$0xf]
      %v6140 = vsel %vm6073, %v5911, %v6139
      %6141 = vst [vmem:[%s5639 + $0x6c] sm:$0xf] %v6140
      %6142 = vst [vmem:[%s5639 + $0x70] sm:$0xf] %v5920
      %v6143 = vld [vmem:[%s5639 + $0x74] sm:$0x1]
      %v6144 = vsel %vm6079, %v5921, %v6143
      %6145 = vst [vmem:[%s5639 + $0x74] sm:$0x1] %v6144
      %v6146 = vld [vmem:[%s5639 + $0x78] sm:$0xf]
      %v6147 = vsel %vm6073, %v5928, %v6146
      %6148 = vst [vmem:[%s5639 + $0x78] sm:$0xf] %v6147
      %6149 = vst [vmem:[%s5639 + $0x7c] sm:$0xf] %v5937
      %v6150 = vld [vmem:[%s5639 + $0x80] sm:$0x1]
      %v6151 = vsel %vm6079, %v5938, %v6150
      %6152 = vst [vmem:[%s5639 + $0x80] sm:$0x1] %v6151
      %v6153 = vld [vmem:[%s5639 + $0x84] sm:$0xf]
      %v6154 = vsel %vm6073, %v5945, %v6153
      %6155 = vst [vmem:[%s5639 + $0x84] sm:$0xf] %v6154
      %6156 = vst [vmem:[%s5639 + $0x88] sm:$0xf] %v5954
      %v6157 = vld [vmem:[%s5639 + $0x8c] sm:$0x1]
      %v6158 = vsel %vm6079, %v5955, %v6157
      %6159 = vst [vmem:[%s5639 + $0x8c] sm:$0x1] %v6158
      %v6160 = vld [vmem:[%s5639 + $0x90] sm:$0xf]
      %v6161 = vsel %vm6073, %v5962, %v6160
      %6162 = vst [vmem:[%s5639 + $0x90] sm:$0xf] %v6161
      %6163 = vst [vmem:[%s5639 + $0x94] sm:$0xf] %v5971
      %v6164 = vld [vmem:[%s5639 + $0x98] sm:$0x1]
      %v6165 = vsel %vm6079, %v5972, %v6164
      %6166 = vst [vmem:[%s5639 + $0x98] sm:$0x1] %v6165
      %v6167 = vld [vmem:[%s5639 + $0x9c] sm:$0xf]
      %v6168 = vsel %vm6073, %v5979, %v6167
      %6169 = vst [vmem:[%s5639 + $0x9c] sm:$0xf] %v6168
      %6170 = vst [vmem:[%s5639 + $0xa0] sm:$0xf] %v5988
      %v6171 = vld [vmem:[%s5639 + $0xa4] sm:$0x1]
      %v6172 = vsel %vm6079, %v5989, %v6171
      %6173 = vst [vmem:[%s5639 + $0xa4] sm:$0x1] %v6172
      %v6174 = vld [vmem:[%s5639 + $0xa8] sm:$0xf]
      %v6175 = vsel %vm6073, %v5996, %v6174
      %6176 = vst [vmem:[%s5639 + $0xa8] sm:$0xf] %v6175
      %6177 = vst [vmem:[%s5639 + $0xac] sm:$0xf] %v6005
      %v6178 = vld [vmem:[%s5639 + $0xb0] sm:$0x1]
      %v6179 = vsel %vm6079, %v6006, %v6178
      %6180 = vst [vmem:[%s5639 + $0xb0] sm:$0x1] %v6179
      %v6181 = vld [vmem:[%s5639 + $0xb4] sm:$0xf]
      %v6182 = vsel %vm6073, %v6013, %v6181
      %6183 = vst [vmem:[%s5639 + $0xb4] sm:$0xf] %v6182
      %6184 = vst [vmem:[%s5639 + $0xb8] sm:$0xf] %v6022
      %v6185 = vld [vmem:[%s5639 + $0xbc] sm:$0x1]
      %v6186 = vsel %vm6079, %v6023, %v6185
      %6187 = vst [vmem:[%s5639 + $0xbc] sm:$0x1] %v6186
      %v6188 = vld [vmem:[#allocation3] sm:$0xf]
      %v6189 = vld [vmem:[#allocation3 + $0x4] sm:$0xf]
      %v6190 = vld [vmem:[#allocation3 + $0xc] sm:$0xf]
      %v6191 = vld [vmem:[#allocation3 + $0x10] sm:$0xf]
      %v6192 = vld [vmem:[#allocation3 + $0x18] sm:$0xf]
      %v6193 = vld [vmem:[#allocation3 + $0x1c] sm:$0xf]
      %v6194 = vld [vmem:[#allocation3 + $0x24] sm:$0xf]
      %v6195 = vld [vmem:[#allocation3 + $0x28] sm:$0xf]
      %v6196 = vld [vmem:[#allocation3 + $0x30] sm:$0xf]
      %v6197 = vld [vmem:[#allocation3 + $0x34] sm:$0xf]
      %v6198 = vld [vmem:[#allocation3 + $0x3c] sm:$0xf]
      %v6199 = vld [vmem:[#allocation3 + $0x40] sm:$0xf]
      %v6200 = vld [vmem:[#allocation3 + $0x48] sm:$0xf]
      %v6201 = vld [vmem:[#allocation3 + $0x4c] sm:$0xf]
      %v6202 = vld [vmem:[#allocation3 + $0x54] sm:$0xf]
      %v6203 = vld [vmem:[#allocation3 + $0x58] sm:$0xf]
      %v6204 = vld [vmem:[#allocation3 + $0x60] sm:$0xf]
      %v6205 = vld [vmem:[#allocation3 + $0x64] sm:$0xf]
      %v6206 = vld [vmem:[#allocation3 + $0x6c] sm:$0xf]
      %v6207 = vld [vmem:[#allocation3 + $0x70] sm:$0xf]
      %v6208 = vld [vmem:[#allocation3 + $0x78] sm:$0xf]
      %v6209 = vld [vmem:[#allocation3 + $0x7c] sm:$0xf]
      %v6210 = vld [vmem:[#allocation3 + $0x84] sm:$0xf]
      %v6211 = vld [vmem:[#allocation3 + $0x88] sm:$0xf]
      %v6212 = vld [vmem:[#allocation3 + $0x90] sm:$0xf]
      %v6213 = vld [vmem:[#allocation3 + $0x94] sm:$0xf]
      %v6214 = vld [vmem:[#allocation3 + $0x9c] sm:$0xf]
      %v6215 = vld [vmem:[#allocation3 + $0xa0] sm:$0xf]
      %v6216 = vld [vmem:[#allocation3 + $0xa8] sm:$0xf]
      %v6217 = vld [vmem:[#allocation3 + $0xac] sm:$0xf]
      %v6218 = vld [vmem:[#allocation3 + $0xb4] sm:$0xf]
      %v6219 = vld [vmem:[#allocation3 + $0xb8] sm:$0xf]
      %v6220 = vld [vmem:[%s2] sm:$0xf]
      %v6221 = vld [vmem:[%s2 + $0x4] sm:$0xf]
      %v6222 = vld [vmem:[%s2 + $0x8] sm:$0xf]
      %v6223 = vld [vmem:[%s2 + $0xc] sm:$0xf]
      %v6224 = vld [vmem:[%s2 + $0x10] sm:$0xf]
      %v6225 = vld [vmem:[%s2 + $0x14] sm:$0xf]
      %v6226 = vld [vmem:[%s2 + $0x18] sm:$0xf]
      %v6227 = vld [vmem:[%s2 + $0x1c] sm:$0xf]
      %v6228 = vld [vmem:[%s2 + $0x20] sm:$0xf]
      %v6229 = vld [vmem:[%s2 + $0x24] sm:$0xf]
      %v6230 = vld [vmem:[%s2 + $0x28] sm:$0xf]
      %v6231 = vld [vmem:[%s2 + $0x2c] sm:$0xf]
      %v6232 = vld [vmem:[%s2 + $0x30] sm:$0xf]
      %v6233 = vld [vmem:[%s2 + $0x34] sm:$0xf]
      %v6234 = vld [vmem:[%s2 + $0x38] sm:$0xf]
      %v6235 = vld [vmem:[%s2 + $0x3c] sm:$0xf]
      %v6236 = vld [vmem:[#allocation3 + $0x8] sm:$0x1]
      %v6237 = vld [vmem:[#allocation3 + $0x14] sm:$0x1]
      %v6238 = vld [vmem:[#allocation3 + $0x20] sm:$0x1]
      %v6239 = vld [vmem:[#allocation3 + $0x2c] sm:$0x1]
      %v6240 = vld [vmem:[#allocation3 + $0x38] sm:$0x1]
      %v6241 = vld [vmem:[#allocation3 + $0x44] sm:$0x1]
      %v6242 = vld [vmem:[#allocation3 + $0x50] sm:$0x1]
      %v6243 = vld [vmem:[#allocation3 + $0x5c] sm:$0x1]
      %v6244 = vld [vmem:[#allocation3 + $0x68] sm:$0x1]
      %v6245 = vld [vmem:[#allocation3 + $0x74] sm:$0x1]
      %v6246 = vld [vmem:[#allocation3 + $0x80] sm:$0x1]
      %v6247 = vld [vmem:[#allocation3 + $0x8c] sm:$0x1]
      %v6248 = vld [vmem:[#allocation3 + $0x98] sm:$0x1]
      %v6249 = vld [vmem:[#allocation3 + $0xa4] sm:$0x1]
      %v6250 = vld [vmem:[#allocation3 + $0xb0] sm:$0x1]
      %v6251 = vld [vmem:[#allocation3 + $0xbc] sm:$0x1]
      %v6253 = vshrl.u32 %v6188, 16
      %v6255 = vrot.slane %v6253, 4
      %v6256 = vshll.u32 %v6188, 16
      %v6258 = vrot.slane %v6256, 5
      %v6259 = vor.u32 %v6255, %v6258
      %v6260 = vrot.slane %v6259, 4
      %v6262 = vshll.u32 %v6189, 16
      %v6264 = vrot.slane %v6262, 5
      %v6265 = vsel %vm900, %v6260, %v6264
      %v6266 = vshrl.u32 %v6189, 16
      %v6268 = vrot.slane %v6266, 4
      %v6269 = vor.u32 %v6268, %v6264
      %v6270 = vrot.slane %v6269, 4
      %v6272 = vshll.u32 %v6236, 16
      %v6274 = vrot.slane %v6272, 5
      %v6275 = vsel %vm900, %v6270, %v6274
      %v6277 = vshrl.u32 %v6190, 16
      %v6279 = vrot.slane %v6277, 4
      %v6280 = vshll.u32 %v6190, 16
      %v6282 = vrot.slane %v6280, 5
      %v6283 = vor.u32 %v6279, %v6282
      %v6284 = vrot.slane %v6283, 4
      %v6286 = vshll.u32 %v6191, 16
      %v6288 = vrot.slane %v6286, 5
      %v6289 = vsel %vm900, %v6284, %v6288
      %v6290 = vshrl.u32 %v6191, 16
      %v6292 = vrot.slane %v6290, 4
      %v6293 = vor.u32 %v6292, %v6288
      %v6294 = vrot.slane %v6293, 4
      %v6296 = vshll.u32 %v6237, 16
      %v6298 = vrot.slane %v6296, 5
      %v6299 = vsel %vm900, %v6294, %v6298
      %v6301 = vshrl.u32 %v6192, 16
      %v6303 = vrot.slane %v6301, 4
      %v6304 = vshll.u32 %v6192, 16
      %v6306 = vrot.slane %v6304, 5
      %v6307 = vor.u32 %v6303, %v6306
      %v6308 = vrot.slane %v6307, 4
      %v6310 = vshll.u32 %v6193, 16
      %v6312 = vrot.slane %v6310, 5
      %v6313 = vsel %vm900, %v6308, %v6312
      %v6314 = vshrl.u32 %v6193, 16
      %v6316 = vrot.slane %v6314, 4
      %v6317 = vor.u32 %v6316, %v6312
      %v6318 = vrot.slane %v6317, 4
      %v6320 = vshll.u32 %v6238, 16
      %v6322 = vrot.slane %v6320, 5
      %v6323 = vsel %vm900, %v6318, %v6322
      %v6325 = vshrl.u32 %v6194, 16
      %v6327 = vrot.slane %v6325, 4
      %v6328 = vshll.u32 %v6194, 16
      %v6330 = vrot.slane %v6328, 5
      %v6331 = vor.u32 %v6327, %v6330
      %v6332 = vrot.slane %v6331, 4
      %v6334 = vshll.u32 %v6195, 16
      %v6336 = vrot.slane %v6334, 5
      %v6337 = vsel %vm900, %v6332, %v6336
      %v6338 = vshrl.u32 %v6195, 16
      %v6340 = vrot.slane %v6338, 4
      %v6341 = vor.u32 %v6340, %v6336
      %v6342 = vrot.slane %v6341, 4
      %v6344 = vshll.u32 %v6239, 16
      %v6346 = vrot.slane %v6344, 5
      %v6347 = vsel %vm900, %v6342, %v6346
      %v6349 = vshrl.u32 %v6196, 16
      %v6351 = vrot.slane %v6349, 4
      %v6352 = vshll.u32 %v6196, 16
      %v6354 = vrot.slane %v6352, 5
      %v6355 = vor.u32 %v6351, %v6354
      %v6356 = vrot.slane %v6355, 4
      %v6358 = vshll.u32 %v6197, 16
      %v6360 = vrot.slane %v6358, 5
      %v6361 = vsel %vm900, %v6356, %v6360
      %v6362 = vshrl.u32 %v6197, 16
      %v6364 = vrot.slane %v6362, 4
      %v6365 = vor.u32 %v6364, %v6360
      %v6366 = vrot.slane %v6365, 4
      %v6368 = vshll.u32 %v6240, 16
      %v6370 = vrot.slane %v6368, 5
      %v6371 = vsel %vm900, %v6366, %v6370
      %v6373 = vshrl.u32 %v6198, 16
      %v6375 = vrot.slane %v6373, 4
      %v6376 = vshll.u32 %v6198, 16
      %v6378 = vrot.slane %v6376, 5
      %v6379 = vor.u32 %v6375, %v6378
      %v6380 = vrot.slane %v6379, 4
      %v6382 = vshll.u32 %v6199, 16
      %v6384 = vrot.slane %v6382, 5
      %v6385 = vsel %vm900, %v6380, %v6384
      %v6386 = vshrl.u32 %v6199, 16
      %v6388 = vrot.slane %v6386, 4
      %v6389 = vor.u32 %v6388, %v6384
      %v6390 = vrot.slane %v6389, 4
      %v6392 = vshll.u32 %v6241, 16
      %v6394 = vrot.slane %v6392, 5
      %v6395 = vsel %vm900, %v6390, %v6394
      %v6397 = vshrl.u32 %v6200, 16
      %v6399 = vrot.slane %v6397, 4
      %v6400 = vshll.u32 %v6200, 16
      %v6402 = vrot.slane %v6400, 5
      %v6403 = vor.u32 %v6399, %v6402
      %v6404 = vrot.slane %v6403, 4
      %v6406 = vshll.u32 %v6201, 16
      %v6408 = vrot.slane %v6406, 5
      %v6409 = vsel %vm900, %v6404, %v6408
      %v6410 = vshrl.u32 %v6201, 16
      %v6412 = vrot.slane %v6410, 4
      %v6413 = vor.u32 %v6412, %v6408
      %v6414 = vrot.slane %v6413, 4
      %v6416 = vshll.u32 %v6242, 16
      %v6418 = vrot.slane %v6416, 5
      %v6419 = vsel %vm900, %v6414, %v6418
      %v6421 = vshrl.u32 %v6202, 16
      %v6423 = vrot.slane %v6421, 4
      %v6424 = vshll.u32 %v6202, 16
      %v6426 = vrot.slane %v6424, 5
      %v6427 = vor.u32 %v6423, %v6426
      %v6428 = vrot.slane %v6427, 4
      %v6430 = vshll.u32 %v6203, 16
      %v6432 = vrot.slane %v6430, 5
      %v6433 = vsel %vm900, %v6428, %v6432
      %v6434 = vshrl.u32 %v6203, 16
      %v6436 = vrot.slane %v6434, 4
      %v6437 = vor.u32 %v6436, %v6432
      %v6438 = vrot.slane %v6437, 4
      %v6440 = vshll.u32 %v6243, 16
      %v6442 = vrot.slane %v6440, 5
      %v6443 = vsel %vm900, %v6438, %v6442
      %v6445 = vshrl.u32 %v6204, 16
      %v6447 = vrot.slane %v6445, 4
      %v6448 = vshll.u32 %v6204, 16
      %v6450 = vrot.slane %v6448, 5
      %v6451 = vor.u32 %v6447, %v6450
      %v6452 = vrot.slane %v6451, 4
      %v6454 = vshll.u32 %v6205, 16
      %v6456 = vrot.slane %v6454, 5
      %v6457 = vsel %vm900, %v6452, %v6456
      %v6458 = vshrl.u32 %v6205, 16
      %v6460 = vrot.slane %v6458, 4
      %v6461 = vor.u32 %v6460, %v6456
      %v6462 = vrot.slane %v6461, 4
      %v6464 = vshll.u32 %v6244, 16
      %v6466 = vrot.slane %v6464, 5
      %v6467 = vsel %vm900, %v6462, %v6466
      %v6469 = vshrl.u32 %v6206, 16
      %v6471 = vrot.slane %v6469, 4
      %v6472 = vshll.u32 %v6206, 16
      %v6474 = vrot.slane %v6472, 5
      %v6475 = vor.u32 %v6471, %v6474
      %v6476 = vrot.slane %v6475, 4
      %v6478 = vshll.u32 %v6207, 16
      %v6480 = vrot.slane %v6478, 5
      %v6481 = vsel %vm900, %v6476, %v6480
      %v6482 = vshrl.u32 %v6207, 16
      %v6484 = vrot.slane %v6482, 4
      %v6485 = vor.u32 %v6484, %v6480
      %v6486 = vrot.slane %v6485, 4
      %v6488 = vshll.u32 %v6245, 16
      %v6490 = vrot.slane %v6488, 5
      %v6491 = vsel %vm900, %v6486, %v6490
      %v6493 = vshrl.u32 %v6208, 16
      %v6495 = vrot.slane %v6493, 4
      %v6496 = vshll.u32 %v6208, 16
      %v6498 = vrot.slane %v6496, 5
      %v6499 = vor.u32 %v6495, %v6498
      %v6500 = vrot.slane %v6499, 4
      %v6502 = vshll.u32 %v6209, 16
      %v6504 = vrot.slane %v6502, 5
      %v6505 = vsel %vm900, %v6500, %v6504
      %v6506 = vshrl.u32 %v6209, 16
      %v6508 = vrot.slane %v6506, 4
      %v6509 = vor.u32 %v6508, %v6504
      %v6510 = vrot.slane %v6509, 4
      %v6512 = vshll.u32 %v6246, 16
      %v6514 = vrot.slane %v6512, 5
      %v6515 = vsel %vm900, %v6510, %v6514
      %v6517 = vshrl.u32 %v6210, 16
      %v6519 = vrot.slane %v6517, 4
      %v6520 = vshll.u32 %v6210, 16
      %v6522 = vrot.slane %v6520, 5
      %v6523 = vor.u32 %v6519, %v6522
      %v6524 = vrot.slane %v6523, 4
      %v6526 = vshll.u32 %v6211, 16
      %v6528 = vrot.slane %v6526, 5
      %v6529 = vsel %vm900, %v6524, %v6528
      %v6530 = vshrl.u32 %v6211, 16
      %v6532 = vrot.slane %v6530, 4
      %v6533 = vor.u32 %v6532, %v6528
      %v6534 = vrot.slane %v6533, 4
      %v6536 = vshll.u32 %v6247, 16
      %v6538 = vrot.slane %v6536, 5
      %v6539 = vsel %vm900, %v6534, %v6538
      %v6541 = vshrl.u32 %v6212, 16
      %v6543 = vrot.slane %v6541, 4
      %v6544 = vshll.u32 %v6212, 16
      %v6546 = vrot.slane %v6544, 5
      %v6547 = vor.u32 %v6543, %v6546
      %v6548 = vrot.slane %v6547, 4
      %v6550 = vshll.u32 %v6213, 16
      %v6552 = vrot.slane %v6550, 5
      %v6553 = vsel %vm900, %v6548, %v6552
      %v6554 = vshrl.u32 %v6213, 16
      %v6556 = vrot.slane %v6554, 4
      %v6557 = vor.u32 %v6556, %v6552
      %v6558 = vrot.slane %v6557, 4
      %v6560 = vshll.u32 %v6248, 16
      %v6562 = vrot.slane %v6560, 5
      %v6563 = vsel %vm900, %v6558, %v6562
      %v6565 = vshrl.u32 %v6214, 16
      %v6567 = vrot.slane %v6565, 4
      %v6568 = vshll.u32 %v6214, 16
      %v6570 = vrot.slane %v6568, 5
      %v6571 = vor.u32 %v6567, %v6570
      %v6572 = vrot.slane %v6571, 4
      %v6574 = vshll.u32 %v6215, 16
      %v6576 = vrot.slane %v6574, 5
      %v6577 = vsel %vm900, %v6572, %v6576
      %v6578 = vshrl.u32 %v6215, 16
      %v6580 = vrot.slane %v6578, 4
      %v6581 = vor.u32 %v6580, %v6576
      %v6582 = vrot.slane %v6581, 4
      %v6584 = vshll.u32 %v6249, 16
      %v6586 = vrot.slane %v6584, 5
      %v6587 = vsel %vm900, %v6582, %v6586
      %v6589 = vshrl.u32 %v6216, 16
      %v6591 = vrot.slane %v6589, 4
      %v6592 = vshll.u32 %v6216, 16
      %v6594 = vrot.slane %v6592, 5
      %v6595 = vor.u32 %v6591, %v6594
      %v6596 = vrot.slane %v6595, 4
      %v6598 = vshll.u32 %v6217, 16
      %v6600 = vrot.slane %v6598, 5
      %v6601 = vsel %vm900, %v6596, %v6600
      %v6602 = vshrl.u32 %v6217, 16
      %v6604 = vrot.slane %v6602, 4
      %v6605 = vor.u32 %v6604, %v6600
      %v6606 = vrot.slane %v6605, 4
      %v6608 = vshll.u32 %v6250, 16
      %v6610 = vrot.slane %v6608, 5
      %v6611 = vsel %vm900, %v6606, %v6610
      %v6613 = vshrl.u32 %v6218, 16
      %v6615 = vrot.slane %v6613, 4
      %v6616 = vshll.u32 %v6218, 16
      %v6618 = vrot.slane %v6616, 5
      %v6619 = vor.u32 %v6615, %v6618
      %v6620 = vrot.slane %v6619, 4
      %v6622 = vshll.u32 %v6219, 16
      %v6624 = vrot.slane %v6622, 5
      %v6625 = vsel %vm900, %v6620, %v6624
      %v6626 = vshrl.u32 %v6219, 16
      %v6628 = vrot.slane %v6626, 4
      %v6629 = vor.u32 %v6628, %v6624
      %v6630 = vrot.slane %v6629, 4
      %v6632 = vshll.u32 %v6251, 16
      %v6634 = vrot.slane %v6632, 5
      %v6635 = vsel %vm900, %v6630, %v6634
      %s6636 = scalar_lea.vmem %s2, 64
      %v6637 = vld [vmem:[%s6636] sm:$0xf]
      %v6638 = vld [vmem:[%s6636 + $0x4] sm:$0xf]
      %v6639 = vld [vmem:[%s6636 + $0x8] sm:$0xf]
      %v6640 = vld [vmem:[%s6636 + $0xc] sm:$0xf]
      %v6641 = vld [vmem:[%s6636 + $0x10] sm:$0xf]
      %v6642 = vld [vmem:[%s6636 + $0x14] sm:$0xf]
      %v6643 = vld [vmem:[%s6636 + $0x18] sm:$0xf]
      %v6644 = vld [vmem:[%s6636 + $0x1c] sm:$0xf]
      %v6645 = vld [vmem:[%s6636 + $0x20] sm:$0xf]
      %v6646 = vld [vmem:[%s6636 + $0x24] sm:$0xf]
      %v6647 = vld [vmem:[%s6636 + $0x28] sm:$0xf]
      %v6648 = vld [vmem:[%s6636 + $0x2c] sm:$0xf]
      %v6649 = vld [vmem:[%s6636 + $0x30] sm:$0xf]
      %v6650 = vld [vmem:[%s6636 + $0x34] sm:$0xf]
      %v6651 = vld [vmem:[%s6636 + $0x38] sm:$0xf]
      %v6652 = vld [vmem:[%s6636 + $0x3c] sm:$0xf]
      %v6653 = vunpack.c.l.b16 %v6265
      %v6654 = vunpack.c.l.b16 %v6275
      %v6655 = vunpack.c.l.b16 %v6289
      %v6656 = vunpack.c.l.b16 %v6299
      %v6657 = vunpack.c.l.b16 %v6313
      %v6658 = vunpack.c.l.b16 %v6323
      %v6659 = vunpack.c.l.b16 %v6337
      %v6660 = vunpack.c.l.b16 %v6347
      %v6661 = vunpack.c.l.b16 %v6361
      %v6662 = vunpack.c.l.b16 %v6371
      %v6663 = vunpack.c.l.b16 %v6385
      %v6664 = vunpack.c.l.b16 %v6395
      %v6665 = vunpack.c.l.b16 %v6409
      %v6666 = vunpack.c.l.b16 %v6419
      %v6667 = vunpack.c.l.b16 %v6433
      %v6668 = vunpack.c.l.b16 %v6443
      %v6669 = vunpack.c.l.b16 %v6457
      %v6670 = vunpack.c.l.b16 %v6467
      %v6671 = vunpack.c.l.b16 %v6481
      %v6672 = vunpack.c.l.b16 %v6491
      %v6673 = vunpack.c.l.b16 %v6505
      %v6674 = vunpack.c.l.b16 %v6515
      %v6675 = vunpack.c.l.b16 %v6529
      %v6676 = vunpack.c.l.b16 %v6539
      %v6677 = vunpack.c.l.b16 %v6553
      %v6678 = vunpack.c.l.b16 %v6563
      %v6679 = vunpack.c.l.b16 %v6577
      %v6680 = vunpack.c.l.b16 %v6587
      %v6681 = vunpack.c.l.b16 %v6601
      %v6682 = vunpack.c.l.b16 %v6611
      %v6683 = vunpack.c.l.b16 %v6625
      %v6684 = vunpack.c.l.b16 %v6635
      %v6685 = vpack.c.b16 %v6654, %v6653
      %v6686 = vpack.c.b16 %v6656, %v6655
      %v6687 = vpack.c.b16 %v6658, %v6657
      %v6688 = vpack.c.b16 %v6660, %v6659
      %v6689 = vpack.c.b16 %v6662, %v6661
      %v6690 = vpack.c.b16 %v6664, %v6663
      %v6691 = vpack.c.b16 %v6666, %v6665
      %v6692 = vpack.c.b16 %v6668, %v6667
      %v6693 = vpack.c.b16 %v6670, %v6669
      %v6694 = vpack.c.b16 %v6672, %v6671
      %v6695 = vpack.c.b16 %v6674, %v6673
      %v6696 = vpack.c.b16 %v6676, %v6675
      %v6697 = vpack.c.b16 %v6678, %v6677
      %v6698 = vpack.c.b16 %v6680, %v6679
      %v6699 = vpack.c.b16 %v6682, %v6681
      %v6700 = vpack.c.b16 %v6684, %v6683
      %v6733 = vunpack.c.l.b16 %v6637
      %v6734 = vunpack.c.l.b16 %v6638
      %v6735 = vunpack.c.l.b16 %v6639
      %v6736 = vunpack.c.l.b16 %v6640
      %v6737 = vunpack.c.l.b16 %v6641
      %v6738 = vunpack.c.l.b16 %v6642
      %v6739 = vunpack.c.l.b16 %v6643
      %v6740 = vunpack.c.l.b16 %v6644
      %v6741 = vunpack.c.l.b16 %v6645
      %v6742 = vunpack.c.l.b16 %v6646
      %v6743 = vunpack.c.l.b16 %v6647
      %v6744 = vunpack.c.l.b16 %v6648
      %v6745 = vunpack.c.l.b16 %v6649
      %v6746 = vunpack.c.l.b16 %v6650
      %v6747 = vunpack.c.l.b16 %v6651
      %v6748 = vunpack.c.l.b16 %v6652
      %v6749 = vpack.c.b16 %v6734, %v6733
      %v6750 = vpack.c.b16 %v6736, %v6735
      %v6751 = vpack.c.b16 %v6738, %v6737
      %v6752 = vpack.c.b16 %v6740, %v6739
      %v6753 = vpack.c.b16 %v6742, %v6741
      %v6754 = vpack.c.b16 %v6744, %v6743
      %v6755 = vpack.c.b16 %v6746, %v6745
      %v6756 = vpack.c.b16 %v6748, %v6747
      %6765 = vmatprep.subr.bf16.mxu0 0
      %6766 = vmatpush1.bf16.msra.mxu0 %v6749
      %6767 = vmatprep.subr.bf16.mxu0 0
      %6768 = vmatpush1.bf16.msra.mxu0 %v6750
      %6769 = vmatprep.subr.bf16.mxu0 0
      %6770 = vmatpush1.bf16.msra.mxu0 %v6751
      %6771 = vmatprep.subr.bf16.mxu0 0
      %6772 = vmatpush1.bf16.msra.mxu0 %v6752
      %6773 = vmatprep.subr.bf16.mxu0 0
      %6774 = vmatpush1.bf16.msra.mxu0 %v6753
      %6775 = vmatprep.subr.bf16.mxu0 0
      %6776 = vmatpush1.bf16.msra.mxu0 %v6754
      %6777 = vmatprep.subr.bf16.mxu0 0
      %6778 = vmatpush1.bf16.msra.mxu0 %v6755
      %6779 = vmatprep.subr.bf16.mxu0 0
      %6780 = vmatpush1.bf16.msra.mxu0 %v6756
      %6781 = vmatprep.subr.bf16.mxu0 0
      %6782 = vmatpush1.bf16.msra.mxu0 0
      %6783 = vmatprep.subr.bf16.mxu0 0
      %6784 = vmatpush1.bf16.msra.mxu0 0
      %6785 = vmatprep.subr.bf16.mxu0 0
      %6786 = vmatpush1.bf16.msra.mxu0 0
      %6787 = vmatprep.subr.bf16.mxu0 0
      %6788 = vmatpush1.bf16.msra.mxu0 0
      %6789 = vmatprep.subr.bf16.mxu0 0
      %6790 = vmatpush1.bf16.msra.mxu0 0
      %6791 = vmatprep.subr.bf16.mxu0 0
      %6792 = vmatpush1.bf16.msra.mxu0 0
      %6793 = vmatprep.subr.bf16.mxu0 0
      %6794 = vmatpush1.bf16.msra.mxu0 0
      %6795 = vmatprep.subr.bf16.mxu0 0
      %6796 = vmatpush1.bf16.msra.mxu0 0
      %6797 = vmatprep.mubr.bf16.mxu0 0
      %6798 = vmatmul.mubr.bf16.gmra.mrb[0].mxu0 %v6685
      %v6799 = vpop.f32.mrb[0].mxu0
      %v6800 = vadd.f32 0.0, %v6799
      %v6801 = vpop.f32.mrb[0].mxu0
      %v6802 = vpop.f32.mrb[0].mxu0
      %v6803 = vadd.f32 0.0, %v6802
      %v6804 = vpop.f32.mrb[0].mxu0
      %6805 = vmatprep.mubr.bf16.mxu0 0
      %6806 = vmatmul.mubr.bf16.gmra.mrb[0].mxu0 %v6686
      %v6807 = vpop.f32.mrb[0].mxu0
      %v6808 = vadd.f32 0.0, %v6807
      %v6809 = vpop.f32.mrb[0].mxu0
      %v6810 = vpop.f32.mrb[0].mxu0
      %v6811 = vadd.f32 0.0, %v6810
      %v6812 = vpop.f32.mrb[0].mxu0
      %6813 = vmatprep.mubr.bf16.mxu0 0
      %6814 = vmatmul.mubr.bf16.gmra.mrb[0].mxu0 %v6687
      %v6815 = vpop.f32.mrb[0].mxu0
      %v6816 = vadd.f32 0.0, %v6815
      %v6817 = vpop.f32.mrb[0].mxu0
      %v6818 = vpop.f32.mrb[0].mxu0
      %v6819 = vadd.f32 0.0, %v6818
      %v6820 = vpop.f32.mrb[0].mxu0
      %6821 = vmatprep.mubr.bf16.mxu0 0
      %6822 = vmatmul.mubr.bf16.gmra.mrb[0].mxu0 %v6688
      %v6823 = vpop.f32.mrb[0].mxu0
      %v6824 = vadd.f32 0.0, %v6823
      %v6825 = vpop.f32.mrb[0].mxu0
      %v6826 = vpop.f32.mrb[0].mxu0
      %v6827 = vadd.f32 0.0, %v6826
      %v6828 = vpop.f32.mrb[0].mxu0
      %6829 = vmatprep.mubr.bf16.mxu0 0
      %6830 = vmatmul.mubr.bf16.gmra.mrb[0].mxu0 %v6689
      %v6831 = vpop.f32.mrb[0].mxu0
      %v6832 = vadd.f32 0.0, %v6831
      %v6833 = vpop.f32.mrb[0].mxu0
      %v6834 = vpop.f32.mrb[0].mxu0
      %v6835 = vadd.f32 0.0, %v6834
      %v6836 = vpop.f32.mrb[0].mxu0
      %6837 = vmatprep.mubr.bf16.mxu0 0
      %6838 = vmatmul.mubr.bf16.gmra.mrb[0].mxu0 %v6690
      %v6839 = vpop.f32.mrb[0].mxu0
      %v6840 = vadd.f32 0.0, %v6839
      %v6841 = vpop.f32.mrb[0].mxu0
      %v6842 = vpop.f32.mrb[0].mxu0
      %v6843 = vadd.f32 0.0, %v6842
      %v6844 = vpop.f32.mrb[0].mxu0
      %6845 = vmatprep.mubr.bf16.mxu0 0
      %6846 = vmatmul.mubr.bf16.gmra.mrb[0].mxu0 %v6691
      %v6847 = vpop.f32.mrb[0].mxu0
      %v6848 = vadd.f32 0.0, %v6847
      %v6849 = vpop.f32.mrb[0].mxu0
      %v6850 = vpop.f32.mrb[0].mxu0
      %v6851 = vadd.f32 0.0, %v6850
      %v6852 = vpop.f32.mrb[0].mxu0
      %6853 = vmatprep.mubr.bf16.mxu0 0
      %6854 = vmatmul.mubr.bf16.gmra.mrb[0].mxu0 %v6692
      %v6855 = vpop.f32.mrb[0].mxu0
      %v6856 = vadd.f32 0.0, %v6855
      %v6857 = vpop.f32.mrb[0].mxu0
      %v6858 = vpop.f32.mrb[0].mxu0
      %v6859 = vadd.f32 0.0, %v6858
      %v6860 = vpop.f32.mrb[0].mxu0
      %6861 = vmatprep.mubr.bf16.mxu0 0
      %6862 = vmatmul.mubr.bf16.gmra.mrb[0].mxu0 %v6693
      %v6863 = vpop.f32.mrb[0].mxu0
      %v6864 = vadd.f32 0.0, %v6863
      %v6865 = vpop.f32.mrb[0].mxu0
      %v6866 = vpop.f32.mrb[0].mxu0
      %v6867 = vadd.f32 0.0, %v6866
      %v6868 = vpop.f32.mrb[0].mxu0
      %6869 = vmatprep.mubr.bf16.mxu0 0
      %6870 = vmatmul.mubr.bf16.gmra.mrb[0].mxu0 %v6694
      %v6871 = vpop.f32.mrb[0].mxu0
      %v6872 = vadd.f32 0.0, %v6871
      %v6873 = vpop.f32.mrb[0].mxu0
      %v6874 = vpop.f32.mrb[0].mxu0
      %v6875 = vadd.f32 0.0, %v6874
      %v6876 = vpop.f32.mrb[0].mxu0
      %6877 = vmatprep.mubr.bf16.mxu0 0
      %6878 = vmatmul.mubr.bf16.gmra.mrb[0].mxu0 %v6695
      %v6879 = vpop.f32.mrb[0].mxu0
      %v6880 = vadd.f32 0.0, %v6879
      %v6881 = vpop.f32.mrb[0].mxu0
      %v6882 = vpop.f32.mrb[0].mxu0
      %v6883 = vadd.f32 0.0, %v6882
      %v6884 = vpop.f32.mrb[0].mxu0
      %6885 = vmatprep.mubr.bf16.mxu0 0
      %6886 = vmatmul.mubr.bf16.gmra.mrb[0].mxu0 %v6696
      %v6887 = vpop.f32.mrb[0].mxu0
      %v6888 = vadd.f32 0.0, %v6887
      %v6889 = vpop.f32.mrb[0].mxu0
      %v6890 = vpop.f32.mrb[0].mxu0
      %v6891 = vadd.f32 0.0, %v6890
      %v6892 = vpop.f32.mrb[0].mxu0
      %6893 = vmatprep.mubr.bf16.mxu0 0
      %6894 = vmatmul.mubr.bf16.gmra.mrb[0].mxu0 %v6697
      %v6895 = vpop.f32.mrb[0].mxu0
      %v6896 = vadd.f32 0.0, %v6895
      %v6897 = vpop.f32.mrb[0].mxu0
      %v6898 = vpop.f32.mrb[0].mxu0
      %v6899 = vadd.f32 0.0, %v6898
      %v6900 = vpop.f32.mrb[0].mxu0
      %6901 = vmatprep.mubr.bf16.mxu0 0
      %6902 = vmatmul.mubr.bf16.gmra.mrb[0].mxu0 %v6698
      %v6903 = vpop.f32.mrb[0].mxu0
      %v6904 = vadd.f32 0.0, %v6903
      %v6905 = vpop.f32.mrb[0].mxu0
      %v6906 = vpop.f32.mrb[0].mxu0
      %v6907 = vadd.f32 0.0, %v6906
      %v6908 = vpop.f32.mrb[0].mxu0
      %6909 = vmatprep.mubr.bf16.mxu0 0
      %6910 = vmatmul.mubr.bf16.gmra.mrb[0].mxu0 %v6699
      %v6911 = vpop.f32.mrb[0].mxu0
      %v6912 = vadd.f32 0.0, %v6911
      %v6913 = vpop.f32.mrb[0].mxu0
      %v6914 = vpop.f32.mrb[0].mxu0
      %v6915 = vadd.f32 0.0, %v6914
      %v6916 = vpop.f32.mrb[0].mxu0
      %6917 = vmatprep.mubr.bf16.mxu0 0
      %6918 = vmatmul.mubr.bf16.gmra.mrb[0].mxu0 %v6700
      %v6919 = vpop.f32.mrb[0].mxu0
      %v6920 = vadd.f32 0.0, %v6919
      %v6921 = vpop.f32.mrb[0].mxu0
      %v6922 = vpop.f32.mrb[0].mxu0
      %v6923 = vadd.f32 0.0, %v6922
      %v6924 = vpop.f32.mrb[0].mxu0
      %6925 = vdwg.mxu0
      %v6958 = vunpack.c.l.b16 %v6188
      %v6959 = vunpack.c.l.b16 %v6189
      %v6960 = vunpack.c.l.b16 %v6190
      %v6961 = vunpack.c.l.b16 %v6191
      %v6962 = vunpack.c.l.b16 %v6192
      %v6963 = vunpack.c.l.b16 %v6193
      %v6964 = vunpack.c.l.b16 %v6194
      %v6965 = vunpack.c.l.b16 %v6195
      %v6966 = vunpack.c.l.b16 %v6196
      %v6967 = vunpack.c.l.b16 %v6197
      %v6968 = vunpack.c.l.b16 %v6198
      %v6969 = vunpack.c.l.b16 %v6199
      %v6970 = vunpack.c.l.b16 %v6200
      %v6971 = vunpack.c.l.b16 %v6201
      %v6972 = vunpack.c.l.b16 %v6202
      %v6973 = vunpack.c.l.b16 %v6203
      %v6974 = vunpack.c.l.b16 %v6204
      %v6975 = vunpack.c.l.b16 %v6205
      %v6976 = vunpack.c.l.b16 %v6206
      %v6977 = vunpack.c.l.b16 %v6207
      %v6978 = vunpack.c.l.b16 %v6208
      %v6979 = vunpack.c.l.b16 %v6209
      %v6980 = vunpack.c.l.b16 %v6210
      %v6981 = vunpack.c.l.b16 %v6211
      %v6982 = vunpack.c.l.b16 %v6212
      %v6983 = vunpack.c.l.b16 %v6213
      %v6984 = vunpack.c.l.b16 %v6214
      %v6985 = vunpack.c.l.b16 %v6215
      %v6986 = vunpack.c.l.b16 %v6216
      %v6987 = vunpack.c.l.b16 %v6217
      %v6988 = vunpack.c.l.b16 %v6218
      %v6989 = vunpack.c.l.b16 %v6219
      %v6990 = vpack.c.b16 %v6959, %v6958
      %v6991 = vpack.c.b16 %v6961, %v6960
      %v6992 = vpack.c.b16 %v6963, %v6962
      %v6993 = vpack.c.b16 %v6965, %v6964
      %v6994 = vpack.c.b16 %v6967, %v6966
      %v6995 = vpack.c.b16 %v6969, %v6968
      %v6996 = vpack.c.b16 %v6971, %v6970
      %v6997 = vpack.c.b16 %v6973, %v6972
      %v6998 = vpack.c.b16 %v6975, %v6974
      %v6999 = vpack.c.b16 %v6977, %v6976
      %v7000 = vpack.c.b16 %v6979, %v6978
      %v7001 = vpack.c.b16 %v6981, %v6980
      %v7002 = vpack.c.b16 %v6983, %v6982
      %v7003 = vpack.c.b16 %v6985, %v6984
      %v7004 = vpack.c.b16 %v6987, %v6986
      %v7005 = vpack.c.b16 %v6989, %v6988
      %v7038 = vunpack.c.l.b16 %v6220
      %v7039 = vunpack.c.l.b16 %v6221
      %v7040 = vunpack.c.l.b16 %v6222
      %v7041 = vunpack.c.l.b16 %v6223
      %v7042 = vunpack.c.l.b16 %v6224
      %v7043 = vunpack.c.l.b16 %v6225
      %v7044 = vunpack.c.l.b16 %v6226
      %v7045 = vunpack.c.l.b16 %v6227
      %v7046 = vunpack.c.l.b16 %v6228
      %v7047 = vunpack.c.l.b16 %v6229
      %v7048 = vunpack.c.l.b16 %v6230
      %v7049 = vunpack.c.l.b16 %v6231
      %v7050 = vunpack.c.l.b16 %v6232
      %v7051 = vunpack.c.l.b16 %v6233
      %v7052 = vunpack.c.l.b16 %v6234
      %v7053 = vunpack.c.l.b16 %v6235
      %v7054 = vpack.c.b16 %v7039, %v7038
      %v7055 = vpack.c.b16 %v7041, %v7040
      %v7056 = vpack.c.b16 %v7043, %v7042
      %v7057 = vpack.c.b16 %v7045, %v7044
      %v7058 = vpack.c.b16 %v7047, %v7046
      %v7059 = vpack.c.b16 %v7049, %v7048
      %v7060 = vpack.c.b16 %v7051, %v7050
      %v7061 = vpack.c.b16 %v7053, %v7052
      %7070 = vmatprep.subr.bf16.mxu0 0
      %7071 = vmatpush1.bf16.msra.mxu0 %v7054
      %7072 = vmatprep.subr.bf16.mxu0 0
      %7073 = vmatpush1.bf16.msra.mxu0 %v7055
      %7074 = vmatprep.subr.bf16.mxu0 0
      %7075 = vmatpush1.bf16.msra.mxu0 %v7056
      %7076 = vmatprep.subr.bf16.mxu0 0
      %7077 = vmatpush1.bf16.msra.mxu0 %v7057
      %7078 = vmatprep.subr.bf16.mxu0 0
      %7079 = vmatpush1.bf16.msra.mxu0 %v7058
      %7080 = vmatprep.subr.bf16.mxu0 0
      %7081 = vmatpush1.bf16.msra.mxu0 %v7059
      %7082 = vmatprep.subr.bf16.mxu0 0
      %7083 = vmatpush1.bf16.msra.mxu0 %v7060
      %7084 = vmatprep.subr.bf16.mxu0 0
      %7085 = vmatpush1.bf16.msra.mxu0 %v7061
      %7086 = vmatprep.subr.bf16.mxu0 0
      %7087 = vmatpush1.bf16.msra.mxu0 0
      %7088 = vmatprep.subr.bf16.mxu0 0
      %7089 = vmatpush1.bf16.msra.mxu0 0
      %7090 = vmatprep.subr.bf16.mxu0 0
      %7091 = vmatpush1.bf16.msra.mxu0 0
      %7092 = vmatprep.subr.bf16.mxu0 0
      %7093 = vmatpush1.bf16.msra.mxu0 0
      %7094 = vmatprep.subr.bf16.mxu0 0
      %7095 = vmatpush1.bf16.msra.mxu0 0
      %7096 = vmatprep.subr.bf16.mxu0 0
      %7097 = vmatpush1.bf16.msra.mxu0 0
      %7098 = vmatprep.subr.bf16.mxu0 0
      %7099 = vmatpush1.bf16.msra.mxu0 0
      %7100 = vmatprep.subr.bf16.mxu0 0
      %7101 = vmatpush1.bf16.msra.mxu0 0
      %7102 = vmatprep.mubr.bf16.mxu0 0
      %7103 = vmatmul.mubr.bf16.gmra.mrb[0].mxu0 %v6990
      %v7104 = vpop.f32.mrb[0].mxu0
      %v7105 = vadd.f32 %v6800, %v7104
      %v7106 = vpop.f32.mrb[0].mxu0
      %v7107 = vpop.f32.mrb[0].mxu0
      %v7108 = vadd.f32 %v6803, %v7107
      %v7109 = vpop.f32.mrb[0].mxu0
      %7110 = vmatprep.mubr.bf16.mxu0 0
      %7111 = vmatmul.mubr.bf16.gmra.mrb[0].mxu0 %v6991
      %v7112 = vpop.f32.mrb[0].mxu0
      %v7113 = vadd.f32 %v6808, %v7112
      %v7114 = vpop.f32.mrb[0].mxu0
      %v7115 = vpop.f32.mrb[0].mxu0
      %v7116 = vadd.f32 %v6811, %v7115
      %v7117 = vpop.f32.mrb[0].mxu0
      %7118 = vmatprep.mubr.bf16.mxu0 0
      %7119 = vmatmul.mubr.bf16.gmra.mrb[0].mxu0 %v6992
      %v7120 = vpop.f32.mrb[0].mxu0
      %v7121 = vadd.f32 %v6816, %v7120
      %v7122 = vpop.f32.mrb[0].mxu0
      %v7123 = vpop.f32.mrb[0].mxu0
      %v7124 = vadd.f32 %v6819, %v7123
      %v7125 = vpop.f32.mrb[0].mxu0
      %7126 = vmatprep.mubr.bf16.mxu0 0
      %7127 = vmatmul.mubr.bf16.gmra.mrb[0].mxu0 %v6993
      %v7128 = vpop.f32.mrb[0].mxu0
      %v7129 = vadd.f32 %v6824, %v7128
      %v7130 = vpop.f32.mrb[0].mxu0
      %v7131 = vpop.f32.mrb[0].mxu0
      %v7132 = vadd.f32 %v6827, %v7131
      %v7133 = vpop.f32.mrb[0].mxu0
      %7134 = vmatprep.mubr.bf16.mxu0 0
      %7135 = vmatmul.mubr.bf16.gmra.mrb[0].mxu0 %v6994
      %v7136 = vpop.f32.mrb[0].mxu0
      %v7137 = vadd.f32 %v6832, %v7136
      %v7138 = vpop.f32.mrb[0].mxu0
      %v7139 = vpop.f32.mrb[0].mxu0
      %v7140 = vadd.f32 %v6835, %v7139
      %v7141 = vpop.f32.mrb[0].mxu0
      %7142 = vmatprep.mubr.bf16.mxu0 0
      %7143 = vmatmul.mubr.bf16.gmra.mrb[0].mxu0 %v6995
      %v7144 = vpop.f32.mrb[0].mxu0
      %v7145 = vadd.f32 %v6840, %v7144
      %v7146 = vpop.f32.mrb[0].mxu0
      %v7147 = vpop.f32.mrb[0].mxu0
      %v7148 = vadd.f32 %v6843, %v7147
      %v7149 = vpop.f32.mrb[0].mxu0
      %7150 = vmatprep.mubr.bf16.mxu0 0
      %7151 = vmatmul.mubr.bf16.gmra.mrb[0].mxu0 %v6996
      %v7152 = vpop.f32.mrb[0].mxu0
      %v7153 = vadd.f32 %v6848, %v7152
      %v7154 = vpop.f32.mrb[0].mxu0
      %v7155 = vpop.f32.mrb[0].mxu0
      %v7156 = vadd.f32 %v6851, %v7155
      %v7157 = vpop.f32.mrb[0].mxu0
      %7158 = vmatprep.mubr.bf16.mxu0 0
      %7159 = vmatmul.mubr.bf16.gmra.mrb[0].mxu0 %v6997
      %v7160 = vpop.f32.mrb[0].mxu0
      %v7161 = vadd.f32 %v6856, %v7160
      %v7162 = vpop.f32.mrb[0].mxu0
      %v7163 = vpop.f32.mrb[0].mxu0
      %v7164 = vadd.f32 %v6859, %v7163
      %v7165 = vpop.f32.mrb[0].mxu0
      %7166 = vmatprep.mubr.bf16.mxu0 0
      %7167 = vmatmul.mubr.bf16.gmra.mrb[0].mxu0 %v6998
      %v7168 = vpop.f32.mrb[0].mxu0
      %v7169 = vadd.f32 %v6864, %v7168
      %v7170 = vpop.f32.mrb[0].mxu0
      %v7171 = vpop.f32.mrb[0].mxu0
      %v7172 = vadd.f32 %v6867, %v7171
      %v7173 = vpop.f32.mrb[0].mxu0
      %7174 = vmatprep.mubr.bf16.mxu0 0
      %7175 = vmatmul.mubr.bf16.gmra.mrb[0].mxu0 %v6999
      %v7176 = vpop.f32.mrb[0].mxu0
      %v7177 = vadd.f32 %v6872, %v7176
      %v7178 = vpop.f32.mrb[0].mxu0
      %v7179 = vpop.f32.mrb[0].mxu0
      %v7180 = vadd.f32 %v6875, %v7179
      %v7181 = vpop.f32.mrb[0].mxu0
      %7182 = vmatprep.mubr.bf16.mxu0 0
      %7183 = vmatmul.mubr.bf16.gmra.mrb[0].mxu0 %v7000
      %v7184 = vpop.f32.mrb[0].mxu0
      %v7185 = vadd.f32 %v6880, %v7184
      %v7186 = vpop.f32.mrb[0].mxu0
      %v7187 = vpop.f32.mrb[0].mxu0
      %v7188 = vadd.f32 %v6883, %v7187
      %v7189 = vpop.f32.mrb[0].mxu0
      %7190 = vmatprep.mubr.bf16.mxu0 0
      %7191 = vmatmul.mubr.bf16.gmra.mrb[0].mxu0 %v7001
      %v7192 = vpop.f32.mrb[0].mxu0
      %v7193 = vadd.f32 %v6888, %v7192
      %v7194 = vpop.f32.mrb[0].mxu0
      %v7195 = vpop.f32.mrb[0].mxu0
      %v7196 = vadd.f32 %v6891, %v7195
      %v7197 = vpop.f32.mrb[0].mxu0
      %7198 = vmatprep.mubr.bf16.mxu0 0
      %7199 = vmatmul.mubr.bf16.gmra.mrb[0].mxu0 %v7002
      %v7200 = vpop.f32.mrb[0].mxu0
      %v7201 = vadd.f32 %v6896, %v7200
      %v7202 = vpop.f32.mrb[0].mxu0
      %v7203 = vpop.f32.mrb[0].mxu0
      %v7204 = vadd.f32 %v6899, %v7203
      %v7205 = vpop.f32.mrb[0].mxu0
      %7206 = vmatprep.mubr.bf16.mxu0 0
      %7207 = vmatmul.mubr.bf16.gmra.mrb[0].mxu0 %v7003
      %v7208 = vpop.f32.mrb[0].mxu0
      %v7209 = vadd.f32 %v6904, %v7208
      %v7210 = vpop.f32.mrb[0].mxu0
      %v7211 = vpop.f32.mrb[0].mxu0
      %v7212 = vadd.f32 %v6907, %v7211
      %v7213 = vpop.f32.mrb[0].mxu0
      %7214 = vmatprep.mubr.bf16.mxu0 0
      %7215 = vmatmul.mubr.bf16.gmra.mrb[0].mxu0 %v7004
      %v7216 = vpop.f32.mrb[0].mxu0
      %v7217 = vadd.f32 %v6912, %v7216
      %v7218 = vpop.f32.mrb[0].mxu0
      %v7219 = vpop.f32.mrb[0].mxu0
      %v7220 = vadd.f32 %v6915, %v7219
      %v7221 = vpop.f32.mrb[0].mxu0
      %7222 = vmatprep.mubr.bf16.mxu0 0
      %7223 = vmatmul.mubr.bf16.gmra.mrb[0].mxu0 %v7005
      %v7224 = vpop.f32.mrb[0].mxu0
      %v7225 = vadd.f32 %v6920, %v7224
      %v7226 = vpop.f32.mrb[0].mxu0
      %v7227 = vpop.f32.mrb[0].mxu0
      %v7228 = vadd.f32 %v6923, %v7227
      %v7229 = vpop.f32.mrb[0].mxu0
      %7230 = vdwg.mxu0
      %v7231 = vld [vmem:[#allocation3] sm:$0xe]
      %v7232 = vld [vmem:[#allocation3 + $0xc] sm:$0xe]
      %v7233 = vld [vmem:[#allocation3 + $0x18] sm:$0xe]
      %v7234 = vld [vmem:[#allocation3 + $0x24] sm:$0xe]
      %v7235 = vld [vmem:[#allocation3 + $0x30] sm:$0xe]
      %v7236 = vld [vmem:[#allocation3 + $0x3c] sm:$0xe]
      %v7237 = vld [vmem:[#allocation3 + $0x48] sm:$0xe]
      %v7238 = vld [vmem:[#allocation3 + $0x54] sm:$0xe]
      %v7239 = vld [vmem:[#allocation3 + $0x60] sm:$0xe]
      %v7240 = vld [vmem:[#allocation3 + $0x6c] sm:$0xe]
      %v7241 = vld [vmem:[#allocation3 + $0x78] sm:$0xe]
      %v7242 = vld [vmem:[#allocation3 + $0x84] sm:$0xe]
      %v7243 = vld [vmem:[#allocation3 + $0x90] sm:$0xe]
      %v7244 = vld [vmem:[#allocation3 + $0x9c] sm:$0xe]
      %v7245 = vld [vmem:[#allocation3 + $0xa8] sm:$0xe]
      %v7246 = vld [vmem:[#allocation3 + $0xb4] sm:$0xe]
      %v7279 = vrot.slane %v7231, 5
      %v7280 = vrot.slane %v7279, 4
      %v7281 = vrot.slane %v6189, 5
      %v7282 = vsel %vm1891, %v7280, %v7281
      %v7283 = vrot.slane %v7281, 4
      %v7284 = vrot.slane %v6236, 5
      %v7285 = vsel %vm1891, %v7283, %v7284
      %v7286 = vrot.slane %v7232, 5
      %v7287 = vrot.slane %v7286, 4
      %v7288 = vrot.slane %v6191, 5
      %v7289 = vsel %vm1891, %v7287, %v7288
      %v7290 = vrot.slane %v7288, 4
      %v7291 = vrot.slane %v6237, 5
      %v7292 = vsel %vm1891, %v7290, %v7291
      %v7293 = vrot.slane %v7233, 5
      %v7294 = vrot.slane %v7293, 4
      %v7295 = vrot.slane %v6193, 5
      %v7296 = vsel %vm1891, %v7294, %v7295
      %v7297 = vrot.slane %v7295, 4
      %v7298 = vrot.slane %v6238, 5
      %v7299 = vsel %vm1891, %v7297, %v7298
      %v7300 = vrot.slane %v7234, 5
      %v7301 = vrot.slane %v7300, 4
      %v7302 = vrot.slane %v6195, 5
      %v7303 = vsel %vm1891, %v7301, %v7302
      %v7304 = vrot.slane %v7302, 4
      %v7305 = vrot.slane %v6239, 5
      %v7306 = vsel %vm1891, %v7304, %v7305
      %v7307 = vrot.slane %v7235, 5
      %v7308 = vrot.slane %v7307, 4
      %v7309 = vrot.slane %v6197, 5
      %v7310 = vsel %vm1891, %v7308, %v7309
      %v7311 = vrot.slane %v7309, 4
      %v7312 = vrot.slane %v6240, 5
      %v7313 = vsel %vm1891, %v7311, %v7312
      %v7314 = vrot.slane %v7236, 5
      %v7315 = vrot.slane %v7314, 4
      %v7316 = vrot.slane %v6199, 5
      %v7317 = vsel %vm1891, %v7315, %v7316
      %v7318 = vrot.slane %v7316, 4
      %v7319 = vrot.slane %v6241, 5
      %v7320 = vsel %vm1891, %v7318, %v7319
      %v7321 = vrot.slane %v7237, 5
      %v7322 = vrot.slane %v7321, 4
      %v7323 = vrot.slane %v6201, 5
      %v7324 = vsel %vm1891, %v7322, %v7323
      %v7325 = vrot.slane %v7323, 4
      %v7326 = vrot.slane %v6242, 5
      %v7327 = vsel %vm1891, %v7325, %v7326
      %v7328 = vrot.slane %v7238, 5
      %v7329 = vrot.slane %v7328, 4
      %v7330 = vrot.slane %v6203, 5
      %v7331 = vsel %vm1891, %v7329, %v7330
      %v7332 = vrot.slane %v7330, 4
      %v7333 = vrot.slane %v6243, 5
      %v7334 = vsel %vm1891, %v7332, %v7333
      %v7335 = vrot.slane %v7239, 5
      %v7336 = vrot.slane %v7335, 4
      %v7337 = vrot.slane %v6205, 5
      %v7338 = vsel %vm1891, %v7336, %v7337
      %v7339 = vrot.slane %v7337, 4
      %v7340 = vrot.slane %v6244, 5
      %v7341 = vsel %vm1891, %v7339, %v7340
      %v7342 = vrot.slane %v7240, 5
      %v7343 = vrot.slane %v7342, 4
      %v7344 = vrot.slane %v6207, 5
      %v7345 = vsel %vm1891, %v7343, %v7344
      %v7346 = vrot.slane %v7344, 4
      %v7347 = vrot.slane %v6245, 5
      %v7348 = vsel %vm1891, %v7346, %v7347
      %v7349 = vrot.slane %v7241, 5
      %v7350 = vrot.slane %v7349, 4
      %v7351 = vrot.slane %v6209, 5
      %v7352 = vsel %vm1891, %v7350, %v7351
      %v7353 = vrot.slane %v7351, 4
      %v7354 = vrot.slane %v6246, 5
      %v7355 = vsel %vm1891, %v7353, %v7354
      %v7356 = vrot.slane %v7242, 5
      %v7357 = vrot.slane %v7356, 4
      %v7358 = vrot.slane %v6211, 5
      %v7359 = vsel %vm1891, %v7357, %v7358
      %v7360 = vrot.slane %v7358, 4
      %v7361 = vrot.slane %v6247, 5
      %v7362 = vsel %vm1891, %v7360, %v7361
      %v7363 = vrot.slane %v7243, 5
      %v7364 = vrot.slane %v7363, 4
      %v7365 = vrot.slane %v6213, 5
      %v7366 = vsel %vm1891, %v7364, %v7365
      %v7367 = vrot.slane %v7365, 4
      %v7368 = vrot.slane %v6248, 5
      %v7369 = vsel %vm1891, %v7367, %v7368
      %v7370 = vrot.slane %v7244, 5
      %v7371 = vrot.slane %v7370, 4
      %v7372 = vrot.slane %v6215, 5
      %v7373 = vsel %vm1891, %v7371, %v7372
      %v7374 = vrot.slane %v7372, 4
      %v7375 = vrot.slane %v6249, 5
      %v7376 = vsel %vm1891, %v7374, %v7375
      %v7377 = vrot.slane %v7245, 5
      %v7378 = vrot.slane %v7377, 4
      %v7379 = vrot.slane %v6217, 5
      %v7380 = vsel %vm1891, %v7378, %v7379
      %v7381 = vrot.slane %v7379, 4
      %v7382 = vrot.slane %v6250, 5
      %v7383 = vsel %vm1891, %v7381, %v7382
      %v7384 = vrot.slane %v7246, 5
      %v7385 = vrot.slane %v7384, 4
      %v7386 = vrot.slane %v6219, 5
      %v7387 = vsel %vm1891, %v7385, %v7386
      %v7388 = vrot.slane %v7386, 4
      %v7389 = vrot.slane %v6251, 5
      %v7390 = vsel %vm1891, %v7388, %v7389
      %s7391 = scalar_lea.vmem %s2, 128
      %v7392 = vld [vmem:[%s7391] sm:$0xf]
      %v7393 = vld [vmem:[%s7391 + $0x4] sm:$0xf]
      %v7394 = vld [vmem:[%s7391 + $0x8] sm:$0xf]
      %v7395 = vld [vmem:[%s7391 + $0xc] sm:$0xf]
      %v7396 = vld [vmem:[%s7391 + $0x10] sm:$0xf]
      %v7397 = vld [vmem:[%s7391 + $0x14] sm:$0xf]
      %v7398 = vld [vmem:[%s7391 + $0x18] sm:$0xf]
      %v7399 = vld [vmem:[%s7391 + $0x1c] sm:$0xf]
      %v7400 = vld [vmem:[%s7391 + $0x20] sm:$0xf]
      %v7401 = vld [vmem:[%s7391 + $0x24] sm:$0xf]
      %v7402 = vld [vmem:[%s7391 + $0x28] sm:$0xf]
      %v7403 = vld [vmem:[%s7391 + $0x2c] sm:$0xf]
      %v7404 = vld [vmem:[%s7391 + $0x30] sm:$0xf]
      %v7405 = vld [vmem:[%s7391 + $0x34] sm:$0xf]
      %v7406 = vld [vmem:[%s7391 + $0x38] sm:$0xf]
      %v7407 = vld [vmem:[%s7391 + $0x3c] sm:$0xf]
      %v7408 = vunpack.c.l.b16 %v7282
      %v7409 = vunpack.c.l.b16 %v7285
      %v7410 = vunpack.c.l.b16 %v7289
      %v7411 = vunpack.c.l.b16 %v7292
      %v7412 = vunpack.c.l.b16 %v7296
      %v7413 = vunpack.c.l.b16 %v7299
      %v7414 = vunpack.c.l.b16 %v7303
      %v7415 = vunpack.c.l.b16 %v7306
      %v7416 = vunpack.c.l.b16 %v7310
      %v7417 = vunpack.c.l.b16 %v7313
      %v7418 = vunpack.c.l.b16 %v7317
      %v7419 = vunpack.c.l.b16 %v7320
      %v7420 = vunpack.c.l.b16 %v7324
      %v7421 = vunpack.c.l.b16 %v7327
      %v7422 = vunpack.c.l.b16 %v7331
      %v7423 = vunpack.c.l.b16 %v7334
      %v7424 = vunpack.c.l.b16 %v7338
      %v7425 = vunpack.c.l.b16 %v7341
      %v7426 = vunpack.c.l.b16 %v7345
      %v7427 = vunpack.c.l.b16 %v7348
      %v7428 = vunpack.c.l.b16 %v7352
      %v7429 = vunpack.c.l.b16 %v7355
      %v7430 = vunpack.c.l.b16 %v7359
      %v7431 = vunpack.c.l.b16 %v7362
      %v7432 = vunpack.c.l.b16 %v7366
      %v7433 = vunpack.c.l.b16 %v7369
      %v7434 = vunpack.c.l.b16 %v7373
      %v7435 = vunpack.c.l.b16 %v7376
      %v7436 = vunpack.c.l.b16 %v7380
      %v7437 = vunpack.c.l.b16 %v7383
      %v7438 = vunpack.c.l.b16 %v7387
      %v7439 = vunpack.c.l.b16 %v7390
      %v7440 = vpack.c.b16 %v7409, %v7408
      %v7441 = vpack.c.b16 %v7411, %v7410
      %v7442 = vpack.c.b16 %v7413, %v7412
      %v7443 = vpack.c.b16 %v7415, %v7414
      %v7444 = vpack.c.b16 %v7417, %v7416
      %v7445 = vpack.c.b16 %v7419, %v7418
      %v7446 = vpack.c.b16 %v7421, %v7420
      %v7447 = vpack.c.b16 %v7423, %v7422
      %v7448 = vpack.c.b16 %v7425, %v7424
      %v7449 = vpack.c.b16 %v7427, %v7426
      %v7450 = vpack.c.b16 %v7429, %v7428
      %v7451 = vpack.c.b16 %v7431, %v7430
      %v7452 = vpack.c.b16 %v7433, %v7432
      %v7453 = vpack.c.b16 %v7435, %v7434
      %v7454 = vpack.c.b16 %v7437, %v7436
      %v7455 = vpack.c.b16 %v7439, %v7438
      %v7488 = vunpack.c.l.b16 %v7392
      %v7489 = vunpack.c.l.b16 %v7393
      %v7490 = vunpack.c.l.b16 %v7394
      %v7491 = vunpack.c.l.b16 %v7395
      %v7492 = vunpack.c.l.b16 %v7396
      %v7493 = vunpack.c.l.b16 %v7397
      %v7494 = vunpack.c.l.b16 %v7398
      %v7495 = vunpack.c.l.b16 %v7399
      %v7496 = vunpack.c.l.b16 %v7400
      %v7497 = vunpack.c.l.b16 %v7401
      %v7498 = vunpack.c.l.b16 %v7402
      %v7499 = vunpack.c.l.b16 %v7403
      %v7500 = vunpack.c.l.b16 %v7404
      %v7501 = vunpack.c.l.b16 %v7405
      %v7502 = vunpack.c.l.b16 %v7406
      %v7503 = vunpack.c.l.b16 %v7407
      %v7504 = vpack.c.b16 %v7489, %v7488
      %v7505 = vpack.c.b16 %v7491, %v7490
      %v7506 = vpack.c.b16 %v7493, %v7492
      %v7507 = vpack.c.b16 %v7495, %v7494
      %v7508 = vpack.c.b16 %v7497, %v7496
      %v7509 = vpack.c.b16 %v7499, %v7498
      %v7510 = vpack.c.b16 %v7501, %v7500
      %v7511 = vpack.c.b16 %v7503, %v7502
      %7520 = vmatprep.subr.bf16.mxu0 0
      %7521 = vmatpush1.bf16.msra.mxu0 %v7504
      %7522 = vmatprep.subr.bf16.mxu0 0
      %7523 = vmatpush1.bf16.msra.mxu0 %v7505
      %7524 = vmatprep.subr.bf16.mxu0 0
      %7525 = vmatpush1.bf16.msra.mxu0 %v7506
      %7526 = vmatprep.subr.bf16.mxu0 0
      %7527 = vmatpush1.bf16.msra.mxu0 %v7507
      %7528 = vmatprep.subr.bf16.mxu0 0
      %7529 = vmatpush1.bf16.msra.mxu0 %v7508
      %7530 = vmatprep.subr.bf16.mxu0 0
      %7531 = vmatpush1.bf16.msra.mxu0 %v7509
      %7532 = vmatprep.subr.bf16.mxu0 0
      %7533 = vmatpush1.bf16.msra.mxu0 %v7510
      %7534 = vmatprep.subr.bf16.mxu0 0
      %7535 = vmatpush1.bf16.msra.mxu0 %v7511
      %7536 = vmatprep.subr.bf16.mxu0 0
      %7537 = vmatpush1.bf16.msra.mxu0 0
      %7538 = vmatprep.subr.bf16.mxu0 0
      %7539 = vmatpush1.bf16.msra.mxu0 0
      %7540 = vmatprep.subr.bf16.mxu0 0
      %7541 = vmatpush1.bf16.msra.mxu0 0
      %7542 = vmatprep.subr.bf16.mxu0 0
      %7543 = vmatpush1.bf16.msra.mxu0 0
      %7544 = vmatprep.subr.bf16.mxu0 0
      %7545 = vmatpush1.bf16.msra.mxu0 0
      %7546 = vmatprep.subr.bf16.mxu0 0
      %7547 = vmatpush1.bf16.msra.mxu0 0
      %7548 = vmatprep.subr.bf16.mxu0 0
      %7549 = vmatpush1.bf16.msra.mxu0 0
      %7550 = vmatprep.subr.bf16.mxu0 0
      %7551 = vmatpush1.bf16.msra.mxu0 0
      %7552 = vmatprep.mubr.bf16.mxu0 0
      %7553 = vmatmul.mubr.bf16.gmra.mrb[0].mxu0 %v7440
      %v7554 = vpop.f32.mrb[0].mxu0
      %v7555 = vadd.f32 0.0, %v7554
      %v7556 = vpop.f32.mrb[0].mxu0
      %v7557 = vpop.f32.mrb[0].mxu0
      %v7558 = vadd.f32 0.0, %v7557
      %v7559 = vpop.f32.mrb[0].mxu0
      %7560 = vmatprep.mubr.bf16.mxu0 0
      %7561 = vmatmul.mubr.bf16.gmra.mrb[0].mxu0 %v7441
      %v7562 = vpop.f32.mrb[0].mxu0
      %v7563 = vadd.f32 0.0, %v7562
      %v7564 = vpop.f32.mrb[0].mxu0
      %v7565 = vpop.f32.mrb[0].mxu0
      %v7566 = vadd.f32 0.0, %v7565
      %v7567 = vpop.f32.mrb[0].mxu0
      %7568 = vmatprep.mubr.bf16.mxu0 0
      %7569 = vmatmul.mubr.bf16.gmra.mrb[0].mxu0 %v7442
      %v7570 = vpop.f32.mrb[0].mxu0
      %v7571 = vadd.f32 0.0, %v7570
      %v7572 = vpop.f32.mrb[0].mxu0
      %v7573 = vpop.f32.mrb[0].mxu0
      %v7574 = vadd.f32 0.0, %v7573
      %v7575 = vpop.f32.mrb[0].mxu0
      %7576 = vmatprep.mubr.bf16.mxu0 0
      %7577 = vmatmul.mubr.bf16.gmra.mrb[0].mxu0 %v7443
      %v7578 = vpop.f32.mrb[0].mxu0
      %v7579 = vadd.f32 0.0, %v7578
      %v7580 = vpop.f32.mrb[0].mxu0
      %v7581 = vpop.f32.mrb[0].mxu0
      %v7582 = vadd.f32 0.0, %v7581
      %v7583 = vpop.f32.mrb[0].mxu0
      %7584 = vmatprep.mubr.bf16.mxu0 0
      %7585 = vmatmul.mubr.bf16.gmra.mrb[0].mxu0 %v7444
      %v7586 = vpop.f32.mrb[0].mxu0
      %v7587 = vadd.f32 0.0, %v7586
      %v7588 = vpop.f32.mrb[0].mxu0
      %v7589 = vpop.f32.mrb[0].mxu0
      %v7590 = vadd.f32 0.0, %v7589
      %v7591 = vpop.f32.mrb[0].mxu0
      %7592 = vmatprep.mubr.bf16.mxu0 0
      %7593 = vmatmul.mubr.bf16.gmra.mrb[0].mxu0 %v7445
      %v7594 = vpop.f32.mrb[0].mxu0
      %v7595 = vadd.f32 0.0, %v7594
      %v7596 = vpop.f32.mrb[0].mxu0
      %v7597 = vpop.f32.mrb[0].mxu0
      %v7598 = vadd.f32 0.0, %v7597
      %v7599 = vpop.f32.mrb[0].mxu0
      %7600 = vmatprep.mubr.bf16.mxu0 0
      %7601 = vmatmul.mubr.bf16.gmra.mrb[0].mxu0 %v7446
      %v7602 = vpop.f32.mrb[0].mxu0
      %v7603 = vadd.f32 0.0, %v7602
      %v7604 = vpop.f32.mrb[0].mxu0
      %v7605 = vpop.f32.mrb[0].mxu0
      %v7606 = vadd.f32 0.0, %v7605
      %v7607 = vpop.f32.mrb[0].mxu0
      %7608 = vmatprep.mubr.bf16.mxu0 0
      %7609 = vmatmul.mubr.bf16.gmra.mrb[0].mxu0 %v7447
      %v7610 = vpop.f32.mrb[0].mxu0
      %v7611 = vadd.f32 0.0, %v7610
      %v7612 = vpop.f32.mrb[0].mxu0
      %v7613 = vpop.f32.mrb[0].mxu0
      %v7614 = vadd.f32 0.0, %v7613
      %v7615 = vpop.f32.mrb[0].mxu0
      %7616 = vmatprep.mubr.bf16.mxu0 0
      %7617 = vmatmul.mubr.bf16.gmra.mrb[0].mxu0 %v7448
      %v7618 = vpop.f32.mrb[0].mxu0
      %v7619 = vadd.f32 0.0, %v7618
      %v7620 = vpop.f32.mrb[0].mxu0
      %v7621 = vpop.f32.mrb[0].mxu0
      %v7622 = vadd.f32 0.0, %v7621
      %v7623 = vpop.f32.mrb[0].mxu0
      %7624 = vmatprep.mubr.bf16.mxu0 0
      %7625 = vmatmul.mubr.bf16.gmra.mrb[0].mxu0 %v7449
      %v7626 = vpop.f32.mrb[0].mxu0
      %v7627 = vadd.f32 0.0, %v7626
      %v7628 = vpop.f32.mrb[0].mxu0
      %v7629 = vpop.f32.mrb[0].mxu0
      %v7630 = vadd.f32 0.0, %v7629
      %v7631 = vpop.f32.mrb[0].mxu0
      %7632 = vmatprep.mubr.bf16.mxu0 0
      %7633 = vmatmul.mubr.bf16.gmra.mrb[0].mxu0 %v7450
      %v7634 = vpop.f32.mrb[0].mxu0
      %v7635 = vadd.f32 0.0, %v7634
      %v7636 = vpop.f32.mrb[0].mxu0
      %v7637 = vpop.f32.mrb[0].mxu0
      %v7638 = vadd.f32 0.0, %v7637
      %v7639 = vpop.f32.mrb[0].mxu0
      %7640 = vmatprep.mubr.bf16.mxu0 0
      %7641 = vmatmul.mubr.bf16.gmra.mrb[0].mxu0 %v7451
      %v7642 = vpop.f32.mrb[0].mxu0
      %v7643 = vadd.f32 0.0, %v7642
      %v7644 = vpop.f32.mrb[0].mxu0
      %v7645 = vpop.f32.mrb[0].mxu0
      %v7646 = vadd.f32 0.0, %v7645
      %v7647 = vpop.f32.mrb[0].mxu0
      %7648 = vmatprep.mubr.bf16.mxu0 0
      %7649 = vmatmul.mubr.bf16.gmra.mrb[0].mxu0 %v7452
      %v7650 = vpop.f32.mrb[0].mxu0
      %v7651 = vadd.f32 0.0, %v7650
      %v7652 = vpop.f32.mrb[0].mxu0
      %v7653 = vpop.f32.mrb[0].mxu0
      %v7654 = vadd.f32 0.0, %v7653
      %v7655 = vpop.f32.mrb[0].mxu0
      %7656 = vmatprep.mubr.bf16.mxu0 0
      %7657 = vmatmul.mubr.bf16.gmra.mrb[0].mxu0 %v7453
      %v7658 = vpop.f32.mrb[0].mxu0
      %v7659 = vadd.f32 0.0, %v7658
      %v7660 = vpop.f32.mrb[0].mxu0
      %v7661 = vpop.f32.mrb[0].mxu0
      %v7662 = vadd.f32 0.0, %v7661
      %v7663 = vpop.f32.mrb[0].mxu0
      %7664 = vmatprep.mubr.bf16.mxu0 0
      %7665 = vmatmul.mubr.bf16.gmra.mrb[0].mxu0 %v7454
      %v7666 = vpop.f32.mrb[0].mxu0
      %v7667 = vadd.f32 0.0, %v7666
      %v7668 = vpop.f32.mrb[0].mxu0
      %v7669 = vpop.f32.mrb[0].mxu0
      %v7670 = vadd.f32 0.0, %v7669
      %v7671 = vpop.f32.mrb[0].mxu0
      %7672 = vmatprep.mubr.bf16.mxu0 0
      %7673 = vmatmul.mubr.bf16.gmra.mrb[0].mxu0 %v7455
      %v7674 = vpop.f32.mrb[0].mxu0
      %v7675 = vadd.f32 0.0, %v7674
      %v7676 = vpop.f32.mrb[0].mxu0
      %v7677 = vpop.f32.mrb[0].mxu0
      %v7678 = vadd.f32 0.0, %v7677
      %v7679 = vpop.f32.mrb[0].mxu0
      %7680 = vdwg.mxu0
      %v7681 = vadd.f32 %v7105, %v7555
      %v7682 = vadd.f32 %v7108, %v7558
      %v7683 = vadd.f32 %v7113, %v7563
      %v7684 = vadd.f32 %v7116, %v7566
      %v7685 = vadd.f32 %v7121, %v7571
      %v7686 = vadd.f32 %v7124, %v7574
      %v7687 = vadd.f32 %v7129, %v7579
      %v7688 = vadd.f32 %v7132, %v7582
      %v7689 = vadd.f32 %v7137, %v7587
      %v7690 = vadd.f32 %v7140, %v7590
      %v7691 = vadd.f32 %v7145, %v7595
      %v7692 = vadd.f32 %v7148, %v7598
      %v7693 = vadd.f32 %v7153, %v7603
      %v7694 = vadd.f32 %v7156, %v7606
      %v7695 = vadd.f32 %v7161, %v7611
      %v7696 = vadd.f32 %v7164, %v7614
      %v7697 = vadd.f32 %v7169, %v7619
      %v7698 = vadd.f32 %v7172, %v7622
      %v7699 = vadd.f32 %v7177, %v7627
      %v7700 = vadd.f32 %v7180, %v7630
      %v7701 = vadd.f32 %v7185, %v7635
      %v7702 = vadd.f32 %v7188, %v7638
      %v7703 = vadd.f32 %v7193, %v7643
      %v7704 = vadd.f32 %v7196, %v7646
      %v7705 = vadd.f32 %v7201, %v7651
      %v7706 = vadd.f32 %v7204, %v7654
      %v7707 = vadd.f32 %v7209, %v7659
      %v7708 = vadd.f32 %v7212, %v7662
      %v7709 = vadd.f32 %v7217, %v7667
      %v7710 = vadd.f32 %v7220, %v7670
      %v7711 = vadd.f32 %v7225, %v7675
      %v7712 = vadd.f32 %v7228, %v7678
      %v7713 = vld [vmem:[%s5639] sm:$0xf]
      %v7714 = vld [vmem:[%s5639 + $0x4] sm:$0xf]
      %v7715 = vld [vmem:[%s5639 + $0xc] sm:$0xf]
      %v7716 = vld [vmem:[%s5639 + $0x10] sm:$0xf]
      %v7717 = vld [vmem:[%s5639 + $0x18] sm:$0xf]
      %v7718 = vld [vmem:[%s5639 + $0x1c] sm:$0xf]
      %v7719 = vld [vmem:[%s5639 + $0x24] sm:$0xf]
      %v7720 = vld [vmem:[%s5639 + $0x28] sm:$0xf]
      %v7721 = vld [vmem:[%s5639 + $0x30] sm:$0xf]
      %v7722 = vld [vmem:[%s5639 + $0x34] sm:$0xf]
      %v7723 = vld [vmem:[%s5639 + $0x3c] sm:$0xf]
      %v7724 = vld [vmem:[%s5639 + $0x40] sm:$0xf]
      %v7725 = vld [vmem:[%s5639 + $0x48] sm:$0xf]
      %v7726 = vld [vmem:[%s5639 + $0x4c] sm:$0xf]
      %v7727 = vld [vmem:[%s5639 + $0x54] sm:$0xf]
      %v7728 = vld [vmem:[%s5639 + $0x58] sm:$0xf]
      %v7729 = vld [vmem:[%s5639 + $0x60] sm:$0xf]
      %v7730 = vld [vmem:[%s5639 + $0x64] sm:$0xf]
      %v7731 = vld [vmem:[%s5639 + $0x6c] sm:$0xf]
      %v7732 = vld [vmem:[%s5639 + $0x70] sm:$0xf]
      %v7733 = vld [vmem:[%s5639 + $0x78] sm:$0xf]
      %v7734 = vld [vmem:[%s5639 + $0x7c] sm:$0xf]
      %v7735 = vld [vmem:[%s5639 + $0x84] sm:$0xf]
      %v7736 = vld [vmem:[%s5639 + $0x88] sm:$0xf]
      %v7737 = vld [vmem:[%s5639 + $0x90] sm:$0xf]
      %v7738 = vld [vmem:[%s5639 + $0x94] sm:$0xf]
      %v7739 = vld [vmem:[%s5639 + $0x9c] sm:$0xf]
      %v7740 = vld [vmem:[%s5639 + $0xa0] sm:$0xf]
      %v7741 = vld [vmem:[%s5639 + $0xa8] sm:$0xf]
      %v7742 = vld [vmem:[%s5639 + $0xac] sm:$0xf]
      %v7743 = vld [vmem:[%s5639 + $0xb4] sm:$0xf]
      %v7744 = vld [vmem:[%s5639 + $0xb8] sm:$0xf]
      %s7745 = scalar_lea.vmem %s2, 192
      %v7746 = vld [vmem:[%s7745] sm:$0xf]
      %v7747 = vld [vmem:[%s7745 + $0x4] sm:$0xf]
      %v7748 = vld [vmem:[%s7745 + $0x8] sm:$0xf]
      %v7749 = vld [vmem:[%s7745 + $0xc] sm:$0xf]
      %v7750 = vld [vmem:[%s7745 + $0x10] sm:$0xf]
      %v7751 = vld [vmem:[%s7745 + $0x14] sm:$0xf]
      %v7752 = vld [vmem:[%s7745 + $0x18] sm:$0xf]
      %v7753 = vld [vmem:[%s7745 + $0x1c] sm:$0xf]
      %v7754 = vld [vmem:[%s7745 + $0x20] sm:$0xf]
      %v7755 = vld [vmem:[%s7745 + $0x24] sm:$0xf]
      %v7756 = vld [vmem:[%s7745 + $0x28] sm:$0xf]
      %v7757 = vld [vmem:[%s7745 + $0x2c] sm:$0xf]
      %v7758 = vld [vmem:[%s7745 + $0x30] sm:$0xf]
      %v7759 = vld [vmem:[%s7745 + $0x34] sm:$0xf]
      %v7760 = vld [vmem:[%s7745 + $0x38] sm:$0xf]
      %v7761 = vld [vmem:[%s7745 + $0x3c] sm:$0xf]
      %v7794 = vunpack.c.l.b16 %v7713
      %v7795 = vunpack.c.l.b16 %v7714
      %v7796 = vunpack.c.l.b16 %v7715
      %v7797 = vunpack.c.l.b16 %v7716
      %v7798 = vunpack.c.l.b16 %v7717
      %v7799 = vunpack.c.l.b16 %v7718
      %v7800 = vunpack.c.l.b16 %v7719
      %v7801 = vunpack.c.l.b16 %v7720
      %v7802 = vunpack.c.l.b16 %v7721
      %v7803 = vunpack.c.l.b16 %v7722
      %v7804 = vunpack.c.l.b16 %v7723
      %v7805 = vunpack.c.l.b16 %v7724
      %v7806 = vunpack.c.l.b16 %v7725
      %v7807 = vunpack.c.l.b16 %v7726
      %v7808 = vunpack.c.l.b16 %v7727
      %v7809 = vunpack.c.l.b16 %v7728
      %v7810 = vunpack.c.l.b16 %v7729
      %v7811 = vunpack.c.l.b16 %v7730
      %v7812 = vunpack.c.l.b16 %v7731
      %v7813 = vunpack.c.l.b16 %v7732
      %v7814 = vunpack.c.l.b16 %v7733
      %v7815 = vunpack.c.l.b16 %v7734
      %v7816 = vunpack.c.l.b16 %v7735
      %v7817 = vunpack.c.l.b16 %v7736
      %v7818 = vunpack.c.l.b16 %v7737
      %v7819 = vunpack.c.l.b16 %v7738
      %v7820 = vunpack.c.l.b16 %v7739
      %v7821 = vunpack.c.l.b16 %v7740
      %v7822 = vunpack.c.l.b16 %v7741
      %v7823 = vunpack.c.l.b16 %v7742
      %v7824 = vunpack.c.l.b16 %v7743
      %v7825 = vunpack.c.l.b16 %v7744
      %v7826 = vpack.c.b16 %v7795, %v7794
      %v7827 = vpack.c.b16 %v7797, %v7796
      %v7828 = vpack.c.b16 %v7799, %v7798
      %v7829 = vpack.c.b16 %v7801, %v7800
      %v7830 = vpack.c.b16 %v7803, %v7802
      %v7831 = vpack.c.b16 %v7805, %v7804
      %v7832 = vpack.c.b16 %v7807, %v7806
      %v7833 = vpack.c.b16 %v7809, %v7808
      %v7834 = vpack.c.b16 %v7811, %v7810
      %v7835 = vpack.c.b16 %v7813, %v7812
      %v7836 = vpack.c.b16 %v7815, %v7814
      %v7837 = vpack.c.b16 %v7817, %v7816
      %v7838 = vpack.c.b16 %v7819, %v7818
      %v7839 = vpack.c.b16 %v7821, %v7820
      %v7840 = vpack.c.b16 %v7823, %v7822
      %v7841 = vpack.c.b16 %v7825, %v7824
      %v7874 = vunpack.c.l.b16 %v7746
      %v7875 = vunpack.c.l.b16 %v7747
      %v7876 = vunpack.c.l.b16 %v7748
      %v7877 = vunpack.c.l.b16 %v7749
      %v7878 = vunpack.c.l.b16 %v7750
      %v7879 = vunpack.c.l.b16 %v7751
      %v7880 = vunpack.c.l.b16 %v7752
      %v7881 = vunpack.c.l.b16 %v7753
      %v7882 = vunpack.c.l.b16 %v7754
      %v7883 = vunpack.c.l.b16 %v7755
      %v7884 = vunpack.c.l.b16 %v7756
      %v7885 = vunpack.c.l.b16 %v7757
      %v7886 = vunpack.c.l.b16 %v7758
      %v7887 = vunpack.c.l.b16 %v7759
      %v7888 = vunpack.c.l.b16 %v7760
      %v7889 = vunpack.c.l.b16 %v7761
      %v7890 = vpack.c.b16 %v7875, %v7874
      %v7891 = vpack.c.b16 %v7877, %v7876
      %v7892 = vpack.c.b16 %v7879, %v7878
      %v7893 = vpack.c.b16 %v7881, %v7880
      %v7894 = vpack.c.b16 %v7883, %v7882
      %v7895 = vpack.c.b16 %v7885, %v7884
      %v7896 = vpack.c.b16 %v7887, %v7886
      %v7897 = vpack.c.b16 %v7889, %v7888
      %7906 = vmatprep.subr.bf16.mxu0 0
      %7907 = vmatpush1.bf16.msra.mxu0 %v7890
      %7908 = vmatprep.subr.bf16.mxu0 0
      %7909 = vmatpush1.bf16.msra.mxu0 %v7891
      %7910 = vmatprep.subr.bf16.mxu0 0
      %7911 = vmatpush1.bf16.msra.mxu0 %v7892
      %7912 = vmatprep.subr.bf16.mxu0 0
      %7913 = vmatpush1.bf16.msra.mxu0 %v7893
      %7914 = vmatprep.subr.bf16.mxu0 0
      %7915 = vmatpush1.bf16.msra.mxu0 %v7894
      %7916 = vmatprep.subr.bf16.mxu0 0
      %7917 = vmatpush1.bf16.msra.mxu0 %v7895
      %7918 = vmatprep.subr.bf16.mxu0 0
      %7919 = vmatpush1.bf16.msra.mxu0 %v7896
      %7920 = vmatprep.subr.bf16.mxu0 0
      %7921 = vmatpush1.bf16.msra.mxu0 %v7897
      %7922 = vmatprep.subr.bf16.mxu0 0
      %7923 = vmatpush1.bf16.msra.mxu0 0
      %7924 = vmatprep.subr.bf16.mxu0 0
      %7925 = vmatpush1.bf16.msra.mxu0 0
      %7926 = vmatprep.subr.bf16.mxu0 0
      %7927 = vmatpush1.bf16.msra.mxu0 0
      %7928 = vmatprep.subr.bf16.mxu0 0
      %7929 = vmatpush1.bf16.msra.mxu0 0
      %7930 = vmatprep.subr.bf16.mxu0 0
      %7931 = vmatpush1.bf16.msra.mxu0 0
      %7932 = vmatprep.subr.bf16.mxu0 0
      %7933 = vmatpush1.bf16.msra.mxu0 0
      %7934 = vmatprep.subr.bf16.mxu0 0
      %7935 = vmatpush1.bf16.msra.mxu0 0
      %7936 = vmatprep.subr.bf16.mxu0 0
      %7937 = vmatpush1.bf16.msra.mxu0 0
      %7938 = vmatprep.mubr.bf16.mxu0 0
      %7939 = vmatmul.mubr.bf16.gmra.mrb[0].mxu0 %v7826
      %v7940 = vpop.f32.mrb[0].mxu0
      %v7941 = vadd.f32 0.0, %v7940
      %v7942 = vpop.f32.mrb[0].mxu0
      %v7943 = vpop.f32.mrb[0].mxu0
      %v7944 = vadd.f32 0.0, %v7943
      %v7945 = vpop.f32.mrb[0].mxu0
      %7946 = vmatprep.mubr.bf16.mxu0 0
      %7947 = vmatmul.mubr.bf16.gmra.mrb[0].mxu0 %v7827
      %v7948 = vpop.f32.mrb[0].mxu0
      %v7949 = vadd.f32 0.0, %v7948
      %v7950 = vpop.f32.mrb[0].mxu0
      %v7951 = vpop.f32.mrb[0].mxu0
      %v7952 = vadd.f32 0.0, %v7951
      %v7953 = vpop.f32.mrb[0].mxu0
      %7954 = vmatprep.mubr.bf16.mxu0 0
      %7955 = vmatmul.mubr.bf16.gmra.mrb[0].mxu0 %v7828
      %v7956 = vpop.f32.mrb[0].mxu0
      %v7957 = vadd.f32 0.0, %v7956
      %v7958 = vpop.f32.mrb[0].mxu0
      %v7959 = vpop.f32.mrb[0].mxu0
      %v7960 = vadd.f32 0.0, %v7959
      %v7961 = vpop.f32.mrb[0].mxu0
      %7962 = vmatprep.mubr.bf16.mxu0 0
      %7963 = vmatmul.mubr.bf16.gmra.mrb[0].mxu0 %v7829
      %v7964 = vpop.f32.mrb[0].mxu0
      %v7965 = vadd.f32 0.0, %v7964
      %v7966 = vpop.f32.mrb[0].mxu0
      %v7967 = vpop.f32.mrb[0].mxu0
      %v7968 = vadd.f32 0.0, %v7967
      %v7969 = vpop.f32.mrb[0].mxu0
      %7970 = vmatprep.mubr.bf16.mxu0 0
      %7971 = vmatmul.mubr.bf16.gmra.mrb[0].mxu0 %v7830
      %v7972 = vpop.f32.mrb[0].mxu0
      %v7973 = vadd.f32 0.0, %v7972
      %v7974 = vpop.f32.mrb[0].mxu0
      %v7975 = vpop.f32.mrb[0].mxu0
      %v7976 = vadd.f32 0.0, %v7975
      %v7977 = vpop.f32.mrb[0].mxu0
      %7978 = vmatprep.mubr.bf16.mxu0 0
      %7979 = vmatmul.mubr.bf16.gmra.mrb[0].mxu0 %v7831
      %v7980 = vpop.f32.mrb[0].mxu0
      %v7981 = vadd.f32 0.0, %v7980
      %v7982 = vpop.f32.mrb[0].mxu0
      %v7983 = vpop.f32.mrb[0].mxu0
      %v7984 = vadd.f32 0.0, %v7983
      %v7985 = vpop.f32.mrb[0].mxu0
      %7986 = vmatprep.mubr.bf16.mxu0 0
      %7987 = vmatmul.mubr.bf16.gmra.mrb[0].mxu0 %v7832
      %v7988 = vpop.f32.mrb[0].mxu0
      %v7989 = vadd.f32 0.0, %v7988
      %v7990 = vpop.f32.mrb[0].mxu0
      %v7991 = vpop.f32.mrb[0].mxu0
      %v7992 = vadd.f32 0.0, %v7991
      %v7993 = vpop.f32.mrb[0].mxu0
      %7994 = vmatprep.mubr.bf16.mxu0 0
      %7995 = vmatmul.mubr.bf16.gmra.mrb[0].mxu0 %v7833
      %v7996 = vpop.f32.mrb[0].mxu0
      %v7997 = vadd.f32 0.0, %v7996
      %v7998 = vpop.f32.mrb[0].mxu0
      %v7999 = vpop.f32.mrb[0].mxu0
      %v8000 = vadd.f32 0.0, %v7999
      %v8001 = vpop.f32.mrb[0].mxu0
      %8002 = vmatprep.mubr.bf16.mxu0 0
      %8003 = vmatmul.mubr.bf16.gmra.mrb[0].mxu0 %v7834
      %v8004 = vpop.f32.mrb[0].mxu0
      %v8005 = vadd.f32 0.0, %v8004
      %v8006 = vpop.f32.mrb[0].mxu0
      %v8007 = vpop.f32.mrb[0].mxu0
      %v8008 = vadd.f32 0.0, %v8007
      %v8009 = vpop.f32.mrb[0].mxu0
      %8010 = vmatprep.mubr.bf16.mxu0 0
      %8011 = vmatmul.mubr.bf16.gmra.mrb[0].mxu0 %v7835
      %v8012 = vpop.f32.mrb[0].mxu0
      %v8013 = vadd.f32 0.0, %v8012
      %v8014 = vpop.f32.mrb[0].mxu0
      %v8015 = vpop.f32.mrb[0].mxu0
      %v8016 = vadd.f32 0.0, %v8015
      %v8017 = vpop.f32.mrb[0].mxu0
      %8018 = vmatprep.mubr.bf16.mxu0 0
      %8019 = vmatmul.mubr.bf16.gmra.mrb[0].mxu0 %v7836
      %v8020 = vpop.f32.mrb[0].mxu0
      %v8021 = vadd.f32 0.0, %v8020
      %v8022 = vpop.f32.mrb[0].mxu0
      %v8023 = vpop.f32.mrb[0].mxu0
      %v8024 = vadd.f32 0.0, %v8023
      %v8025 = vpop.f32.mrb[0].mxu0
      %8026 = vmatprep.mubr.bf16.mxu0 0
      %8027 = vmatmul.mubr.bf16.gmra.mrb[0].mxu0 %v7837
      %v8028 = vpop.f32.mrb[0].mxu0
      %v8029 = vadd.f32 0.0, %v8028
      %v8030 = vpop.f32.mrb[0].mxu0
      %v8031 = vpop.f32.mrb[0].mxu0
      %v8032 = vadd.f32 0.0, %v8031
      %v8033 = vpop.f32.mrb[0].mxu0
      %8034 = vmatprep.mubr.bf16.mxu0 0
      %8035 = vmatmul.mubr.bf16.gmra.mrb[0].mxu0 %v7838
      %v8036 = vpop.f32.mrb[0].mxu0
      %v8037 = vadd.f32 0.0, %v8036
      %v8038 = vpop.f32.mrb[0].mxu0
      %v8039 = vpop.f32.mrb[0].mxu0
      %v8040 = vadd.f32 0.0, %v8039
      %v8041 = vpop.f32.mrb[0].mxu0
      %8042 = vmatprep.mubr.bf16.mxu0 0
      %8043 = vmatmul.mubr.bf16.gmra.mrb[0].mxu0 %v7839
      %v8044 = vpop.f32.mrb[0].mxu0
      %v8045 = vadd.f32 0.0, %v8044
      %v8046 = vpop.f32.mrb[0].mxu0
      %v8047 = vpop.f32.mrb[0].mxu0
      %v8048 = vadd.f32 0.0, %v8047
      %v8049 = vpop.f32.mrb[0].mxu0
      %8050 = vmatprep.mubr.bf16.mxu0 0
      %8051 = vmatmul.mubr.bf16.gmra.mrb[0].mxu0 %v7840
      %v8052 = vpop.f32.mrb[0].mxu0
      %v8053 = vadd.f32 0.0, %v8052
      %v8054 = vpop.f32.mrb[0].mxu0
      %v8055 = vpop.f32.mrb[0].mxu0
      %v8056 = vadd.f32 0.0, %v8055
      %v8057 = vpop.f32.mrb[0].mxu0
      %8058 = vmatprep.mubr.bf16.mxu0 0
      %8059 = vmatmul.mubr.bf16.gmra.mrb[0].mxu0 %v7841
      %v8060 = vpop.f32.mrb[0].mxu0
      %v8061 = vadd.f32 0.0, %v8060
      %v8062 = vpop.f32.mrb[0].mxu0
      %v8063 = vpop.f32.mrb[0].mxu0
      %v8064 = vadd.f32 0.0, %v8063
      %v8065 = vpop.f32.mrb[0].mxu0
      %8066 = vdwg.mxu0
      %v8067 = vadd.f32 %v7681, %v7941
      %v8068 = vadd.f32 %v7682, %v7944
      %v8069 = vadd.f32 %v7683, %v7949
      %v8070 = vadd.f32 %v7684, %v7952
      %v8071 = vadd.f32 %v7685, %v7957
      %v8072 = vadd.f32 %v7686, %v7960
      %v8073 = vadd.f32 %v7687, %v7965
      %v8074 = vadd.f32 %v7688, %v7968
      %v8075 = vadd.f32 %v7689, %v7973
      %v8076 = vadd.f32 %v7690, %v7976
      %v8077 = vadd.f32 %v7691, %v7981
      %v8078 = vadd.f32 %v7692, %v7984
      %v8079 = vadd.f32 %v7693, %v7989
      %v8080 = vadd.f32 %v7694, %v7992
      %v8081 = vadd.f32 %v7695, %v7997
      %v8082 = vadd.f32 %v7696, %v8000
      %v8083 = vadd.f32 %v7697, %v8005
      %v8084 = vadd.f32 %v7698, %v8008
      %v8085 = vadd.f32 %v7699, %v8013
      %v8086 = vadd.f32 %v7700, %v8016
      %v8087 = vadd.f32 %v7701, %v8021
      %v8088 = vadd.f32 %v7702, %v8024
      %v8089 = vadd.f32 %v7703, %v8029
      %v8090 = vadd.f32 %v7704, %v8032
      %v8091 = vadd.f32 %v7705, %v8037
      %v8092 = vadd.f32 %v7706, %v8040
      %v8093 = vadd.f32 %v7707, %v8045
      %v8094 = vadd.f32 %v7708, %v8048
      %v8095 = vadd.f32 %v7709, %v8053
      %v8096 = vadd.f32 %v7710, %v8056
      %v8097 = vadd.f32 %v7711, %v8061
      %v8098 = vadd.f32 %v7712, %v8064
      %v8099 = vld [vmem:[%s5639] sm:$0xf]
      %v8100 = vld [vmem:[%s5639 + $0x4] sm:$0xf]
      %v8101 = vld [vmem:[%s5639 + $0x8] sm:$0x1]
      %v8102 = vld [vmem:[%s5639 + $0xc] sm:$0xf]
      %v8103 = vld [vmem:[%s5639 + $0x10] sm:$0xf]
      %v8104 = vld [vmem:[%s5639 + $0x14] sm:$0x1]
      %v8105 = vld [vmem:[%s5639 + $0x18] sm:$0xf]
      %v8106 = vld [vmem:[%s5639 + $0x1c] sm:$0xf]
      %v8107 = vld [vmem:[%s5639 + $0x20] sm:$0x1]
      %v8108 = vld [vmem:[%s5639 + $0x24] sm:$0xf]
      %v8109 = vld [vmem:[%s5639 + $0x28] sm:$0xf]
      %v8110 = vld [vmem:[%s5639 + $0x2c] sm:$0x1]
      %v8111 = vld [vmem:[%s5639 + $0x30] sm:$0xf]
      %v8112 = vld [vmem:[%s5639 + $0x34] sm:$0xf]
      %v8113 = vld [vmem:[%s5639 + $0x38] sm:$0x1]
      %v8114 = vld [vmem:[%s5639 + $0x3c] sm:$0xf]
      %v8115 = vld [vmem:[%s5639 + $0x40] sm:$0xf]
      %v8116 = vld [vmem:[%s5639 + $0x44] sm:$0x1]
      %v8117 = vld [vmem:[%s5639 + $0x48] sm:$0xf]
      %v8118 = vld [vmem:[%s5639 + $0x4c] sm:$0xf]
      %v8119 = vld [vmem:[%s5639 + $0x50] sm:$0x1]
      %v8120 = vld [vmem:[%s5639 + $0x54] sm:$0xf]
      %v8121 = vld [vmem:[%s5639 + $0x58] sm:$0xf]
      %v8122 = vld [vmem:[%s5639 + $0x5c] sm:$0x1]
      %v8123 = vld [vmem:[%s5639 + $0x60] sm:$0xf]
      %v8124 = vld [vmem:[%s5639 + $0x64] sm:$0xf]
      %v8125 = vld [vmem:[%s5639 + $0x68] sm:$0x1]
      %v8126 = vld [vmem:[%s5639 + $0x6c] sm:$0xf]
      %v8127 = vld [vmem:[%s5639 + $0x70] sm:$0xf]
      %v8128 = vld [vmem:[%s5639 + $0x74] sm:$0x1]
      %v8129 = vld [vmem:[%s5639 + $0x78] sm:$0xf]
      %v8130 = vld [vmem:[%s5639 + $0x7c] sm:$0xf]
      %v8131 = vld [vmem:[%s5639 + $0x80] sm:$0x1]
      %v8132 = vld [vmem:[%s5639 + $0x84] sm:$0xf]
      %v8133 = vld [vmem:[%s5639 + $0x88] sm:$0xf]
      %v8134 = vld [vmem:[%s5639 + $0x8c] sm:$0x1]
      %v8135 = vld [vmem:[%s5639 + $0x90] sm:$0xf]
      %v8136 = vld [vmem:[%s5639 + $0x94] sm:$0xf]
      %v8137 = vld [vmem:[%s5639 + $0x98] sm:$0x1]
      %v8138 = vld [vmem:[%s5639 + $0x9c] sm:$0xf]
      %v8139 = vld [vmem:[%s5639 + $0xa0] sm:$0xf]
      %v8140 = vld [vmem:[%s5639 + $0xa4] sm:$0x1]
      %v8141 = vld [vmem:[%s5639 + $0xa8] sm:$0xf]
      %v8142 = vld [vmem:[%s5639 + $0xac] sm:$0xf]
      %v8143 = vld [vmem:[%s5639 + $0xb0] sm:$0x1]
      %v8144 = vld [vmem:[%s5639 + $0xb4] sm:$0xf]
      %v8145 = vld [vmem:[%s5639 + $0xb8] sm:$0xf]
      %v8146 = vld [vmem:[%s5639 + $0xbc] sm:$0x1]
      %v8148 = vshrl.u32 %v8099, 16
      %v8150 = vrot.slane %v8148, 4
      %v8151 = vshll.u32 %v8099, 16
      %v8153 = vrot.slane %v8151, 5
      %v8154 = vor.u32 %v8150, %v8153
      %v8155 = vrot.slane %v8154, 4
      %v8157 = vshll.u32 %v8100, 16
      %v8159 = vrot.slane %v8157, 5
      %v8160 = vsel %vm900, %v8155, %v8159
      %v8161 = vshrl.u32 %v8100, 16
      %v8163 = vrot.slane %v8161, 4
      %v8164 = vor.u32 %v8163, %v8159
      %v8165 = vrot.slane %v8164, 4
      %v8167 = vshll.u32 %v8101, 16
      %v8169 = vrot.slane %v8167, 5
      %v8170 = vsel %vm900, %v8165, %v8169
      %v8172 = vshrl.u32 %v8102, 16
      %v8174 = vrot.slane %v8172, 4
      %v8175 = vshll.u32 %v8102, 16
      %v8177 = vrot.slane %v8175, 5
      %v8178 = vor.u32 %v8174, %v8177
      %v8179 = vrot.slane %v8178, 4
      %v8181 = vshll.u32 %v8103, 16
      %v8183 = vrot.slane %v8181, 5
      %v8184 = vsel %vm900, %v8179, %v8183
      %v8185 = vshrl.u32 %v8103, 16
      %v8187 = vrot.slane %v8185, 4
      %v8188 = vor.u32 %v8187, %v8183
      %v8189 = vrot.slane %v8188, 4
      %v8191 = vshll.u32 %v8104, 16
      %v8193 = vrot.slane %v8191, 5
      %v8194 = vsel %vm900, %v8189, %v8193
      %v8196 = vshrl.u32 %v8105, 16
      %v8198 = vrot.slane %v8196, 4
      %v8199 = vshll.u32 %v8105, 16
      %v8201 = vrot.slane %v8199, 5
      %v8202 = vor.u32 %v8198, %v8201
      %v8203 = vrot.slane %v8202, 4
      %v8205 = vshll.u32 %v8106, 16
      %v8207 = vrot.slane %v8205, 5
      %v8208 = vsel %vm900, %v8203, %v8207
      %v8209 = vshrl.u32 %v8106, 16
      %v8211 = vrot.slane %v8209, 4
      %v8212 = vor.u32 %v8211, %v8207
      %v8213 = vrot.slane %v8212, 4
      %v8215 = vshll.u32 %v8107, 16
      %v8217 = vrot.slane %v8215, 5
      %v8218 = vsel %vm900, %v8213, %v8217
      %v8220 = vshrl.u32 %v8108, 16
      %v8222 = vrot.slane %v8220, 4
      %v8223 = vshll.u32 %v8108, 16
      %v8225 = vrot.slane %v8223, 5
      %v8226 = vor.u32 %v8222, %v8225
      %v8227 = vrot.slane %v8226, 4
      %v8229 = vshll.u32 %v8109, 16
      %v8231 = vrot.slane %v8229, 5
      %v8232 = vsel %vm900, %v8227, %v8231
      %v8233 = vshrl.u32 %v8109, 16
      %v8235 = vrot.slane %v8233, 4
      %v8236 = vor.u32 %v8235, %v8231
      %v8237 = vrot.slane %v8236, 4
      %v8239 = vshll.u32 %v8110, 16
      %v8241 = vrot.slane %v8239, 5
      %v8242 = vsel %vm900, %v8237, %v8241
      %v8244 = vshrl.u32 %v8111, 16
      %v8246 = vrot.slane %v8244, 4
      %v8247 = vshll.u32 %v8111, 16
      %v8249 = vrot.slane %v8247, 5
      %v8250 = vor.u32 %v8246, %v8249
      %v8251 = vrot.slane %v8250, 4
      %v8253 = vshll.u32 %v8112, 16
      %v8255 = vrot.slane %v8253, 5
      %v8256 = vsel %vm900, %v8251, %v8255
      %v8257 = vshrl.u32 %v8112, 16
      %v8259 = vrot.slane %v8257, 4
      %v8260 = vor.u32 %v8259, %v8255
      %v8261 = vrot.slane %v8260, 4
      %v8263 = vshll.u32 %v8113, 16
      %v8265 = vrot.slane %v8263, 5
      %v8266 = vsel %vm900, %v8261, %v8265
      %v8268 = vshrl.u32 %v8114, 16
      %v8270 = vrot.slane %v8268, 4
      %v8271 = vshll.u32 %v8114, 16
      %v8273 = vrot.slane %v8271, 5
      %v8274 = vor.u32 %v8270, %v8273
      %v8275 = vrot.slane %v8274, 4
      %v8277 = vshll.u32 %v8115, 16
      %v8279 = vrot.slane %v8277, 5
      %v8280 = vsel %vm900, %v8275, %v8279
      %v8281 = vshrl.u32 %v8115, 16
      %v8283 = vrot.slane %v8281, 4
      %v8284 = vor.u32 %v8283, %v8279
      %v8285 = vrot.slane %v8284, 4
      %v8287 = vshll.u32 %v8116, 16
      %v8289 = vrot.slane %v8287, 5
      %v8290 = vsel %vm900, %v8285, %v8289
      %v8292 = vshrl.u32 %v8117, 16
      %v8294 = vrot.slane %v8292, 4
      %v8295 = vshll.u32 %v8117, 16
      %v8297 = vrot.slane %v8295, 5
      %v8298 = vor.u32 %v8294, %v8297
      %v8299 = vrot.slane %v8298, 4
      %v8301 = vshll.u32 %v8118, 16
      %v8303 = vrot.slane %v8301, 5
      %v8304 = vsel %vm900, %v8299, %v8303
      %v8305 = vshrl.u32 %v8118, 16
      %v8307 = vrot.slane %v8305, 4
      %v8308 = vor.u32 %v8307, %v8303
      %v8309 = vrot.slane %v8308, 4
      %v8311 = vshll.u32 %v8119, 16
      %v8313 = vrot.slane %v8311, 5
      %v8314 = vsel %vm900, %v8309, %v8313
      %v8316 = vshrl.u32 %v8120, 16
      %v8318 = vrot.slane %v8316, 4
      %v8319 = vshll.u32 %v8120, 16
      %v8321 = vrot.slane %v8319, 5
      %v8322 = vor.u32 %v8318, %v8321
      %v8323 = vrot.slane %v8322, 4
      %v8325 = vshll.u32 %v8121, 16
      %v8327 = vrot.slane %v8325, 5
      %v8328 = vsel %vm900, %v8323, %v8327
      %v8329 = vshrl.u32 %v8121, 16
      %v8331 = vrot.slane %v8329, 4
      %v8332 = vor.u32 %v8331, %v8327
      %v8333 = vrot.slane %v8332, 4
      %v8335 = vshll.u32 %v8122, 16
      %v8337 = vrot.slane %v8335, 5
      %v8338 = vsel %vm900, %v8333, %v8337
      %v8340 = vshrl.u32 %v8123, 16
      %v8342 = vrot.slane %v8340, 4
      %v8343 = vshll.u32 %v8123, 16
      %v8345 = vrot.slane %v8343, 5
      %v8346 = vor.u32 %v8342, %v8345
      %v8347 = vrot.slane %v8346, 4
      %v8349 = vshll.u32 %v8124, 16
      %v8351 = vrot.slane %v8349, 5
      %v8352 = vsel %vm900, %v8347, %v8351
      %v8353 = vshrl.u32 %v8124, 16
      %v8355 = vrot.slane %v8353, 4
      %v8356 = vor.u32 %v8355, %v8351
      %v8357 = vrot.slane %v8356, 4
      %v8359 = vshll.u32 %v8125, 16
      %v8361 = vrot.slane %v8359, 5
      %v8362 = vsel %vm900, %v8357, %v8361
      %v8364 = vshrl.u32 %v8126, 16
      %v8366 = vrot.slane %v8364, 4
      %v8367 = vshll.u32 %v8126, 16
      %v8369 = vrot.slane %v8367, 5
      %v8370 = vor.u32 %v8366, %v8369
      %v8371 = vrot.slane %v8370, 4
      %v8373 = vshll.u32 %v8127, 16
      %v8375 = vrot.slane %v8373, 5
      %v8376 = vsel %vm900, %v8371, %v8375
      %v8377 = vshrl.u32 %v8127, 16
      %v8379 = vrot.slane %v8377, 4
      %v8380 = vor.u32 %v8379, %v8375
      %v8381 = vrot.slane %v8380, 4
      %v8383 = vshll.u32 %v8128, 16
      %v8385 = vrot.slane %v8383, 5
      %v8386 = vsel %vm900, %v8381, %v8385
      %v8388 = vshrl.u32 %v8129, 16
      %v8390 = vrot.slane %v8388, 4
      %v8391 = vshll.u32 %v8129, 16
      %v8393 = vrot.slane %v8391, 5
      %v8394 = vor.u32 %v8390, %v8393
      %v8395 = vrot.slane %v8394, 4
      %v8397 = vshll.u32 %v8130, 16
      %v8399 = vrot.slane %v8397, 5
      %v8400 = vsel %vm900, %v8395, %v8399
      %v8401 = vshrl.u32 %v8130, 16
      %v8403 = vrot.slane %v8401, 4
      %v8404 = vor.u32 %v8403, %v8399
      %v8405 = vrot.slane %v8404, 4
      %v8407 = vshll.u32 %v8131, 16
      %v8409 = vrot.slane %v8407, 5
      %v8410 = vsel %vm900, %v8405, %v8409
      %v8412 = vshrl.u32 %v8132, 16
      %v8414 = vrot.slane %v8412, 4
      %v8415 = vshll.u32 %v8132, 16
      %v8417 = vrot.slane %v8415, 5
      %v8418 = vor.u32 %v8414, %v8417
      %v8419 = vrot.slane %v8418, 4
      %v8421 = vshll.u32 %v8133, 16
      %v8423 = vrot.slane %v8421, 5
      %v8424 = vsel %vm900, %v8419, %v8423
      %v8425 = vshrl.u32 %v8133, 16
      %v8427 = vrot.slane %v8425, 4
      %v8428 = vor.u32 %v8427, %v8423
      %v8429 = vrot.slane %v8428, 4
      %v8431 = vshll.u32 %v8134, 16
      %v8433 = vrot.slane %v8431, 5
      %v8434 = vsel %vm900, %v8429, %v8433
      %v8436 = vshrl.u32 %v8135, 16
      %v8438 = vrot.slane %v8436, 4
      %v8439 = vshll.u32 %v8135, 16
      %v8441 = vrot.slane %v8439, 5
      %v8442 = vor.u32 %v8438, %v8441
      %v8443 = vrot.slane %v8442, 4
      %v8445 = vshll.u32 %v8136, 16
      %v8447 = vrot.slane %v8445, 5
      %v8448 = vsel %vm900, %v8443, %v8447
      %v8449 = vshrl.u32 %v8136, 16
      %v8451 = vrot.slane %v8449, 4
      %v8452 = vor.u32 %v8451, %v8447
      %v8453 = vrot.slane %v8452, 4
      %v8455 = vshll.u32 %v8137, 16
      %v8457 = vrot.slane %v8455, 5
      %v8458 = vsel %vm900, %v8453, %v8457
      %v8460 = vshrl.u32 %v8138, 16
      %v8462 = vrot.slane %v8460, 4
      %v8463 = vshll.u32 %v8138, 16
      %v8465 = vrot.slane %v8463, 5
      %v8466 = vor.u32 %v8462, %v8465
      %v8467 = vrot.slane %v8466, 4
      %v8469 = vshll.u32 %v8139, 16
      %v8471 = vrot.slane %v8469, 5
      %v8472 = vsel %vm900, %v8467, %v8471
      %v8473 = vshrl.u32 %v8139, 16
      %v8475 = vrot.slane %v8473, 4
      %v8476 = vor.u32 %v8475, %v8471
      %v8477 = vrot.slane %v8476, 4
      %v8479 = vshll.u32 %v8140, 16
      %v8481 = vrot.slane %v8479, 5
      %v8482 = vsel %vm900, %v8477, %v8481
      %v8484 = vshrl.u32 %v8141, 16
      %v8486 = vrot.slane %v8484, 4
      %v8487 = vshll.u32 %v8141, 16
      %v8489 = vrot.slane %v8487, 5
      %v8490 = vor.u32 %v8486, %v8489
      %v8491 = vrot.slane %v8490, 4
      %v8493 = vshll.u32 %v8142, 16
      %v8495 = vrot.slane %v8493, 5
      %v8496 = vsel %vm900, %v8491, %v8495
      %v8497 = vshrl.u32 %v8142, 16
      %v8499 = vrot.slane %v8497, 4
      %v8500 = vor.u32 %v8499, %v8495
      %v8501 = vrot.slane %v8500, 4
      %v8503 = vshll.u32 %v8143, 16
      %v8505 = vrot.slane %v8503, 5
      %v8506 = vsel %vm900, %v8501, %v8505
      %v8508 = vshrl.u32 %v8144, 16
      %v8510 = vrot.slane %v8508, 4
      %v8511 = vshll.u32 %v8144, 16
      %v8513 = vrot.slane %v8511, 5
      %v8514 = vor.u32 %v8510, %v8513
      %v8515 = vrot.slane %v8514, 4
      %v8517 = vshll.u32 %v8145, 16
      %v8519 = vrot.slane %v8517, 5
      %v8520 = vsel %vm900, %v8515, %v8519
      %v8521 = vshrl.u32 %v8145, 16
      %v8523 = vrot.slane %v8521, 4
      %v8524 = vor.u32 %v8523, %v8519
      %v8525 = vrot.slane %v8524, 4
      %v8527 = vshll.u32 %v8146, 16
      %v8529 = vrot.slane %v8527, 5
      %v8530 = vsel %vm900, %v8525, %v8529
      %s8531 = scalar_lea.vmem %s2, 256
      %v8532 = vld [vmem:[%s8531] sm:$0xf]
      %v8533 = vld [vmem:[%s8531 + $0x4] sm:$0xf]
      %v8534 = vld [vmem:[%s8531 + $0x8] sm:$0xf]
      %v8535 = vld [vmem:[%s8531 + $0xc] sm:$0xf]
      %v8536 = vld [vmem:[%s8531 + $0x10] sm:$0xf]
      %v8537 = vld [vmem:[%s8531 + $0x14] sm:$0xf]
      %v8538 = vld [vmem:[%s8531 + $0x18] sm:$0xf]
      %v8539 = vld [vmem:[%s8531 + $0x1c] sm:$0xf]
      %v8540 = vld [vmem:[%s8531 + $0x20] sm:$0xf]
      %v8541 = vld [vmem:[%s8531 + $0x24] sm:$0xf]
      %v8542 = vld [vmem:[%s8531 + $0x28] sm:$0xf]
      %v8543 = vld [vmem:[%s8531 + $0x2c] sm:$0xf]
      %v8544 = vld [vmem:[%s8531 + $0x30] sm:$0xf]
      %v8545 = vld [vmem:[%s8531 + $0x34] sm:$0xf]
      %v8546 = vld [vmem:[%s8531 + $0x38] sm:$0xf]
      %v8547 = vld [vmem:[%s8531 + $0x3c] sm:$0xf]
      %v8548 = vunpack.c.l.b16 %v8160
      %v8549 = vunpack.c.l.b16 %v8170
      %v8550 = vunpack.c.l.b16 %v8184
      %v8551 = vunpack.c.l.b16 %v8194
      %v8552 = vunpack.c.l.b16 %v8208
      %v8553 = vunpack.c.l.b16 %v8218
      %v8554 = vunpack.c.l.b16 %v8232
      %v8555 = vunpack.c.l.b16 %v8242
      %v8556 = vunpack.c.l.b16 %v8256
      %v8557 = vunpack.c.l.b16 %v8266
      %v8558 = vunpack.c.l.b16 %v8280
      %v8559 = vunpack.c.l.b16 %v8290
      %v8560 = vunpack.c.l.b16 %v8304
      %v8561 = vunpack.c.l.b16 %v8314
      %v8562 = vunpack.c.l.b16 %v8328
      %v8563 = vunpack.c.l.b16 %v8338
      %v8564 = vunpack.c.l.b16 %v8352
      %v8565 = vunpack.c.l.b16 %v8362
      %v8566 = vunpack.c.l.b16 %v8376
      %v8567 = vunpack.c.l.b16 %v8386
      %v8568 = vunpack.c.l.b16 %v8400
      %v8569 = vunpack.c.l.b16 %v8410
      %v8570 = vunpack.c.l.b16 %v8424
      %v8571 = vunpack.c.l.b16 %v8434
      %v8572 = vunpack.c.l.b16 %v8448
      %v8573 = vunpack.c.l.b16 %v8458
      %v8574 = vunpack.c.l.b16 %v8472
      %v8575 = vunpack.c.l.b16 %v8482
      %v8576 = vunpack.c.l.b16 %v8496
      %v8577 = vunpack.c.l.b16 %v8506
      %v8578 = vunpack.c.l.b16 %v8520
      %v8579 = vunpack.c.l.b16 %v8530
      %v8580 = vpack.c.b16 %v8549, %v8548
      %v8581 = vpack.c.b16 %v8551, %v8550
      %v8582 = vpack.c.b16 %v8553, %v8552
      %v8583 = vpack.c.b16 %v8555, %v8554
      %v8584 = vpack.c.b16 %v8557, %v8556
      %v8585 = vpack.c.b16 %v8559, %v8558
      %v8586 = vpack.c.b16 %v8561, %v8560
      %v8587 = vpack.c.b16 %v8563, %v8562
      %v8588 = vpack.c.b16 %v8565, %v8564
      %v8589 = vpack.c.b16 %v8567, %v8566
      %v8590 = vpack.c.b16 %v8569, %v8568
      %v8591 = vpack.c.b16 %v8571, %v8570
      %v8592 = vpack.c.b16 %v8573, %v8572
      %v8593 = vpack.c.b16 %v8575, %v8574
      %v8594 = vpack.c.b16 %v8577, %v8576
      %v8595 = vpack.c.b16 %v8579, %v8578
      %v8628 = vunpack.c.l.b16 %v8532
      %v8629 = vunpack.c.l.b16 %v8533
      %v8630 = vunpack.c.l.b16 %v8534
      %v8631 = vunpack.c.l.b16 %v8535
      %v8632 = vunpack.c.l.b16 %v8536
      %v8633 = vunpack.c.l.b16 %v8537
      %v8634 = vunpack.c.l.b16 %v8538
      %v8635 = vunpack.c.l.b16 %v8539
      %v8636 = vunpack.c.l.b16 %v8540
      %v8637 = vunpack.c.l.b16 %v8541
      %v8638 = vunpack.c.l.b16 %v8542
      %v8639 = vunpack.c.l.b16 %v8543
      %v8640 = vunpack.c.l.b16 %v8544
      %v8641 = vunpack.c.l.b16 %v8545
      %v8642 = vunpack.c.l.b16 %v8546
      %v8643 = vunpack.c.l.b16 %v8547
      %v8644 = vpack.c.b16 %v8629, %v8628
      %v8645 = vpack.c.b16 %v8631, %v8630
      %v8646 = vpack.c.b16 %v8633, %v8632
      %v8647 = vpack.c.b16 %v8635, %v8634
      %v8648 = vpack.c.b16 %v8637, %v8636
      %v8649 = vpack.c.b16 %v8639, %v8638
      %v8650 = vpack.c.b16 %v8641, %v8640
      %v8651 = vpack.c.b16 %v8643, %v8642
      %8660 = vmatprep.subr.bf16.mxu0 0
      %8661 = vmatpush1.bf16.msra.mxu0 %v8644
      %8662 = vmatprep.subr.bf16.mxu0 0
      %8663 = vmatpush1.bf16.msra.mxu0 %v8645
      %8664 = vmatprep.subr.bf16.mxu0 0
      %8665 = vmatpush1.bf16.msra.mxu0 %v8646
      %8666 = vmatprep.subr.bf16.mxu0 0
      %8667 = vmatpush1.bf16.msra.mxu0 %v8647
      %8668 = vmatprep.subr.bf16.mxu0 0
      %8669 = vmatpush1.bf16.msra.mxu0 %v8648
      %8670 = vmatprep.subr.bf16.mxu0 0
      %8671 = vmatpush1.bf16.msra.mxu0 %v8649
      %8672 = vmatprep.subr.bf16.mxu0 0
      %8673 = vmatpush1.bf16.msra.mxu0 %v8650
      %8674 = vmatprep.subr.bf16.mxu0 0
      %8675 = vmatpush1.bf16.msra.mxu0 %v8651
      %8676 = vmatprep.subr.bf16.mxu0 0
      %8677 = vmatpush1.bf16.msra.mxu0 0
      %8678 = vmatprep.subr.bf16.mxu0 0
      %8679 = vmatpush1.bf16.msra.mxu0 0
      %8680 = vmatprep.subr.bf16.mxu0 0
      %8681 = vmatpush1.bf16.msra.mxu0 0
      %8682 = vmatprep.subr.bf16.mxu0 0
      %8683 = vmatpush1.bf16.msra.mxu0 0
      %8684 = vmatprep.subr.bf16.mxu0 0
      %8685 = vmatpush1.bf16.msra.mxu0 0
      %8686 = vmatprep.subr.bf16.mxu0 0
      %8687 = vmatpush1.bf16.msra.mxu0 0
      %8688 = vmatprep.subr.bf16.mxu0 0
      %8689 = vmatpush1.bf16.msra.mxu0 0
      %8690 = vmatprep.subr.bf16.mxu0 0
      %8691 = vmatpush1.bf16.msra.mxu0 0
      %8692 = vmatprep.mubr.bf16.mxu0 0
      %8693 = vmatmul.mubr.bf16.gmra.mrb[0].mxu0 %v8580
      %v8694 = vpop.f32.mrb[0].mxu0
      %v8695 = vadd.f32 0.0, %v8694
      %v8696 = vpop.f32.mrb[0].mxu0
      %v8697 = vpop.f32.mrb[0].mxu0
      %v8698 = vadd.f32 0.0, %v8697
      %v8699 = vpop.f32.mrb[0].mxu0
      %8700 = vmatprep.mubr.bf16.mxu0 0
      %8701 = vmatmul.mubr.bf16.gmra.mrb[0].mxu0 %v8581
      %v8702 = vpop.f32.mrb[0].mxu0
      %v8703 = vadd.f32 0.0, %v8702
      %v8704 = vpop.f32.mrb[0].mxu0
      %v8705 = vpop.f32.mrb[0].mxu0
      %v8706 = vadd.f32 0.0, %v8705
      %v8707 = vpop.f32.mrb[0].mxu0
      %8708 = vmatprep.mubr.bf16.mxu0 0
      %8709 = vmatmul.mubr.bf16.gmra.mrb[0].mxu0 %v8582
      %v8710 = vpop.f32.mrb[0].mxu0
      %v8711 = vadd.f32 0.0, %v8710
      %v8712 = vpop.f32.mrb[0].mxu0
      %v8713 = vpop.f32.mrb[0].mxu0
      %v8714 = vadd.f32 0.0, %v8713
      %v8715 = vpop.f32.mrb[0].mxu0
      %8716 = vmatprep.mubr.bf16.mxu0 0
      %8717 = vmatmul.mubr.bf16.gmra.mrb[0].mxu0 %v8583
      %v8718 = vpop.f32.mrb[0].mxu0
      %v8719 = vadd.f32 0.0, %v8718
      %v8720 = vpop.f32.mrb[0].mxu0
      %v8721 = vpop.f32.mrb[0].mxu0
      %v8722 = vadd.f32 0.0, %v8721
      %v8723 = vpop.f32.mrb[0].mxu0
      %8724 = vmatprep.mubr.bf16.mxu0 0
      %8725 = vmatmul.mubr.bf16.gmra.mrb[0].mxu0 %v8584
      %v8726 = vpop.f32.mrb[0].mxu0
      %v8727 = vadd.f32 0.0, %v8726
      %v8728 = vpop.f32.mrb[0].mxu0
      %v8729 = vpop.f32.mrb[0].mxu0
      %v8730 = vadd.f32 0.0, %v8729
      %v8731 = vpop.f32.mrb[0].mxu0
      %8732 = vmatprep.mubr.bf16.mxu0 0
      %8733 = vmatmul.mubr.bf16.gmra.mrb[0].mxu0 %v8585
      %v8734 = vpop.f32.mrb[0].mxu0
      %v8735 = vadd.f32 0.0, %v8734
      %v8736 = vpop.f32.mrb[0].mxu0
      %v8737 = vpop.f32.mrb[0].mxu0
      %v8738 = vadd.f32 0.0, %v8737
      %v8739 = vpop.f32.mrb[0].mxu0
      %8740 = vmatprep.mubr.bf16.mxu0 0
      %8741 = vmatmul.mubr.bf16.gmra.mrb[0].mxu0 %v8586
      %v8742 = vpop.f32.mrb[0].mxu0
      %v8743 = vadd.f32 0.0, %v8742
      %v8744 = vpop.f32.mrb[0].mxu0
      %v8745 = vpop.f32.mrb[0].mxu0
      %v8746 = vadd.f32 0.0, %v8745
      %v8747 = vpop.f32.mrb[0].mxu0
      %8748 = vmatprep.mubr.bf16.mxu0 0
      %8749 = vmatmul.mubr.bf16.gmra.mrb[0].mxu0 %v8587
      %v8750 = vpop.f32.mrb[0].mxu0
      %v8751 = vadd.f32 0.0, %v8750
      %v8752 = vpop.f32.mrb[0].mxu0
      %v8753 = vpop.f32.mrb[0].mxu0
      %v8754 = vadd.f32 0.0, %v8753
      %v8755 = vpop.f32.mrb[0].mxu0
      %8756 = vmatprep.mubr.bf16.mxu0 0
      %8757 = vmatmul.mubr.bf16.gmra.mrb[0].mxu0 %v8588
      %v8758 = vpop.f32.mrb[0].mxu0
      %v8759 = vadd.f32 0.0, %v8758
      %v8760 = vpop.f32.mrb[0].mxu0
      %v8761 = vpop.f32.mrb[0].mxu0
      %v8762 = vadd.f32 0.0, %v8761
      %v8763 = vpop.f32.mrb[0].mxu0
      %8764 = vmatprep.mubr.bf16.mxu0 0
      %8765 = vmatmul.mubr.bf16.gmra.mrb[0].mxu0 %v8589
      %v8766 = vpop.f32.mrb[0].mxu0
      %v8767 = vadd.f32 0.0, %v8766
      %v8768 = vpop.f32.mrb[0].mxu0
      %v8769 = vpop.f32.mrb[0].mxu0
      %v8770 = vadd.f32 0.0, %v8769
      %v8771 = vpop.f32.mrb[0].mxu0
      %8772 = vmatprep.mubr.bf16.mxu0 0
      %8773 = vmatmul.mubr.bf16.gmra.mrb[0].mxu0 %v8590
      %v8774 = vpop.f32.mrb[0].mxu0
      %v8775 = vadd.f32 0.0, %v8774
      %v8776 = vpop.f32.mrb[0].mxu0
      %v8777 = vpop.f32.mrb[0].mxu0
      %v8778 = vadd.f32 0.0, %v8777
      %v8779 = vpop.f32.mrb[0].mxu0
      %8780 = vmatprep.mubr.bf16.mxu0 0
      %8781 = vmatmul.mubr.bf16.gmra.mrb[0].mxu0 %v8591
      %v8782 = vpop.f32.mrb[0].mxu0
      %v8783 = vadd.f32 0.0, %v8782
      %v8784 = vpop.f32.mrb[0].mxu0
      %v8785 = vpop.f32.mrb[0].mxu0
      %v8786 = vadd.f32 0.0, %v8785
      %v8787 = vpop.f32.mrb[0].mxu0
      %8788 = vmatprep.mubr.bf16.mxu0 0
      %8789 = vmatmul.mubr.bf16.gmra.mrb[0].mxu0 %v8592
      %v8790 = vpop.f32.mrb[0].mxu0
      %v8791 = vadd.f32 0.0, %v8790
      %v8792 = vpop.f32.mrb[0].mxu0
      %v8793 = vpop.f32.mrb[0].mxu0
      %v8794 = vadd.f32 0.0, %v8793
      %v8795 = vpop.f32.mrb[0].mxu0
      %8796 = vmatprep.mubr.bf16.mxu0 0
      %8797 = vmatmul.mubr.bf16.gmra.mrb[0].mxu0 %v8593
      %v8798 = vpop.f32.mrb[0].mxu0
      %v8799 = vadd.f32 0.0, %v8798
      %v8800 = vpop.f32.mrb[0].mxu0
      %v8801 = vpop.f32.mrb[0].mxu0
      %v8802 = vadd.f32 0.0, %v8801
      %v8803 = vpop.f32.mrb[0].mxu0
      %8804 = vmatprep.mubr.bf16.mxu0 0
      %8805 = vmatmul.mubr.bf16.gmra.mrb[0].mxu0 %v8594
      %v8806 = vpop.f32.mrb[0].mxu0
      %v8807 = vadd.f32 0.0, %v8806
      %v8808 = vpop.f32.mrb[0].mxu0
      %v8809 = vpop.f32.mrb[0].mxu0
      %v8810 = vadd.f32 0.0, %v8809
      %v8811 = vpop.f32.mrb[0].mxu0
      %8812 = vmatprep.mubr.bf16.mxu0 0
      %8813 = vmatmul.mubr.bf16.gmra.mrb[0].mxu0 %v8595
      %v8814 = vpop.f32.mrb[0].mxu0
      %v8815 = vadd.f32 0.0, %v8814
      %v8816 = vpop.f32.mrb[0].mxu0
      %v8817 = vpop.f32.mrb[0].mxu0
      %v8818 = vadd.f32 0.0, %v8817
      %v8819 = vpop.f32.mrb[0].mxu0
      %8820 = vdwg.mxu0
      %v8821 = vadd.f32 %v8067, %v8695
      %v8822 = vadd.f32 %v8068, %v8698
      %v8823 = vadd.f32 %v8069, %v8703
      %v8824 = vadd.f32 %v8070, %v8706
      %v8825 = vadd.f32 %v8071, %v8711
      %v8826 = vadd.f32 %v8072, %v8714
      %v8827 = vadd.f32 %v8073, %v8719
      %v8828 = vadd.f32 %v8074, %v8722
      %v8829 = vadd.f32 %v8075, %v8727
      %v8830 = vadd.f32 %v8076, %v8730
      %v8831 = vadd.f32 %v8077, %v8735
      %v8832 = vadd.f32 %v8078, %v8738
      %v8833 = vadd.f32 %v8079, %v8743
      %v8834 = vadd.f32 %v8080, %v8746
      %v8835 = vadd.f32 %v8081, %v8751
      %v8836 = vadd.f32 %v8082, %v8754
      %v8837 = vadd.f32 %v8083, %v8759
      %v8838 = vadd.f32 %v8084, %v8762
      %v8839 = vadd.f32 %v8085, %v8767
      %v8840 = vadd.f32 %v8086, %v8770
      %v8841 = vadd.f32 %v8087, %v8775
      %v8842 = vadd.f32 %v8088, %v8778
      %v8843 = vadd.f32 %v8089, %v8783
      %v8844 = vadd.f32 %v8090, %v8786
      %v8845 = vadd.f32 %v8091, %v8791
      %v8846 = vadd.f32 %v8092, %v8794
      %v8847 = vadd.f32 %v8093, %v8799
      %v8848 = vadd.f32 %v8094, %v8802
      %v8849 = vadd.f32 %v8095, %v8807
      %v8850 = vadd.f32 %v8096, %v8810
      %v8851 = vadd.f32 %v8097, %v8815
      %v8852 = vadd.f32 %v8098, %v8818
      %v8853 = vld [vmem:[%s5639] sm:$0xe]
      %v8854 = vld [vmem:[%s5639 + $0xc] sm:$0xe]
      %v8855 = vld [vmem:[%s5639 + $0x18] sm:$0xe]
      %v8856 = vld [vmem:[%s5639 + $0x24] sm:$0xe]
      %v8857 = vld [vmem:[%s5639 + $0x30] sm:$0xe]
      %v8858 = vld [vmem:[%s5639 + $0x3c] sm:$0xe]
      %v8859 = vld [vmem:[%s5639 + $0x48] sm:$0xe]
      %v8860 = vld [vmem:[%s5639 + $0x54] sm:$0xe]
      %v8861 = vld [vmem:[%s5639 + $0x60] sm:$0xe]
      %v8862 = vld [vmem:[%s5639 + $0x6c] sm:$0xe]
      %v8863 = vld [vmem:[%s5639 + $0x78] sm:$0xe]
      %v8864 = vld [vmem:[%s5639 + $0x84] sm:$0xe]
      %v8865 = vld [vmem:[%s5639 + $0x90] sm:$0xe]
      %v8866 = vld [vmem:[%s5639 + $0x9c] sm:$0xe]
      %v8867 = vld [vmem:[%s5639 + $0xa8] sm:$0xe]
      %v8868 = vld [vmem:[%s5639 + $0xb4] sm:$0xe]
      %v8917 = vrot.slane %v8853, 5
      %v8918 = vrot.slane %v8917, 4
      %v8919 = vrot.slane %v8100, 5
      %v8920 = vsel %vm1891, %v8918, %v8919
      %v8921 = vrot.slane %v8919, 4
      %v8922 = vrot.slane %v8101, 5
      %v8923 = vsel %vm1891, %v8921, %v8922
      %v8924 = vrot.slane %v8854, 5
      %v8925 = vrot.slane %v8924, 4
      %v8926 = vrot.slane %v8103, 5
      %v8927 = vsel %vm1891, %v8925, %v8926
      %v8928 = vrot.slane %v8926, 4
      %v8929 = vrot.slane %v8104, 5
      %v8930 = vsel %vm1891, %v8928, %v8929
      %v8931 = vrot.slane %v8855, 5
      %v8932 = vrot.slane %v8931, 4
      %v8933 = vrot.slane %v8106, 5
      %v8934 = vsel %vm1891, %v8932, %v8933
      %v8935 = vrot.slane %v8933, 4
      %v8936 = vrot.slane %v8107, 5
      %v8937 = vsel %vm1891, %v8935, %v8936
      %v8938 = vrot.slane %v8856, 5
      %v8939 = vrot.slane %v8938, 4
      %v8940 = vrot.slane %v8109, 5
      %v8941 = vsel %vm1891, %v8939, %v8940
      %v8942 = vrot.slane %v8940, 4
      %v8943 = vrot.slane %v8110, 5
      %v8944 = vsel %vm1891, %v8942, %v8943
      %v8945 = vrot.slane %v8857, 5
      %v8946 = vrot.slane %v8945, 4
      %v8947 = vrot.slane %v8112, 5
      %v8948 = vsel %vm1891, %v8946, %v8947
      %v8949 = vrot.slane %v8947, 4
      %v8950 = vrot.slane %v8113, 5
      %v8951 = vsel %vm1891, %v8949, %v8950
      %v8952 = vrot.slane %v8858, 5
      %v8953 = vrot.slane %v8952, 4
      %v8954 = vrot.slane %v8115, 5
      %v8955 = vsel %vm1891, %v8953, %v8954
      %v8956 = vrot.slane %v8954, 4
      %v8957 = vrot.slane %v8116, 5
      %v8958 = vsel %vm1891, %v8956, %v8957
      %v8959 = vrot.slane %v8859, 5
      %v8960 = vrot.slane %v8959, 4
      %v8961 = vrot.slane %v8118, 5
      %v8962 = vsel %vm1891, %v8960, %v8961
      %v8963 = vrot.slane %v8961, 4
      %v8964 = vrot.slane %v8119, 5
      %v8965 = vsel %vm1891, %v8963, %v8964
      %v8966 = vrot.slane %v8860, 5
      %v8967 = vrot.slane %v8966, 4
      %v8968 = vrot.slane %v8121, 5
      %v8969 = vsel %vm1891, %v8967, %v8968
      %v8970 = vrot.slane %v8968, 4
      %v8971 = vrot.slane %v8122, 5
      %v8972 = vsel %vm1891, %v8970, %v8971
      %v8973 = vrot.slane %v8861, 5
      %v8974 = vrot.slane %v8973, 4
      %v8975 = vrot.slane %v8124, 5
      %v8976 = vsel %vm1891, %v8974, %v8975
      %v8977 = vrot.slane %v8975, 4
      %v8978 = vrot.slane %v8125, 5
      %v8979 = vsel %vm1891, %v8977, %v8978
      %v8980 = vrot.slane %v8862, 5
      %v8981 = vrot.slane %v8980, 4
      %v8982 = vrot.slane %v8127, 5
      %v8983 = vsel %vm1891, %v8981, %v8982
      %v8984 = vrot.slane %v8982, 4
      %v8985 = vrot.slane %v8128, 5
      %v8986 = vsel %vm1891, %v8984, %v8985
      %v8987 = vrot.slane %v8863, 5
      %v8988 = vrot.slane %v8987, 4
      %v8989 = vrot.slane %v8130, 5
      %v8990 = vsel %vm1891, %v8988, %v8989
      %v8991 = vrot.slane %v8989, 4
      %v8992 = vrot.slane %v8131, 5
      %v8993 = vsel %vm1891, %v8991, %v8992
      %v8994 = vrot.slane %v8864, 5
      %v8995 = vrot.slane %v8994, 4
      %v8996 = vrot.slane %v8133, 5
      %v8997 = vsel %vm1891, %v8995, %v8996
      %v8998 = vrot.slane %v8996, 4
      %v8999 = vrot.slane %v8134, 5
      %v9000 = vsel %vm1891, %v8998, %v8999
      %v9001 = vrot.slane %v8865, 5
      %v9002 = vrot.slane %v9001, 4
      %v9003 = vrot.slane %v8136, 5
      %v9004 = vsel %vm1891, %v9002, %v9003
      %v9005 = vrot.slane %v9003, 4
      %v9006 = vrot.slane %v8137, 5
      %v9007 = vsel %vm1891, %v9005, %v9006
      %v9008 = vrot.slane %v8866, 5
      %v9009 = vrot.slane %v9008, 4
      %v9010 = vrot.slane %v8139, 5
      %v9011 = vsel %vm1891, %v9009, %v9010
      %v9012 = vrot.slane %v9010, 4
      %v9013 = vrot.slane %v8140, 5
      %v9014 = vsel %vm1891, %v9012, %v9013
      %v9015 = vrot.slane %v8867, 5
      %v9016 = vrot.slane %v9015, 4
      %v9017 = vrot.slane %v8142, 5
      %v9018 = vsel %vm1891, %v9016, %v9017
      %v9019 = vrot.slane %v9017, 4
      %v9020 = vrot.slane %v8143, 5
      %v9021 = vsel %vm1891, %v9019, %v9020
      %v9022 = vrot.slane %v8868, 5
      %v9023 = vrot.slane %v9022, 4
      %v9024 = vrot.slane %v8145, 5
      %v9025 = vsel %vm1891, %v9023, %v9024
      %v9026 = vrot.slane %v9024, 4
      %v9027 = vrot.slane %v8146, 5
      %v9028 = vsel %vm1891, %v9026, %v9027
      %s9029 = scalar_lea.vmem %s2, 320
      %v9030 = vld [vmem:[%s9029] sm:$0xf]
      %v9031 = vld [vmem:[%s9029 + $0x4] sm:$0xf]
      %v9032 = vld [vmem:[%s9029 + $0x8] sm:$0xf]
      %v9033 = vld [vmem:[%s9029 + $0xc] sm:$0xf]
      %v9034 = vld [vmem:[%s9029 + $0x10] sm:$0xf]
      %v9035 = vld [vmem:[%s9029 + $0x14] sm:$0xf]
      %v9036 = vld [vmem:[%s9029 + $0x18] sm:$0xf]
      %v9037 = vld [vmem:[%s9029 + $0x1c] sm:$0xf]
      %v9038 = vld [vmem:[%s9029 + $0x20] sm:$0xf]
      %v9039 = vld [vmem:[%s9029 + $0x24] sm:$0xf]
      %v9040 = vld [vmem:[%s9029 + $0x28] sm:$0xf]
      %v9041 = vld [vmem:[%s9029 + $0x2c] sm:$0xf]
      %v9042 = vld [vmem:[%s9029 + $0x30] sm:$0xf]
      %v9043 = vld [vmem:[%s9029 + $0x34] sm:$0xf]
      %v9044 = vld [vmem:[%s9029 + $0x38] sm:$0xf]
      %v9045 = vld [vmem:[%s9029 + $0x3c] sm:$0xf]
      %v9046 = vunpack.c.l.b16 %v8920
      %v9047 = vunpack.c.l.b16 %v8923
      %v9048 = vunpack.c.l.b16 %v8927
      %v9049 = vunpack.c.l.b16 %v8930
      %v9050 = vunpack.c.l.b16 %v8934
      %v9051 = vunpack.c.l.b16 %v8937
      %v9052 = vunpack.c.l.b16 %v8941
      %v9053 = vunpack.c.l.b16 %v8944
      %v9054 = vunpack.c.l.b16 %v8948
      %v9055 = vunpack.c.l.b16 %v8951
      %v9056 = vunpack.c.l.b16 %v8955
      %v9057 = vunpack.c.l.b16 %v8958
      %v9058 = vunpack.c.l.b16 %v8962
      %v9059 = vunpack.c.l.b16 %v8965
      %v9060 = vunpack.c.l.b16 %v8969
      %v9061 = vunpack.c.l.b16 %v8972
      %v9062 = vunpack.c.l.b16 %v8976
      %v9063 = vunpack.c.l.b16 %v8979
      %v9064 = vunpack.c.l.b16 %v8983
      %v9065 = vunpack.c.l.b16 %v8986
      %v9066 = vunpack.c.l.b16 %v8990
      %v9067 = vunpack.c.l.b16 %v8993
      %v9068 = vunpack.c.l.b16 %v8997
      %v9069 = vunpack.c.l.b16 %v9000
      %v9070 = vunpack.c.l.b16 %v9004
      %v9071 = vunpack.c.l.b16 %v9007
      %v9072 = vunpack.c.l.b16 %v9011
      %v9073 = vunpack.c.l.b16 %v9014
      %v9074 = vunpack.c.l.b16 %v9018
      %v9075 = vunpack.c.l.b16 %v9021
      %v9076 = vunpack.c.l.b16 %v9025
      %v9077 = vunpack.c.l.b16 %v9028
      %v9078 = vpack.c.b16 %v9047, %v9046
      %v9079 = vpack.c.b16 %v9049, %v9048
      %v9080 = vpack.c.b16 %v9051, %v9050
      %v9081 = vpack.c.b16 %v9053, %v9052
      %v9082 = vpack.c.b16 %v9055, %v9054
      %v9083 = vpack.c.b16 %v9057, %v9056
      %v9084 = vpack.c.b16 %v9059, %v9058
      %v9085 = vpack.c.b16 %v9061, %v9060
      %v9086 = vpack.c.b16 %v9063, %v9062
      %v9087 = vpack.c.b16 %v9065, %v9064
      %v9088 = vpack.c.b16 %v9067, %v9066
      %v9089 = vpack.c.b16 %v9069, %v9068
      %v9090 = vpack.c.b16 %v9071, %v9070
      %v9091 = vpack.c.b16 %v9073, %v9072
      %v9092 = vpack.c.b16 %v9075, %v9074
      %v9093 = vpack.c.b16 %v9077, %v9076
      %v9126 = vunpack.c.l.b16 %v9030
      %v9127 = vunpack.c.l.b16 %v9031
      %v9128 = vunpack.c.l.b16 %v9032
      %v9129 = vunpack.c.l.b16 %v9033
      %v9130 = vunpack.c.l.b16 %v9034
      %v9131 = vunpack.c.l.b16 %v9035
      %v9132 = vunpack.c.l.b16 %v9036
      %v9133 = vunpack.c.l.b16 %v9037
      %v9134 = vunpack.c.l.b16 %v9038
      %v9135 = vunpack.c.l.b16 %v9039
      %v9136 = vunpack.c.l.b16 %v9040
      %v9137 = vunpack.c.l.b16 %v9041
      %v9138 = vunpack.c.l.b16 %v9042
      %v9139 = vunpack.c.l.b16 %v9043
      %v9140 = vunpack.c.l.b16 %v9044
      %v9141 = vunpack.c.l.b16 %v9045
      %v9142 = vpack.c.b16 %v9127, %v9126
      %v9143 = vpack.c.b16 %v9129, %v9128
      %v9144 = vpack.c.b16 %v9131, %v9130
      %v9145 = vpack.c.b16 %v9133, %v9132
      %v9146 = vpack.c.b16 %v9135, %v9134
      %v9147 = vpack.c.b16 %v9137, %v9136
      %v9148 = vpack.c.b16 %v9139, %v9138
      %v9149 = vpack.c.b16 %v9141, %v9140
      %9158 = vmatprep.subr.bf16.mxu0 0
      %9159 = vmatpush1.bf16.msra.mxu0 %v9142
      %9160 = vmatprep.subr.bf16.mxu0 0
      %9161 = vmatpush1.bf16.msra.mxu0 %v9143
      %9162 = vmatprep.subr.bf16.mxu0 0
      %9163 = vmatpush1.bf16.msra.mxu0 %v9144
      %9164 = vmatprep.subr.bf16.mxu0 0
      %9165 = vmatpush1.bf16.msra.mxu0 %v9145
      %9166 = vmatprep.subr.bf16.mxu0 0
      %9167 = vmatpush1.bf16.msra.mxu0 %v9146
      %9168 = vmatprep.subr.bf16.mxu0 0
      %9169 = vmatpush1.bf16.msra.mxu0 %v9147
      %9170 = vmatprep.subr.bf16.mxu0 0
      %9171 = vmatpush1.bf16.msra.mxu0 %v9148
      %9172 = vmatprep.subr.bf16.mxu0 0
      %9173 = vmatpush1.bf16.msra.mxu0 %v9149
      %9174 = vmatprep.subr.bf16.mxu0 0
      %9175 = vmatpush1.bf16.msra.mxu0 0
      %9176 = vmatprep.subr.bf16.mxu0 0
      %9177 = vmatpush1.bf16.msra.mxu0 0
      %9178 = vmatprep.subr.bf16.mxu0 0
      %9179 = vmatpush1.bf16.msra.mxu0 0
      %9180 = vmatprep.subr.bf16.mxu0 0
      %9181 = vmatpush1.bf16.msra.mxu0 0
      %9182 = vmatprep.subr.bf16.mxu0 0
      %9183 = vmatpush1.bf16.msra.mxu0 0
      %9184 = vmatprep.subr.bf16.mxu0 0
      %9185 = vmatpush1.bf16.msra.mxu0 0
      %9186 = vmatprep.subr.bf16.mxu0 0
      %9187 = vmatpush1.bf16.msra.mxu0 0
      %9188 = vmatprep.subr.bf16.mxu0 0
      %9189 = vmatpush1.bf16.msra.mxu0 0
      %9190 = vmatprep.mubr.bf16.mxu0 0
      %9191 = vmatmul.mubr.bf16.gmra.mrb[0].mxu0 %v9078
      %v9192 = vpop.f32.mrb[0].mxu0
      %v9193 = vadd.f32 0.0, %v9192
      %v9194 = vpop.f32.mrb[0].mxu0
      %v9195 = vpop.f32.mrb[0].mxu0
      %v9196 = vadd.f32 0.0, %v9195
      %v9197 = vpop.f32.mrb[0].mxu0
      %9198 = vmatprep.mubr.bf16.mxu0 0
      %9199 = vmatmul.mubr.bf16.gmra.mrb[0].mxu0 %v9079
      %v9200 = vpop.f32.mrb[0].mxu0
      %v9201 = vadd.f32 0.0, %v9200
      %v9202 = vpop.f32.mrb[0].mxu0
      %v9203 = vpop.f32.mrb[0].mxu0
      %v9204 = vadd.f32 0.0, %v9203
      %v9205 = vpop.f32.mrb[0].mxu0
      %9206 = vmatprep.mubr.bf16.mxu0 0
      %9207 = vmatmul.mubr.bf16.gmra.mrb[0].mxu0 %v9080
      %v9208 = vpop.f32.mrb[0].mxu0
      %v9209 = vadd.f32 0.0, %v9208
      %v9210 = vpop.f32.mrb[0].mxu0
      %v9211 = vpop.f32.mrb[0].mxu0
      %v9212 = vadd.f32 0.0, %v9211
      %v9213 = vpop.f32.mrb[0].mxu0
      %9214 = vmatprep.mubr.bf16.mxu0 0
      %9215 = vmatmul.mubr.bf16.gmra.mrb[0].mxu0 %v9081
      %v9216 = vpop.f32.mrb[0].mxu0
      %v9217 = vadd.f32 0.0, %v9216
      %v9218 = vpop.f32.mrb[0].mxu0
      %v9219 = vpop.f32.mrb[0].mxu0
      %v9220 = vadd.f32 0.0, %v9219
      %v9221 = vpop.f32.mrb[0].mxu0
      %9222 = vmatprep.mubr.bf16.mxu0 0
      %9223 = vmatmul.mubr.bf16.gmra.mrb[0].mxu0 %v9082
      %v9224 = vpop.f32.mrb[0].mxu0
      %v9225 = vadd.f32 0.0, %v9224
      %v9226 = vpop.f32.mrb[0].mxu0
      %v9227 = vpop.f32.mrb[0].mxu0
      %v9228 = vadd.f32 0.0, %v9227
      %v9229 = vpop.f32.mrb[0].mxu0
      %9230 = vmatprep.mubr.bf16.mxu0 0
      %9231 = vmatmul.mubr.bf16.gmra.mrb[0].mxu0 %v9083
      %v9232 = vpop.f32.mrb[0].mxu0
      %v9233 = vadd.f32 0.0, %v9232
      %v9234 = vpop.f32.mrb[0].mxu0
      %v9235 = vpop.f32.mrb[0].mxu0
      %v9236 = vadd.f32 0.0, %v9235
      %v9237 = vpop.f32.mrb[0].mxu0
      %9238 = vmatprep.mubr.bf16.mxu0 0
      %9239 = vmatmul.mubr.bf16.gmra.mrb[0].mxu0 %v9084
      %v9240 = vpop.f32.mrb[0].mxu0
      %v9241 = vadd.f32 0.0, %v9240
      %v9242 = vpop.f32.mrb[0].mxu0
      %v9243 = vpop.f32.mrb[0].mxu0
      %v9244 = vadd.f32 0.0, %v9243
      %v9245 = vpop.f32.mrb[0].mxu0
      %9246 = vmatprep.mubr.bf16.mxu0 0
      %9247 = vmatmul.mubr.bf16.gmra.mrb[0].mxu0 %v9085
      %v9248 = vpop.f32.mrb[0].mxu0
      %v9249 = vadd.f32 0.0, %v9248
      %v9250 = vpop.f32.mrb[0].mxu0
      %v9251 = vpop.f32.mrb[0].mxu0
      %v9252 = vadd.f32 0.0, %v9251
      %v9253 = vpop.f32.mrb[0].mxu0
      %9254 = vmatprep.mubr.bf16.mxu0 0
      %9255 = vmatmul.mubr.bf16.gmra.mrb[0].mxu0 %v9086
      %v9256 = vpop.f32.mrb[0].mxu0
      %v9257 = vadd.f32 0.0, %v9256
      %v9258 = vpop.f32.mrb[0].mxu0
      %v9259 = vpop.f32.mrb[0].mxu0
      %v9260 = vadd.f32 0.0, %v9259
      %v9261 = vpop.f32.mrb[0].mxu0
      %9262 = vmatprep.mubr.bf16.mxu0 0
      %9263 = vmatmul.mubr.bf16.gmra.mrb[0].mxu0 %v9087
      %v9264 = vpop.f32.mrb[0].mxu0
      %v9265 = vadd.f32 0.0, %v9264
      %v9266 = vpop.f32.mrb[0].mxu0
      %v9267 = vpop.f32.mrb[0].mxu0
      %v9268 = vadd.f32 0.0, %v9267
      %v9269 = vpop.f32.mrb[0].mxu0
      %9270 = vmatprep.mubr.bf16.mxu0 0
      %9271 = vmatmul.mubr.bf16.gmra.mrb[0].mxu0 %v9088
      %v9272 = vpop.f32.mrb[0].mxu0
      %v9273 = vadd.f32 0.0, %v9272
      %v9274 = vpop.f32.mrb[0].mxu0
      %v9275 = vpop.f32.mrb[0].mxu0
      %v9276 = vadd.f32 0.0, %v9275
      %v9277 = vpop.f32.mrb[0].mxu0
      %9278 = vmatprep.mubr.bf16.mxu0 0
      %9279 = vmatmul.mubr.bf16.gmra.mrb[0].mxu0 %v9089
      %v9280 = vpop.f32.mrb[0].mxu0
      %v9281 = vadd.f32 0.0, %v9280
      %v9282 = vpop.f32.mrb[0].mxu0
      %v9283 = vpop.f32.mrb[0].mxu0
      %v9284 = vadd.f32 0.0, %v9283
      %v9285 = vpop.f32.mrb[0].mxu0
      %9286 = vmatprep.mubr.bf16.mxu0 0
      %9287 = vmatmul.mubr.bf16.gmra.mrb[0].mxu0 %v9090
      %v9288 = vpop.f32.mrb[0].mxu0
      %v9289 = vadd.f32 0.0, %v9288
      %v9290 = vpop.f32.mrb[0].mxu0
      %v9291 = vpop.f32.mrb[0].mxu0
      %v9292 = vadd.f32 0.0, %v9291
      %v9293 = vpop.f32.mrb[0].mxu0
      %9294 = vmatprep.mubr.bf16.mxu0 0
      %9295 = vmatmul.mubr.bf16.gmra.mrb[0].mxu0 %v9091
      %v9296 = vpop.f32.mrb[0].mxu0
      %v9297 = vadd.f32 0.0, %v9296
      %v9298 = vpop.f32.mrb[0].mxu0
      %v9299 = vpop.f32.mrb[0].mxu0
      %v9300 = vadd.f32 0.0, %v9299
      %v9301 = vpop.f32.mrb[0].mxu0
      %9302 = vmatprep.mubr.bf16.mxu0 0
      %9303 = vmatmul.mubr.bf16.gmra.mrb[0].mxu0 %v9092
      %v9304 = vpop.f32.mrb[0].mxu0
      %v9305 = vadd.f32 0.0, %v9304
      %v9306 = vpop.f32.mrb[0].mxu0
      %v9307 = vpop.f32.mrb[0].mxu0
      %v9308 = vadd.f32 0.0, %v9307
      %v9309 = vpop.f32.mrb[0].mxu0
      %9310 = vmatprep.mubr.bf16.mxu0 0
      %9311 = vmatmul.mubr.bf16.gmra.mrb[0].mxu0 %v9093
      %v9312 = vpop.f32.mrb[0].mxu0
      %v9313 = vadd.f32 0.0, %v9312
      %v9314 = vpop.f32.mrb[0].mxu0
      %v9315 = vpop.f32.mrb[0].mxu0
      %v9316 = vadd.f32 0.0, %v9315
      %v9317 = vpop.f32.mrb[0].mxu0
      %9318 = vdwg.mxu0
      %v9319 = vadd.f32 %v8821, %v9193
      %v9320 = vadd.f32 %v8822, %v9196
      %v9321 = vadd.f32 %v8823, %v9201
      %v9322 = vadd.f32 %v8824, %v9204
      %v9323 = vadd.f32 %v8825, %v9209
      %v9324 = vadd.f32 %v8826, %v9212
      %v9325 = vadd.f32 %v8827, %v9217
      %v9326 = vadd.f32 %v8828, %v9220
      %v9327 = vadd.f32 %v8829, %v9225
      %v9328 = vadd.f32 %v8830, %v9228
      %v9329 = vadd.f32 %v8831, %v9233
      %v9330 = vadd.f32 %v8832, %v9236
      %v9331 = vadd.f32 %v8833, %v9241
      %v9332 = vadd.f32 %v8834, %v9244
      %v9333 = vadd.f32 %v8835, %v9249
      %v9334 = vadd.f32 %v8836, %v9252
      %v9335 = vadd.f32 %v8837, %v9257
      %v9336 = vadd.f32 %v8838, %v9260
      %v9337 = vadd.f32 %v8839, %v9265
      %v9338 = vadd.f32 %v8840, %v9268
      %v9339 = vadd.f32 %v8841, %v9273
      %v9340 = vadd.f32 %v8842, %v9276
      %v9341 = vadd.f32 %v8843, %v9281
      %v9342 = vadd.f32 %v8844, %v9284
      %v9343 = vadd.f32 %v8845, %v9289
      %v9344 = vadd.f32 %v8846, %v9292
      %v9345 = vadd.f32 %v8847, %v9297
      %v9346 = vadd.f32 %v8848, %v9300
      %v9347 = vadd.f32 %v8849, %v9305
      %v9348 = vadd.f32 %v8850, %v9308
      %v9349 = vadd.f32 %v8851, %v9313
      %v9350 = vadd.f32 %v8852, %v9316
      %s9351 = scalar_lea.vmem [#allocation3], 24
      %v9352 = vld [vmem:[%s9351] sm:$0xf]
      %v9353 = vld [vmem:[%s9351 + $0x4] sm:$0xf]
      %v9354 = vld [vmem:[%s9351 + $0xc] sm:$0xf]
      %v9355 = vld [vmem:[%s9351 + $0x10] sm:$0xf]
      %v9356 = vld [vmem:[%s9351 + $0x18] sm:$0xf]
      %v9357 = vld [vmem:[%s9351 + $0x1c] sm:$0xf]
      %v9358 = vld [vmem:[%s9351 + $0x24] sm:$0xf]
      %v9359 = vld [vmem:[%s9351 + $0x28] sm:$0xf]
      %v9360 = vld [vmem:[%s9351 + $0x30] sm:$0xf]
      %v9361 = vld [vmem:[%s9351 + $0x34] sm:$0xf]
      %v9362 = vld [vmem:[%s9351 + $0x3c] sm:$0xf]
      %v9363 = vld [vmem:[%s9351 + $0x40] sm:$0xf]
      %v9364 = vld [vmem:[%s9351 + $0x48] sm:$0xf]
      %v9365 = vld [vmem:[%s9351 + $0x4c] sm:$0xf]
      %v9366 = vld [vmem:[%s9351 + $0x54] sm:$0xf]
      %v9367 = vld [vmem:[%s9351 + $0x58] sm:$0xf]
      %v9368 = vld [vmem:[%s9351 + $0x60] sm:$0xf]
      %v9369 = vld [vmem:[%s9351 + $0x64] sm:$0xf]
      %v9370 = vld [vmem:[%s9351 + $0x6c] sm:$0xf]
      %v9371 = vld [vmem:[%s9351 + $0x70] sm:$0xf]
      %v9372 = vld [vmem:[%s9351 + $0x78] sm:$0xf]
      %v9373 = vld [vmem:[%s9351 + $0x7c] sm:$0xf]
      %v9374 = vld [vmem:[%s9351 + $0x84] sm:$0xf]
      %v9375 = vld [vmem:[%s9351 + $0x88] sm:$0xf]
      %v9376 = vld [vmem:[%s9351 + $0x90] sm:$0xf]
      %v9377 = vld [vmem:[%s9351 + $0x94] sm:$0xf]
      %v9378 = vld [vmem:[%s9351 + $0x9c] sm:$0xf]
      %v9379 = vld [vmem:[%s9351 + $0xa0] sm:$0xf]
      %v9380 = vld [vmem:[%s9351 + $0xa8] sm:$0xf]
      %v9381 = vld [vmem:[%s9351 + $0xac] sm:$0xf]
      %v9382 = vld [vmem:[%s9351 + $0xb4] sm:$0xf]
      %v9383 = vld [vmem:[%s9351 + $0xb8] sm:$0xf]
      %s9384 = scalar_lea.vmem %s2, 384
      %v9385 = vld [vmem:[%s9384] sm:$0xf]
      %v9386 = vld [vmem:[%s9384 + $0x4] sm:$0xf]
      %v9387 = vld [vmem:[%s9384 + $0x8] sm:$0xf]
      %v9388 = vld [vmem:[%s9384 + $0xc] sm:$0xf]
      %v9389 = vld [vmem:[%s9384 + $0x10] sm:$0xf]
      %v9390 = vld [vmem:[%s9384 + $0x14] sm:$0xf]
      %v9391 = vld [vmem:[%s9384 + $0x18] sm:$0xf]
      %v9392 = vld [vmem:[%s9384 + $0x1c] sm:$0xf]
      %v9393 = vld [vmem:[%s9384 + $0x20] sm:$0xf]
      %v9394 = vld [vmem:[%s9384 + $0x24] sm:$0xf]
      %v9395 = vld [vmem:[%s9384 + $0x28] sm:$0xf]
      %v9396 = vld [vmem:[%s9384 + $0x2c] sm:$0xf]
      %v9397 = vld [vmem:[%s9384 + $0x30] sm:$0xf]
      %v9398 = vld [vmem:[%s9384 + $0x34] sm:$0xf]
      %v9399 = vld [vmem:[%s9384 + $0x38] sm:$0xf]
      %v9400 = vld [vmem:[%s9384 + $0x3c] sm:$0xf]
      %v9433 = vunpack.c.l.b16 %v9352
      %v9434 = vunpack.c.l.b16 %v9353
      %v9435 = vunpack.c.l.b16 %v9354
      %v9436 = vunpack.c.l.b16 %v9355
      %v9437 = vunpack.c.l.b16 %v9356
      %v9438 = vunpack.c.l.b16 %v9357
      %v9439 = vunpack.c.l.b16 %v9358
      %v9440 = vunpack.c.l.b16 %v9359
      %v9441 = vunpack.c.l.b16 %v9360
      %v9442 = vunpack.c.l.b16 %v9361
      %v9443 = vunpack.c.l.b16 %v9362
      %v9444 = vunpack.c.l.b16 %v9363
      %v9445 = vunpack.c.l.b16 %v9364
      %v9446 = vunpack.c.l.b16 %v9365
      %v9447 = vunpack.c.l.b16 %v9366
      %v9448 = vunpack.c.l.b16 %v9367
      %v9449 = vunpack.c.l.b16 %v9368
      %v9450 = vunpack.c.l.b16 %v9369
      %v9451 = vunpack.c.l.b16 %v9370
      %v9452 = vunpack.c.l.b16 %v9371
      %v9453 = vunpack.c.l.b16 %v9372
      %v9454 = vunpack.c.l.b16 %v9373
      %v9455 = vunpack.c.l.b16 %v9374
      %v9456 = vunpack.c.l.b16 %v9375
      %v9457 = vunpack.c.l.b16 %v9376
      %v9458 = vunpack.c.l.b16 %v9377
      %v9459 = vunpack.c.l.b16 %v9378
      %v9460 = vunpack.c.l.b16 %v9379
      %v9461 = vunpack.c.l.b16 %v9380
      %v9462 = vunpack.c.l.b16 %v9381
      %v9463 = vunpack.c.l.b16 %v9382
      %v9464 = vunpack.c.l.b16 %v9383
      %v9465 = vpack.c.b16 %v9434, %v9433
      %v9466 = vpack.c.b16 %v9436, %v9435
      %v9467 = vpack.c.b16 %v9438, %v9437
      %v9468 = vpack.c.b16 %v9440, %v9439
      %v9469 = vpack.c.b16 %v9442, %v9441
      %v9470 = vpack.c.b16 %v9444, %v9443
      %v9471 = vpack.c.b16 %v9446, %v9445
      %v9472 = vpack.c.b16 %v9448, %v9447
      %v9473 = vpack.c.b16 %v9450, %v9449
      %v9474 = vpack.c.b16 %v9452, %v9451
      %v9475 = vpack.c.b16 %v9454, %v9453
      %v9476 = vpack.c.b16 %v9456, %v9455
      %v9477 = vpack.c.b16 %v9458, %v9457
      %v9478 = vpack.c.b16 %v9460, %v9459
      %v9479 = vpack.c.b16 %v9462, %v9461
      %v9480 = vpack.c.b16 %v9464, %v9463
      %v9513 = vunpack.c.l.b16 %v9385
      %v9514 = vunpack.c.l.b16 %v9386
      %v9515 = vunpack.c.l.b16 %v9387
      %v9516 = vunpack.c.l.b16 %v9388
      %v9517 = vunpack.c.l.b16 %v9389
      %v9518 = vunpack.c.l.b16 %v9390
      %v9519 = vunpack.c.l.b16 %v9391
      %v9520 = vunpack.c.l.b16 %v9392
      %v9521 = vunpack.c.l.b16 %v9393
      %v9522 = vunpack.c.l.b16 %v9394
      %v9523 = vunpack.c.l.b16 %v9395
      %v9524 = vunpack.c.l.b16 %v9396
      %v9525 = vunpack.c.l.b16 %v9397
      %v9526 = vunpack.c.l.b16 %v9398
      %v9527 = vunpack.c.l.b16 %v9399
      %v9528 = vunpack.c.l.b16 %v9400
      %v9529 = vpack.c.b16 %v9514, %v9513
      %v9530 = vpack.c.b16 %v9516, %v9515
      %v9531 = vpack.c.b16 %v9518, %v9517
      %v9532 = vpack.c.b16 %v9520, %v9519
      %v9533 = vpack.c.b16 %v9522, %v9521
      %v9534 = vpack.c.b16 %v9524, %v9523
      %v9535 = vpack.c.b16 %v9526, %v9525
      %v9536 = vpack.c.b16 %v9528, %v9527
      %9545 = vmatprep.subr.bf16.mxu0 0
      %9546 = vmatpush1.bf16.msra.mxu0 %v9529
      %9547 = vmatprep.subr.bf16.mxu0 0
      %9548 = vmatpush1.bf16.msra.mxu0 %v9530
      %9549 = vmatprep.subr.bf16.mxu0 0
      %9550 = vmatpush1.bf16.msra.mxu0 %v9531
      %9551 = vmatprep.subr.bf16.mxu0 0
      %9552 = vmatpush1.bf16.msra.mxu0 %v9532
      %9553 = vmatprep.subr.bf16.mxu0 0
      %9554 = vmatpush1.bf16.msra.mxu0 %v9533
      %9555 = vmatprep.subr.bf16.mxu0 0
      %9556 = vmatpush1.bf16.msra.mxu0 %v9534
      %9557 = vmatprep.subr.bf16.mxu0 0
      %9558 = vmatpush1.bf16.msra.mxu0 %v9535
      %9559 = vmatprep.subr.bf16.mxu0 0
      %9560 = vmatpush1.bf16.msra.mxu0 %v9536
      %9561 = vmatprep.subr.bf16.mxu0 0
      %9562 = vmatpush1.bf16.msra.mxu0 0
      %9563 = vmatprep.subr.bf16.mxu0 0
      %9564 = vmatpush1.bf16.msra.mxu0 0
      %9565 = vmatprep.subr.bf16.mxu0 0
      %9566 = vmatpush1.bf16.msra.mxu0 0
      %9567 = vmatprep.subr.bf16.mxu0 0
      %9568 = vmatpush1.bf16.msra.mxu0 0
      %9569 = vmatprep.subr.bf16.mxu0 0
      %9570 = vmatpush1.bf16.msra.mxu0 0
      %9571 = vmatprep.subr.bf16.mxu0 0
      %9572 = vmatpush1.bf16.msra.mxu0 0
      %9573 = vmatprep.subr.bf16.mxu0 0
      %9574 = vmatpush1.bf16.msra.mxu0 0
      %9575 = vmatprep.subr.bf16.mxu0 0
      %9576 = vmatpush1.bf16.msra.mxu0 0
      %9577 = vmatprep.mubr.bf16.mxu0 0
      %9578 = vmatmul.mubr.bf16.gmra.mrb[0].mxu0 %v9465
      %v9579 = vpop.f32.mrb[0].mxu0
      %v9580 = vadd.f32 0.0, %v9579
      %v9581 = vpop.f32.mrb[0].mxu0
      %v9582 = vpop.f32.mrb[0].mxu0
      %v9583 = vadd.f32 0.0, %v9582
      %v9584 = vpop.f32.mrb[0].mxu0
      %9585 = vmatprep.mubr.bf16.mxu0 0
      %9586 = vmatmul.mubr.bf16.gmra.mrb[0].mxu0 %v9466
      %v9587 = vpop.f32.mrb[0].mxu0
      %v9588 = vadd.f32 0.0, %v9587
      %v9589 = vpop.f32.mrb[0].mxu0
      %v9590 = vpop.f32.mrb[0].mxu0
      %v9591 = vadd.f32 0.0, %v9590
      %v9592 = vpop.f32.mrb[0].mxu0
      %9593 = vmatprep.mubr.bf16.mxu0 0
      %9594 = vmatmul.mubr.bf16.gmra.mrb[0].mxu0 %v9467
      %v9595 = vpop.f32.mrb[0].mxu0
      %v9596 = vadd.f32 0.0, %v9595
      %v9597 = vpop.f32.mrb[0].mxu0
      %v9598 = vpop.f32.mrb[0].mxu0
      %v9599 = vadd.f32 0.0, %v9598
      %v9600 = vpop.f32.mrb[0].mxu0
      %9601 = vmatprep.mubr.bf16.mxu0 0
      %9602 = vmatmul.mubr.bf16.gmra.mrb[0].mxu0 %v9468
      %v9603 = vpop.f32.mrb[0].mxu0
      %v9604 = vadd.f32 0.0, %v9603
      %v9605 = vpop.f32.mrb[0].mxu0
      %v9606 = vpop.f32.mrb[0].mxu0
      %v9607 = vadd.f32 0.0, %v9606
      %v9608 = vpop.f32.mrb[0].mxu0
      %9609 = vmatprep.mubr.bf16.mxu0 0
      %9610 = vmatmul.mubr.bf16.gmra.mrb[0].mxu0 %v9469
      %v9611 = vpop.f32.mrb[0].mxu0
      %v9612 = vadd.f32 0.0, %v9611
      %v9613 = vpop.f32.mrb[0].mxu0
      %v9614 = vpop.f32.mrb[0].mxu0
      %v9615 = vadd.f32 0.0, %v9614
      %v9616 = vpop.f32.mrb[0].mxu0
      %9617 = vmatprep.mubr.bf16.mxu0 0
      %9618 = vmatmul.mubr.bf16.gmra.mrb[0].mxu0 %v9470
      %v9619 = vpop.f32.mrb[0].mxu0
      %v9620 = vadd.f32 0.0, %v9619
      %v9621 = vpop.f32.mrb[0].mxu0
      %v9622 = vpop.f32.mrb[0].mxu0
      %v9623 = vadd.f32 0.0, %v9622
      %v9624 = vpop.f32.mrb[0].mxu0
      %9625 = vmatprep.mubr.bf16.mxu0 0
      %9626 = vmatmul.mubr.bf16.gmra.mrb[0].mxu0 %v9471
      %v9627 = vpop.f32.mrb[0].mxu0
      %v9628 = vadd.f32 0.0, %v9627
      %v9629 = vpop.f32.mrb[0].mxu0
      %v9630 = vpop.f32.mrb[0].mxu0
      %v9631 = vadd.f32 0.0, %v9630
      %v9632 = vpop.f32.mrb[0].mxu0
      %9633 = vmatprep.mubr.bf16.mxu0 0
      %9634 = vmatmul.mubr.bf16.gmra.mrb[0].mxu0 %v9472
      %v9635 = vpop.f32.mrb[0].mxu0
      %v9636 = vadd.f32 0.0, %v9635
      %v9637 = vpop.f32.mrb[0].mxu0
      %v9638 = vpop.f32.mrb[0].mxu0
      %v9639 = vadd.f32 0.0, %v9638
      %v9640 = vpop.f32.mrb[0].mxu0
      %9641 = vmatprep.mubr.bf16.mxu0 0
      %9642 = vmatmul.mubr.bf16.gmra.mrb[0].mxu0 %v9473
      %v9643 = vpop.f32.mrb[0].mxu0
      %v9644 = vadd.f32 0.0, %v9643
      %v9645 = vpop.f32.mrb[0].mxu0
      %v9646 = vpop.f32.mrb[0].mxu0
      %v9647 = vadd.f32 0.0, %v9646
      %v9648 = vpop.f32.mrb[0].mxu0
      %9649 = vmatprep.mubr.bf16.mxu0 0
      %9650 = vmatmul.mubr.bf16.gmra.mrb[0].mxu0 %v9474
      %v9651 = vpop.f32.mrb[0].mxu0
      %v9652 = vadd.f32 0.0, %v9651
      %v9653 = vpop.f32.mrb[0].mxu0
      %v9654 = vpop.f32.mrb[0].mxu0
      %v9655 = vadd.f32 0.0, %v9654
      %v9656 = vpop.f32.mrb[0].mxu0
      %9657 = vmatprep.mubr.bf16.mxu0 0
      %9658 = vmatmul.mubr.bf16.gmra.mrb[0].mxu0 %v9475
      %v9659 = vpop.f32.mrb[0].mxu0
      %v9660 = vadd.f32 0.0, %v9659
      %v9661 = vpop.f32.mrb[0].mxu0
      %v9662 = vpop.f32.mrb[0].mxu0
      %v9663 = vadd.f32 0.0, %v9662
      %v9664 = vpop.f32.mrb[0].mxu0
      %9665 = vmatprep.mubr.bf16.mxu0 0
      %9666 = vmatmul.mubr.bf16.gmra.mrb[0].mxu0 %v9476
      %v9667 = vpop.f32.mrb[0].mxu0
      %v9668 = vadd.f32 0.0, %v9667
      %v9669 = vpop.f32.mrb[0].mxu0
      %v9670 = vpop.f32.mrb[0].mxu0
      %v9671 = vadd.f32 0.0, %v9670
      %v9672 = vpop.f32.mrb[0].mxu0
      %9673 = vmatprep.mubr.bf16.mxu0 0
      %9674 = vmatmul.mubr.bf16.gmra.mrb[0].mxu0 %v9477
      %v9675 = vpop.f32.mrb[0].mxu0
      %v9676 = vadd.f32 0.0, %v9675
      %v9677 = vpop.f32.mrb[0].mxu0
      %v9678 = vpop.f32.mrb[0].mxu0
      %v9679 = vadd.f32 0.0, %v9678
      %v9680 = vpop.f32.mrb[0].mxu0
      %9681 = vmatprep.mubr.bf16.mxu0 0
      %9682 = vmatmul.mubr.bf16.gmra.mrb[0].mxu0 %v9478
      %v9683 = vpop.f32.mrb[0].mxu0
      %v9684 = vadd.f32 0.0, %v9683
      %v9685 = vpop.f32.mrb[0].mxu0
      %v9686 = vpop.f32.mrb[0].mxu0
      %v9687 = vadd.f32 0.0, %v9686
      %v9688 = vpop.f32.mrb[0].mxu0
      %9689 = vmatprep.mubr.bf16.mxu0 0
      %9690 = vmatmul.mubr.bf16.gmra.mrb[0].mxu0 %v9479
      %v9691 = vpop.f32.mrb[0].mxu0
      %v9692 = vadd.f32 0.0, %v9691
      %v9693 = vpop.f32.mrb[0].mxu0
      %v9694 = vpop.f32.mrb[0].mxu0
      %v9695 = vadd.f32 0.0, %v9694
      %v9696 = vpop.f32.mrb[0].mxu0
      %9697 = vmatprep.mubr.bf16.mxu0 0
      %9698 = vmatmul.mubr.bf16.gmra.mrb[0].mxu0 %v9480
      %v9699 = vpop.f32.mrb[0].mxu0
      %v9700 = vadd.f32 0.0, %v9699
      %v9701 = vpop.f32.mrb[0].mxu0
      %v9702 = vpop.f32.mrb[0].mxu0
      %v9703 = vadd.f32 0.0, %v9702
      %v9704 = vpop.f32.mrb[0].mxu0
      %9705 = vdwg.mxu0
      %v9706 = vadd.f32 %v9319, %v9580
      %v9707 = vadd.f32 %v9320, %v9583
      %v9708 = vadd.f32 %v9321, %v9588
      %v9709 = vadd.f32 %v9322, %v9591
      %v9710 = vadd.f32 %v9323, %v9596
      %v9711 = vadd.f32 %v9324, %v9599
      %v9712 = vadd.f32 %v9325, %v9604
      %v9713 = vadd.f32 %v9326, %v9607
      %v9714 = vadd.f32 %v9327, %v9612
      %v9715 = vadd.f32 %v9328, %v9615
      %v9716 = vadd.f32 %v9329, %v9620
      %v9717 = vadd.f32 %v9330, %v9623
      %v9718 = vadd.f32 %v9331, %v9628
      %v9719 = vadd.f32 %v9332, %v9631
      %v9720 = vadd.f32 %v9333, %v9636
      %v9721 = vadd.f32 %v9334, %v9639
      %v9722 = vadd.f32 %v9335, %v9644
      %v9723 = vadd.f32 %v9336, %v9647
      %v9724 = vadd.f32 %v9337, %v9652
      %v9725 = vadd.f32 %v9338, %v9655
      %v9726 = vadd.f32 %v9339, %v9660
      %v9727 = vadd.f32 %v9340, %v9663
      %v9728 = vadd.f32 %v9341, %v9668
      %v9729 = vadd.f32 %v9342, %v9671
      %v9730 = vadd.f32 %v9343, %v9676
      %v9731 = vadd.f32 %v9344, %v9679
      %v9732 = vadd.f32 %v9345, %v9684
      %v9733 = vadd.f32 %v9346, %v9687
      %v9734 = vadd.f32 %v9347, %v9692
      %v9735 = vadd.f32 %v9348, %v9695
      %v9736 = vadd.f32 %v9349, %v9700
      %v9737 = vadd.f32 %v9350, %v9703
      %v9738 = vld [vmem:[%s9351] sm:$0xf]
      %v9739 = vld [vmem:[%s9351 + $0x4] sm:$0xf]
      %v9740 = vld [vmem:[%s9351 + $0x8] sm:$0x1]
      %v9741 = vld [vmem:[%s9351 + $0xc] sm:$0xf]
      %v9742 = vld [vmem:[%s9351 + $0x10] sm:$0xf]
      %v9743 = vld [vmem:[%s9351 + $0x14] sm:$0x1]
      %v9744 = vld [vmem:[%s9351 + $0x18] sm:$0xf]
      %v9745 = vld [vmem:[%s9351 + $0x1c] sm:$0xf]
      %v9746 = vld [vmem:[%s9351 + $0x20] sm:$0x1]
      %v9747 = vld [vmem:[%s9351 + $0x24] sm:$0xf]
      %v9748 = vld [vmem:[%s9351 + $0x28] sm:$0xf]
      %v9749 = vld [vmem:[%s9351 + $0x2c] sm:$0x1]
      %v9750 = vld [vmem:[%s9351 + $0x30] sm:$0xf]
      %v9751 = vld [vmem:[%s9351 + $0x34] sm:$0xf]
      %v9752 = vld [vmem:[%s9351 + $0x38] sm:$0x1]
      %v9753 = vld [vmem:[%s9351 + $0x3c] sm:$0xf]
      %v9754 = vld [vmem:[%s9351 + $0x40] sm:$0xf]
      %v9755 = vld [vmem:[%s9351 + $0x44] sm:$0x1]
      %v9756 = vld [vmem:[%s9351 + $0x48] sm:$0xf]
      %v9757 = vld [vmem:[%s9351 + $0x4c] sm:$0xf]
      %v9758 = vld [vmem:[%s9351 + $0x50] sm:$0x1]
      %v9759 = vld [vmem:[%s9351 + $0x54] sm:$0xf]
      %v9760 = vld [vmem:[%s9351 + $0x58] sm:$0xf]
      %v9761 = vld [vmem:[%s9351 + $0x5c] sm:$0x1]
      %v9762 = vld [vmem:[%s9351 + $0x60] sm:$0xf]
      %v9763 = vld [vmem:[%s9351 + $0x64] sm:$0xf]
      %v9764 = vld [vmem:[%s9351 + $0x68] sm:$0x1]
      %v9765 = vld [vmem:[%s9351 + $0x6c] sm:$0xf]
      %v9766 = vld [vmem:[%s9351 + $0x70] sm:$0xf]
      %v9767 = vld [vmem:[%s9351 + $0x74] sm:$0x1]
      %v9768 = vld [vmem:[%s9351 + $0x78] sm:$0xf]
      %v9769 = vld [vmem:[%s9351 + $0x7c] sm:$0xf]
      %v9770 = vld [vmem:[%s9351 + $0x80] sm:$0x1]
      %v9771 = vld [vmem:[%s9351 + $0x84] sm:$0xf]
      %v9772 = vld [vmem:[%s9351 + $0x88] sm:$0xf]
      %v9773 = vld [vmem:[%s9351 + $0x8c] sm:$0x1]
      %v9774 = vld [vmem:[%s9351 + $0x90] sm:$0xf]
      %v9775 = vld [vmem:[%s9351 + $0x94] sm:$0xf]
      %v9776 = vld [vmem:[%s9351 + $0x98] sm:$0x1]
      %v9777 = vld [vmem:[%s9351 + $0x9c] sm:$0xf]
      %v9778 = vld [vmem:[%s9351 + $0xa0] sm:$0xf]
      %v9779 = vld [vmem:[%s9351 + $0xa4] sm:$0x1]
      %v9780 = vld [vmem:[%s9351 + $0xa8] sm:$0xf]
      %v9781 = vld [vmem:[%s9351 + $0xac] sm:$0xf]
      %v9782 = vld [vmem:[%s9351 + $0xb0] sm:$0x1]
      %v9783 = vld [vmem:[%s9351 + $0xb4] sm:$0xf]
      %v9784 = vld [vmem:[%s9351 + $0xb8] sm:$0xf]
      %v9785 = vld [vmem:[%s9351 + $0xbc] sm:$0x1]
      %v9787 = vshrl.u32 %v9738, 16
      %v9789 = vrot.slane %v9787, 4
      %v9790 = vshll.u32 %v9738, 16
      %v9792 = vrot.slane %v9790, 5
      %v9793 = vor.u32 %v9789, %v9792
      %v9794 = vrot.slane %v9793, 4
      %v9796 = vshll.u32 %v9739, 16
      %v9798 = vrot.slane %v9796, 5
      %v9799 = vsel %vm900, %v9794, %v9798
      %v9800 = vshrl.u32 %v9739, 16
      %v9802 = vrot.slane %v9800, 4
      %v9803 = vor.u32 %v9802, %v9798
      %v9804 = vrot.slane %v9803, 4
      %v9806 = vshll.u32 %v9740, 16
      %v9808 = vrot.slane %v9806, 5
      %v9809 = vsel %vm900, %v9804, %v9808
      %v9811 = vshrl.u32 %v9741, 16
      %v9813 = vrot.slane %v9811, 4
      %v9814 = vshll.u32 %v9741, 16
      %v9816 = vrot.slane %v9814, 5
      %v9817 = vor.u32 %v9813, %v9816
      %v9818 = vrot.slane %v9817, 4
      %v9820 = vshll.u32 %v9742, 16
      %v9822 = vrot.slane %v9820, 5
      %v9823 = vsel %vm900, %v9818, %v9822
      %v9824 = vshrl.u32 %v9742, 16
      %v9826 = vrot.slane %v9824, 4
      %v9827 = vor.u32 %v9826, %v9822
      %v9828 = vrot.slane %v9827, 4
      %v9830 = vshll.u32 %v9743, 16
      %v9832 = vrot.slane %v9830, 5
      %v9833 = vsel %vm900, %v9828, %v9832
      %v9835 = vshrl.u32 %v9744, 16
      %v9837 = vrot.slane %v9835, 4
      %v9838 = vshll.u32 %v9744, 16
      %v9840 = vrot.slane %v9838, 5
      %v9841 = vor.u32 %v9837, %v9840
      %v9842 = vrot.slane %v9841, 4
      %v9844 = vshll.u32 %v9745, 16
      %v9846 = vrot.slane %v9844, 5
      %v9847 = vsel %vm900, %v9842, %v9846
      %v9848 = vshrl.u32 %v9745, 16
      %v9850 = vrot.slane %v9848, 4
      %v9851 = vor.u32 %v9850, %v9846
      %v9852 = vrot.slane %v9851, 4
      %v9854 = vshll.u32 %v9746, 16
      %v9856 = vrot.slane %v9854, 5
      %v9857 = vsel %vm900, %v9852, %v9856
      %v9859 = vshrl.u32 %v9747, 16
      %v9861 = vrot.slane %v9859, 4
      %v9862 = vshll.u32 %v9747, 16
      %v9864 = vrot.slane %v9862, 5
      %v9865 = vor.u32 %v9861, %v9864
      %v9866 = vrot.slane %v9865, 4
      %v9868 = vshll.u32 %v9748, 16
      %v9870 = vrot.slane %v9868, 5
      %v9871 = vsel %vm900, %v9866, %v9870
      %v9872 = vshrl.u32 %v9748, 16
      %v9874 = vrot.slane %v9872, 4
      %v9875 = vor.u32 %v9874, %v9870
      %v9876 = vrot.slane %v9875, 4
      %v9878 = vshll.u32 %v9749, 16
      %v9880 = vrot.slane %v9878, 5
      %v9881 = vsel %vm900, %v9876, %v9880
      %v9883 = vshrl.u32 %v9750, 16
      %v9885 = vrot.slane %v9883, 4
      %v9886 = vshll.u32 %v9750, 16
      %v9888 = vrot.slane %v9886, 5
      %v9889 = vor.u32 %v9885, %v9888
      %v9890 = vrot.slane %v9889, 4
      %v9892 = vshll.u32 %v9751, 16
      %v9894 = vrot.slane %v9892, 5
      %v9895 = vsel %vm900, %v9890, %v9894
      %v9896 = vshrl.u32 %v9751, 16
      %v9898 = vrot.slane %v9896, 4
      %v9899 = vor.u32 %v9898, %v9894
      %v9900 = vrot.slane %v9899, 4
      %v9902 = vshll.u32 %v9752, 16
      %v9904 = vrot.slane %v9902, 5
      %v9905 = vsel %vm900, %v9900, %v9904
      %v9907 = vshrl.u32 %v9753, 16
      %v9909 = vrot.slane %v9907, 4
      %v9910 = vshll.u32 %v9753, 16
      %v9912 = vrot.slane %v9910, 5
      %v9913 = vor.u32 %v9909, %v9912
      %v9914 = vrot.slane %v9913, 4
      %v9916 = vshll.u32 %v9754, 16
      %v9918 = vrot.slane %v9916, 5
      %v9919 = vsel %vm900, %v9914, %v9918
      %v9920 = vshrl.u32 %v9754, 16
      %v9922 = vrot.slane %v9920, 4
      %v9923 = vor.u32 %v9922, %v9918
      %v9924 = vrot.slane %v9923, 4
      %v9926 = vshll.u32 %v9755, 16
      %v9928 = vrot.slane %v9926, 5
      %v9929 = vsel %vm900, %v9924, %v9928
      %v9931 = vshrl.u32 %v9756, 16
      %v9933 = vrot.slane %v9931, 4
      %v9934 = vshll.u32 %v9756, 16
      %v9936 = vrot.slane %v9934, 5
      %v9937 = vor.u32 %v9933, %v9936
      %v9938 = vrot.slane %v9937, 4
      %v9940 = vshll.u32 %v9757, 16
      %v9942 = vrot.slane %v9940, 5
      %v9943 = vsel %vm900, %v9938, %v9942
      %v9944 = vshrl.u32 %v9757, 16
      %v9946 = vrot.slane %v9944, 4
      %v9947 = vor.u32 %v9946, %v9942
      %v9948 = vrot.slane %v9947, 4
      %v9950 = vshll.u32 %v9758, 16
      %v9952 = vrot.slane %v9950, 5
      %v9953 = vsel %vm900, %v9948, %v9952
      %v9955 = vshrl.u32 %v9759, 16
      %v9957 = vrot.slane %v9955, 4
      %v9958 = vshll.u32 %v9759, 16
      %v9960 = vrot.slane %v9958, 5
      %v9961 = vor.u32 %v9957, %v9960
      %v9962 = vrot.slane %v9961, 4
      %v9964 = vshll.u32 %v9760, 16
      %v9966 = vrot.slane %v9964, 5
      %v9967 = vsel %vm900, %v9962, %v9966
      %v9968 = vshrl.u32 %v9760, 16
      %v9970 = vrot.slane %v9968, 4
      %v9971 = vor.u32 %v9970, %v9966
      %v9972 = vrot.slane %v9971, 4
      %v9974 = vshll.u32 %v9761, 16
      %v9976 = vrot.slane %v9974, 5
      %v9977 = vsel %vm900, %v9972, %v9976
      %v9979 = vshrl.u32 %v9762, 16
      %v9981 = vrot.slane %v9979, 4
      %v9982 = vshll.u32 %v9762, 16
      %v9984 = vrot.slane %v9982, 5
      %v9985 = vor.u32 %v9981, %v9984
      %v9986 = vrot.slane %v9985, 4
      %v9988 = vshll.u32 %v9763, 16
      %v9990 = vrot.slane %v9988, 5
      %v9991 = vsel %vm900, %v9986, %v9990
      %v9992 = vshrl.u32 %v9763, 16
      %v9994 = vrot.slane %v9992, 4
      %v9995 = vor.u32 %v9994, %v9990
      %v9996 = vrot.slane %v9995, 4
      %v9998 = vshll.u32 %v9764, 16
      %v10000 = vrot.slane %v9998, 5
      %v10001 = vsel %vm900, %v9996, %v10000
      %v10003 = vshrl.u32 %v9765, 16
      %v10005 = vrot.slane %v10003, 4
      %v10006 = vshll.u32 %v9765, 16
      %v10008 = vrot.slane %v10006, 5
      %v10009 = vor.u32 %v10005, %v10008
      %v10010 = vrot.slane %v10009, 4
      %v10012 = vshll.u32 %v9766, 16
      %v10014 = vrot.slane %v10012, 5
      %v10015 = vsel %vm900, %v10010, %v10014
      %v10016 = vshrl.u32 %v9766, 16
      %v10018 = vrot.slane %v10016, 4
      %v10019 = vor.u32 %v10018, %v10014
      %v10020 = vrot.slane %v10019, 4
      %v10022 = vshll.u32 %v9767, 16
      %v10024 = vrot.slane %v10022, 5
      %v10025 = vsel %vm900, %v10020, %v10024
      %v10027 = vshrl.u32 %v9768, 16
      %v10029 = vrot.slane %v10027, 4
      %v10030 = vshll.u32 %v9768, 16
      %v10032 = vrot.slane %v10030, 5
      %v10033 = vor.u32 %v10029, %v10032
      %v10034 = vrot.slane %v10033, 4
      %v10036 = vshll.u32 %v9769, 16
      %v10038 = vrot.slane %v10036, 5
      %v10039 = vsel %vm900, %v10034, %v10038
      %v10040 = vshrl.u32 %v9769, 16
      %v10042 = vrot.slane %v10040, 4
      %v10043 = vor.u32 %v10042, %v10038
      %v10044 = vrot.slane %v10043, 4
      %v10046 = vshll.u32 %v9770, 16
      %v10048 = vrot.slane %v10046, 5
      %v10049 = vsel %vm900, %v10044, %v10048
      %v10051 = vshrl.u32 %v9771, 16
      %v10053 = vrot.slane %v10051, 4
      %v10054 = vshll.u32 %v9771, 16
      %v10056 = vrot.slane %v10054, 5
      %v10057 = vor.u32 %v10053, %v10056
      %v10058 = vrot.slane %v10057, 4
      %v10060 = vshll.u32 %v9772, 16
      %v10062 = vrot.slane %v10060, 5
      %v10063 = vsel %vm900, %v10058, %v10062
      %v10064 = vshrl.u32 %v9772, 16
      %v10066 = vrot.slane %v10064, 4
      %v10067 = vor.u32 %v10066, %v10062
      %v10068 = vrot.slane %v10067, 4
      %v10070 = vshll.u32 %v9773, 16
      %v10072 = vrot.slane %v10070, 5
      %v10073 = vsel %vm900, %v10068, %v10072
      %v10075 = vshrl.u32 %v9774, 16
      %v10077 = vrot.slane %v10075, 4
      %v10078 = vshll.u32 %v9774, 16
      %v10080 = vrot.slane %v10078, 5
      %v10081 = vor.u32 %v10077, %v10080
      %v10082 = vrot.slane %v10081, 4
      %v10084 = vshll.u32 %v9775, 16
      %v10086 = vrot.slane %v10084, 5
      %v10087 = vsel %vm900, %v10082, %v10086
      %v10088 = vshrl.u32 %v9775, 16
      %v10090 = vrot.slane %v10088, 4
      %v10091 = vor.u32 %v10090, %v10086
      %v10092 = vrot.slane %v10091, 4
      %v10094 = vshll.u32 %v9776, 16
      %v10096 = vrot.slane %v10094, 5
      %v10097 = vsel %vm900, %v10092, %v10096
      %v10099 = vshrl.u32 %v9777, 16
      %v10101 = vrot.slane %v10099, 4
      %v10102 = vshll.u32 %v9777, 16
      %v10104 = vrot.slane %v10102, 5
      %v10105 = vor.u32 %v10101, %v10104
      %v10106 = vrot.slane %v10105, 4
      %v10108 = vshll.u32 %v9778, 16
      %v10110 = vrot.slane %v10108, 5
      %v10111 = vsel %vm900, %v10106, %v10110
      %v10112 = vshrl.u32 %v9778, 16
      %v10114 = vrot.slane %v10112, 4
      %v10115 = vor.u32 %v10114, %v10110
      %v10116 = vrot.slane %v10115, 4
      %v10118 = vshll.u32 %v9779, 16
      %v10120 = vrot.slane %v10118, 5
      %v10121 = vsel %vm900, %v10116, %v10120
      %v10123 = vshrl.u32 %v9780, 16
      %v10125 = vrot.slane %v10123, 4
      %v10126 = vshll.u32 %v9780, 16
      %v10128 = vrot.slane %v10126, 5
      %v10129 = vor.u32 %v10125, %v10128
      %v10130 = vrot.slane %v10129, 4
      %v10132 = vshll.u32 %v9781, 16
      %v10134 = vrot.slane %v10132, 5
      %v10135 = vsel %vm900, %v10130, %v10134
      %v10136 = vshrl.u32 %v9781, 16
      %v10138 = vrot.slane %v10136, 4
      %v10139 = vor.u32 %v10138, %v10134
      %v10140 = vrot.slane %v10139, 4
      %v10142 = vshll.u32 %v9782, 16
      %v10144 = vrot.slane %v10142, 5
      %v10145 = vsel %vm900, %v10140, %v10144
      %v10147 = vshrl.u32 %v9783, 16
      %v10149 = vrot.slane %v10147, 4
      %v10150 = vshll.u32 %v9783, 16
      %v10152 = vrot.slane %v10150, 5
      %v10153 = vor.u32 %v10149, %v10152
      %v10154 = vrot.slane %v10153, 4
      %v10156 = vshll.u32 %v9784, 16
      %v10158 = vrot.slane %v10156, 5
      %v10159 = vsel %vm900, %v10154, %v10158
      %v10160 = vshrl.u32 %v9784, 16
      %v10162 = vrot.slane %v10160, 4
      %v10163 = vor.u32 %v10162, %v10158
      %v10164 = vrot.slane %v10163, 4
      %v10166 = vshll.u32 %v9785, 16
      %v10168 = vrot.slane %v10166, 5
      %v10169 = vsel %vm900, %v10164, %v10168
      %s10170 = scalar_lea.vmem %s2, 448
      %v10171 = vld [vmem:[%s10170] sm:$0xf]
      %v10172 = vld [vmem:[%s10170 + $0x4] sm:$0xf]
      %v10173 = vld [vmem:[%s10170 + $0x8] sm:$0xf]
      %v10174 = vld [vmem:[%s10170 + $0xc] sm:$0xf]
      %v10175 = vld [vmem:[%s10170 + $0x10] sm:$0xf]
      %v10176 = vld [vmem:[%s10170 + $0x14] sm:$0xf]
      %v10177 = vld [vmem:[%s10170 + $0x18] sm:$0xf]
      %v10178 = vld [vmem:[%s10170 + $0x1c] sm:$0xf]
      %v10179 = vld [vmem:[%s10170 + $0x20] sm:$0xf]
      %v10180 = vld [vmem:[%s10170 + $0x24] sm:$0xf]
      %v10181 = vld [vmem:[%s10170 + $0x28] sm:$0xf]
      %v10182 = vld [vmem:[%s10170 + $0x2c] sm:$0xf]
      %v10183 = vld [vmem:[%s10170 + $0x30] sm:$0xf]
      %v10184 = vld [vmem:[%s10170 + $0x34] sm:$0xf]
      %v10185 = vld [vmem:[%s10170 + $0x38] sm:$0xf]
      %v10186 = vld [vmem:[%s10170 + $0x3c] sm:$0xf]
      %v10187 = vunpack.c.l.b16 %v9799
      %v10188 = vunpack.c.l.b16 %v9809
      %v10189 = vunpack.c.l.b16 %v9823
      %v10190 = vunpack.c.l.b16 %v9833
      %v10191 = vunpack.c.l.b16 %v9847
      %v10192 = vunpack.c.l.b16 %v9857
      %v10193 = vunpack.c.l.b16 %v9871
      %v10194 = vunpack.c.l.b16 %v9881
      %v10195 = vunpack.c.l.b16 %v9895
      %v10196 = vunpack.c.l.b16 %v9905
      %v10197 = vunpack.c.l.b16 %v9919
      %v10198 = vunpack.c.l.b16 %v9929
      %v10199 = vunpack.c.l.b16 %v9943
      %v10200 = vunpack.c.l.b16 %v9953
      %v10201 = vunpack.c.l.b16 %v9967
      %v10202 = vunpack.c.l.b16 %v9977
      %v10203 = vunpack.c.l.b16 %v9991
      %v10204 = vunpack.c.l.b16 %v10001
      %v10205 = vunpack.c.l.b16 %v10015
      %v10206 = vunpack.c.l.b16 %v10025
      %v10207 = vunpack.c.l.b16 %v10039
      %v10208 = vunpack.c.l.b16 %v10049
      %v10209 = vunpack.c.l.b16 %v10063
      %v10210 = vunpack.c.l.b16 %v10073
      %v10211 = vunpack.c.l.b16 %v10087
      %v10212 = vunpack.c.l.b16 %v10097
      %v10213 = vunpack.c.l.b16 %v10111
      %v10214 = vunpack.c.l.b16 %v10121
      %v10215 = vunpack.c.l.b16 %v10135
      %v10216 = vunpack.c.l.b16 %v10145
      %v10217 = vunpack.c.l.b16 %v10159
      %v10218 = vunpack.c.l.b16 %v10169
      %v10219 = vpack.c.b16 %v10188, %v10187
      %v10220 = vpack.c.b16 %v10190, %v10189
      %v10221 = vpack.c.b16 %v10192, %v10191
      %v10222 = vpack.c.b16 %v10194, %v10193
      %v10223 = vpack.c.b16 %v10196, %v10195
      %v10224 = vpack.c.b16 %v10198, %v10197
      %v10225 = vpack.c.b16 %v10200, %v10199
      %v10226 = vpack.c.b16 %v10202, %v10201
      %v10227 = vpack.c.b16 %v10204, %v10203
      %v10228 = vpack.c.b16 %v10206, %v10205
      %v10229 = vpack.c.b16 %v10208, %v10207
      %v10230 = vpack.c.b16 %v10210, %v10209
      %v10231 = vpack.c.b16 %v10212, %v10211
      %v10232 = vpack.c.b16 %v10214, %v10213
      %v10233 = vpack.c.b16 %v10216, %v10215
      %v10234 = vpack.c.b16 %v10218, %v10217
      %v10267 = vunpack.c.l.b16 %v10171
      %v10268 = vunpack.c.l.b16 %v10172
      %v10269 = vunpack.c.l.b16 %v10173
      %v10270 = vunpack.c.l.b16 %v10174
      %v10271 = vunpack.c.l.b16 %v10175
      %v10272 = vunpack.c.l.b16 %v10176
      %v10273 = vunpack.c.l.b16 %v10177
      %v10274 = vunpack.c.l.b16 %v10178
      %v10275 = vunpack.c.l.b16 %v10179
      %v10276 = vunpack.c.l.b16 %v10180
      %v10277 = vunpack.c.l.b16 %v10181
      %v10278 = vunpack.c.l.b16 %v10182
      %v10279 = vunpack.c.l.b16 %v10183
      %v10280 = vunpack.c.l.b16 %v10184
      %v10281 = vunpack.c.l.b16 %v10185
      %v10282 = vunpack.c.l.b16 %v10186
      %v10283 = vpack.c.b16 %v10268, %v10267
      %v10284 = vpack.c.b16 %v10270, %v10269
      %v10285 = vpack.c.b16 %v10272, %v10271
      %v10286 = vpack.c.b16 %v10274, %v10273
      %v10287 = vpack.c.b16 %v10276, %v10275
      %v10288 = vpack.c.b16 %v10278, %v10277
      %v10289 = vpack.c.b16 %v10280, %v10279
      %v10290 = vpack.c.b16 %v10282, %v10281
      %10299 = vmatprep.subr.bf16.mxu0 0
      %10300 = vmatpush1.bf16.msra.mxu0 %v10283
      %10301 = vmatprep.subr.bf16.mxu0 0
      %10302 = vmatpush1.bf16.msra.mxu0 %v10284
      %10303 = vmatprep.subr.bf16.mxu0 0
      %10304 = vmatpush1.bf16.msra.mxu0 %v10285
      %10305 = vmatprep.subr.bf16.mxu0 0
      %10306 = vmatpush1.bf16.msra.mxu0 %v10286
      %10307 = vmatprep.subr.bf16.mxu0 0
      %10308 = vmatpush1.bf16.msra.mxu0 %v10287
      %10309 = vmatprep.subr.bf16.mxu0 0
      %10310 = vmatpush1.bf16.msra.mxu0 %v10288
      %10311 = vmatprep.subr.bf16.mxu0 0
      %10312 = vmatpush1.bf16.msra.mxu0 %v10289
      %10313 = vmatprep.subr.bf16.mxu0 0
      %10314 = vmatpush1.bf16.msra.mxu0 %v10290
      %10315 = vmatprep.subr.bf16.mxu0 0
      %10316 = vmatpush1.bf16.msra.mxu0 0
      %10317 = vmatprep.subr.bf16.mxu0 0
      %10318 = vmatpush1.bf16.msra.mxu0 0
      %10319 = vmatprep.subr.bf16.mxu0 0
      %10320 = vmatpush1.bf16.msra.mxu0 0
      %10321 = vmatprep.subr.bf16.mxu0 0
      %10322 = vmatpush1.bf16.msra.mxu0 0
      %10323 = vmatprep.subr.bf16.mxu0 0
      %10324 = vmatpush1.bf16.msra.mxu0 0
      %10325 = vmatprep.subr.bf16.mxu0 0
      %10326 = vmatpush1.bf16.msra.mxu0 0
      %10327 = vmatprep.subr.bf16.mxu0 0
      %10328 = vmatpush1.bf16.msra.mxu0 0
      %10329 = vmatprep.subr.bf16.mxu0 0
      %10330 = vmatpush1.bf16.msra.mxu0 0
      %10331 = vmatprep.mubr.bf16.mxu0 0
      %10332 = vmatmul.mubr.bf16.gmra.mrb[0].mxu0 %v10219
      %v10333 = vpop.f32.mrb[0].mxu0
      %v10334 = vadd.f32 0.0, %v10333
      %v10335 = vpop.f32.mrb[0].mxu0
      %v10336 = vpop.f32.mrb[0].mxu0
      %v10337 = vadd.f32 0.0, %v10336
      %v10338 = vpop.f32.mrb[0].mxu0
      %10339 = vmatprep.mubr.bf16.mxu0 0
      %10340 = vmatmul.mubr.bf16.gmra.mrb[0].mxu0 %v10220
      %v10341 = vpop.f32.mrb[0].mxu0
      %v10342 = vadd.f32 0.0, %v10341
      %v10343 = vpop.f32.mrb[0].mxu0
      %v10344 = vpop.f32.mrb[0].mxu0
      %v10345 = vadd.f32 0.0, %v10344
      %v10346 = vpop.f32.mrb[0].mxu0
      %10347 = vmatprep.mubr.bf16.mxu0 0
      %10348 = vmatmul.mubr.bf16.gmra.mrb[0].mxu0 %v10221
      %v10349 = vpop.f32.mrb[0].mxu0
      %v10350 = vadd.f32 0.0, %v10349
      %v10351 = vpop.f32.mrb[0].mxu0
      %v10352 = vpop.f32.mrb[0].mxu0
      %v10353 = vadd.f32 0.0, %v10352
      %v10354 = vpop.f32.mrb[0].mxu0
      %10355 = vmatprep.mubr.bf16.mxu0 0
      %10356 = vmatmul.mubr.bf16.gmra.mrb[0].mxu0 %v10222
      %v10357 = vpop.f32.mrb[0].mxu0
      %v10358 = vadd.f32 0.0, %v10357
      %v10359 = vpop.f32.mrb[0].mxu0
      %v10360 = vpop.f32.mrb[0].mxu0
      %v10361 = vadd.f32 0.0, %v10360
      %v10362 = vpop.f32.mrb[0].mxu0
      %10363 = vmatprep.mubr.bf16.mxu0 0
      %10364 = vmatmul.mubr.bf16.gmra.mrb[0].mxu0 %v10223
      %v10365 = vpop.f32.mrb[0].mxu0
      %v10366 = vadd.f32 0.0, %v10365
      %v10367 = vpop.f32.mrb[0].mxu0
      %v10368 = vpop.f32.mrb[0].mxu0
      %v10369 = vadd.f32 0.0, %v10368
      %v10370 = vpop.f32.mrb[0].mxu0
      %10371 = vmatprep.mubr.bf16.mxu0 0
      %10372 = vmatmul.mubr.bf16.gmra.mrb[0].mxu0 %v10224
      %v10373 = vpop.f32.mrb[0].mxu0
      %v10374 = vadd.f32 0.0, %v10373
      %v10375 = vpop.f32.mrb[0].mxu0
      %v10376 = vpop.f32.mrb[0].mxu0
      %v10377 = vadd.f32 0.0, %v10376
      %v10378 = vpop.f32.mrb[0].mxu0
      %10379 = vmatprep.mubr.bf16.mxu0 0
      %10380 = vmatmul.mubr.bf16.gmra.mrb[0].mxu0 %v10225
      %v10381 = vpop.f32.mrb[0].mxu0
      %v10382 = vadd.f32 0.0, %v10381
      %v10383 = vpop.f32.mrb[0].mxu0
      %v10384 = vpop.f32.mrb[0].mxu0
      %v10385 = vadd.f32 0.0, %v10384
      %v10386 = vpop.f32.mrb[0].mxu0
      %10387 = vmatprep.mubr.bf16.mxu0 0
      %10388 = vmatmul.mubr.bf16.gmra.mrb[0].mxu0 %v10226
      %v10389 = vpop.f32.mrb[0].mxu0
      %v10390 = vadd.f32 0.0, %v10389
      %v10391 = vpop.f32.mrb[0].mxu0
      %v10392 = vpop.f32.mrb[0].mxu0
      %v10393 = vadd.f32 0.0, %v10392
      %v10394 = vpop.f32.mrb[0].mxu0
      %10395 = vmatprep.mubr.bf16.mxu0 0
      %10396 = vmatmul.mubr.bf16.gmra.mrb[0].mxu0 %v10227
      %v10397 = vpop.f32.mrb[0].mxu0
      %v10398 = vadd.f32 0.0, %v10397
      %v10399 = vpop.f32.mrb[0].mxu0
      %v10400 = vpop.f32.mrb[0].mxu0
      %v10401 = vadd.f32 0.0, %v10400
      %v10402 = vpop.f32.mrb[0].mxu0
      %10403 = vmatprep.mubr.bf16.mxu0 0
      %10404 = vmatmul.mubr.bf16.gmra.mrb[0].mxu0 %v10228
      %v10405 = vpop.f32.mrb[0].mxu0
      %v10406 = vadd.f32 0.0, %v10405
      %v10407 = vpop.f32.mrb[0].mxu0
      %v10408 = vpop.f32.mrb[0].mxu0
      %v10409 = vadd.f32 0.0, %v10408
      %v10410 = vpop.f32.mrb[0].mxu0
      %10411 = vmatprep.mubr.bf16.mxu0 0
      %10412 = vmatmul.mubr.bf16.gmra.mrb[0].mxu0 %v10229
      %v10413 = vpop.f32.mrb[0].mxu0
      %v10414 = vadd.f32 0.0, %v10413
      %v10415 = vpop.f32.mrb[0].mxu0
      %v10416 = vpop.f32.mrb[0].mxu0
      %v10417 = vadd.f32 0.0, %v10416
      %v10418 = vpop.f32.mrb[0].mxu0
      %10419 = vmatprep.mubr.bf16.mxu0 0
      %10420 = vmatmul.mubr.bf16.gmra.mrb[0].mxu0 %v10230
      %v10421 = vpop.f32.mrb[0].mxu0
      %v10422 = vadd.f32 0.0, %v10421
      %v10423 = vpop.f32.mrb[0].mxu0
      %v10424 = vpop.f32.mrb[0].mxu0
      %v10425 = vadd.f32 0.0, %v10424
      %v10426 = vpop.f32.mrb[0].mxu0
      %10427 = vmatprep.mubr.bf16.mxu0 0
      %10428 = vmatmul.mubr.bf16.gmra.mrb[0].mxu0 %v10231
      %v10429 = vpop.f32.mrb[0].mxu0
      %v10430 = vadd.f32 0.0, %v10429
      %v10431 = vpop.f32.mrb[0].mxu0
      %v10432 = vpop.f32.mrb[0].mxu0
      %v10433 = vadd.f32 0.0, %v10432
      %v10434 = vpop.f32.mrb[0].mxu0
      %10435 = vmatprep.mubr.bf16.mxu0 0
      %10436 = vmatmul.mubr.bf16.gmra.mrb[0].mxu0 %v10232
      %v10437 = vpop.f32.mrb[0].mxu0
      %v10438 = vadd.f32 0.0, %v10437
      %v10439 = vpop.f32.mrb[0].mxu0
      %v10440 = vpop.f32.mrb[0].mxu0
      %v10441 = vadd.f32 0.0, %v10440
      %v10442 = vpop.f32.mrb[0].mxu0
      %10443 = vmatprep.mubr.bf16.mxu0 0
      %10444 = vmatmul.mubr.bf16.gmra.mrb[0].mxu0 %v10233
      %v10445 = vpop.f32.mrb[0].mxu0
      %v10446 = vadd.f32 0.0, %v10445
      %v10447 = vpop.f32.mrb[0].mxu0
      %v10448 = vpop.f32.mrb[0].mxu0
      %v10449 = vadd.f32 0.0, %v10448
      %v10450 = vpop.f32.mrb[0].mxu0
      %10451 = vmatprep.mubr.bf16.mxu0 0
      %10452 = vmatmul.mubr.bf16.gmra.mrb[0].mxu0 %v10234
      %v10453 = vpop.f32.mrb[0].mxu0
      %v10454 = vadd.f32 0.0, %v10453
      %v10455 = vpop.f32.mrb[0].mxu0
      %v10456 = vpop.f32.mrb[0].mxu0
      %v10457 = vadd.f32 0.0, %v10456
      %v10458 = vpop.f32.mrb[0].mxu0
      %10459 = vdwg.mxu0
      %v10460 = vadd.f32 %v9706, %v10334
      %v10461 = vadd.f32 %v9707, %v10337
      %v10462 = vadd.f32 %v9708, %v10342
      %v10463 = vadd.f32 %v9709, %v10345
      %v10464 = vadd.f32 %v9710, %v10350
      %v10465 = vadd.f32 %v9711, %v10353
      %v10466 = vadd.f32 %v9712, %v10358
      %v10467 = vadd.f32 %v9713, %v10361
      %v10468 = vadd.f32 %v9714, %v10366
      %v10469 = vadd.f32 %v9715, %v10369
      %v10470 = vadd.f32 %v9716, %v10374
      %v10471 = vadd.f32 %v9717, %v10377
      %v10472 = vadd.f32 %v9718, %v10382
      %v10473 = vadd.f32 %v9719, %v10385
      %v10474 = vadd.f32 %v9720, %v10390
      %v10475 = vadd.f32 %v9721, %v10393
      %v10476 = vadd.f32 %v9722, %v10398
      %v10477 = vadd.f32 %v9723, %v10401
      %v10478 = vadd.f32 %v9724, %v10406
      %v10479 = vadd.f32 %v9725, %v10409
      %v10480 = vadd.f32 %v9726, %v10414
      %v10481 = vadd.f32 %v9727, %v10417
      %v10482 = vadd.f32 %v9728, %v10422
      %v10483 = vadd.f32 %v9729, %v10425
      %v10484 = vadd.f32 %v9730, %v10430
      %v10485 = vadd.f32 %v9731, %v10433
      %v10486 = vadd.f32 %v9732, %v10438
      %v10487 = vadd.f32 %v9733, %v10441
      %v10488 = vadd.f32 %v9734, %v10446
      %v10489 = vadd.f32 %v9735, %v10449
      %v10490 = vadd.f32 %v9736, %v10454
      %v10491 = vadd.f32 %v9737, %v10457
      %v10492 = vld [vmem:[%s9351] sm:$0xe]
      %v10493 = vld [vmem:[%s9351 + $0xc] sm:$0xe]
      %v10494 = vld [vmem:[%s9351 + $0x18] sm:$0xe]
      %v10495 = vld [vmem:[%s9351 + $0x24] sm:$0xe]
      %v10496 = vld [vmem:[%s9351 + $0x30] sm:$0xe]
      %v10497 = vld [vmem:[%s9351 + $0x3c] sm:$0xe]
      %v10498 = vld [vmem:[%s9351 + $0x48] sm:$0xe]
      %v10499 = vld [vmem:[%s9351 + $0x54] sm:$0xe]
      %v10500 = vld [vmem:[%s9351 + $0x60] sm:$0xe]
      %v10501 = vld [vmem:[%s9351 + $0x6c] sm:$0xe]
      %v10502 = vld [vmem:[%s9351 + $0x78] sm:$0xe]
      %v10503 = vld [vmem:[%s9351 + $0x84] sm:$0xe]
      %v10504 = vld [vmem:[%s9351 + $0x90] sm:$0xe]
      %v10505 = vld [vmem:[%s9351 + $0x9c] sm:$0xe]
      %v10506 = vld [vmem:[%s9351 + $0xa8] sm:$0xe]
      %v10507 = vld [vmem:[%s9351 + $0xb4] sm:$0xe]
      %v10556 = vrot.slane %v10492, 5
      %v10557 = vrot.slane %v10556, 4
      %v10558 = vrot.slane %v9739, 5
      %v10559 = vsel %vm1891, %v10557, %v10558
      %v10560 = vrot.slane %v10558, 4
      %v10561 = vrot.slane %v9740, 5
      %v10562 = vsel %vm1891, %v10560, %v10561
      %v10563 = vrot.slane %v10493, 5
      %v10564 = vrot.slane %v10563, 4
      %v10565 = vrot.slane %v9742, 5
      %v10566 = vsel %vm1891, %v10564, %v10565
      %v10567 = vrot.slane %v10565, 4
      %v10568 = vrot.slane %v9743, 5
      %v10569 = vsel %vm1891, %v10567, %v10568
      %v10570 = vrot.slane %v10494, 5
      %v10571 = vrot.slane %v10570, 4
      %v10572 = vrot.slane %v9745, 5
      %v10573 = vsel %vm1891, %v10571, %v10572
      %v10574 = vrot.slane %v10572, 4
      %v10575 = vrot.slane %v9746, 5
      %v10576 = vsel %vm1891, %v10574, %v10575
      %v10577 = vrot.slane %v10495, 5
      %v10578 = vrot.slane %v10577, 4
      %v10579 = vrot.slane %v9748, 5
      %v10580 = vsel %vm1891, %v10578, %v10579
      %v10581 = vrot.slane %v10579, 4
      %v10582 = vrot.slane %v9749, 5
      %v10583 = vsel %vm1891, %v10581, %v10582
      %v10584 = vrot.slane %v10496, 5
      %v10585 = vrot.slane %v10584, 4
      %v10586 = vrot.slane %v9751, 5
      %v10587 = vsel %vm1891, %v10585, %v10586
      %v10588 = vrot.slane %v10586, 4
      %v10589 = vrot.slane %v9752, 5
      %v10590 = vsel %vm1891, %v10588, %v10589
      %v10591 = vrot.slane %v10497, 5
      %v10592 = vrot.slane %v10591, 4
      %v10593 = vrot.slane %v9754, 5
      %v10594 = vsel %vm1891, %v10592, %v10593
      %v10595 = vrot.slane %v10593, 4
      %v10596 = vrot.slane %v9755, 5
      %v10597 = vsel %vm1891, %v10595, %v10596
      %v10598 = vrot.slane %v10498, 5
      %v10599 = vrot.slane %v10598, 4
      %v10600 = vrot.slane %v9757, 5
      %v10601 = vsel %vm1891, %v10599, %v10600
      %v10602 = vrot.slane %v10600, 4
      %v10603 = vrot.slane %v9758, 5
      %v10604 = vsel %vm1891, %v10602, %v10603
      %v10605 = vrot.slane %v10499, 5
      %v10606 = vrot.slane %v10605, 4
      %v10607 = vrot.slane %v9760, 5
      %v10608 = vsel %vm1891, %v10606, %v10607
      %v10609 = vrot.slane %v10607, 4
      %v10610 = vrot.slane %v9761, 5
      %v10611 = vsel %vm1891, %v10609, %v10610
      %v10612 = vrot.slane %v10500, 5
      %v10613 = vrot.slane %v10612, 4
      %v10614 = vrot.slane %v9763, 5
      %v10615 = vsel %vm1891, %v10613, %v10614
      %v10616 = vrot.slane %v10614, 4
      %v10617 = vrot.slane %v9764, 5
      %v10618 = vsel %vm1891, %v10616, %v10617
      %v10619 = vrot.slane %v10501, 5
      %v10620 = vrot.slane %v10619, 4
      %v10621 = vrot.slane %v9766, 5
      %v10622 = vsel %vm1891, %v10620, %v10621
      %v10623 = vrot.slane %v10621, 4
      %v10624 = vrot.slane %v9767, 5
      %v10625 = vsel %vm1891, %v10623, %v10624
      %v10626 = vrot.slane %v10502, 5
      %v10627 = vrot.slane %v10626, 4
      %v10628 = vrot.slane %v9769, 5
      %v10629 = vsel %vm1891, %v10627, %v10628
      %v10630 = vrot.slane %v10628, 4
      %v10631 = vrot.slane %v9770, 5
      %v10632 = vsel %vm1891, %v10630, %v10631
      %v10633 = vrot.slane %v10503, 5
      %v10634 = vrot.slane %v10633, 4
      %v10635 = vrot.slane %v9772, 5
      %v10636 = vsel %vm1891, %v10634, %v10635
      %v10637 = vrot.slane %v10635, 4
      %v10638 = vrot.slane %v9773, 5
      %v10639 = vsel %vm1891, %v10637, %v10638
      %v10640 = vrot.slane %v10504, 5
      %v10641 = vrot.slane %v10640, 4
      %v10642 = vrot.slane %v9775, 5
      %v10643 = vsel %vm1891, %v10641, %v10642
      %v10644 = vrot.slane %v10642, 4
      %v10645 = vrot.slane %v9776, 5
      %v10646 = vsel %vm1891, %v10644, %v10645
      %v10647 = vrot.slane %v10505, 5
      %v10648 = vrot.slane %v10647, 4
      %v10649 = vrot.slane %v9778, 5
      %v10650 = vsel %vm1891, %v10648, %v10649
      %v10651 = vrot.slane %v10649, 4
      %v10652 = vrot.slane %v9779, 5
      %v10653 = vsel %vm1891, %v10651, %v10652
      %v10654 = vrot.slane %v10506, 5
      %v10655 = vrot.slane %v10654, 4
      %v10656 = vrot.slane %v9781, 5
      %v10657 = vsel %vm1891, %v10655, %v10656
      %v10658 = vrot.slane %v10656, 4
      %v10659 = vrot.slane %v9782, 5
      %v10660 = vsel %vm1891, %v10658, %v10659
      %v10661 = vrot.slane %v10507, 5
      %v10662 = vrot.slane %v10661, 4
      %v10663 = vrot.slane %v9784, 5
      %v10664 = vsel %vm1891, %v10662, %v10663
      %v10665 = vrot.slane %v10663, 4
      %v10666 = vrot.slane %v9785, 5
      %v10667 = vsel %vm1891, %v10665, %v10666
      %s10668 = scalar_lea.vmem %s2, 512
      %v10669 = vld [vmem:[%s10668] sm:$0xf]
      %v10670 = vld [vmem:[%s10668 + $0x4] sm:$0xf]
      %v10671 = vld [vmem:[%s10668 + $0x8] sm:$0xf]
      %v10672 = vld [vmem:[%s10668 + $0xc] sm:$0xf]
      %v10673 = vld [vmem:[%s10668 + $0x10] sm:$0xf]
      %v10674 = vld [vmem:[%s10668 + $0x14] sm:$0xf]
      %v10675 = vld [vmem:[%s10668 + $0x18] sm:$0xf]
      %v10676 = vld [vmem:[%s10668 + $0x1c] sm:$0xf]
      %v10677 = vld [vmem:[%s10668 + $0x20] sm:$0xf]
      %v10678 = vld [vmem:[%s10668 + $0x24] sm:$0xf]
      %v10679 = vld [vmem:[%s10668 + $0x28] sm:$0xf]
      %v10680 = vld [vmem:[%s10668 + $0x2c] sm:$0xf]
      %v10681 = vld [vmem:[%s10668 + $0x30] sm:$0xf]
      %v10682 = vld [vmem:[%s10668 + $0x34] sm:$0xf]
      %v10683 = vld [vmem:[%s10668 + $0x38] sm:$0xf]
      %v10684 = vld [vmem:[%s10668 + $0x3c] sm:$0xf]
      %v10685 = vunpack.c.l.b16 %v10559
      %v10686 = vunpack.c.l.b16 %v10562
      %v10687 = vunpack.c.l.b16 %v10566
      %v10688 = vunpack.c.l.b16 %v10569
      %v10689 = vunpack.c.l.b16 %v10573
      %v10690 = vunpack.c.l.b16 %v10576
      %v10691 = vunpack.c.l.b16 %v10580
      %v10692 = vunpack.c.l.b16 %v10583
      %v10693 = vunpack.c.l.b16 %v10587
      %v10694 = vunpack.c.l.b16 %v10590
      %v10695 = vunpack.c.l.b16 %v10594
      %v10696 = vunpack.c.l.b16 %v10597
      %v10697 = vunpack.c.l.b16 %v10601
      %v10698 = vunpack.c.l.b16 %v10604
      %v10699 = vunpack.c.l.b16 %v10608
      %v10700 = vunpack.c.l.b16 %v10611
      %v10701 = vunpack.c.l.b16 %v10615
      %v10702 = vunpack.c.l.b16 %v10618
      %v10703 = vunpack.c.l.b16 %v10622
      %v10704 = vunpack.c.l.b16 %v10625
      %v10705 = vunpack.c.l.b16 %v10629
      %v10706 = vunpack.c.l.b16 %v10632
      %v10707 = vunpack.c.l.b16 %v10636
      %v10708 = vunpack.c.l.b16 %v10639
      %v10709 = vunpack.c.l.b16 %v10643
      %v10710 = vunpack.c.l.b16 %v10646
      %v10711 = vunpack.c.l.b16 %v10650
      %v10712 = vunpack.c.l.b16 %v10653
      %v10713 = vunpack.c.l.b16 %v10657
      %v10714 = vunpack.c.l.b16 %v10660
      %v10715 = vunpack.c.l.b16 %v10664
      %v10716 = vunpack.c.l.b16 %v10667
      %v10717 = vpack.c.b16 %v10686, %v10685
      %v10718 = vpack.c.b16 %v10688, %v10687
      %v10719 = vpack.c.b16 %v10690, %v10689
      %v10720 = vpack.c.b16 %v10692, %v10691
      %v10721 = vpack.c.b16 %v10694, %v10693
      %v10722 = vpack.c.b16 %v10696, %v10695
      %v10723 = vpack.c.b16 %v10698, %v10697
      %v10724 = vpack.c.b16 %v10700, %v10699
      %v10725 = vpack.c.b16 %v10702, %v10701
      %v10726 = vpack.c.b16 %v10704, %v10703
      %v10727 = vpack.c.b16 %v10706, %v10705
      %v10728 = vpack.c.b16 %v10708, %v10707
      %v10729 = vpack.c.b16 %v10710, %v10709
      %v10730 = vpack.c.b16 %v10712, %v10711
      %v10731 = vpack.c.b16 %v10714, %v10713
      %v10732 = vpack.c.b16 %v10716, %v10715
      %v10765 = vunpack.c.l.b16 %v10669
      %v10766 = vunpack.c.l.b16 %v10670
      %v10767 = vunpack.c.l.b16 %v10671
      %v10768 = vunpack.c.l.b16 %v10672
      %v10769 = vunpack.c.l.b16 %v10673
      %v10770 = vunpack.c.l.b16 %v10674
      %v10771 = vunpack.c.l.b16 %v10675
      %v10772 = vunpack.c.l.b16 %v10676
      %v10773 = vunpack.c.l.b16 %v10677
      %v10774 = vunpack.c.l.b16 %v10678
      %v10775 = vunpack.c.l.b16 %v10679
      %v10776 = vunpack.c.l.b16 %v10680
      %v10777 = vunpack.c.l.b16 %v10681
      %v10778 = vunpack.c.l.b16 %v10682
      %v10779 = vunpack.c.l.b16 %v10683
      %v10780 = vunpack.c.l.b16 %v10684
      %v10781 = vpack.c.b16 %v10766, %v10765
      %v10782 = vpack.c.b16 %v10768, %v10767
      %v10783 = vpack.c.b16 %v10770, %v10769
      %v10784 = vpack.c.b16 %v10772, %v10771
      %v10785 = vpack.c.b16 %v10774, %v10773
      %v10786 = vpack.c.b16 %v10776, %v10775
      %v10787 = vpack.c.b16 %v10778, %v10777
      %v10788 = vpack.c.b16 %v10780, %v10779
      %10797 = vmatprep.subr.bf16.mxu0 0
      %10798 = vmatpush1.bf16.msra.mxu0 %v10781
      %10799 = vmatprep.subr.bf16.mxu0 0
      %10800 = vmatpush1.bf16.msra.mxu0 %v10782
      %10801 = vmatprep.subr.bf16.mxu0 0
      %10802 = vmatpush1.bf16.msra.mxu0 %v10783
      %10803 = vmatprep.subr.bf16.mxu0 0
      %10804 = vmatpush1.bf16.msra.mxu0 %v10784
      %10805 = vmatprep.subr.bf16.mxu0 0
      %10806 = vmatpush1.bf16.msra.mxu0 %v10785
      %10807 = vmatprep.subr.bf16.mxu0 0
      %10808 = vmatpush1.bf16.msra.mxu0 %v10786
      %10809 = vmatprep.subr.bf16.mxu0 0
      %10810 = vmatpush1.bf16.msra.mxu0 %v10787
      %10811 = vmatprep.subr.bf16.mxu0 0
      %10812 = vmatpush1.bf16.msra.mxu0 %v10788
      %10813 = vmatprep.subr.bf16.mxu0 0
      %10814 = vmatpush1.bf16.msra.mxu0 0
      %10815 = vmatprep.subr.bf16.mxu0 0
      %10816 = vmatpush1.bf16.msra.mxu0 0
      %10817 = vmatprep.subr.bf16.mxu0 0
      %10818 = vmatpush1.bf16.msra.mxu0 0
      %10819 = vmatprep.subr.bf16.mxu0 0
      %10820 = vmatpush1.bf16.msra.mxu0 0
      %10821 = vmatprep.subr.bf16.mxu0 0
      %10822 = vmatpush1.bf16.msra.mxu0 0
      %10823 = vmatprep.subr.bf16.mxu0 0
      %10824 = vmatpush1.bf16.msra.mxu0 0
      %10825 = vmatprep.subr.bf16.mxu0 0
      %10826 = vmatpush1.bf16.msra.mxu0 0
      %10827 = vmatprep.subr.bf16.mxu0 0
      %10828 = vmatpush1.bf16.msra.mxu0 0
      %10829 = vmatprep.mubr.bf16.mxu0 0
      %10830 = vmatmul.mubr.bf16.gmra.mrb[0].mxu0 %v10717
      %v10831 = vpop.f32.mrb[0].mxu0
      %v10832 = vadd.f32 0.0, %v10831
      %v10833 = vpop.f32.mrb[0].mxu0
      %v10834 = vpop.f32.mrb[0].mxu0
      %v10835 = vadd.f32 0.0, %v10834
      %v10836 = vpop.f32.mrb[0].mxu0
      %10837 = vmatprep.mubr.bf16.mxu0 0
      %10838 = vmatmul.mubr.bf16.gmra.mrb[0].mxu0 %v10718
      %v10839 = vpop.f32.mrb[0].mxu0
      %v10840 = vadd.f32 0.0, %v10839
      %v10841 = vpop.f32.mrb[0].mxu0
      %v10842 = vpop.f32.mrb[0].mxu0
      %v10843 = vadd.f32 0.0, %v10842
      %v10844 = vpop.f32.mrb[0].mxu0
      %10845 = vmatprep.mubr.bf16.mxu0 0
      %10846 = vmatmul.mubr.bf16.gmra.mrb[0].mxu0 %v10719
      %v10847 = vpop.f32.mrb[0].mxu0
      %v10848 = vadd.f32 0.0, %v10847
      %v10849 = vpop.f32.mrb[0].mxu0
      %v10850 = vpop.f32.mrb[0].mxu0
      %v10851 = vadd.f32 0.0, %v10850
      %v10852 = vpop.f32.mrb[0].mxu0
      %10853 = vmatprep.mubr.bf16.mxu0 0
      %10854 = vmatmul.mubr.bf16.gmra.mrb[0].mxu0 %v10720
      %v10855 = vpop.f32.mrb[0].mxu0
      %v10856 = vadd.f32 0.0, %v10855
      %v10857 = vpop.f32.mrb[0].mxu0
      %v10858 = vpop.f32.mrb[0].mxu0
      %v10859 = vadd.f32 0.0, %v10858
      %v10860 = vpop.f32.mrb[0].mxu0
      %10861 = vmatprep.mubr.bf16.mxu0 0
      %10862 = vmatmul.mubr.bf16.gmra.mrb[0].mxu0 %v10721
      %v10863 = vpop.f32.mrb[0].mxu0
      %v10864 = vadd.f32 0.0, %v10863
      %v10865 = vpop.f32.mrb[0].mxu0
      %v10866 = vpop.f32.mrb[0].mxu0
      %v10867 = vadd.f32 0.0, %v10866
      %v10868 = vpop.f32.mrb[0].mxu0
      %10869 = vmatprep.mubr.bf16.mxu0 0
      %10870 = vmatmul.mubr.bf16.gmra.mrb[0].mxu0 %v10722
      %v10871 = vpop.f32.mrb[0].mxu0
      %v10872 = vadd.f32 0.0, %v10871
      %v10873 = vpop.f32.mrb[0].mxu0
      %v10874 = vpop.f32.mrb[0].mxu0
      %v10875 = vadd.f32 0.0, %v10874
      %v10876 = vpop.f32.mrb[0].mxu0
      %10877 = vmatprep.mubr.bf16.mxu0 0
      %10878 = vmatmul.mubr.bf16.gmra.mrb[0].mxu0 %v10723
      %v10879 = vpop.f32.mrb[0].mxu0
      %v10880 = vadd.f32 0.0, %v10879
      %v10881 = vpop.f32.mrb[0].mxu0
      %v10882 = vpop.f32.mrb[0].mxu0
      %v10883 = vadd.f32 0.0, %v10882
      %v10884 = vpop.f32.mrb[0].mxu0
      %10885 = vmatprep.mubr.bf16.mxu0 0
      %10886 = vmatmul.mubr.bf16.gmra.mrb[0].mxu0 %v10724
      %v10887 = vpop.f32.mrb[0].mxu0
      %v10888 = vadd.f32 0.0, %v10887
      %v10889 = vpop.f32.mrb[0].mxu0
      %v10890 = vpop.f32.mrb[0].mxu0
      %v10891 = vadd.f32 0.0, %v10890
      %v10892 = vpop.f32.mrb[0].mxu0
      %10893 = vmatprep.mubr.bf16.mxu0 0
      %10894 = vmatmul.mubr.bf16.gmra.mrb[0].mxu0 %v10725
      %v10895 = vpop.f32.mrb[0].mxu0
      %v10896 = vadd.f32 0.0, %v10895
      %v10897 = vpop.f32.mrb[0].mxu0
      %v10898 = vpop.f32.mrb[0].mxu0
      %v10899 = vadd.f32 0.0, %v10898
      %v10900 = vpop.f32.mrb[0].mxu0
      %10901 = vmatprep.mubr.bf16.mxu0 0
      %10902 = vmatmul.mubr.bf16.gmra.mrb[0].mxu0 %v10726
      %v10903 = vpop.f32.mrb[0].mxu0
      %v10904 = vadd.f32 0.0, %v10903
      %v10905 = vpop.f32.mrb[0].mxu0
      %v10906 = vpop.f32.mrb[0].mxu0
      %v10907 = vadd.f32 0.0, %v10906
      %v10908 = vpop.f32.mrb[0].mxu0
      %10909 = vmatprep.mubr.bf16.mxu0 0
      %10910 = vmatmul.mubr.bf16.gmra.mrb[0].mxu0 %v10727
      %v10911 = vpop.f32.mrb[0].mxu0
      %v10912 = vadd.f32 0.0, %v10911
      %v10913 = vpop.f32.mrb[0].mxu0
      %v10914 = vpop.f32.mrb[0].mxu0
      %v10915 = vadd.f32 0.0, %v10914
      %v10916 = vpop.f32.mrb[0].mxu0
      %10917 = vmatprep.mubr.bf16.mxu0 0
      %10918 = vmatmul.mubr.bf16.gmra.mrb[0].mxu0 %v10728
      %v10919 = vpop.f32.mrb[0].mxu0
      %v10920 = vadd.f32 0.0, %v10919
      %v10921 = vpop.f32.mrb[0].mxu0
      %v10922 = vpop.f32.mrb[0].mxu0
      %v10923 = vadd.f32 0.0, %v10922
      %v10924 = vpop.f32.mrb[0].mxu0
      %10925 = vmatprep.mubr.bf16.mxu0 0
      %10926 = vmatmul.mubr.bf16.gmra.mrb[0].mxu0 %v10729
      %v10927 = vpop.f32.mrb[0].mxu0
      %v10928 = vadd.f32 0.0, %v10927
      %v10929 = vpop.f32.mrb[0].mxu0
      %v10930 = vpop.f32.mrb[0].mxu0
      %v10931 = vadd.f32 0.0, %v10930
      %v10932 = vpop.f32.mrb[0].mxu0
      %10933 = vmatprep.mubr.bf16.mxu0 0
      %10934 = vmatmul.mubr.bf16.gmra.mrb[0].mxu0 %v10730
      %v10935 = vpop.f32.mrb[0].mxu0
      %v10936 = vadd.f32 0.0, %v10935
      %v10937 = vpop.f32.mrb[0].mxu0
      %v10938 = vpop.f32.mrb[0].mxu0
      %v10939 = vadd.f32 0.0, %v10938
      %v10940 = vpop.f32.mrb[0].mxu0
      %10941 = vmatprep.mubr.bf16.mxu0 0
      %10942 = vmatmul.mubr.bf16.gmra.mrb[0].mxu0 %v10731
      %v10943 = vpop.f32.mrb[0].mxu0
      %v10944 = vadd.f32 0.0, %v10943
      %v10945 = vpop.f32.mrb[0].mxu0
      %v10946 = vpop.f32.mrb[0].mxu0
      %v10947 = vadd.f32 0.0, %v10946
      %v10948 = vpop.f32.mrb[0].mxu0
      %10949 = vmatprep.mubr.bf16.mxu0 0
      %10950 = vmatmul.mubr.bf16.gmra.mrb[0].mxu0 %v10732
      %v10951 = vpop.f32.mrb[0].mxu0
      %v10952 = vadd.f32 0.0, %v10951
      %v10953 = vpop.f32.mrb[0].mxu0
      %v10954 = vpop.f32.mrb[0].mxu0
      %v10955 = vadd.f32 0.0, %v10954
      %v10956 = vpop.f32.mrb[0].mxu0
      %10957 = vdwg.mxu0
      %v10958 = vadd.f32 %v10460, %v10832
      %v10959 = vadd.f32 %v10461, %v10835
      %v10960 = vadd.f32 %v10462, %v10840
      %v10961 = vadd.f32 %v10463, %v10843
      %v10962 = vadd.f32 %v10464, %v10848
      %v10963 = vadd.f32 %v10465, %v10851
      %v10964 = vadd.f32 %v10466, %v10856
      %v10965 = vadd.f32 %v10467, %v10859
      %v10966 = vadd.f32 %v10468, %v10864
      %v10967 = vadd.f32 %v10469, %v10867
      %v10968 = vadd.f32 %v10470, %v10872
      %v10969 = vadd.f32 %v10471, %v10875
      %v10970 = vadd.f32 %v10472, %v10880
      %v10971 = vadd.f32 %v10473, %v10883
      %v10972 = vadd.f32 %v10474, %v10888
      %v10973 = vadd.f32 %v10475, %v10891
      %v10974 = vadd.f32 %v10476, %v10896
      %v10975 = vadd.f32 %v10477, %v10899
      %v10976 = vadd.f32 %v10478, %v10904
      %v10977 = vadd.f32 %v10479, %v10907
      %v10978 = vadd.f32 %v10480, %v10912
      %v10979 = vadd.f32 %v10481, %v10915
      %v10980 = vadd.f32 %v10482, %v10920
      %v10981 = vadd.f32 %v10483, %v10923
      %v10982 = vadd.f32 %v10484, %v10928
      %v10983 = vadd.f32 %v10485, %v10931
      %v10984 = vadd.f32 %v10486, %v10936
      %v10985 = vadd.f32 %v10487, %v10939
      %v10986 = vadd.f32 %v10488, %v10944
      %v10987 = vadd.f32 %v10489, %v10947
      %v10988 = vadd.f32 %v10490, %v10952
      %v10989 = vadd.f32 %v10491, %v10955
      %v10990 = vadd.f32 %v10958, %v10959
      %v10991 = vadd.f32 %v10990, %v10960
      %v10992 = vadd.f32 %v10991, %v10961
      %v10993 = vadd.f32 %v10992, %v10962
      %v10994 = vadd.f32 %v10993, %v10963
      %v10995 = vadd.f32 %v10994, %v10964
      %v10996 = vadd.f32 %v10995, %v10965
      %v10997 = vadd.f32 %v10996, %v10966
      %v10998 = vadd.f32 %v10997, %v10967
      %v10999 = vadd.f32 %v10998, %v10968
      %v11000 = vadd.f32 %v10999, %v10969
      %v11001 = vadd.f32 %v11000, %v10970
      %v11002 = vadd.f32 %v11001, %v10971
      %v11003 = vadd.f32 %v11002, %v10972
      %v11004 = vadd.f32 %v11003, %v10973
      %v11005 = vadd.f32 %v11004, %v10974
      %v11006 = vadd.f32 %v11005, %v10975
      %v11007 = vadd.f32 %v11006, %v10976
      %v11008 = vadd.f32 %v11007, %v10977
      %v11009 = vadd.f32 %v11008, %v10978
      %v11010 = vadd.f32 %v11009, %v10979
      %v11011 = vadd.f32 %v11010, %v10980
      %v11012 = vadd.f32 %v11011, %v10981
      %v11013 = vadd.f32 %v11012, %v10982
      %v11014 = vadd.f32 %v11013, %v10983
      %v11015 = vadd.f32 %v11014, %v10984
      %v11016 = vadd.f32 %v11015, %v10985
      %v11017 = vadd.f32 %v11016, %v10986
      %v11018 = vadd.f32 %v11017, %v10987
      %v11019 = vadd.f32 %v11018, %v10988
      %v11020 = vadd.f32 %v11019, %v10989
      %v11021 = vrot.slane %v11020, 4
      %v11022 = vadd.f32 %v11020, %v11021
      %v11023 = vrot.slane %v11022, 2
      %v11024 = vadd.f32 %v11022, %v11023
      %v11025 = vrot.slane %v11024, 1
      %v11026 = vadd.f32 %v11024, %v11025
      %v11027 = vmul.f32 %v10958, %v10958
      %v11028 = vmul.f32 %v10959, %v10959
      %v11029 = vmul.f32 %v10960, %v10960
      %v11030 = vmul.f32 %v10961, %v10961
      %v11031 = vmul.f32 %v10962, %v10962
      %v11032 = vmul.f32 %v10963, %v10963
      %v11033 = vmul.f32 %v10964, %v10964
      %v11034 = vmul.f32 %v10965, %v10965
      %v11035 = vmul.f32 %v10966, %v10966
      %v11036 = vmul.f32 %v10967, %v10967
      %v11037 = vmul.f32 %v10968, %v10968
      %v11038 = vmul.f32 %v10969, %v10969
      %v11039 = vmul.f32 %v10970, %v10970
      %v11040 = vmul.f32 %v10971, %v10971
      %v11041 = vmul.f32 %v10972, %v10972
      %v11042 = vmul.f32 %v10973, %v10973
      %v11043 = vmul.f32 %v10974, %v10974
      %v11044 = vmul.f32 %v10975, %v10975
      %v11045 = vmul.f32 %v10976, %v10976
      %v11046 = vmul.f32 %v10977, %v10977
      %v11047 = vmul.f32 %v10978, %v10978
      %v11048 = vmul.f32 %v10979, %v10979
      %v11049 = vmul.f32 %v10980, %v10980
      %v11050 = vmul.f32 %v10981, %v10981
      %v11051 = vmul.f32 %v10982, %v10982
      %v11052 = vmul.f32 %v10983, %v10983
      %v11053 = vmul.f32 %v10984, %v10984
      %v11054 = vmul.f32 %v10985, %v10985
      %v11055 = vmul.f32 %v10986, %v10986
      %v11056 = vmul.f32 %v10987, %v10987
      %v11057 = vmul.f32 %v10988, %v10988
      %v11058 = vmul.f32 %v10989, %v10989
      %v11059 = vadd.f32 %v11027, %v11028
      %v11060 = vadd.f32 %v11059, %v11029
      %v11061 = vadd.f32 %v11060, %v11030
      %v11062 = vadd.f32 %v11061, %v11031
      %v11063 = vadd.f32 %v11062, %v11032
      %v11064 = vadd.f32 %v11063, %v11033
      %v11065 = vadd.f32 %v11064, %v11034
      %v11066 = vadd.f32 %v11065, %v11035
      %v11067 = vadd.f32 %v11066, %v11036
      %v11068 = vadd.f32 %v11067, %v11037
      %v11069 = vadd.f32 %v11068, %v11038
      %v11070 = vadd.f32 %v11069, %v11039
      %v11071 = vadd.f32 %v11070, %v11040
      %v11072 = vadd.f32 %v11071, %v11041
      %v11073 = vadd.f32 %v11072, %v11042
      %v11074 = vadd.f32 %v11073, %v11043
      %v11075 = vadd.f32 %v11074, %v11044
      %v11076 = vadd.f32 %v11075, %v11045
      %v11077 = vadd.f32 %v11076, %v11046
      %v11078 = vadd.f32 %v11077, %v11047
      %v11079 = vadd.f32 %v11078, %v11048
      %v11080 = vadd.f32 %v11079, %v11049
      %v11081 = vadd.f32 %v11080, %v11050
      %v11082 = vadd.f32 %v11081, %v11051
      %v11083 = vadd.f32 %v11082, %v11052
      %v11084 = vadd.f32 %v11083, %v11053
      %v11085 = vadd.f32 %v11084, %v11054
      %v11086 = vadd.f32 %v11085, %v11055
      %v11087 = vadd.f32 %v11086, %v11056
      %v11088 = vadd.f32 %v11087, %v11057
      %v11089 = vadd.f32 %v11088, %v11058
      %v11090 = vrot.slane %v11089, 4
      %v11091 = vadd.f32 %v11089, %v11090
      %v11092 = vrot.slane %v11091, 2
      %v11093 = vadd.f32 %v11091, %v11092
      %v11094 = vrot.slane %v11093, 1
      %v11095 = vadd.f32 %v11093, %v11094
      %v11096 = vmul.f32 %v11026, 0.00390625
      %v11097 = vmul.f32 %v11095, 0.00390625
      %v11098 = vmul.f32 %v11096, %v11096
      %v11099 = vsub.f32 %v11097, %v11098
      %v11100 = vmax.f32 %v11099, 0.0
      %v11101 = vsub.f32 %v10958, %v11096
      %v11102 = vsub.f32 %v10959, %v11096
      %v11103 = vsub.f32 %v10960, %v11096
      %v11104 = vsub.f32 %v10961, %v11096
      %v11105 = vsub.f32 %v10962, %v11096
      %v11106 = vsub.f32 %v10963, %v11096
      %v11107 = vsub.f32 %v10964, %v11096
      %v11108 = vsub.f32 %v10965, %v11096
      %v11109 = vsub.f32 %v10966, %v11096
      %v11110 = vsub.f32 %v10967, %v11096
      %v11111 = vsub.f32 %v10968, %v11096
      %v11112 = vsub.f32 %v10969, %v11096
      %v11113 = vsub.f32 %v10970, %v11096
      %v11114 = vsub.f32 %v10971, %v11096
      %v11115 = vsub.f32 %v10972, %v11096
      %v11116 = vsub.f32 %v10973, %v11096
      %v11117 = vsub.f32 %v10974, %v11096
      %v11118 = vsub.f32 %v10975, %v11096
      %v11119 = vsub.f32 %v10976, %v11096
      %v11120 = vsub.f32 %v10977, %v11096
      %v11121 = vsub.f32 %v10978, %v11096
      %v11122 = vsub.f32 %v10979, %v11096
      %v11123 = vsub.f32 %v10980, %v11096
      %v11124 = vsub.f32 %v10981, %v11096
      %v11125 = vsub.f32 %v10982, %v11096
      %v11126 = vsub.f32 %v10983, %v11096
      %v11127 = vsub.f32 %v10984, %v11096
      %v11128 = vsub.f32 %v10985, %v11096
      %v11129 = vsub.f32 %v10986, %v11096
      %v11130 = vsub.f32 %v10987, %v11096
      %v11131 = vsub.f32 %v10988, %v11096
      %v11132 = vsub.f32 %v10989, %v11096
      %v11133 = vadd.f32 %v11100, 1e-05
      %v11134 = vrsqrt.pop %v11133
      %v11135 = vmul.f32 %v11101, %v11134
      %v11136 = vmul.f32 %v11102, %v11134
      %v11137 = vmul.f32 %v11103, %v11134
      %v11138 = vmul.f32 %v11104, %v11134
      %v11139 = vmul.f32 %v11105, %v11134
      %v11140 = vmul.f32 %v11106, %v11134
      %v11141 = vmul.f32 %v11107, %v11134
      %v11142 = vmul.f32 %v11108, %v11134
      %v11143 = vmul.f32 %v11109, %v11134
      %v11144 = vmul.f32 %v11110, %v11134
      %v11145 = vmul.f32 %v11111, %v11134
      %v11146 = vmul.f32 %v11112, %v11134
      %v11147 = vmul.f32 %v11113, %v11134
      %v11148 = vmul.f32 %v11114, %v11134
      %v11149 = vmul.f32 %v11115, %v11134
      %v11150 = vmul.f32 %v11116, %v11134
      %v11151 = vmul.f32 %v11117, %v11134
      %v11152 = vmul.f32 %v11118, %v11134
      %v11153 = vmul.f32 %v11119, %v11134
      %v11154 = vmul.f32 %v11120, %v11134
      %v11155 = vmul.f32 %v11121, %v11134
      %v11156 = vmul.f32 %v11122, %v11134
      %v11157 = vmul.f32 %v11123, %v11134
      %v11158 = vmul.f32 %v11124, %v11134
      %v11159 = vmul.f32 %v11125, %v11134
      %v11160 = vmul.f32 %v11126, %v11134
      %v11161 = vmul.f32 %v11127, %v11134
      %v11162 = vmul.f32 %v11128, %v11134
      %v11163 = vmul.f32 %v11129, %v11134
      %v11164 = vmul.f32 %v11130, %v11134
      %v11165 = vmul.f32 %v11131, %v11134
      %v11166 = vmul.f32 %v11132, %v11134
      %v11167 = vmax.f32 %v11135, 0.0
      %v11168 = vmax.f32 %v11136, 0.0
      %v11169 = vmax.f32 %v11137, 0.0
      %v11170 = vmax.f32 %v11138, 0.0
      %v11171 = vmax.f32 %v11139, 0.0
      %v11172 = vmax.f32 %v11140, 0.0
      %v11173 = vmax.f32 %v11141, 0.0
      %v11174 = vmax.f32 %v11142, 0.0
      %v11175 = vmax.f32 %v11143, 0.0
      %v11176 = vmax.f32 %v11144, 0.0
      %v11177 = vmax.f32 %v11145, 0.0
      %v11178 = vmax.f32 %v11146, 0.0
      %v11179 = vmax.f32 %v11147, 0.0
      %v11180 = vmax.f32 %v11148, 0.0
      %v11181 = vmax.f32 %v11149, 0.0
      %v11182 = vmax.f32 %v11150, 0.0
      %v11183 = vmax.f32 %v11151, 0.0
      %v11184 = vmax.f32 %v11152, 0.0
      %v11185 = vmax.f32 %v11153, 0.0
      %v11186 = vmax.f32 %v11154, 0.0
      %v11187 = vmax.f32 %v11155, 0.0
      %v11188 = vmax.f32 %v11156, 0.0
      %v11189 = vmax.f32 %v11157, 0.0
      %v11190 = vmax.f32 %v11158, 0.0
      %v11191 = vmax.f32 %v11159, 0.0
      %v11192 = vmax.f32 %v11160, 0.0
      %v11193 = vmax.f32 %v11161, 0.0
      %v11194 = vmax.f32 %v11162, 0.0
      %v11195 = vmax.f32 %v11163, 0.0
      %v11196 = vmax.f32 %v11164, 0.0
      %v11197 = vmax.f32 %v11165, 0.0
      %v11198 = vmax.f32 %v11166, 0.0
      %v11199 = vadd.f32 %v11167, %v11168
      %v11200 = vadd.f32 %v11199, %v11169
      %v11201 = vadd.f32 %v11200, %v11170
      %v11202 = vadd.f32 %v11201, %v11171
      %v11203 = vadd.f32 %v11202, %v11172
      %v11204 = vadd.f32 %v11203, %v11173
      %v11205 = vadd.f32 %v11204, %v11174
      %v11206 = vadd.f32 %v11205, %v11175
      %v11207 = vadd.f32 %v11206, %v11176
      %v11208 = vadd.f32 %v11207, %v11177
      %v11209 = vadd.f32 %v11208, %v11178
      %v11210 = vadd.f32 %v11209, %v11179
      %v11211 = vadd.f32 %v11210, %v11180
      %v11212 = vadd.f32 %v11211, %v11181
      %v11213 = vadd.f32 %v11212, %v11182
      %v11214 = vadd.f32 %v11213, %v11183
      %v11215 = vadd.f32 %v11214, %v11184
      %v11216 = vadd.f32 %v11215, %v11185
      %v11217 = vadd.f32 %v11216, %v11186
      %v11218 = vadd.f32 %v11217, %v11187
      %v11219 = vadd.f32 %v11218, %v11188
      %v11220 = vadd.f32 %v11219, %v11189
      %v11221 = vadd.f32 %v11220, %v11190
      %v11222 = vadd.f32 %v11221, %v11191
      %v11223 = vadd.f32 %v11222, %v11192
      %v11224 = vadd.f32 %v11223, %v11193
      %v11225 = vadd.f32 %v11224, %v11194
      %v11226 = vadd.f32 %v11225, %v11195
      %v11227 = vadd.f32 %v11226, %v11196
      %v11228 = vadd.f32 %v11227, %v11197
      %v11229 = vadd.f32 %v11228, %v11198
      %v11230 = vrot.slane %v11229, 4
      %v11231 = vadd.f32 %v11229, %v11230
      %v11232 = vrot.slane %v11231, 2
      %v11233 = vadd.f32 %v11231, %v11232
      %v11234 = vrot.slane %v11233, 1
      %v11235 = vadd.f32 %v11233, %v11234
      %v11236 = vmul.f32 %v11235, 0.00390625
      %v11237 = vld [vmem:[%s3] sm:$0xff]
      %v11238 = vld [vmem:[%s3 + $0x8] sm:$0xff]
      %v11239 = vld [vmem:[%s3 + $0x10] sm:$0xff]
      %v11240 = vld [vmem:[%s3 + $0x18] sm:$0xff]
      %v11241 = vld [vmem:[%s3 + $0x20] sm:$0xff]
      %v11242 = vld [vmem:[%s3 + $0x28] sm:$0xff]
      %v11243 = vld [vmem:[%s3 + $0x30] sm:$0xff]
      %v11244 = vld [vmem:[%s3 + $0x38] sm:$0xff]
      %v11245 = vld [vmem:[%s3 + $0x40] sm:$0xff]
      %v11246 = vld [vmem:[%s3 + $0x48] sm:$0xff]
      %v11247 = vld [vmem:[%s3 + $0x50] sm:$0xff]
      %v11248 = vld [vmem:[%s3 + $0x58] sm:$0xff]
      %v11249 = vld [vmem:[%s3 + $0x60] sm:$0xff]
      %v11250 = vld [vmem:[%s3 + $0x68] sm:$0xff]
      %v11251 = vld [vmem:[%s3 + $0x70] sm:$0xff]
      %v11252 = vld [vmem:[%s3 + $0x78] sm:$0xff]
      %v11253 = vld [vmem:[%s4] sm:$0x1]
      %11254 = vmatprep.subr.mxu0 0.0
      %11255 = vmatpush1.msra.mxu0 %v11237
      %11256 = vmatprep.subr.mxu0 0.0
      %11257 = vmatpush1.msra.mxu0 %v11238
      %11258 = vmatprep.subr.mxu0 0.0
      %11259 = vmatpush1.msra.mxu0 %v11239
      %11260 = vmatprep.subr.mxu0 0.0
      %11261 = vmatpush1.msra.mxu0 %v11240
      %11262 = vmatprep.subr.mxu0 0.0
      %11263 = vmatpush1.msra.mxu0 %v11241
      %11264 = vmatprep.subr.mxu0 0.0
      %11265 = vmatpush1.msra.mxu0 %v11242
      %11266 = vmatprep.subr.mxu0 0.0
      %11267 = vmatpush1.msra.mxu0 %v11243
      %11268 = vmatprep.subr.mxu0 0.0
      %11269 = vmatpush1.msra.mxu0 %v11244
      %11270 = vmatprep.subr.mxu0 0.0
      %11271 = vmatpush1.msra.mxu0 %v11245
      %11272 = vmatprep.subr.mxu0 0.0
      %11273 = vmatpush1.msra.mxu0 %v11246
      %11274 = vmatprep.subr.mxu0 0.0
      %11275 = vmatpush1.msra.mxu0 %v11247
      %11276 = vmatprep.subr.mxu0 0.0
      %11277 = vmatpush1.msra.mxu0 %v11248
      %11278 = vmatprep.subr.mxu0 0.0
      %11279 = vmatpush1.msra.mxu0 %v11249
      %11280 = vmatprep.subr.mxu0 0.0
      %11281 = vmatpush1.msra.mxu0 %v11250
      %11282 = vmatprep.subr.mxu0 0.0
      %11283 = vmatpush1.msra.mxu0 %v11251
      %11284 = vmatprep.subr.mxu0 0.0
      %11285 = vmatpush1.msra.mxu0 %v11252
      %11286 = vmatprep.subr.mxu0 0.0
      %11287 = vmatpush1.msra.mxu0 0.0
      %11288 = vmatprep.subr.mxu0 0.0
      %11289 = vmatpush1.msra.mxu0 0.0
      %11290 = vmatprep.subr.mxu0 0.0
      %11291 = vmatpush1.msra.mxu0 0.0
      %11292 = vmatprep.subr.mxu0 0.0
      %11293 = vmatpush1.msra.mxu0 0.0
      %11294 = vmatprep.subr.mxu0 0.0
      %11295 = vmatpush1.msra.mxu0 0.0
      %11296 = vmatprep.subr.mxu0 0.0
      %11297 = vmatpush1.msra.mxu0 0.0
      %11298 = vmatprep.subr.mxu0 0.0
      %11299 = vmatpush1.msra.mxu0 0.0
      %11300 = vmatprep.subr.mxu0 0.0
      %11301 = vmatpush1.msra.mxu0 0.0
      %11302 = vmatprep.subr.mxu0 0.0
      %11303 = vmatpush1.msra.mxu0 0.0
      %11304 = vmatprep.subr.mxu0 0.0
      %11305 = vmatpush1.msra.mxu0 0.0
      %11306 = vmatprep.subr.mxu0 0.0
      %11307 = vmatpush1.msra.mxu0 0.0
      %11308 = vmatprep.subr.mxu0 0.0
      %11309 = vmatpush1.msra.mxu0 0.0
      %11310 = vmatprep.subr.mxu0 0.0
      %11311 = vmatpush1.msra.mxu0 0.0
      %11312 = vmatprep.subr.mxu0 0.0
      %11313 = vmatpush1.msra.mxu0 0.0
      %11314 = vmatprep.subr.mxu0 0.0
      %11315 = vmatpush1.msra.mxu0 0.0
      %11316 = vmatprep.subr.mxu0 0.0
      %11317 = vmatpush1.msra.mxu0 0.0
      %11318 = vmatprep.mubr.f32.mxu0 0.0
      %11319 = vmatmul.mubr.f32.gmra.mrb[0].mxu0 %v11236
      %v11320 = vpop.f32.mrb[0].mxu0
      %v11321 = vadd.f32 %v11253, %v11320
      %v11322 = vpop.f32.mrb[0].mxu0
      %11323 = vdwg.mxu0
      %v11324 = vmax.f32 %v11321, 0.0
      %v11325 = vld [vmem:[%s5] sm:$0x3]
      %v11326 = vld [vmem:[%s6] sm:$0x1]
      %vm11327 = vcmask 15360
      %v11329 = vsel %vm11327, %v11324, 0
      %v11332 = vsel %vm1384, %v11325, 0
      %11334 = vmatprep.subr.mxu0 0.0
      %11335 = vmatpush1.msra.mxu0 %v11332
      %11336 = vmatprep.subr.mxu0 0.0
      %11337 = vmatpush1.msra.mxu0 0.0
      %11338 = vmatprep.subr.mxu0 0.0
      %11339 = vmatpush1.msra.mxu0 0.0
      %11340 = vmatprep.subr.mxu0 0.0
      %11341 = vmatpush1.msra.mxu0 0.0
      %11342 = vmatprep.subr.mxu0 0.0
      %11343 = vmatpush1.msra.mxu0 0.0
      %11344 = vmatprep.subr.mxu0 0.0
      %11345 = vmatpush1.msra.mxu0 0.0
      %11346 = vmatprep.subr.mxu0 0.0
      %11347 = vmatpush1.msra.mxu0 0.0
      %11348 = vmatprep.subr.mxu0 0.0
      %11349 = vmatpush1.msra.mxu0 0.0
      %11350 = vmatprep.subr.mxu0 0.0
      %11351 = vmatpush1.msra.mxu0 0.0
      %11352 = vmatprep.subr.mxu0 0.0
      %11353 = vmatpush1.msra.mxu0 0.0
      %11354 = vmatprep.subr.mxu0 0.0
      %11355 = vmatpush1.msra.mxu0 0.0
      %11356 = vmatprep.subr.mxu0 0.0
      %11357 = vmatpush1.msra.mxu0 0.0
      %11358 = vmatprep.subr.mxu0 0.0
      %11359 = vmatpush1.msra.mxu0 0.0
      %11360 = vmatprep.subr.mxu0 0.0
      %11361 = vmatpush1.msra.mxu0 0.0
      %11362 = vmatprep.subr.mxu0 0.0
      %11363 = vmatpush1.msra.mxu0 0.0
      %11364 = vmatprep.subr.mxu0 0.0
      %11365 = vmatpush1.msra.mxu0 0.0
      %11366 = vmatprep.subr.mxu0 0.0
      %11367 = vmatpush1.msra.mxu0 0.0
      %11368 = vmatprep.subr.mxu0 0.0
      %11369 = vmatpush1.msra.mxu0 0.0
      %11370 = vmatprep.subr.mxu0 0.0
      %11371 = vmatpush1.msra.mxu0 0.0
      %11372 = vmatprep.subr.mxu0 0.0
      %11373 = vmatpush1.msra.mxu0 0.0
      %11374 = vmatprep.subr.mxu0 0.0
      %11375 = vmatpush1.msra.mxu0 0.0
      %11376 = vmatprep.subr.mxu0 0.0
      %11377 = vmatpush1.msra.mxu0 0.0
      %11378 = vmatprep.subr.mxu0 0.0
      %11379 = vmatpush1.msra.mxu0 0.0
      %11380 = vmatprep.subr.mxu0 0.0
      %11381 = vmatpush1.msra.mxu0 0.0
      %11382 = vmatprep.subr.mxu0 0.0
      %11383 = vmatpush1.msra.mxu0 0.0
      %11384 = vmatprep.subr.mxu0 0.0
      %11385 = vmatpush1.msra.mxu0 0.0
      %11386 = vmatprep.subr.mxu0 0.0
      %11387 = vmatpush1.msra.mxu0 0.0
      %11388 = vmatprep.subr.mxu0 0.0
      %11389 = vmatpush1.msra.mxu0 0.0
      %11390 = vmatprep.subr.mxu0 0.0
      %11391 = vmatpush1.msra.mxu0 0.0
      %11392 = vmatprep.subr.mxu0 0.0
      %11393 = vmatpush1.msra.mxu0 0.0
      %11394 = vmatprep.subr.mxu0 0.0
      %11395 = vmatpush1.msra.mxu0 0.0
      %11396 = vmatprep.subr.mxu0 0.0
      %11397 = vmatpush1.msra.mxu0 0.0
      %11398 = vmatprep.mubr.f32.mxu0 0.0
      %11399 = vmatmul.mubr.f32.gmra.mrb[0].mxu0 %v11329
      %v11400 = vpop.f32.mrb[0].mxu0
      %v11401 = vadd.f32 %v11326, %v11400
      %v11402 = vpop.f32.mrb[0].mxu0
      %11403 = vdwg.mxu0
      %v11404 = vxor.u32 %v11401, 2147483648
      %v11405 = vmul.f32 %v11404, 1.442695
      %v11406 = vpow.pop %v11405
      %v11407 = vadd.f32 %v11406, 1.0
      %v11408 = vrcp.pop %v11407
      %v11409 = vmul.f32 1.0, %v11408
      %v11410 = vld [vmem:[%s7] sm:$0x1]
      %v11412 = vlaneseq
      %v11413 = vshrl.u32 %v11412, 7
      %v11414 = vsub.s32 0, %v11413
      %v11415 = vrot.slane %v11410, %v11414
      %v11417 = vmul.f32 %v11167, %v11415
      %v11418 = vmul.f32 %v11168, %v11415
      %v11419 = vmul.f32 %v11169, %v11415
      %v11420 = vmul.f32 %v11170, %v11415
      %v11421 = vmul.f32 %v11171, %v11415
      %v11422 = vmul.f32 %v11172, %v11415
      %v11423 = vmul.f32 %v11173, %v11415
      %v11424 = vmul.f32 %v11174, %v11415
      %v11425 = vmul.f32 %v11175, %v11415
      %v11426 = vmul.f32 %v11176, %v11415
      %v11427 = vmul.f32 %v11177, %v11415
      %v11428 = vmul.f32 %v11178, %v11415
      %v11429 = vmul.f32 %v11179, %v11415
      %v11430 = vmul.f32 %v11180, %v11415
      %v11431 = vmul.f32 %v11181, %v11415
      %v11432 = vmul.f32 %v11182, %v11415
      %v11433 = vmul.f32 %v11183, %v11415
      %v11434 = vmul.f32 %v11184, %v11415
      %v11435 = vmul.f32 %v11185, %v11415
      %v11436 = vmul.f32 %v11186, %v11415
      %v11437 = vmul.f32 %v11187, %v11415
      %v11438 = vmul.f32 %v11188, %v11415
      %v11439 = vmul.f32 %v11189, %v11415
      %v11440 = vmul.f32 %v11190, %v11415
      %v11441 = vmul.f32 %v11191, %v11415
      %v11442 = vmul.f32 %v11192, %v11415
      %v11443 = vmul.f32 %v11193, %v11415
      %v11444 = vmul.f32 %v11194, %v11415
      %v11445 = vmul.f32 %v11195, %v11415
      %v11446 = vmul.f32 %v11196, %v11415
      %v11447 = vmul.f32 %v11197, %v11415
      %v11448 = vmul.f32 %v11198, %v11415
      %11449 = vadd.xlane.f32.xlu0 %v11417
      %v11450 = vpop.xlane.xlu0 %11449
      %11451 = vadd.xlane.f32.xlu0 %v11418
      %v11452 = vpop.xlane.xlu0 %11451
      %11453 = vadd.xlane.f32.xlu0 %v11419
      %v11454 = vpop.xlane.xlu0 %11453
      %11455 = vadd.xlane.f32.xlu0 %v11420
      %v11456 = vpop.xlane.xlu0 %11455
      %11457 = vadd.xlane.f32.xlu0 %v11421
      %v11458 = vpop.xlane.xlu0 %11457
      %11459 = vadd.xlane.f32.xlu0 %v11422
      %v11460 = vpop.xlane.xlu0 %11459
      %11461 = vadd.xlane.f32.xlu0 %v11423
      %v11462 = vpop.xlane.xlu0 %11461
      %11463 = vadd.xlane.f32.xlu0 %v11424
      %v11464 = vpop.xlane.xlu0 %11463
      %11465 = vadd.xlane.f32.xlu0 %v11425
      %v11466 = vpop.xlane.xlu0 %11465
      %11467 = vadd.xlane.f32.xlu0 %v11426
      %v11468 = vpop.xlane.xlu0 %11467
      %11469 = vadd.xlane.f32.xlu0 %v11427
      %v11470 = vpop.xlane.xlu0 %11469
      %11471 = vadd.xlane.f32.xlu0 %v11428
      %v11472 = vpop.xlane.xlu0 %11471
      %11473 = vadd.xlane.f32.xlu0 %v11429
      %v11474 = vpop.xlane.xlu0 %11473
      %11475 = vadd.xlane.f32.xlu0 %v11430
      %v11476 = vpop.xlane.xlu0 %11475
      %11477 = vadd.xlane.f32.xlu0 %v11431
      %v11478 = vpop.xlane.xlu0 %11477
      %11479 = vadd.xlane.f32.xlu0 %v11432
      %v11480 = vpop.xlane.xlu0 %11479
      %11481 = vadd.xlane.f32.xlu0 %v11433
      %v11482 = vpop.xlane.xlu0 %11481
      %11483 = vadd.xlane.f32.xlu0 %v11434
      %v11484 = vpop.xlane.xlu0 %11483
      %11485 = vadd.xlane.f32.xlu0 %v11435
      %v11486 = vpop.xlane.xlu0 %11485
      %11487 = vadd.xlane.f32.xlu0 %v11436
      %v11488 = vpop.xlane.xlu0 %11487
      %11489 = vadd.xlane.f32.xlu0 %v11437
      %v11490 = vpop.xlane.xlu0 %11489
      %11491 = vadd.xlane.f32.xlu0 %v11438
      %v11492 = vpop.xlane.xlu0 %11491
      %11493 = vadd.xlane.f32.xlu0 %v11439
      %v11494 = vpop.xlane.xlu0 %11493
      %11495 = vadd.xlane.f32.xlu0 %v11440
      %v11496 = vpop.xlane.xlu0 %11495
      %11497 = vadd.xlane.f32.xlu0 %v11441
      %v11498 = vpop.xlane.xlu0 %11497
      %11499 = vadd.xlane.f32.xlu0 %v11442
      %v11500 = vpop.xlane.xlu0 %11499
      %11501 = vadd.xlane.f32.xlu0 %v11443
      %v11502 = vpop.xlane.xlu0 %11501
      %11503 = vadd.xlane.f32.xlu0 %v11444
      %v11504 = vpop.xlane.xlu0 %11503
      %11505 = vadd.xlane.f32.xlu0 %v11445
      %v11506 = vpop.xlane.xlu0 %11505
      %11507 = vadd.xlane.f32.xlu0 %v11446
      %v11508 = vpop.xlane.xlu0 %11507
      %11509 = vadd.xlane.f32.xlu0 %v11447
      %v11510 = vpop.xlane.xlu0 %11509
      %11511 = vadd.xlane.f32.xlu0 %v11448
      %v11512 = vpop.xlane.xlu0 %11511
      %s11513 = sld [smem:[#allocation4]]
      %v11514 = vstv %s11513
      %v11515 = vadd.f32 %v11450, %v11514
      %v11516 = vadd.f32 %v11452, %v11514
      %v11517 = vadd.f32 %v11454, %v11514
      %v11518 = vadd.f32 %v11456, %v11514
      %v11519 = vadd.f32 %v11458, %v11514
      %v11520 = vadd.f32 %v11460, %v11514
      %v11521 = vadd.f32 %v11462, %v11514
      %v11522 = vadd.f32 %v11464, %v11514
      %v11523 = vadd.f32 %v11466, %v11514
      %v11524 = vadd.f32 %v11468, %v11514
      %v11525 = vadd.f32 %v11470, %v11514
      %v11526 = vadd.f32 %v11472, %v11514
      %v11527 = vadd.f32 %v11474, %v11514
      %v11528 = vadd.f32 %v11476, %v11514
      %v11529 = vadd.f32 %v11478, %v11514
      %v11530 = vadd.f32 %v11480, %v11514
      %v11531 = vadd.f32 %v11482, %v11514
      %v11532 = vadd.f32 %v11484, %v11514
      %v11533 = vadd.f32 %v11486, %v11514
      %v11534 = vadd.f32 %v11488, %v11514
      %v11535 = vadd.f32 %v11490, %v11514
      %v11536 = vadd.f32 %v11492, %v11514
      %v11537 = vadd.f32 %v11494, %v11514
      %v11538 = vadd.f32 %v11496, %v11514
      %v11539 = vadd.f32 %v11498, %v11514
      %v11540 = vadd.f32 %v11500, %v11514
      %v11541 = vadd.f32 %v11502, %v11514
      %v11542 = vadd.f32 %v11504, %v11514
      %v11543 = vadd.f32 %v11506, %v11514
      %v11544 = vadd.f32 %v11508, %v11514
      %v11545 = vadd.f32 %v11510, %v11514
      %v11546 = vadd.f32 %v11512, %v11514
      %v11547 = vxor.u32 %v11515, 2147483648
      %v11548 = vxor.u32 %v11516, 2147483648
      %v11549 = vxor.u32 %v11517, 2147483648
      %v11550 = vxor.u32 %v11518, 2147483648
      %v11551 = vxor.u32 %v11519, 2147483648
      %v11552 = vxor.u32 %v11520, 2147483648
      %v11553 = vxor.u32 %v11521, 2147483648
      %v11554 = vxor.u32 %v11522, 2147483648
      %v11555 = vxor.u32 %v11523, 2147483648
      %v11556 = vxor.u32 %v11524, 2147483648
      %v11557 = vxor.u32 %v11525, 2147483648
      %v11558 = vxor.u32 %v11526, 2147483648
      %v11559 = vxor.u32 %v11527, 2147483648
      %v11560 = vxor.u32 %v11528, 2147483648
      %v11561 = vxor.u32 %v11529, 2147483648
      %v11562 = vxor.u32 %v11530, 2147483648
      %v11563 = vxor.u32 %v11531, 2147483648
      %v11564 = vxor.u32 %v11532, 2147483648
      %v11565 = vxor.u32 %v11533, 2147483648
      %v11566 = vxor.u32 %v11534, 2147483648
      %v11567 = vxor.u32 %v11535, 2147483648
      %v11568 = vxor.u32 %v11536, 2147483648
      %v11569 = vxor.u32 %v11537, 2147483648
      %v11570 = vxor.u32 %v11538, 2147483648
      %v11571 = vxor.u32 %v11539, 2147483648
      %v11572 = vxor.u32 %v11540, 2147483648
      %v11573 = vxor.u32 %v11541, 2147483648
      %v11574 = vxor.u32 %v11542, 2147483648
      %v11575 = vxor.u32 %v11543, 2147483648
      %v11576 = vxor.u32 %v11544, 2147483648
      %v11577 = vxor.u32 %v11545, 2147483648
      %v11578 = vxor.u32 %v11546, 2147483648
      %v11579 = vmul.f32 %v11547, 1.442695
      %v11580 = vpow.pop %v11579
      %v11581 = vmul.f32 %v11548, 1.442695
      %v11582 = vpow.pop %v11581
      %v11583 = vmul.f32 %v11549, 1.442695
      %v11584 = vpow.pop %v11583
      %v11585 = vmul.f32 %v11550, 1.442695
      %v11586 = vpow.pop %v11585
      %v11587 = vmul.f32 %v11551, 1.442695
      %v11588 = vpow.pop %v11587
      %v11589 = vmul.f32 %v11552, 1.442695
      %v11590 = vpow.pop %v11589
      %v11591 = vmul.f32 %v11553, 1.442695
      %v11592 = vpow.pop %v11591
      %v11593 = vmul.f32 %v11554, 1.442695
      %v11594 = vpow.pop %v11593
      %v11595 = vmul.f32 %v11555, 1.442695
      %v11596 = vpow.pop %v11595
      %v11597 = vmul.f32 %v11556, 1.442695
      %v11598 = vpow.pop %v11597
      %v11599 = vmul.f32 %v11557, 1.442695
      %v11600 = vpow.pop %v11599
      %v11601 = vmul.f32 %v11558, 1.442695
      %v11602 = vpow.pop %v11601
      %v11603 = vmul.f32 %v11559, 1.442695
      %v11604 = vpow.pop %v11603
      %v11605 = vmul.f32 %v11560, 1.442695
      %v11606 = vpow.pop %v11605
      %v11607 = vmul.f32 %v11561, 1.442695
      %v11608 = vpow.pop %v11607
      %v11609 = vmul.f32 %v11562, 1.442695
      %v11610 = vpow.pop %v11609
      %v11611 = vmul.f32 %v11563, 1.442695
      %v11612 = vpow.pop %v11611
      %v11613 = vmul.f32 %v11564, 1.442695
      %v11614 = vpow.pop %v11613
      %v11615 = vmul.f32 %v11565, 1.442695
      %v11616 = vpow.pop %v11615
      %v11617 = vmul.f32 %v11566, 1.442695
      %v11618 = vpow.pop %v11617
      %v11619 = vmul.f32 %v11567, 1.442695
      %v11620 = vpow.pop %v11619
      %v11621 = vmul.f32 %v11568, 1.442695
      %v11622 = vpow.pop %v11621
      %v11623 = vmul.f32 %v11569, 1.442695
      %v11624 = vpow.pop %v11623
      %v11625 = vmul.f32 %v11570, 1.442695
      %v11626 = vpow.pop %v11625
      %v11627 = vmul.f32 %v11571, 1.442695
      %v11628 = vpow.pop %v11627
      %v11629 = vmul.f32 %v11572, 1.442695
      %v11630 = vpow.pop %v11629
      %v11631 = vmul.f32 %v11573, 1.442695
      %v11632 = vpow.pop %v11631
      %v11633 = vmul.f32 %v11574, 1.442695
      %v11634 = vpow.pop %v11633
      %v11635 = vmul.f32 %v11575, 1.442695
      %v11636 = vpow.pop %v11635
      %v11637 = vmul.f32 %v11576, 1.442695
      %v11638 = vpow.pop %v11637
      %v11639 = vmul.f32 %v11577, 1.442695
      %v11640 = vpow.pop %v11639
      %v11641 = vmul.f32 %v11578, 1.442695
      %v11642 = vpow.pop %v11641
      %v11643 = vadd.f32 %v11580, 1.0
      %v11644 = vadd.f32 %v11582, 1.0
      %v11645 = vadd.f32 %v11584, 1.0
      %v11646 = vadd.f32 %v11586, 1.0
      %v11647 = vadd.f32 %v11588, 1.0
      %v11648 = vadd.f32 %v11590, 1.0
      %v11649 = vadd.f32 %v11592, 1.0
      %v11650 = vadd.f32 %v11594, 1.0
      %v11651 = vadd.f32 %v11596, 1.0
      %v11652 = vadd.f32 %v11598, 1.0
      %v11653 = vadd.f32 %v11600, 1.0
      %v11654 = vadd.f32 %v11602, 1.0
      %v11655 = vadd.f32 %v11604, 1.0
      %v11656 = vadd.f32 %v11606, 1.0
      %v11657 = vadd.f32 %v11608, 1.0
      %v11658 = vadd.f32 %v11610, 1.0
      %v11659 = vadd.f32 %v11612, 1.0
      %v11660 = vadd.f32 %v11614, 1.0
      %v11661 = vadd.f32 %v11616, 1.0
      %v11662 = vadd.f32 %v11618, 1.0
      %v11663 = vadd.f32 %v11620, 1.0
      %v11664 = vadd.f32 %v11622, 1.0
      %v11665 = vadd.f32 %v11624, 1.0
      %v11666 = vadd.f32 %v11626, 1.0
      %v11667 = vadd.f32 %v11628, 1.0
      %v11668 = vadd.f32 %v11630, 1.0
      %v11669 = vadd.f32 %v11632, 1.0
      %v11670 = vadd.f32 %v11634, 1.0
      %v11671 = vadd.f32 %v11636, 1.0
      %v11672 = vadd.f32 %v11638, 1.0
      %v11673 = vadd.f32 %v11640, 1.0
      %v11674 = vadd.f32 %v11642, 1.0
      %v11675 = vrcp.pop %v11643
      %v11676 = vmul.f32 1.0, %v11675
      %v11677 = vrcp.pop %v11644
      %v11678 = vmul.f32 1.0, %v11677
      %v11679 = vrcp.pop %v11645
      %v11680 = vmul.f32 1.0, %v11679
      %v11681 = vrcp.pop %v11646
      %v11682 = vmul.f32 1.0, %v11681
      %v11683 = vrcp.pop %v11647
      %v11684 = vmul.f32 1.0, %v11683
      %v11685 = vrcp.pop %v11648
      %v11686 = vmul.f32 1.0, %v11685
      %v11687 = vrcp.pop %v11649
      %v11688 = vmul.f32 1.0, %v11687
      %v11689 = vrcp.pop %v11650
      %v11690 = vmul.f32 1.0, %v11689
      %v11691 = vrcp.pop %v11651
      %v11692 = vmul.f32 1.0, %v11691
      %v11693 = vrcp.pop %v11652
      %v11694 = vmul.f32 1.0, %v11693
      %v11695 = vrcp.pop %v11653
      %v11696 = vmul.f32 1.0, %v11695
      %v11697 = vrcp.pop %v11654
      %v11698 = vmul.f32 1.0, %v11697
      %v11699 = vrcp.pop %v11655
      %v11700 = vmul.f32 1.0, %v11699
      %v11701 = vrcp.pop %v11656
      %v11702 = vmul.f32 1.0, %v11701
      %v11703 = vrcp.pop %v11657
      %v11704 = vmul.f32 1.0, %v11703
      %v11705 = vrcp.pop %v11658
      %v11706 = vmul.f32 1.0, %v11705
      %v11707 = vrcp.pop %v11659
      %v11708 = vmul.f32 1.0, %v11707
      %v11709 = vrcp.pop %v11660
      %v11710 = vmul.f32 1.0, %v11709
      %v11711 = vrcp.pop %v11661
      %v11712 = vmul.f32 1.0, %v11711
      %v11713 = vrcp.pop %v11662
      %v11714 = vmul.f32 1.0, %v11713
      %v11715 = vrcp.pop %v11663
      %v11716 = vmul.f32 1.0, %v11715
      %v11717 = vrcp.pop %v11664
      %v11718 = vmul.f32 1.0, %v11717
      %v11719 = vrcp.pop %v11665
      %v11720 = vmul.f32 1.0, %v11719
      %v11721 = vrcp.pop %v11666
      %v11722 = vmul.f32 1.0, %v11721
      %v11723 = vrcp.pop %v11667
      %v11724 = vmul.f32 1.0, %v11723
      %v11725 = vrcp.pop %v11668
      %v11726 = vmul.f32 1.0, %v11725
      %v11727 = vrcp.pop %v11669
      %v11728 = vmul.f32 1.0, %v11727
      %v11729 = vrcp.pop %v11670
      %v11730 = vmul.f32 1.0, %v11729
      %v11731 = vrcp.pop %v11671
      %v11732 = vmul.f32 1.0, %v11731
      %v11733 = vrcp.pop %v11672
      %v11734 = vmul.f32 1.0, %v11733
      %v11735 = vrcp.pop %v11673
      %v11736 = vmul.f32 1.0, %v11735
      %v11737 = vrcp.pop %v11674
      %v11738 = vmul.f32 1.0, %v11737
      %v11739 = vlaneseq
      %v11740 = vshrl.u32 %v11739, 7
      %v11741 = vsub.s32 0, %v11740
      %v11742 = vrot.slane %v11409, %v11741
      %v11743 = vmax.f32 %v11742, %v11676
      %v11744 = vmax.f32 %v11742, %v11678
      %v11745 = vmax.f32 %v11742, %v11680
      %v11746 = vmax.f32 %v11742, %v11682
      %v11747 = vmax.f32 %v11742, %v11684
      %v11748 = vmax.f32 %v11742, %v11686
      %v11749 = vmax.f32 %v11742, %v11688
      %v11750 = vmax.f32 %v11742, %v11690
      %v11751 = vmax.f32 %v11742, %v11692
      %v11752 = vmax.f32 %v11742, %v11694
      %v11753 = vmax.f32 %v11742, %v11696
      %v11754 = vmax.f32 %v11742, %v11698
      %v11755 = vmax.f32 %v11742, %v11700
      %v11756 = vmax.f32 %v11742, %v11702
      %v11757 = vmax.f32 %v11742, %v11704
      %v11758 = vmax.f32 %v11742, %v11706
      %v11759 = vmax.f32 %v11742, %v11708
      %v11760 = vmax.f32 %v11742, %v11710
      %v11761 = vmax.f32 %v11742, %v11712
      %v11762 = vmax.f32 %v11742, %v11714
      %v11763 = vmax.f32 %v11742, %v11716
      %v11764 = vmax.f32 %v11742, %v11718
      %v11765 = vmax.f32 %v11742, %v11720
      %v11766 = vmax.f32 %v11742, %v11722
      %v11767 = vmax.f32 %v11742, %v11724
      %v11768 = vmax.f32 %v11742, %v11726
      %v11769 = vmax.f32 %v11742, %v11728
      %v11770 = vmax.f32 %v11742, %v11730
      %v11771 = vmax.f32 %v11742, %v11732
      %v11772 = vmax.f32 %v11742, %v11734
      %v11773 = vmax.f32 %v11742, %v11736
      %v11774 = vmax.f32 %v11742, %v11738
      %v11775 = vmul.f32 %v11167, %v11743
      %v11776 = vmul.f32 %v11168, %v11744
      %v11777 = vmul.f32 %v11169, %v11745
      %v11778 = vmul.f32 %v11170, %v11746
      %v11779 = vmul.f32 %v11171, %v11747
      %v11780 = vmul.f32 %v11172, %v11748
      %v11781 = vmul.f32 %v11173, %v11749
      %v11782 = vmul.f32 %v11174, %v11750
      %v11783 = vmul.f32 %v11175, %v11751
      %v11784 = vmul.f32 %v11176, %v11752
      %v11785 = vmul.f32 %v11177, %v11753
      %v11786 = vmul.f32 %v11178, %v11754
      %v11787 = vmul.f32 %v11179, %v11755
      %v11788 = vmul.f32 %v11180, %v11756
      %v11789 = vmul.f32 %v11181, %v11757
      %v11790 = vmul.f32 %v11182, %v11758
      %v11791 = vmul.f32 %v11183, %v11759
      %v11792 = vmul.f32 %v11184, %v11760
      %v11793 = vmul.f32 %v11185, %v11761
      %v11794 = vmul.f32 %v11186, %v11762
      %v11795 = vmul.f32 %v11187, %v11763
      %v11796 = vmul.f32 %v11188, %v11764
      %v11797 = vmul.f32 %v11189, %v11765
      %v11798 = vmul.f32 %v11190, %v11766
      %v11799 = vmul.f32 %v11191, %v11767
      %v11800 = vmul.f32 %v11192, %v11768
      %v11801 = vmul.f32 %v11193, %v11769
      %v11802 = vmul.f32 %v11194, %v11770
      %v11803 = vmul.f32 %v11195, %v11771
      %v11804 = vmul.f32 %v11196, %v11772
      %v11805 = vmul.f32 %v11197, %v11773
      %v11806 = vmul.f32 %v11198, %v11774
      %v11807 = vpack.c.bf16 %v11776, %v11775
      %v11808 = vpack.c.bf16 %v11778, %v11777
      %v11809 = vpack.c.bf16 %v11780, %v11779
      %v11810 = vpack.c.bf16 %v11782, %v11781
      %v11811 = vpack.c.bf16 %v11784, %v11783
      %v11812 = vpack.c.bf16 %v11786, %v11785
      %v11813 = vpack.c.bf16 %v11788, %v11787
      %v11814 = vpack.c.bf16 %v11790, %v11789
      %v11815 = vpack.c.bf16 %v11792, %v11791
      %v11816 = vpack.c.bf16 %v11794, %v11793
      %v11817 = vpack.c.bf16 %v11796, %v11795
      %v11818 = vpack.c.bf16 %v11798, %v11797
      %v11819 = vpack.c.bf16 %v11800, %v11799
      %v11820 = vpack.c.bf16 %v11802, %v11801
      %v11821 = vpack.c.bf16 %v11804, %v11803
      %v11822 = vpack.c.bf16 %v11806, %v11805
      %v11839 = vunpack.c.l.b16 %v11807
      %v11840 = vunpack.c.h.b16 %v11807
      %v11841 = vunpack.c.l.b16 %v11808
      %v11842 = vunpack.c.h.b16 %v11808
      %v11843 = vunpack.c.l.b16 %v11809
      %v11844 = vunpack.c.h.b16 %v11809
      %v11845 = vunpack.c.l.b16 %v11810
      %v11846 = vunpack.c.h.b16 %v11810
      %v11847 = vunpack.c.l.b16 %v11811
      %v11848 = vunpack.c.h.b16 %v11811
      %v11849 = vunpack.c.l.b16 %v11812
      %v11850 = vunpack.c.h.b16 %v11812
      %v11851 = vunpack.c.l.b16 %v11813
      %v11852 = vunpack.c.h.b16 %v11813
      %v11853 = vunpack.c.l.b16 %v11814
      %v11854 = vunpack.c.h.b16 %v11814
      %v11855 = vunpack.c.l.b16 %v11815
      %v11856 = vunpack.c.h.b16 %v11815
      %v11857 = vunpack.c.l.b16 %v11816
      %v11858 = vunpack.c.h.b16 %v11816
      %v11859 = vunpack.c.l.b16 %v11817
      %v11860 = vunpack.c.h.b16 %v11817
      %v11861 = vunpack.c.l.b16 %v11818
      %v11862 = vunpack.c.h.b16 %v11818
      %v11863 = vunpack.c.l.b16 %v11819
      %v11864 = vunpack.c.h.b16 %v11819
      %v11865 = vunpack.c.l.b16 %v11820
      %v11866 = vunpack.c.h.b16 %v11820
      %v11867 = vunpack.c.l.b16 %v11821
      %v11868 = vunpack.c.h.b16 %v11821
      %v11869 = vunpack.c.l.b16 %v11822
      %v11870 = vunpack.c.h.b16 %v11822
      %v11871 = vpack.c.b16 %v11839, %v11839
      %v11872 = vpack.c.b16 %v11840, %v11840
      %v11873 = vpack.c.b16 %v11841, %v11841
      %v11874 = vpack.c.b16 %v11842, %v11842
      %v11875 = vpack.c.b16 %v11843, %v11843
      %v11876 = vpack.c.b16 %v11844, %v11844
      %v11877 = vpack.c.b16 %v11845, %v11845
      %v11878 = vpack.c.b16 %v11846, %v11846
      %v11879 = vpack.c.b16 %v11847, %v11847
      %v11880 = vpack.c.b16 %v11848, %v11848
      %v11881 = vpack.c.b16 %v11849, %v11849
      %v11882 = vpack.c.b16 %v11850, %v11850
      %v11883 = vpack.c.b16 %v11851, %v11851
      %v11884 = vpack.c.b16 %v11852, %v11852
      %v11885 = vpack.c.b16 %v11853, %v11853
      %v11886 = vpack.c.b16 %v11854, %v11854
      %v11887 = vpack.c.b16 %v11855, %v11855
      %v11888 = vpack.c.b16 %v11856, %v11856
      %v11889 = vpack.c.b16 %v11857, %v11857
      %v11890 = vpack.c.b16 %v11858, %v11858
      %v11891 = vpack.c.b16 %v11859, %v11859
      %v11892 = vpack.c.b16 %v11860, %v11860
      %v11893 = vpack.c.b16 %v11861, %v11861
      %v11894 = vpack.c.b16 %v11862, %v11862
      %v11895 = vpack.c.b16 %v11863, %v11863
      %v11896 = vpack.c.b16 %v11864, %v11864
      %v11897 = vpack.c.b16 %v11865, %v11865
      %v11898 = vpack.c.b16 %v11866, %v11866
      %v11899 = vpack.c.b16 %v11867, %v11867
      %v11900 = vpack.c.b16 %v11868, %v11868
      %v11901 = vpack.c.b16 %v11869, %v11869
      %v11902 = vpack.c.b16 %v11870, %v11870
      %11935 = vst [vmem:[%s333] sm:$0xf] %v11871
      %11936 = vst [vmem:[%s333 + $0x4] sm:$0xf] %v11872
      %11937 = vst [vmem:[%s333 + $0x8] sm:$0xf] %v11873
      %11938 = vst [vmem:[%s333 + $0xc] sm:$0xf] %v11874
      %11939 = vst [vmem:[%s333 + $0x10] sm:$0xf] %v11875
      %11940 = vst [vmem:[%s333 + $0x14] sm:$0xf] %v11876
      %11941 = vst [vmem:[%s333 + $0x18] sm:$0xf] %v11877
      %11942 = vst [vmem:[%s333 + $0x1c] sm:$0xf] %v11878
      %11943 = vst [vmem:[%s333 + $0x20] sm:$0xf] %v11879
      %11944 = vst [vmem:[%s333 + $0x24] sm:$0xf] %v11880
      %11945 = vst [vmem:[%s333 + $0x28] sm:$0xf] %v11881
      %11946 = vst [vmem:[%s333 + $0x2c] sm:$0xf] %v11882
      %11947 = vst [vmem:[%s333 + $0x30] sm:$0xf] %v11883
      %11948 = vst [vmem:[%s333 + $0x34] sm:$0xf] %v11884
      %11949 = vst [vmem:[%s333 + $0x38] sm:$0xf] %v11885
      %11950 = vst [vmem:[%s333 + $0x3c] sm:$0xf] %v11886
      %11951 = vst [vmem:[%s333 + $0x40] sm:$0xf] %v11887
      %11952 = vst [vmem:[%s333 + $0x44] sm:$0xf] %v11888
      %11953 = vst [vmem:[%s333 + $0x48] sm:$0xf] %v11889
      %11954 = vst [vmem:[%s333 + $0x4c] sm:$0xf] %v11890
      %11955 = vst [vmem:[%s333 + $0x50] sm:$0xf] %v11891
      %11956 = vst [vmem:[%s333 + $0x54] sm:$0xf] %v11892
      %11957 = vst [vmem:[%s333 + $0x58] sm:$0xf] %v11893
      %11958 = vst [vmem:[%s333 + $0x5c] sm:$0xf] %v11894
      %11959 = vst [vmem:[%s333 + $0x60] sm:$0xf] %v11895
      %11960 = vst [vmem:[%s333 + $0x64] sm:$0xf] %v11896
      %11961 = vst [vmem:[%s333 + $0x68] sm:$0xf] %v11897
      %11962 = vst [vmem:[%s333 + $0x6c] sm:$0xf] %v11898
      %11963 = vst [vmem:[%s333 + $0x70] sm:$0xf] %v11899
      %11964 = vst [vmem:[%s333 + $0x74] sm:$0xf] %v11900
      %11965 = vst [vmem:[%s333 + $0x78] sm:$0xf] %v11901
      %11966 = vst [vmem:[%s333 + $0x7c] sm:$0xf] %v11902
      %p11967 = scmp.lt.s32.totalorder %s21, 1
      %s11968 = scalar_select %p11967, %s21, 1
      %s11969 = smul.addr %s11968, 32
      %s11970 = smul.addr %s11969, 4
      %s11971 = scalar_lea.vmem %s9, %s11970
      // Predicated region
      $region57: #{conv_block_forward.1} parent=55 // pred_check
        %p11972 = pneg %p233
      $region58: #{conv_block_forward.1} parent=55 // pred_check_branch
        %11974 = sbr.rel (%p11972) target = $region60
      $region59: #{conv_block_forward.1} parent=55 // pred_region
        _
      $region60: #{conv_block_forward.1} parent=55 // pred_fallthru
        _
    $region56: #{conv_block_forward.1} parent=5 // pred_fallthru
      _
    %p11975 = scmp.le.s32.totalorder 2, %s16
    // Predicated region
    $region61: #{conv_block_forward.1} parent=5 // pred_check
      %p11976 = pneg %p11975
    $region62: #{conv_block_forward.1} parent=5 // pred_check_branch
      %11978 = sbr.rel (%p11976) target = $region64
    $region63: #{conv_block_forward.1} parent=5 // pred_region
      %s11979 = ssub.s32 %s16, 2
      // Predicated region
      $region65: #{conv_block_forward.1} parent=63 // pred_check
        %p11980 = pneg %p239
      $region66: #{conv_block_forward.1} parent=63 // pred_check_branch
        %11982 = sbr.rel (%p11980) target = $region68
      $region67: #{conv_block_forward.1} parent=63 // pred_region
        %p11983 = scmp.lt.s32.totalorder %s22, 1
        %s11984 = scalar_select %p11983, %s22, 1
        %s11985 = smul.addr %s11984, 32
        %s11986 = smul.addr %s11985, 4
        %s11987 = scalar_lea.vmem %s9, %s11986
      $region68: #{conv_block_forward.1} parent=63 // pred_fallthru
        _
    $region64: #{conv_block_forward.1} parent=5 // pred_fallthru
      _
  $region6: #{conv_block_forward.1} parent=0 // loop_footer
    %s20 = sadd.s32 1, %s16
  $region7: #{conv_block_forward.1} parent=0 // loop_footer_branch
    %15 = sbr.rel target = $region3
  $region8: #{conv_block_forward.1} parent=0 // loop_exit
    _

</llo_original>
